<compile_context>
chip_gen: v7x
topology: tpu7x:2x2x1
jax: 0.10.0
libtpu: 0.0.40
codegen_flags: <defaults>
</compile_context>

<pallas_src>
import functools

import jax
import jax.numpy as jnp
from jax.experimental import pallas as pl
from jax.experimental.pallas import tpu as pltpu


def junction_traffic_lstm_kernel(
    xf_ref,      # (T, Bt, F)   time-major encoder input block (batch tile)
    xlast_ref,   # (Bt, H)      last-timestep input, zero-padded to H lanes
    wih0_ref,    # (F, 4H)      layer-0 input->gates weights (un-padded)
    wf_ref,      # (L, 2H, 4H)  fused [W_ih (padded to H rows); W_hh] per layer
    b_ref,       # (L, 1, 4H)   b_ih + b_hh
    w1_ref, b1_ref,   # (H, H), (1, H)
    w2_ref, b2_ref,   # (H, H), (1, H)
    w3_ref, b3_ref,   # (1, H)  fc3 weight row, (1, 1)
    out_ref,     # (Bt, FS)
    *, future_steps,
):
    f32 = jnp.float32
    L = wf_ref.shape[0]
    H = w1_ref.shape[0]
    T, B, F = xf_ref.shape

    def gate_act(gates, c):
        # Gate columns are packed [i | f | o | g]: one contiguous 3H sigmoid
        # (EUP) + one H tanh instead of three disjoint quarter-vreg sigmoids.
        sig = jax.nn.sigmoid(gates[:, :3 * H])
        i = sig[:, 0 * H:1 * H]
        f = sig[:, 1 * H:2 * H]
        o = sig[:, 2 * H:3 * H]
        g = jnp.tanh(gates[:, 3 * H:])
        c_new = f * c + i * g
        h_new = o * jnp.tanh(c_new)
        return h_new, c_new

    # Hoist per-layer weight/bias views out of every loop (encoder + decoder).
    wf_l = [wf_ref[l] for l in range(L)]      # (2H, 4H) each
    b_l = [b_ref[l] for l in range(L)]        # (1, 4H) each
    whh0 = wf_l[0][H:, :]                     # (H, 4H)

    # ---------------- Encoder: lstm_out, (h, c) = lstm(x) --------------------
    # Layer-0 input->gates projection for ALL T timesteps in one matmul with
    # the bias folded in (row = t*B + b, time-major).
    x_flat = xf_ref[...].reshape(T * B, F)
    proj0 = jnp.dot(x_flat, wih0_ref[...], preferred_element_type=f32) + b_l[0]

    h = [jnp.zeros((B, H), f32) for _ in range(L)]
    c = [jnp.zeros((B, H), f32) for _ in range(L)]

    # Wavefront schedule over the (t, l) grid: every item of wavefront w only
    # depends on wavefront w-1, so the L active layer-steps per wavefront are
    # independent and pipeline through MXU / EUP.  Dependent chain: T + L - 1.
    for w in range(T + L - 1):
        new_hc = []
        for l in range(L):
            t = w - l
            if 0 <= t < T:
                if l == 0:
                    # dot first, then add the precomputed projection slice
                    # (folds into the MXU result pop on v7x's MRB).
                    gates = (jnp.dot(h[0], whh0, preferred_element_type=f32)
                             + proj0[t * B:(t + 1) * B, :])
                else:
                    zin = jnp.concatenate([h[l - 1], h[l]], axis=1)  # (B, 2H)
                    gates = (jnp.dot(zin, wf_l[l], preferred_element_type=f32)
                             + b_l[l])
                new_hc.append((l, gate_act(gates, c[l])))
        # Commit after all reads of this wavefront (reads see wavefront w-1).
        for l, (hn, cn) in new_hc:
            h[l], c[l] = hn, cn

    # ---------------- Decoder: autoregressive future_steps -------------------
    dec = xlast_ref[...]                      # (B, H), features in lanes [0, F)
    col_is0 = jax.lax.broadcasted_iota(jnp.int32, (B, H), 1) == 0
    fs_col = jax.lax.broadcasted_iota(jnp.int32, (B, future_steps), 1)
    out_acc = jnp.zeros((B, future_steps), f32)
    w1 = w1_ref[...]
    b1 = b1_ref[...]
    w2 = w2_ref[...]
    b2 = b2_ref[...]
    w3_row = w3_ref[...]                      # (1, H)
    b3 = b3_ref[...]                          # (1, 1)

    # TODO(synk): switch to lax.fori_loop(..., unroll=k) with (h, c, dec,
    # out_acc) as carries if future_steps grows far beyond a handful of steps.
    for s in range(future_steps):
        inp = dec
        for l in range(L):
            # Fused [W_ih; W_hh]: one (B, 2H) @ (2H, 4H) matmul per layer-step.
            # Layer 0 relies on wf[0] rows [F, H) being zero-padded and dec
            # carrying features in lanes [0, F) (guaranteed by pack_params).
            zin = jnp.concatenate([inp, h[l]], axis=1)            # (B, 2H)
            gates = jnp.dot(zin, wf_l[l], preferred_element_type=f32) + b_l[l]
            h[l], c[l] = gate_act(gates, c[l])
            inp = h[l]

        # nn.Dropout(0.2) is identity at inference time.
        feat = jnp.maximum(
            jnp.dot(inp, w1, preferred_element_type=f32) + b1, 0.0)
        feat = jnp.maximum(
            jnp.dot(feat, w2, preferred_element_type=f32) + b2, 0.0)
        # fc3 (H -> 1) as VPU multiply + lane reduction (no 1-lane MXU result).
        pred = jnp.sum(feat * w3_row, axis=1, keepdims=True) + b3   # (B, 1)

        out_acc = jnp.where(fs_col == s, pred, out_acc)
        # next_input[:, 0, 0] = prediction.squeeze()
        dec = jnp.where(col_is0, pred, dec)

    out_ref[...] = out_acc


@functools.partial(jax.jit, static_argnames=("future_steps", "b_tile"))
def junction_traffic_lstm(x, kernel_params, future_steps=1, b_tile=8):
    """x: (B, T, F) float32 -> (B, future_steps, 1) float32.

    b_tile: batch rows per grid program (multiple of 8).  The wall time is
    fixed by the serial recurrence, so batching many independent sequences
    (B ~ 128 on v5e / ~256 on v6e-v7x) rides the same chain nearly for free;
    the 1-D "parallel" grid over batch tiles additionally lets v7x use both
    TensorCores.  Entire wrapper is jitted so prep + kernel is one dispatch.
    """
    assert b_tile % 8 == 0
    B, T, F = x.shape
    H = kernel_params["w1"].shape[0]
    FS = future_steps

    B_pad = max(b_tile, ((B + b_tile - 1) // b_tile) * b_tile)
    nb = B_pad // b_tile

    x = x.astype(jnp.float32)
    x_p = jnp.zeros((B_pad, T, F), jnp.float32).at[:B].set(x)
    x_tm = jnp.transpose(x_p, (1, 0, 2))                  # (T, B_pad, F)
    x_last = jnp.zeros((B_pad, H), jnp.float32).at[:B, :F].set(x[:, -1, :])

    def full(a):   # whole-array block, same block every grid step (no re-DMA)
        return pl.BlockSpec(a.shape, lambda i, _nd=a.ndim: (0,) * _nd)

    kp = kernel_params
    out = pl.pallas_call(
        functools.partial(junction_traffic_lstm_kernel,
                          future_steps=future_steps),
        out_shape=jax.ShapeDtypeStruct((B_pad, FS), jnp.float32),
        grid=(nb,),
        in_specs=[
            pl.BlockSpec((T, b_tile, F), lambda i: (0, i, 0)),   # x (time-major)
            pl.BlockSpec((b_tile, H), lambda i: (i, 0)),         # x_last
            full(kp["wih0"]), full(kp["wf"]), full(kp["b"]),
            full(kp["w1"]), full(kp["b1"]),
            full(kp["w2"]), full(kp["b2"]),
            full(kp["w3row"]), full(kp["b3"]),
        ],
        out_specs=pl.BlockSpec((b_tile, FS), lambda i: (i, 0)),
        compiler_params=pltpu.CompilerParams(
            dimension_semantics=("parallel",)),
    )(x_tm, x_last, kp["wih0"], kp["wf"], kp["b"],
      kp["w1"], kp["b1"], kp["w2"], kp["b2"], kp["w3row"], kp["b3"])

    return out[:B, :, None]


def init_params(key, input_size=5, hidden_size=32, num_layers=5, output_size=1):
    """PyTorch-layout params (gate chunk order [i|f|g|o]), U(-1/sqrt(H), 1/sqrt(H))."""
    H, L, F = hidden_size, num_layers, input_size
    k = float(H) ** -0.5
    keys = jax.random.split(key, 4 * L + 6)
    w_ih, w_hh, b_ih, b_hh = [], [], [], []
    ki = 0
    for l in range(L):
        in_dim = F if l == 0 else H
        w_ih.append(jax.random.uniform(keys[ki], (in_dim, 4 * H), minval=-k, maxval=k)); ki += 1
        w_hh.append(jax.random.uniform(keys[ki], (H, 4 * H), minval=-k, maxval=k)); ki += 1
        b_ih.append(jax.random.uniform(keys[ki], (4 * H,), minval=-k, maxval=k)); ki += 1
        b_hh.append(jax.random.uniform(keys[ki], (4 * H,), minval=-k, maxval=k)); ki += 1
    w1 = jax.random.uniform(keys[ki], (H, H), minval=-k, maxval=k); ki += 1
    b1 = jax.random.uniform(keys[ki], (H,), minval=-k, maxval=k); ki += 1
    w2 = jax.random.uniform(keys[ki], (H, H), minval=-k, maxval=k); ki += 1
    b2 = jax.random.uniform(keys[ki], (H,), minval=-k, maxval=k); ki += 1
    w3 = jax.random.uniform(keys[ki], (H, output_size), minval=-k, maxval=k); ki += 1
    b3 = jax.random.uniform(keys[ki], (output_size,), minval=-k, maxval=k); ki += 1
    return dict(w_ih=w_ih, w_hh=w_hh, b_ih=b_ih, b_hh=b_hh,
                w1=w1, b1=b1, w2=w2, b2=b2, w3=w3, b3=b3)


def pack_params(tp):
    """PyTorch layout -> kernel layout.

    * Gate columns permuted [i|f|g|o] -> [i|f|o|g] (contiguous 3H sigmoid).
    * Per layer, [W_ih (zero-padded to H rows); W_hh] fused into (2H, 4H);
      biases fused.  Real PyTorch checkpoints MUST go through this function so
      the layer-0 W_ih rows [F, H) are explicitly zero-padded.
    """
    H = tp["w1"].shape[0]
    L = len(tp["w_ih"])
    F = tp["w_ih"][0].shape[0]
    assert F <= H, "decoder feedback layout requires input_size <= hidden_size"
    assert tp["w3"].shape[1] == 1, "fc3 reduction path assumes output_size == 1"

    def reorder(w):   # (..., 4H) columns [i|f|g|o] -> [i|f|o|g]
        return jnp.concatenate(
            [w[..., :2 * H], w[..., 3 * H:], w[..., 2 * H:3 * H]], axis=-1)

    wih0 = reorder(tp["w_ih"][0]).astype(jnp.float32)        # (F, 4H)
    wf = jnp.zeros((L, 2 * H, 4 * H), jnp.float32)
    b = jnp.zeros((L, 1, 4 * H), jnp.float32)
    for l in range(L):
        wih_l = reorder(tp["w_ih"][l]).astype(jnp.float32)
        whh_l = reorder(tp["w_hh"][l]).astype(jnp.float32)
        wf = wf.at[l, :wih_l.shape[0], :].set(wih_l)
        wf = wf.at[l, H:, :].set(whh_l)
        b = b.at[l, 0, :].set(reorder(tp["b_ih"][l] + tp["b_hh"][l]))

    return dict(wih0=wih0, wf=wf, b=b,
                w1=tp["w1"].astype(jnp.float32),
                b1=tp["b1"].reshape(1, H).astype(jnp.float32),
                w2=tp["w2"].astype(jnp.float32),
                b2=tp["b2"].reshape(1, H).astype(jnp.float32),
                w3row=jnp.transpose(tp["w3"]).astype(jnp.float32),
                b3=tp["b3"].reshape(1, 1).astype(jnp.float32))


def reference_forward(x, tp, future_steps=1):
    """Pure-JAX reference matching the PyTorch forward (eval mode)."""
    B, T, F = x.shape
    H = tp["w1"].shape[0]
    L = len(tp["w_ih"])

    h = [jnp.zeros((B, H), jnp.float32) for _ in range(L)]
    c = [jnp.zeros((B, H), jnp.float32) for _ in range(L)]

    def step(xin, h, c):
        h, c = list(h), list(c)
        inp = xin
        for l in range(L):
            gates = (inp @ tp["w_ih"][l] + h[l] @ tp["w_hh"][l]
                     + tp["b_ih"][l] + tp["b_hh"][l])
            i = jax.nn.sigmoid(gates[:, :H])
            f = jax.nn.sigmoid(gates[:, H:2 * H])
            g = jnp.tanh(gates[:, 2 * H:3 * H])
            o = jax.nn.sigmoid(gates[:, 3 * H:])
            c[l] = f * c[l] + i * g
            h[l] = o * jnp.tanh(c[l])
            inp = h[l]
        return inp, h, c

    for t in range(T):
        _, h, c = step(x[:, t, :], h, c)

    dec = x[:, -1, :]
    outs = []
    for _ in range(future_steps):
        top, h, c = step(dec, h, c)
        feat = jnp.maximum(top @ tp["w1"] + tp["b1"], 0.0)
        feat = jnp.maximum(feat @ tp["w2"] + tp["b2"], 0.0)
        pred = feat @ tp["w3"] + tp["b3"]
        outs.append(pred)
        dec = dec.at[:, 0].set(pred[:, 0])
    return jnp.stack(outs, axis=1)


if __name__ == "__main__":
    key = jax.random.PRNGKey(0)
    pkey, xkey, xkey2 = jax.random.split(key, 3)
    B, T, F = 2, 8, 5
    H, L, OUT = 32, 5, 1
    FS = 3

    torch_params = init_params(pkey, input_size=F, hidden_size=H,
                               num_layers=L, output_size=OUT)
    kparams = pack_params(torch_params)
    x = jax.random.normal(xkey, (B, T, F), jnp.float32)

    out = junction_traffic_lstm(x, kparams, future_steps=FS)
    out = jax.block_until_ready(out)
    assert out.shape == (B, FS, OUT)
    ref = reference_forward(x, torch_params, future_steps=FS)
    assert jnp.allclose(out, ref, atol=2e-2, rtol=2e-2), float(
        jnp.max(jnp.abs(out - ref)))

    # Exercise the batch-tiled parallel grid path (nb > 1; v7x uses both TCs).
    B2 = 20
    x2 = jax.random.normal(xkey2, (B2, T, F), jnp.float32)
    out2 = jax.block_until_ready(
        junction_traffic_lstm(x2, kparams, future_steps=FS))
    assert out2.shape == (B2, FS, OUT)
    ref2 = reference_forward(x2, torch_params, future_steps=FS)
    assert jnp.allclose(out2, ref2, atol=2e-2, rtol=2e-2), float(
        jnp.max(jnp.abs(out2 - ref2)))

    print("KERNEL_OK")
</pallas_src>

<mosaic_0001>
module attributes {stable_mosaic.version = 11 : i64} {
  func.func @junction_traffic_lstm_kernel(%arg0: i32, %arg1: memref<8x8x5xf32, #tpu.memory_space<vmem>>, %arg2: memref<8x32xf32, #tpu.memory_space<vmem>>, %arg3: memref<5x128xf32, #tpu.memory_space<vmem>>, %arg4: memref<5x64x128xf32, #tpu.memory_space<vmem>>, %arg5: memref<5x1x128xf32, #tpu.memory_space<vmem>>, %arg6: memref<32x32xf32, #tpu.memory_space<vmem>>, %arg7: memref<1x32xf32, #tpu.memory_space<vmem>>, %arg8: memref<32x32xf32, #tpu.memory_space<vmem>>, %arg9: memref<1x32xf32, #tpu.memory_space<vmem>>, %arg10: memref<1x32xf32, #tpu.memory_space<vmem>>, %arg11: memref<1x1xf32, #tpu.memory_space<vmem>>, %arg12: memref<8x3xf32, #tpu.memory_space<vmem>>) attributes {dimension_semantics = [#tpu.dimension_semantics<parallel>], iteration_bounds = array<i64: 1>, scalar_prefetch = 0 : i64, scratch_operands = 0 : i64, tpu.core_type = #tpu.core_type<tc>, window_params = [{transform_indices = @transform_0, window_bounds = array<i64: 8, 8, 5>}, {transform_indices = @transform_1, window_bounds = array<i64: 8, 32>}, {pipeline_mode = #tpu.pipeline_mode<synchronous>, transform_indices = @transform_2, window_bounds = array<i64: 5, 128>}, {pipeline_mode = #tpu.pipeline_mode<synchronous>, transform_indices = @transform_3, window_bounds = array<i64: 5, 64, 128>}, {pipeline_mode = #tpu.pipeline_mode<synchronous>, transform_indices = @transform_4, window_bounds = array<i64: 5, 1, 128>}, {pipeline_mode = #tpu.pipeline_mode<synchronous>, transform_indices = @transform_5, window_bounds = array<i64: 32, 32>}, {pipeline_mode = #tpu.pipeline_mode<synchronous>, transform_indices = @transform_6, window_bounds = array<i64: 1, 32>}, {pipeline_mode = #tpu.pipeline_mode<synchronous>, transform_indices = @transform_7, window_bounds = array<i64: 32, 32>}, {pipeline_mode = #tpu.pipeline_mode<synchronous>, transform_indices = @transform_8, window_bounds = array<i64: 1, 32>}, {pipeline_mode = #tpu.pipeline_mode<synchronous>, transform_indices = @transform_9, window_bounds = array<i64: 1, 32>}, {pipeline_mode = #tpu.pipeline_mode<synchronous>, transform_indices = @transform_10, window_bounds = array<i64: 1, 1>}, {transform_indices = @transform_11, window_bounds = array<i64: 8, 3>}]} {
    %c0 = arith.constant 0 : index
    %c0_0 = arith.constant 0 : index
    %c0_1 = arith.constant 0 : index
    %0 = vector.load %arg4[%c0, %c0_0, %c0_1] : memref<5x64x128xf32, #tpu.memory_space<vmem>>, vector<1x64x128xf32>
    %1 = vector.shape_cast %0 : vector<1x64x128xf32> to vector<64x128xf32>
    %c1 = arith.constant 1 : index
    %c0_2 = arith.constant 0 : index
    %c0_3 = arith.constant 0 : index
    %2 = vector.load %arg4[%c1, %c0_2, %c0_3] : memref<5x64x128xf32, #tpu.memory_space<vmem>>, vector<1x64x128xf32>
    %3 = vector.shape_cast %2 : vector<1x64x128xf32> to vector<64x128xf32>
    %c2 = arith.constant 2 : index
    %c0_4 = arith.constant 0 : index
    %c0_5 = arith.constant 0 : index
    %4 = vector.load %arg4[%c2, %c0_4, %c0_5] : memref<5x64x128xf32, #tpu.memory_space<vmem>>, vector<1x64x128xf32>
    %5 = vector.shape_cast %4 : vector<1x64x128xf32> to vector<64x128xf32>
    %c3 = arith.constant 3 : index
    %c0_6 = arith.constant 0 : index
    %c0_7 = arith.constant 0 : index
    %6 = vector.load %arg4[%c3, %c0_6, %c0_7] : memref<5x64x128xf32, #tpu.memory_space<vmem>>, vector<1x64x128xf32>
    %7 = vector.shape_cast %6 : vector<1x64x128xf32> to vector<64x128xf32>
    %c4 = arith.constant 4 : index
    %c0_8 = arith.constant 0 : index
    %c0_9 = arith.constant 0 : index
    %8 = vector.load %arg4[%c4, %c0_8, %c0_9] : memref<5x64x128xf32, #tpu.memory_space<vmem>>, vector<1x64x128xf32>
    %9 = vector.shape_cast %8 : vector<1x64x128xf32> to vector<64x128xf32>
    %c0_10 = arith.constant 0 : index
    %c0_11 = arith.constant 0 : index
    %c0_12 = arith.constant 0 : index
    %10 = vector.load %arg5[%c0_10, %c0_11, %c0_12] : memref<5x1x128xf32, #tpu.memory_space<vmem>>, vector<1x1x128xf32>
    %11 = vector.shape_cast %10 : vector<1x1x128xf32> to vector<1x128xf32>
    %c1_13 = arith.constant 1 : index
    %c0_14 = arith.constant 0 : index
    %c0_15 = arith.constant 0 : index
    %12 = vector.load %arg5[%c1_13, %c0_14, %c0_15] : memref<5x1x128xf32, #tpu.memory_space<vmem>>, vector<1x1x128xf32>
    %13 = vector.shape_cast %12 : vector<1x1x128xf32> to vector<1x128xf32>
    %c2_16 = arith.constant 2 : index
    %c0_17 = arith.constant 0 : index
    %c0_18 = arith.constant 0 : index
    %14 = vector.load %arg5[%c2_16, %c0_17, %c0_18] : memref<5x1x128xf32, #tpu.memory_space<vmem>>, vector<1x1x128xf32>
    %15 = vector.shape_cast %14 : vector<1x1x128xf32> to vector<1x128xf32>
    %c3_19 = arith.constant 3 : index
    %c0_20 = arith.constant 0 : index
    %c0_21 = arith.constant 0 : index
    %16 = vector.load %arg5[%c3_19, %c0_20, %c0_21] : memref<5x1x128xf32, #tpu.memory_space<vmem>>, vector<1x1x128xf32>
    %17 = vector.shape_cast %16 : vector<1x1x128xf32> to vector<1x128xf32>
    %c4_22 = arith.constant 4 : index
    %c0_23 = arith.constant 0 : index
    %c0_24 = arith.constant 0 : index
    %18 = vector.load %arg5[%c4_22, %c0_23, %c0_24] : memref<5x1x128xf32, #tpu.memory_space<vmem>>, vector<1x1x128xf32>
    %19 = vector.shape_cast %18 : vector<1x1x128xf32> to vector<1x128xf32>
    %20 = vector.extract_strided_slice %1 {offsets = [32, 0], sizes = [32, 128], strides = [1, 1]} : vector<64x128xf32> to vector<32x128xf32>
    %c0_25 = arith.constant 0 : index
    %c0_26 = arith.constant 0 : index
    %c0_27 = arith.constant 0 : index
    %21 = vector.load %arg1[%c0_25, %c0_26, %c0_27] : memref<8x8x5xf32, #tpu.memory_space<vmem>>, vector<8x8x5xf32>
    %22 = vector.shape_cast %21 : vector<8x8x5xf32> to vector<64x5xf32>
    %c0_28 = arith.constant 0 : index
    %c0_29 = arith.constant 0 : index
    %23 = vector.load %arg3[%c0_28, %c0_29] : memref<5x128xf32, #tpu.memory_space<vmem>>, vector<5x128xf32>
    %cst = arith.constant dense<0.000000e+00> : vector<64x128xf32>
    %24 = tpu.matmul %22, %23, %cst {dimension_numbers = #tpu.dot_dimension_numbers<[1], [0], [0], [1], [0, 0, 1, 1], [], []>} : vector<64x5xf32>, vector<5x128xf32>, vector<64x128xf32> -> vector<64x128xf32>
    %25 = vector.broadcast %11 : vector<1x128xf32> to vector<64x128xf32>
    %26 = arith.addf %24, %25 : vector<64x128xf32>
    %cst_30 = arith.constant 0.000000e+00 : f32
    %27 = vector.broadcast %cst_30 : f32 to vector<8x32xf32>
    %cst_31 = arith.constant 0.000000e+00 : f32
    %28 = vector.broadcast %cst_31 : f32 to vector<8x32xf32>
    %cst_32 = arith.constant 0.000000e+00 : f32
    %29 = vector.broadcast %cst_32 : f32 to vector<8x32xf32>
    %cst_33 = arith.constant 0.000000e+00 : f32
    %30 = vector.broadcast %cst_33 : f32 to vector<8x32xf32>
    %cst_34 = arith.constant 0.000000e+00 : f32
    %31 = vector.broadcast %cst_34 : f32 to vector<8x32xf32>
    %cst_35 = arith.constant 0.000000e+00 : f32
    %32 = vector.broadcast %cst_35 : f32 to vector<8x32xf32>
    %cst_36 = arith.constant 0.000000e+00 : f32
    %33 = vector.broadcast %cst_36 : f32 to vector<8x32xf32>
    %cst_37 = arith.constant 0.000000e+00 : f32
    %34 = vector.broadcast %cst_37 : f32 to vector<8x32xf32>
    %cst_38 = arith.constant 0.000000e+00 : f32
    %35 = vector.broadcast %cst_38 : f32 to vector<8x32xf32>
    %cst_39 = arith.constant 0.000000e+00 : f32
    %36 = vector.broadcast %cst_39 : f32 to vector<8x32xf32>
    %cst_40 = arith.constant dense<0.000000e+00> : vector<8x128xf32>
    %37 = tpu.matmul %27, %20, %cst_40 {dimension_numbers = #tpu.dot_dimension_numbers<[1], [0], [0], [1], [0, 0, 1, 1], [], []>} : vector<8x32xf32>, vector<32x128xf32>, vector<8x128xf32> -> vector<8x128xf32>
    %38 = vector.extract_strided_slice %26 {offsets = [0, 0], sizes = [8, 128], strides = [1, 1]} : vector<64x128xf32> to vector<8x128xf32>
    %39 = arith.addf %37, %38 : vector<8x128xf32>
    %40 = vector.extract_strided_slice %39 {offsets = [0, 0], sizes = [8, 96], strides = [1, 1]} : vector<8x128xf32> to vector<8x96xf32>
    %41 = arith.negf %40 : vector<8x96xf32>
    %42 = math.exp %41 : vector<8x96xf32>
    %cst_41 = arith.constant 1.000000e+00 : f32
    %43 = vector.broadcast %cst_41 : f32 to vector<8x96xf32>
    %44 = arith.addf %43, %42 : vector<8x96xf32>
    %45 = arith.divf %43, %44 : vector<8x96xf32>
    %46 = vector.extract_strided_slice %45 {offsets = [0, 0], sizes = [8, 32], strides = [1, 1]} : vector<8x96xf32> to vector<8x32xf32>
    %47 = vector.extract_strided_slice %45 {offsets = [0, 32], sizes = [8, 32], strides = [1, 1]} : vector<8x96xf32> to vector<8x32xf32>
    %48 = vector.extract_strided_slice %45 {offsets = [0, 64], sizes = [8, 32], strides = [1, 1]} : vector<8x96xf32> to vector<8x32xf32>
    %49 = vector.extract_strided_slice %39 {offsets = [0, 96], sizes = [8, 32], strides = [1, 1]} : vector<8x128xf32> to vector<8x32xf32>
    %50 = math.tanh %49 : vector<8x32xf32>
    %51 = arith.mulf %47, %32 : vector<8x32xf32>
    %52 = arith.mulf %46, %50 : vector<8x32xf32>
    %53 = arith.addf %51, %52 : vector<8x32xf32>
    %54 = math.tanh %53 : vector<8x32xf32>
    %55 = arith.mulf %48, %54 : vector<8x32xf32>
    %cst_42 = arith.constant dense<0.000000e+00> : vector<8x128xf32>
    %56 = tpu.matmul %55, %20, %cst_42 {dimension_numbers = #tpu.dot_dimension_numbers<[1], [0], [0], [1], [0, 0, 1, 1], [], []>} : vector<8x32xf32>, vector<32x128xf32>, vector<8x128xf32> -> vector<8x128xf32>
    %57 = vector.extract_strided_slice %26 {offsets = [8, 0], sizes = [8, 128], strides = [1, 1]} : vector<64x128xf32> to vector<8x128xf32>
    %58 = arith.addf %56, %57 : vector<8x128xf32>
    %59 = vector.extract_strided_slice %58 {offsets = [0, 0], sizes = [8, 96], strides = [1, 1]} : vector<8x128xf32> to vector<8x96xf32>
    %60 = arith.negf %59 : vector<8x96xf32>
    %61 = math.exp %60 : vector<8x96xf32>
    %cst_43 = arith.constant 1.000000e+00 : f32
    %62 = vector.broadcast %cst_43 : f32 to vector<8x96xf32>
    %63 = arith.addf %62, %61 : vector<8x96xf32>
    %64 = arith.divf %62, %63 : vector<8x96xf32>
    %65 = vector.extract_strided_slice %64 {offsets = [0, 0], sizes = [8, 32], strides = [1, 1]} : vector<8x96xf32> to vector<8x32xf32>
    %66 = vector.extract_strided_slice %64 {offsets = [0, 32], sizes = [8, 32], strides = [1, 1]} : vector<8x96xf32> to vector<8x32xf32>
    %67 = vector.extract_strided_slice %64 {offsets = [0, 64], sizes = [8, 32], strides = [1, 1]} : vector<8x96xf32> to vector<8x32xf32>
    %68 = vector.extract_strided_slice %58 {offsets = [0, 96], sizes = [8, 32], strides = [1, 1]} : vector<8x128xf32> to vector<8x32xf32>
    %69 = math.tanh %68 : vector<8x32xf32>
    %70 = arith.mulf %66, %53 : vector<8x32xf32>
    %71 = arith.mulf %65, %69 : vector<8x32xf32>
    %72 = arith.addf %70, %71 : vector<8x32xf32>
    %73 = math.tanh %72 : vector<8x32xf32>
    %74 = arith.mulf %67, %73 : vector<8x32xf32>
    %75 = tpu.concatenate %55, %28 in 1 : vector<8x32xf32>, vector<8x32xf32> -> vector<8x64xf32>
    %cst_44 = arith.constant dense<0.000000e+00> : vector<8x128xf32>
    %76 = tpu.matmul %75, %3, %cst_44 {dimension_numbers = #tpu.dot_dimension_numbers<[1], [0], [0], [1], [0, 0, 1, 1], [], []>} : vector<8x64xf32>, vector<64x128xf32>, vector<8x128xf32> -> vector<8x128xf32>
    %77 = vector.broadcast %13 : vector<1x128xf32> to vector<8x128xf32>
    %78 = arith.addf %76, %77 : vector<8x128xf32>
    %79 = vector.extract_strided_slice %78 {offsets = [0, 0], sizes = [8, 96], strides = [1, 1]} : vector<8x128xf32> to vector<8x96xf32>
    %80 = arith.negf %79 : vector<8x96xf32>
    %81 = math.exp %80 : vector<8x96xf32>
    %cst_45 = arith.constant 1.000000e+00 : f32
    %82 = vector.broadcast %cst_45 : f32 to vector<8x96xf32>
    %83 = arith.addf %82, %81 : vector<8x96xf32>
    %84 = arith.divf %82, %83 : vector<8x96xf32>
    %85 = vector.extract_strided_slice %84 {offsets = [0, 0], sizes = [8, 32], strides = [1, 1]} : vector<8x96xf32> to vector<8x32xf32>
    %86 = vector.extract_strided_slice %84 {offsets = [0, 32], sizes = [8, 32], strides = [1, 1]} : vector<8x96xf32> to vector<8x32xf32>
    %87 = vector.extract_strided_slice %84 {offsets = [0, 64], sizes = [8, 32], strides = [1, 1]} : vector<8x96xf32> to vector<8x32xf32>
    %88 = vector.extract_strided_slice %78 {offsets = [0, 96], sizes = [8, 32], strides = [1, 1]} : vector<8x128xf32> to vector<8x32xf32>
    %89 = math.tanh %88 : vector<8x32xf32>
    %90 = arith.mulf %86, %33 : vector<8x32xf32>
    %91 = arith.mulf %85, %89 : vector<8x32xf32>
    %92 = arith.addf %90, %91 : vector<8x32xf32>
    %93 = math.tanh %92 : vector<8x32xf32>
    %94 = arith.mulf %87, %93 : vector<8x32xf32>
    %cst_46 = arith.constant dense<0.000000e+00> : vector<8x128xf32>
    %95 = tpu.matmul %74, %20, %cst_46 {dimension_numbers = #tpu.dot_dimension_numbers<[1], [0], [0], [1], [0, 0, 1, 1], [], []>} : vector<8x32xf32>, vector<32x128xf32>, vector<8x128xf32> -> vector<8x128xf32>
    %96 = vector.extract_strided_slice %26 {offsets = [16, 0], sizes = [8, 128], strides = [1, 1]} : vector<64x128xf32> to vector<8x128xf32>
    %97 = arith.addf %95, %96 : vector<8x128xf32>
    %98 = vector.extract_strided_slice %97 {offsets = [0, 0], sizes = [8, 96], strides = [1, 1]} : vector<8x128xf32> to vector<8x96xf32>
    %99 = arith.negf %98 : vector<8x96xf32>
    %100 = math.exp %99 : vector<8x96xf32>
    %cst_47 = arith.constant 1.000000e+00 : f32
    %101 = vector.broadcast %cst_47 : f32 to vector<8x96xf32>
    %102 = arith.addf %101, %100 : vector<8x96xf32>
    %103 = arith.divf %101, %102 : vector<8x96xf32>
    %104 = vector.extract_strided_slice %103 {offsets = [0, 0], sizes = [8, 32], strides = [1, 1]} : vector<8x96xf32> to vector<8x32xf32>
    %105 = vector.extract_strided_slice %103 {offsets = [0, 32], sizes = [8, 32], strides = [1, 1]} : vector<8x96xf32> to vector<8x32xf32>
    %106 = vector.extract_strided_slice %103 {offsets = [0, 64], sizes = [8, 32], strides = [1, 1]} : vector<8x96xf32> to vector<8x32xf32>
    %107 = vector.extract_strided_slice %97 {offsets = [0, 96], sizes = [8, 32], strides = [1, 1]} : vector<8x128xf32> to vector<8x32xf32>
    %108 = math.tanh %107 : vector<8x32xf32>
    %109 = arith.mulf %105, %72 : vector<8x32xf32>
    %110 = arith.mulf %104, %108 : vector<8x32xf32>
    %111 = arith.addf %109, %110 : vector<8x32xf32>
    %112 = math.tanh %111 : vector<8x32xf32>
    %113 = arith.mulf %106, %112 : vector<8x32xf32>
    %114 = tpu.concatenate %74, %94 in 1 : vector<8x32xf32>, vector<8x32xf32> -> vector<8x64xf32>
    %cst_48 = arith.constant dense<0.000000e+00> : vector<8x128xf32>
    %115 = tpu.matmul %114, %3, %cst_48 {dimension_numbers = #tpu.dot_dimension_numbers<[1], [0], [0], [1], [0, 0, 1, 1], [], []>} : vector<8x64xf32>, vector<64x128xf32>, vector<8x128xf32> -> vector<8x128xf32>
    %116 = vector.broadcast %13 : vector<1x128xf32> to vector<8x128xf32>
    %117 = arith.addf %115, %116 : vector<8x128xf32>
    %118 = vector.extract_strided_slice %117 {offsets = [0, 0], sizes = [8, 96], strides = [1, 1]} : vector<8x128xf32> to vector<8x96xf32>
    %119 = arith.negf %118 : vector<8x96xf32>
    %120 = math.exp %119 : vector<8x96xf32>
    %cst_49 = arith.constant 1.000000e+00 : f32
    %121 = vector.broadcast %cst_49 : f32 to vector<8x96xf32>
    %122 = arith.addf %121, %120 : vector<8x96xf32>
    %123 = arith.divf %121, %122 : vector<8x96xf32>
    %124 = vector.extract_strided_slice %123 {offsets = [0, 0], sizes = [8, 32], strides = [1, 1]} : vector<8x96xf32> to vector<8x32xf32>
    %125 = vector.extract_strided_slice %123 {offsets = [0, 32], sizes = [8, 32], strides = [1, 1]} : vector<8x96xf32> to vector<8x32xf32>
    %126 = vector.extract_strided_slice %123 {offsets = [0, 64], sizes = [8, 32], strides = [1, 1]} : vector<8x96xf32> to vector<8x32xf32>
    %127 = vector.extract_strided_slice %117 {offsets = [0, 96], sizes = [8, 32], strides = [1, 1]} : vector<8x128xf32> to vector<8x32xf32>
    %128 = math.tanh %127 : vector<8x32xf32>
    %129 = arith.mulf %125, %92 : vector<8x32xf32>
    %130 = arith.mulf %124, %128 : vector<8x32xf32>
    %131 = arith.addf %129, %130 : vector<8x32xf32>
    %132 = math.tanh %131 : vector<8x32xf32>
    %133 = arith.mulf %126, %132 : vector<8x32xf32>
    %134 = tpu.concatenate %94, %29 in 1 : vector<8x32xf32>, vector<8x32xf32> -> vector<8x64xf32>
    %cst_50 = arith.constant dense<0.000000e+00> : vector<8x128xf32>
    %135 = tpu.matmul %134, %5, %cst_50 {dimension_numbers = #tpu.dot_dimension_numbers<[1], [0], [0], [1], [0, 0, 1, 1], [], []>} : vector<8x64xf32>, vector<64x128xf32>, vector<8x128xf32> -> vector<8x128xf32>
    %136 = vector.broadcast %15 : vector<1x128xf32> to vector<8x128xf32>
    %137 = arith.addf %135, %136 : vector<8x128xf32>
    %138 = vector.extract_strided_slice %137 {offsets = [0, 0], sizes = [8, 96], strides = [1, 1]} : vector<8x128xf32> to vector<8x96xf32>
    %139 = arith.negf %138 : vector<8x96xf32>
    %140 = math.exp %139 : vector<8x96xf32>
    %cst_51 = arith.constant 1.000000e+00 : f32
    %141 = vector.broadcast %cst_51 : f32 to vector<8x96xf32>
    %142 = arith.addf %141, %140 : vector<8x96xf32>
    %143 = arith.divf %141, %142 : vector<8x96xf32>
    %144 = vector.extract_strided_slice %143 {offsets = [0, 0], sizes = [8, 32], strides = [1, 1]} : vector<8x96xf32> to vector<8x32xf32>
    %145 = vector.extract_strided_slice %143 {offsets = [0, 32], sizes = [8, 32], strides = [1, 1]} : vector<8x96xf32> to vector<8x32xf32>
    %146 = vector.extract_strided_slice %143 {offsets = [0, 64], sizes = [8, 32], strides = [1, 1]} : vector<8x96xf32> to vector<8x32xf32>
    %147 = vector.extract_strided_slice %137 {offsets = [0, 96], sizes = [8, 32], strides = [1, 1]} : vector<8x128xf32> to vector<8x32xf32>
    %148 = math.tanh %147 : vector<8x32xf32>
    %149 = arith.mulf %145, %34 : vector<8x32xf32>
    %150 = arith.mulf %144, %148 : vector<8x32xf32>
    %151 = arith.addf %149, %150 : vector<8x32xf32>
    %152 = math.tanh %151 : vector<8x32xf32>
    %153 = arith.mulf %146, %152 : vector<8x32xf32>
    %cst_52 = arith.constant dense<0.000000e+00> : vector<8x128xf32>
    %154 = tpu.matmul %113, %20, %cst_52 {dimension_numbers = #tpu.dot_dimension_numbers<[1], [0], [0], [1], [0, 0, 1, 1], [], []>} : vector<8x32xf32>, vector<32x128xf32>, vector<8x128xf32> -> vector<8x128xf32>
    %155 = vector.extract_strided_slice %26 {offsets = [24, 0], sizes = [8, 128], strides = [1, 1]} : vector<64x128xf32> to vector<8x128xf32>
    %156 = arith.addf %154, %155 : vector<8x128xf32>
    %157 = vector.extract_strided_slice %156 {offsets = [0, 0], sizes = [8, 96], strides = [1, 1]} : vector<8x128xf32> to vector<8x96xf32>
    %158 = arith.negf %157 : vector<8x96xf32>
    %159 = math.exp %158 : vector<8x96xf32>
    %cst_53 = arith.constant 1.000000e+00 : f32
    %160 = vector.broadcast %cst_53 : f32 to vector<8x96xf32>
    %161 = arith.addf %160, %159 : vector<8x96xf32>
    %162 = arith.divf %160, %161 : vector<8x96xf32>
    %163 = vector.extract_strided_slice %162 {offsets = [0, 0], sizes = [8, 32], strides = [1, 1]} : vector<8x96xf32> to vector<8x32xf32>
    %164 = vector.extract_strided_slice %162 {offsets = [0, 32], sizes = [8, 32], strides = [1, 1]} : vector<8x96xf32> to vector<8x32xf32>
    %165 = vector.extract_strided_slice %162 {offsets = [0, 64], sizes = [8, 32], strides = [1, 1]} : vector<8x96xf32> to vector<8x32xf32>
    %166 = vector.extract_strided_slice %156 {offsets = [0, 96], sizes = [8, 32], strides = [1, 1]} : vector<8x128xf32> to vector<8x32xf32>
    %167 = math.tanh %166 : vector<8x32xf32>
    %168 = arith.mulf %164, %111 : vector<8x32xf32>
    %169 = arith.mulf %163, %167 : vector<8x32xf32>
    %170 = arith.addf %168, %169 : vector<8x32xf32>
    %171 = math.tanh %170 : vector<8x32xf32>
    %172 = arith.mulf %165, %171 : vector<8x32xf32>
    %173 = tpu.concatenate %113, %133 in 1 : vector<8x32xf32>, vector<8x32xf32> -> vector<8x64xf32>
    %cst_54 = arith.constant dense<0.000000e+00> : vector<8x128xf32>
    %174 = tpu.matmul %173, %3, %cst_54 {dimension_numbers = #tpu.dot_dimension_numbers<[1], [0], [0], [1], [0, 0, 1, 1], [], []>} : vector<8x64xf32>, vector<64x128xf32>, vector<8x128xf32> -> vector<8x128xf32>
    %175 = vector.broadcast %13 : vector<1x128xf32> to vector<8x128xf32>
    %176 = arith.addf %174, %175 : vector<8x128xf32>
    %177 = vector.extract_strided_slice %176 {offsets = [0, 0], sizes = [8, 96], strides = [1, 1]} : vector<8x128xf32> to vector<8x96xf32>
    %178 = arith.negf %177 : vector<8x96xf32>
    %179 = math.exp %178 : vector<8x96xf32>
    %cst_55 = arith.constant 1.000000e+00 : f32
    %180 = vector.broadcast %cst_55 : f32 to vector<8x96xf32>
    %181 = arith.addf %180, %179 : vector<8x96xf32>
    %182 = arith.divf %180, %181 : vector<8x96xf32>
    %183 = vector.extract_strided_slice %182 {offsets = [0, 0], sizes = [8, 32], strides = [1, 1]} : vector<8x96xf32> to vector<8x32xf32>
    %184 = vector.extract_strided_slice %182 {offsets = [0, 32], sizes = [8, 32], strides = [1, 1]} : vector<8x96xf32> to vector<8x32xf32>
    %185 = vector.extract_strided_slice %182 {offsets = [0, 64], sizes = [8, 32], strides = [1, 1]} : vector<8x96xf32> to vector<8x32xf32>
    %186 = vector.extract_strided_slice %176 {offsets = [0, 96], sizes = [8, 32], strides = [1, 1]} : vector<8x128xf32> to vector<8x32xf32>
    %187 = math.tanh %186 : vector<8x32xf32>
    %188 = arith.mulf %184, %131 : vector<8x32xf32>
    %189 = arith.mulf %183, %187 : vector<8x32xf32>
    %190 = arith.addf %188, %189 : vector<8x32xf32>
    %191 = math.tanh %190 : vector<8x32xf32>
    %192 = arith.mulf %185, %191 : vector<8x32xf32>
    %193 = tpu.concatenate %133, %153 in 1 : vector<8x32xf32>, vector<8x32xf32> -> vector<8x64xf32>
    %cst_56 = arith.constant dense<0.000000e+00> : vector<8x128xf32>
    %194 = tpu.matmul %193, %5, %cst_56 {dimension_numbers = #tpu.dot_dimension_numbers<[1], [0], [0], [1], [0, 0, 1, 1], [], []>} : vector<8x64xf32>, vector<64x128xf32>, vector<8x128xf32> -> vector<8x128xf32>
    %195 = vector.broadcast %15 : vector<1x128xf32> to vector<8x128xf32>
    %196 = arith.addf %194, %195 : vector<8x128xf32>
    %197 = vector.extract_strided_slice %196 {offsets = [0, 0], sizes = [8, 96], strides = [1, 1]} : vector<8x128xf32> to vector<8x96xf32>
    %198 = arith.negf %197 : vector<8x96xf32>
    %199 = math.exp %198 : vector<8x96xf32>
    %cst_57 = arith.constant 1.000000e+00 : f32
    %200 = vector.broadcast %cst_57 : f32 to vector<8x96xf32>
    %201 = arith.addf %200, %199 : vector<8x96xf32>
    %202 = arith.divf %200, %201 : vector<8x96xf32>
    %203 = vector.extract_strided_slice %202 {offsets = [0, 0], sizes = [8, 32], strides = [1, 1]} : vector<8x96xf32> to vector<8x32xf32>
    %204 = vector.extract_strided_slice %202 {offsets = [0, 32], sizes = [8, 32], strides = [1, 1]} : vector<8x96xf32> to vector<8x32xf32>
    %205 = vector.extract_strided_slice %202 {offsets = [0, 64], sizes = [8, 32], strides = [1, 1]} : vector<8x96xf32> to vector<8x32xf32>
    %206 = vector.extract_strided_slice %196 {offsets = [0, 96], sizes = [8, 32], strides = [1, 1]} : vector<8x128xf32> to vector<8x32xf32>
    %207 = math.tanh %206 : vector<8x32xf32>
    %208 = arith.mulf %204, %151 : vector<8x32xf32>
    %209 = arith.mulf %203, %207 : vector<8x32xf32>
    %210 = arith.addf %208, %209 : vector<8x32xf32>
    %211 = math.tanh %210 : vector<8x32xf32>
    %212 = arith.mulf %205, %211 : vector<8x32xf32>
    %213 = tpu.concatenate %153, %30 in 1 : vector<8x32xf32>, vector<8x32xf32> -> vector<8x64xf32>
    %cst_58 = arith.constant dense<0.000000e+00> : vector<8x128xf32>
    %214 = tpu.matmul %213, %7, %cst_58 {dimension_numbers = #tpu.dot_dimension_numbers<[1], [0], [0], [1], [0, 0, 1, 1], [], []>} : vector<8x64xf32>, vector<64x128xf32>, vector<8x128xf32> -> vector<8x128xf32>
    %215 = vector.broadcast %17 : vector<1x128xf32> to vector<8x128xf32>
    %216 = arith.addf %214, %215 : vector<8x128xf32>
    %217 = vector.extract_strided_slice %216 {offsets = [0, 0], sizes = [8, 96], strides = [1, 1]} : vector<8x128xf32> to vector<8x96xf32>
    %218 = arith.negf %217 : vector<8x96xf32>
    %219 = math.exp %218 : vector<8x96xf32>
    %cst_59 = arith.constant 1.000000e+00 : f32
    %220 = vector.broadcast %cst_59 : f32 to vector<8x96xf32>
    %221 = arith.addf %220, %219 : vector<8x96xf32>
    %222 = arith.divf %220, %221 : vector<8x96xf32>
    %223 = vector.extract_strided_slice %222 {offsets = [0, 0], sizes = [8, 32], strides = [1, 1]} : vector<8x96xf32> to vector<8x32xf32>
    %224 = vector.extract_strided_slice %222 {offsets = [0, 32], sizes = [8, 32], strides = [1, 1]} : vector<8x96xf32> to vector<8x32xf32>
    %225 = vector.extract_strided_slice %222 {offsets = [0, 64], sizes = [8, 32], strides = [1, 1]} : vector<8x96xf32> to vector<8x32xf32>
    %226 = vector.extract_strided_slice %216 {offsets = [0, 96], sizes = [8, 32], strides = [1, 1]} : vector<8x128xf32> to vector<8x32xf32>
    %227 = math.tanh %226 : vector<8x32xf32>
    %228 = arith.mulf %224, %35 : vector<8x32xf32>
    %229 = arith.mulf %223, %227 : vector<8x32xf32>
    %230 = arith.addf %228, %229 : vector<8x32xf32>
    %231 = math.tanh %230 : vector<8x32xf32>
    %232 = arith.mulf %225, %231 : vector<8x32xf32>
    %cst_60 = arith.constant dense<0.000000e+00> : vector<8x128xf32>
    %233 = tpu.matmul %172, %20, %cst_60 {dimension_numbers = #tpu.dot_dimension_numbers<[1], [0], [0], [1], [0, 0, 1, 1], [], []>} : vector<8x32xf32>, vector<32x128xf32>, vector<8x128xf32> -> vector<8x128xf32>
    %234 = vector.extract_strided_slice %26 {offsets = [32, 0], sizes = [8, 128], strides = [1, 1]} : vector<64x128xf32> to vector<8x128xf32>
    %235 = arith.addf %233, %234 : vector<8x128xf32>
    %236 = vector.extract_strided_slice %235 {offsets = [0, 0], sizes = [8, 96], strides = [1, 1]} : vector<8x128xf32> to vector<8x96xf32>
    %237 = arith.negf %236 : vector<8x96xf32>
    %238 = math.exp %237 : vector<8x96xf32>
    %cst_61 = arith.constant 1.000000e+00 : f32
    %239 = vector.broadcast %cst_61 : f32 to vector<8x96xf32>
    %240 = arith.addf %239, %238 : vector<8x96xf32>
    %241 = arith.divf %239, %240 : vector<8x96xf32>
    %242 = vector.extract_strided_slice %241 {offsets = [0, 0], sizes = [8, 32], strides = [1, 1]} : vector<8x96xf32> to vector<8x32xf32>
    %243 = vector.extract_strided_slice %241 {offsets = [0, 32], sizes = [8, 32], strides = [1, 1]} : vector<8x96xf32> to vector<8x32xf32>
    %244 = vector.extract_strided_slice %241 {offsets = [0, 64], sizes = [8, 32], strides = [1, 1]} : vector<8x96xf32> to vector<8x32xf32>
    %245 = vector.extract_strided_slice %235 {offsets = [0, 96], sizes = [8, 32], strides = [1, 1]} : vector<8x128xf32> to vector<8x32xf32>
    %246 = math.tanh %245 : vector<8x32xf32>
    %247 = arith.mulf %243, %170 : vector<8x32xf32>
    %248 = arith.mulf %242, %246 : vector<8x32xf32>
    %249 = arith.addf %247, %248 : vector<8x32xf32>
    %250 = math.tanh %249 : vector<8x32xf32>
    %251 = arith.mulf %244, %250 : vector<8x32xf32>
    %252 = tpu.concatenate %172, %192 in 1 : vector<8x32xf32>, vector<8x32xf32> -> vector<8x64xf32>
    %cst_62 = arith.constant dense<0.000000e+00> : vector<8x128xf32>
    %253 = tpu.matmul %252, %3, %cst_62 {dimension_numbers = #tpu.dot_dimension_numbers<[1], [0], [0], [1], [0, 0, 1, 1], [], []>} : vector<8x64xf32>, vector<64x128xf32>, vector<8x128xf32> -> vector<8x128xf32>
    %254 = vector.broadcast %13 : vector<1x128xf32> to vector<8x128xf32>
    %255 = arith.addf %253, %254 : vector<8x128xf32>
    %256 = vector.extract_strided_slice %255 {offsets = [0, 0], sizes = [8, 96], strides = [1, 1]} : vector<8x128xf32> to vector<8x96xf32>
    %257 = arith.negf %256 : vector<8x96xf32>
    %258 = math.exp %257 : vector<8x96xf32>
    %cst_63 = arith.constant 1.000000e+00 : f32
    %259 = vector.broadcast %cst_63 : f32 to vector<8x96xf32>
    %260 = arith.addf %259, %258 : vector<8x96xf32>
    %261 = arith.divf %259, %260 : vector<8x96xf32>
    %262 = vector.extract_strided_slice %261 {offsets = [0, 0], sizes = [8, 32], strides = [1, 1]} : vector<8x96xf32> to vector<8x32xf32>
    %263 = vector.extract_strided_slice %261 {offsets = [0, 32], sizes = [8, 32], strides = [1, 1]} : vector<8x96xf32> to vector<8x32xf32>
    %264 = vector.extract_strided_slice %261 {offsets = [0, 64], sizes = [8, 32], strides = [1, 1]} : vector<8x96xf32> to vector<8x32xf32>
    %265 = vector.extract_strided_slice %255 {offsets = [0, 96], sizes = [8, 32], strides = [1, 1]} : vector<8x128xf32> to vector<8x32xf32>
    %266 = math.tanh %265 : vector<8x32xf32>
    %267 = arith.mulf %263, %190 : vector<8x32xf32>
    %268 = arith.mulf %262, %266 : vector<8x32xf32>
    %269 = arith.addf %267, %268 : vector<8x32xf32>
    %270 = math.tanh %269 : vector<8x32xf32>
    %271 = arith.mulf %264, %270 : vector<8x32xf32>
    %272 = tpu.concatenate %192, %212 in 1 : vector<8x32xf32>, vector<8x32xf32> -> vector<8x64xf32>
    %cst_64 = arith.constant dense<0.000000e+00> : vector<8x128xf32>
    %273 = tpu.matmul %272, %5, %cst_64 {dimension_numbers = #tpu.dot_dimension_numbers<[1], [0], [0], [1], [0, 0, 1, 1], [], []>} : vector<8x64xf32>, vector<64x128xf32>, vector<8x128xf32> -> vector<8x128xf32>
    %274 = vector.broadcast %15 : vector<1x128xf32> to vector<8x128xf32>
    %275 = arith.addf %273, %274 : vector<8x128xf32>
    %276 = vector.extract_strided_slice %275 {offsets = [0, 0], sizes = [8, 96], strides = [1, 1]} : vector<8x128xf32> to vector<8x96xf32>
    %277 = arith.negf %276 : vector<8x96xf32>
    %278 = math.exp %277 : vector<8x96xf32>
    %cst_65 = arith.constant 1.000000e+00 : f32
    %279 = vector.broadcast %cst_65 : f32 to vector<8x96xf32>
    %280 = arith.addf %279, %278 : vector<8x96xf32>
    %281 = arith.divf %279, %280 : vector<8x96xf32>
    %282 = vector.extract_strided_slice %281 {offsets = [0, 0], sizes = [8, 32], strides = [1, 1]} : vector<8x96xf32> to vector<8x32xf32>
    %283 = vector.extract_strided_slice %281 {offsets = [0, 32], sizes = [8, 32], strides = [1, 1]} : vector<8x96xf32> to vector<8x32xf32>
    %284 = vector.extract_strided_slice %281 {offsets = [0, 64], sizes = [8, 32], strides = [1, 1]} : vector<8x96xf32> to vector<8x32xf32>
    %285 = vector.extract_strided_slice %275 {offsets = [0, 96], sizes = [8, 32], strides = [1, 1]} : vector<8x128xf32> to vector<8x32xf32>
    %286 = math.tanh %285 : vector<8x32xf32>
    %287 = arith.mulf %283, %210 : vector<8x32xf32>
    %288 = arith.mulf %282, %286 : vector<8x32xf32>
    %289 = arith.addf %287, %288 : vector<8x32xf32>
    %290 = math.tanh %289 : vector<8x32xf32>
    %291 = arith.mulf %284, %290 : vector<8x32xf32>
    %292 = tpu.concatenate %212, %232 in 1 : vector<8x32xf32>, vector<8x32xf32> -> vector<8x64xf32>
    %cst_66 = arith.constant dense<0.000000e+00> : vector<8x128xf32>
    %293 = tpu.matmul %292, %7, %cst_66 {dimension_numbers = #tpu.dot_dimension_numbers<[1], [0], [0], [1], [0, 0, 1, 1], [], []>} : vector<8x64xf32>, vector<64x128xf32>, vector<8x128xf32> -> vector<8x128xf32>
    %294 = vector.broadcast %17 : vector<1x128xf32> to vector<8x128xf32>
    %295 = arith.addf %293, %294 : vector<8x128xf32>
    %296 = vector.extract_strided_slice %295 {offsets = [0, 0], sizes = [8, 96], strides = [1, 1]} : vector<8x128xf32> to vector<8x96xf32>
    %297 = arith.negf %296 : vector<8x96xf32>
    %298 = math.exp %297 : vector<8x96xf32>
    %cst_67 = arith.constant 1.000000e+00 : f32
    %299 = vector.broadcast %cst_67 : f32 to vector<8x96xf32>
    %300 = arith.addf %299, %298 : vector<8x96xf32>
    %301 = arith.divf %299, %300 : vector<8x96xf32>
    %302 = vector.extract_strided_slice %301 {offsets = [0, 0], sizes = [8, 32], strides = [1, 1]} : vector<8x96xf32> to vector<8x32xf32>
    %303 = vector.extract_strided_slice %301 {offsets = [0, 32], sizes = [8, 32], strides = [1, 1]} : vector<8x96xf32> to vector<8x32xf32>
    %304 = vector.extract_strided_slice %301 {offsets = [0, 64], sizes = [8, 32], strides = [1, 1]} : vector<8x96xf32> to vector<8x32xf32>
    %305 = vector.extract_strided_slice %295 {offsets = [0, 96], sizes = [8, 32], strides = [1, 1]} : vector<8x128xf32> to vector<8x32xf32>
    %306 = math.tanh %305 : vector<8x32xf32>
    %307 = arith.mulf %303, %230 : vector<8x32xf32>
    %308 = arith.mulf %302, %306 : vector<8x32xf32>
    %309 = arith.addf %307, %308 : vector<8x32xf32>
    %310 = math.tanh %309 : vector<8x32xf32>
    %311 = arith.mulf %304, %310 : vector<8x32xf32>
    %312 = tpu.concatenate %232, %31 in 1 : vector<8x32xf32>, vector<8x32xf32> -> vector<8x64xf32>
    %cst_68 = arith.constant dense<0.000000e+00> : vector<8x128xf32>
    %313 = tpu.matmul %312, %9, %cst_68 {dimension_numbers = #tpu.dot_dimension_numbers<[1], [0], [0], [1], [0, 0, 1, 1], [], []>} : vector<8x64xf32>, vector<64x128xf32>, vector<8x128xf32> -> vector<8x128xf32>
    %314 = vector.broadcast %19 : vector<1x128xf32> to vector<8x128xf32>
    %315 = arith.addf %313, %314 : vector<8x128xf32>
    %316 = vector.extract_strided_slice %315 {offsets = [0, 0], sizes = [8, 96], strides = [1, 1]} : vector<8x128xf32> to vector<8x96xf32>
    %317 = arith.negf %316 : vector<8x96xf32>
    %318 = math.exp %317 : vector<8x96xf32>
    %cst_69 = arith.constant 1.000000e+00 : f32
    %319 = vector.broadcast %cst_69 : f32 to vector<8x96xf32>
    %320 = arith.addf %319, %318 : vector<8x96xf32>
    %321 = arith.divf %319, %320 : vector<8x96xf32>
    %322 = vector.extract_strided_slice %321 {offsets = [0, 0], sizes = [8, 32], strides = [1, 1]} : vector<8x96xf32> to vector<8x32xf32>
    %323 = vector.extract_strided_slice %321 {offsets = [0, 32], sizes = [8, 32], strides = [1, 1]} : vector<8x96xf32> to vector<8x32xf32>
    %324 = vector.extract_strided_slice %321 {offsets = [0, 64], sizes = [8, 32], strides = [1, 1]} : vector<8x96xf32> to vector<8x32xf32>
    %325 = vector.extract_strided_slice %315 {offsets = [0, 96], sizes = [8, 32], strides = [1, 1]} : vector<8x128xf32> to vector<8x32xf32>
    %326 = math.tanh %325 : vector<8x32xf32>
    %327 = arith.mulf %323, %36 : vector<8x32xf32>
    %328 = arith.mulf %322, %326 : vector<8x32xf32>
    %329 = arith.addf %327, %328 : vector<8x32xf32>
    %330 = math.tanh %329 : vector<8x32xf32>
    %331 = arith.mulf %324, %330 : vector<8x32xf32>
    %cst_70 = arith.constant dense<0.000000e+00> : vector<8x128xf32>
    %332 = tpu.matmul %251, %20, %cst_70 {dimension_numbers = #tpu.dot_dimension_numbers<[1], [0], [0], [1], [0, 0, 1, 1], [], []>} : vector<8x32xf32>, vector<32x128xf32>, vector<8x128xf32> -> vector<8x128xf32>
    %333 = vector.extract_strided_slice %26 {offsets = [40, 0], sizes = [8, 128], strides = [1, 1]} : vector<64x128xf32> to vector<8x128xf32>
    %334 = arith.addf %332, %333 : vector<8x128xf32>
    %335 = vector.extract_strided_slice %334 {offsets = [0, 0], sizes = [8, 96], strides = [1, 1]} : vector<8x128xf32> to vector<8x96xf32>
    %336 = arith.negf %335 : vector<8x96xf32>
    %337 = math.exp %336 : vector<8x96xf32>
    %cst_71 = arith.constant 1.000000e+00 : f32
    %338 = vector.broadcast %cst_71 : f32 to vector<8x96xf32>
    %339 = arith.addf %338, %337 : vector<8x96xf32>
    %340 = arith.divf %338, %339 : vector<8x96xf32>
    %341 = vector.extract_strided_slice %340 {offsets = [0, 0], sizes = [8, 32], strides = [1, 1]} : vector<8x96xf32> to vector<8x32xf32>
    %342 = vector.extract_strided_slice %340 {offsets = [0, 32], sizes = [8, 32], strides = [1, 1]} : vector<8x96xf32> to vector<8x32xf32>
    %343 = vector.extract_strided_slice %340 {offsets = [0, 64], sizes = [8, 32], strides = [1, 1]} : vector<8x96xf32> to vector<8x32xf32>
    %344 = vector.extract_strided_slice %334 {offsets = [0, 96], sizes = [8, 32], strides = [1, 1]} : vector<8x128xf32> to vector<8x32xf32>
    %345 = math.tanh %344 : vector<8x32xf32>
    %346 = arith.mulf %342, %249 : vector<8x32xf32>
    %347 = arith.mulf %341, %345 : vector<8x32xf32>
    %348 = arith.addf %346, %347 : vector<8x32xf32>
    %349 = math.tanh %348 : vector<8x32xf32>
    %350 = arith.mulf %343, %349 : vector<8x32xf32>
    %351 = tpu.concatenate %251, %271 in 1 : vector<8x32xf32>, vector<8x32xf32> -> vector<8x64xf32>
    %cst_72 = arith.constant dense<0.000000e+00> : vector<8x128xf32>
    %352 = tpu.matmul %351, %3, %cst_72 {dimension_numbers = #tpu.dot_dimension_numbers<[1], [0], [0], [1], [0, 0, 1, 1], [], []>} : vector<8x64xf32>, vector<64x128xf32>, vector<8x128xf32> -> vector<8x128xf32>
    %353 = vector.broadcast %13 : vector<1x128xf32> to vector<8x128xf32>
    %354 = arith.addf %352, %353 : vector<8x128xf32>
    %355 = vector.extract_strided_slice %354 {offsets = [0, 0], sizes = [8, 96], strides = [1, 1]} : vector<8x128xf32> to vector<8x96xf32>
    %356 = arith.negf %355 : vector<8x96xf32>
    %357 = math.exp %356 : vector<8x96xf32>
    %cst_73 = arith.constant 1.000000e+00 : f32
    %358 = vector.broadcast %cst_73 : f32 to vector<8x96xf32>
    %359 = arith.addf %358, %357 : vector<8x96xf32>
    %360 = arith.divf %358, %359 : vector<8x96xf32>
    %361 = vector.extract_strided_slice %360 {offsets = [0, 0], sizes = [8, 32], strides = [1, 1]} : vector<8x96xf32> to vector<8x32xf32>
    %362 = vector.extract_strided_slice %360 {offsets = [0, 32], sizes = [8, 32], strides = [1, 1]} : vector<8x96xf32> to vector<8x32xf32>
    %363 = vector.extract_strided_slice %360 {offsets = [0, 64], sizes = [8, 32], strides = [1, 1]} : vector<8x96xf32> to vector<8x32xf32>
    %364 = vector.extract_strided_slice %354 {offsets = [0, 96], sizes = [8, 32], strides = [1, 1]} : vector<8x128xf32> to vector<8x32xf32>
    %365 = math.tanh %364 : vector<8x32xf32>
    %366 = arith.mulf %362, %269 : vector<8x32xf32>
    %367 = arith.mulf %361, %365 : vector<8x32xf32>
    %368 = arith.addf %366, %367 : vector<8x32xf32>
    %369 = math.tanh %368 : vector<8x32xf32>
    %370 = arith.mulf %363, %369 : vector<8x32xf32>
    %371 = tpu.concatenate %271, %291 in 1 : vector<8x32xf32>, vector<8x32xf32> -> vector<8x64xf32>
    %cst_74 = arith.constant dense<0.000000e+00> : vector<8x128xf32>
    %372 = tpu.matmul %371, %5, %cst_74 {dimension_numbers = #tpu.dot_dimension_numbers<[1], [0], [0], [1], [0, 0, 1, 1], [], []>} : vector<8x64xf32>, vector<64x128xf32>, vector<8x128xf32> -> vector<8x128xf32>
    %373 = vector.broadcast %15 : vector<1x128xf32> to vector<8x128xf32>
    %374 = arith.addf %372, %373 : vector<8x128xf32>
    %375 = vector.extract_strided_slice %374 {offsets = [0, 0], sizes = [8, 96], strides = [1, 1]} : vector<8x128xf32> to vector<8x96xf32>
    %376 = arith.negf %375 : vector<8x96xf32>
    %377 = math.exp %376 : vector<8x96xf32>
    %cst_75 = arith.constant 1.000000e+00 : f32
    %378 = vector.broadcast %cst_75 : f32 to vector<8x96xf32>
    %379 = arith.addf %378, %377 : vector<8x96xf32>
    %380 = arith.divf %378, %379 : vector<8x96xf32>
    %381 = vector.extract_strided_slice %380 {offsets = [0, 0], sizes = [8, 32], strides = [1, 1]} : vector<8x96xf32> to vector<8x32xf32>
    %382 = vector.extract_strided_slice %380 {offsets = [0, 32], sizes = [8, 32], strides = [1, 1]} : vector<8x96xf32> to vector<8x32xf32>
    %383 = vector.extract_strided_slice %380 {offsets = [0, 64], sizes = [8, 32], strides = [1, 1]} : vector<8x96xf32> to vector<8x32xf32>
    %384 = vector.extract_strided_slice %374 {offsets = [0, 96], sizes = [8, 32], strides = [1, 1]} : vector<8x128xf32> to vector<8x32xf32>
    %385 = math.tanh %384 : vector<8x32xf32>
    %386 = arith.mulf %382, %289 : vector<8x32xf32>
    %387 = arith.mulf %381, %385 : vector<8x32xf32>
    %388 = arith.addf %386, %387 : vector<8x32xf32>
    %389 = math.tanh %388 : vector<8x32xf32>
    %390 = arith.mulf %383, %389 : vector<8x32xf32>
    %391 = tpu.concatenate %291, %311 in 1 : vector<8x32xf32>, vector<8x32xf32> -> vector<8x64xf32>
    %cst_76 = arith.constant dense<0.000000e+00> : vector<8x128xf32>
    %392 = tpu.matmul %391, %7, %cst_76 {dimension_numbers = #tpu.dot_dimension_numbers<[1], [0], [0], [1], [0, 0, 1, 1], [], []>} : vector<8x64xf32>, vector<64x128xf32>, vector<8x128xf32> -> vector<8x128xf32>
    %393 = vector.broadcast %17 : vector<1x128xf32> to vector<8x128xf32>
    %394 = arith.addf %392, %393 : vector<8x128xf32>
    %395 = vector.extract_strided_slice %394 {offsets = [0, 0], sizes = [8, 96], strides = [1, 1]} : vector<8x128xf32> to vector<8x96xf32>
    %396 = arith.negf %395 : vector<8x96xf32>
    %397 = math.exp %396 : vector<8x96xf32>
    %cst_77 = arith.constant 1.000000e+00 : f32
    %398 = vector.broadcast %cst_77 : f32 to vector<8x96xf32>
    %399 = arith.addf %398, %397 : vector<8x96xf32>
    %400 = arith.divf %398, %399 : vector<8x96xf32>
    %401 = vector.extract_strided_slice %400 {offsets = [0, 0], sizes = [8, 32], strides = [1, 1]} : vector<8x96xf32> to vector<8x32xf32>
    %402 = vector.extract_strided_slice %400 {offsets = [0, 32], sizes = [8, 32], strides = [1, 1]} : vector<8x96xf32> to vector<8x32xf32>
    %403 = vector.extract_strided_slice %400 {offsets = [0, 64], sizes = [8, 32], strides = [1, 1]} : vector<8x96xf32> to vector<8x32xf32>
    %404 = vector.extract_strided_slice %394 {offsets = [0, 96], sizes = [8, 32], strides = [1, 1]} : vector<8x128xf32> to vector<8x32xf32>
    %405 = math.tanh %404 : vector<8x32xf32>
    %406 = arith.mulf %402, %309 : vector<8x32xf32>
    %407 = arith.mulf %401, %405 : vector<8x32xf32>
    %408 = arith.addf %406, %407 : vector<8x32xf32>
    %409 = math.tanh %408 : vector<8x32xf32>
    %410 = arith.mulf %403, %409 : vector<8x32xf32>
    %411 = tpu.concatenate %311, %331 in 1 : vector<8x32xf32>, vector<8x32xf32> -> vector<8x64xf32>
    %cst_78 = arith.constant dense<0.000000e+00> : vector<8x128xf32>
    %412 = tpu.matmul %411, %9, %cst_78 {dimension_numbers = #tpu.dot_dimension_numbers<[1], [0], [0], [1], [0, 0, 1, 1], [], []>} : vector<8x64xf32>, vector<64x128xf32>, vector<8x128xf32> -> vector<8x128xf32>
    %413 = vector.broadcast %19 : vector<1x128xf32> to vector<8x128xf32>
    %414 = arith.addf %412, %413 : vector<8x128xf32>
    %415 = vector.extract_strided_slice %414 {offsets = [0, 0], sizes = [8, 96], strides = [1, 1]} : vector<8x128xf32> to vector<8x96xf32>
    %416 = arith.negf %415 : vector<8x96xf32>
    %417 = math.exp %416 : vector<8x96xf32>
    %cst_79 = arith.constant 1.000000e+00 : f32
    %418 = vector.broadcast %cst_79 : f32 to vector<8x96xf32>
    %419 = arith.addf %418, %417 : vector<8x96xf32>
    %420 = arith.divf %418, %419 : vector<8x96xf32>
    %421 = vector.extract_strided_slice %420 {offsets = [0, 0], sizes = [8, 32], strides = [1, 1]} : vector<8x96xf32> to vector<8x32xf32>
    %422 = vector.extract_strided_slice %420 {offsets = [0, 32], sizes = [8, 32], strides = [1, 1]} : vector<8x96xf32> to vector<8x32xf32>
    %423 = vector.extract_strided_slice %420 {offsets = [0, 64], sizes = [8, 32], strides = [1, 1]} : vector<8x96xf32> to vector<8x32xf32>
    %424 = vector.extract_strided_slice %414 {offsets = [0, 96], sizes = [8, 32], strides = [1, 1]} : vector<8x128xf32> to vector<8x32xf32>
    %425 = math.tanh %424 : vector<8x32xf32>
    %426 = arith.mulf %422, %329 : vector<8x32xf32>
    %427 = arith.mulf %421, %425 : vector<8x32xf32>
    %428 = arith.addf %426, %427 : vector<8x32xf32>
    %429 = math.tanh %428 : vector<8x32xf32>
    %430 = arith.mulf %423, %429 : vector<8x32xf32>
    %cst_80 = arith.constant dense<0.000000e+00> : vector<8x128xf32>
    %431 = tpu.matmul %350, %20, %cst_80 {dimension_numbers = #tpu.dot_dimension_numbers<[1], [0], [0], [1], [0, 0, 1, 1], [], []>} : vector<8x32xf32>, vector<32x128xf32>, vector<8x128xf32> -> vector<8x128xf32>
    %432 = vector.extract_strided_slice %26 {offsets = [48, 0], sizes = [8, 128], strides = [1, 1]} : vector<64x128xf32> to vector<8x128xf32>
    %433 = arith.addf %431, %432 : vector<8x128xf32>
    %434 = vector.extract_strided_slice %433 {offsets = [0, 0], sizes = [8, 96], strides = [1, 1]} : vector<8x128xf32> to vector<8x96xf32>
    %435 = arith.negf %434 : vector<8x96xf32>
    %436 = math.exp %435 : vector<8x96xf32>
    %cst_81 = arith.constant 1.000000e+00 : f32
    %437 = vector.broadcast %cst_81 : f32 to vector<8x96xf32>
    %438 = arith.addf %437, %436 : vector<8x96xf32>
    %439 = arith.divf %437, %438 : vector<8x96xf32>
    %440 = vector.extract_strided_slice %439 {offsets = [0, 0], sizes = [8, 32], strides = [1, 1]} : vector<8x96xf32> to vector<8x32xf32>
    %441 = vector.extract_strided_slice %439 {offsets = [0, 32], sizes = [8, 32], strides = [1, 1]} : vector<8x96xf32> to vector<8x32xf32>
    %442 = vector.extract_strided_slice %439 {offsets = [0, 64], sizes = [8, 32], strides = [1, 1]} : vector<8x96xf32> to vector<8x32xf32>
    %443 = vector.extract_strided_slice %433 {offsets = [0, 96], sizes = [8, 32], strides = [1, 1]} : vector<8x128xf32> to vector<8x32xf32>
    %444 = math.tanh %443 : vector<8x32xf32>
    %445 = arith.mulf %441, %348 : vector<8x32xf32>
    %446 = arith.mulf %440, %444 : vector<8x32xf32>
    %447 = arith.addf %445, %446 : vector<8x32xf32>
    %448 = math.tanh %447 : vector<8x32xf32>
    %449 = arith.mulf %442, %448 : vector<8x32xf32>
    %450 = tpu.concatenate %350, %370 in 1 : vector<8x32xf32>, vector<8x32xf32> -> vector<8x64xf32>
    %cst_82 = arith.constant dense<0.000000e+00> : vector<8x128xf32>
    %451 = tpu.matmul %450, %3, %cst_82 {dimension_numbers = #tpu.dot_dimension_numbers<[1], [0], [0], [1], [0, 0, 1, 1], [], []>} : vector<8x64xf32>, vector<64x128xf32>, vector<8x128xf32> -> vector<8x128xf32>
    %452 = vector.broadcast %13 : vector<1x128xf32> to vector<8x128xf32>
    %453 = arith.addf %451, %452 : vector<8x128xf32>
    %454 = vector.extract_strided_slice %453 {offsets = [0, 0], sizes = [8, 96], strides = [1, 1]} : vector<8x128xf32> to vector<8x96xf32>
    %455 = arith.negf %454 : vector<8x96xf32>
    %456 = math.exp %455 : vector<8x96xf32>
    %cst_83 = arith.constant 1.000000e+00 : f32
    %457 = vector.broadcast %cst_83 : f32 to vector<8x96xf32>
    %458 = arith.addf %457, %456 : vector<8x96xf32>
    %459 = arith.divf %457, %458 : vector<8x96xf32>
    %460 = vector.extract_strided_slice %459 {offsets = [0, 0], sizes = [8, 32], strides = [1, 1]} : vector<8x96xf32> to vector<8x32xf32>
    %461 = vector.extract_strided_slice %459 {offsets = [0, 32], sizes = [8, 32], strides = [1, 1]} : vector<8x96xf32> to vector<8x32xf32>
    %462 = vector.extract_strided_slice %459 {offsets = [0, 64], sizes = [8, 32], strides = [1, 1]} : vector<8x96xf32> to vector<8x32xf32>
    %463 = vector.extract_strided_slice %453 {offsets = [0, 96], sizes = [8, 32], strides = [1, 1]} : vector<8x128xf32> to vector<8x32xf32>
    %464 = math.tanh %463 : vector<8x32xf32>
    %465 = arith.mulf %461, %368 : vector<8x32xf32>
    %466 = arith.mulf %460, %464 : vector<8x32xf32>
    %467 = arith.addf %465, %466 : vector<8x32xf32>
    %468 = math.tanh %467 : vector<8x32xf32>
    %469 = arith.mulf %462, %468 : vector<8x32xf32>
    %470 = tpu.concatenate %370, %390 in 1 : vector<8x32xf32>, vector<8x32xf32> -> vector<8x64xf32>
    %cst_84 = arith.constant dense<0.000000e+00> : vector<8x128xf32>
    %471 = tpu.matmul %470, %5, %cst_84 {dimension_numbers = #tpu.dot_dimension_numbers<[1], [0], [0], [1], [0, 0, 1, 1], [], []>} : vector<8x64xf32>, vector<64x128xf32>, vector<8x128xf32> -> vector<8x128xf32>
    %472 = vector.broadcast %15 : vector<1x128xf32> to vector<8x128xf32>
    %473 = arith.addf %471, %472 : vector<8x128xf32>
    %474 = vector.extract_strided_slice %473 {offsets = [0, 0], sizes = [8, 96], strides = [1, 1]} : vector<8x128xf32> to vector<8x96xf32>
    %475 = arith.negf %474 : vector<8x96xf32>
    %476 = math.exp %475 : vector<8x96xf32>
    %cst_85 = arith.constant 1.000000e+00 : f32
    %477 = vector.broadcast %cst_85 : f32 to vector<8x96xf32>
    %478 = arith.addf %477, %476 : vector<8x96xf32>
    %479 = arith.divf %477, %478 : vector<8x96xf32>
    %480 = vector.extract_strided_slice %479 {offsets = [0, 0], sizes = [8, 32], strides = [1, 1]} : vector<8x96xf32> to vector<8x32xf32>
    %481 = vector.extract_strided_slice %479 {offsets = [0, 32], sizes = [8, 32], strides = [1, 1]} : vector<8x96xf32> to vector<8x32xf32>
    %482 = vector.extract_strided_slice %479 {offsets = [0, 64], sizes = [8, 32], strides = [1, 1]} : vector<8x96xf32> to vector<8x32xf32>
    %483 = vector.extract_strided_slice %473 {offsets = [0, 96], sizes = [8, 32], strides = [1, 1]} : vector<8x128xf32> to vector<8x32xf32>
    %484 = math.tanh %483 : vector<8x32xf32>
    %485 = arith.mulf %481, %388 : vector<8x32xf32>
    %486 = arith.mulf %480, %484 : vector<8x32xf32>
    %487 = arith.addf %485, %486 : vector<8x32xf32>
    %488 = math.tanh %487 : vector<8x32xf32>
    %489 = arith.mulf %482, %488 : vector<8x32xf32>
    %490 = tpu.concatenate %390, %410 in 1 : vector<8x32xf32>, vector<8x32xf32> -> vector<8x64xf32>
    %cst_86 = arith.constant dense<0.000000e+00> : vector<8x128xf32>
    %491 = tpu.matmul %490, %7, %cst_86 {dimension_numbers = #tpu.dot_dimension_numbers<[1], [0], [0], [1], [0, 0, 1, 1], [], []>} : vector<8x64xf32>, vector<64x128xf32>, vector<8x128xf32> -> vector<8x128xf32>
    %492 = vector.broadcast %17 : vector<1x128xf32> to vector<8x128xf32>
    %493 = arith.addf %491, %492 : vector<8x128xf32>
    %494 = vector.extract_strided_slice %493 {offsets = [0, 0], sizes = [8, 96], strides = [1, 1]} : vector<8x128xf32> to vector<8x96xf32>
    %495 = arith.negf %494 : vector<8x96xf32>
    %496 = math.exp %495 : vector<8x96xf32>
    %cst_87 = arith.constant 1.000000e+00 : f32
    %497 = vector.broadcast %cst_87 : f32 to vector<8x96xf32>
    %498 = arith.addf %497, %496 : vector<8x96xf32>
    %499 = arith.divf %497, %498 : vector<8x96xf32>
    %500 = vector.extract_strided_slice %499 {offsets = [0, 0], sizes = [8, 32], strides = [1, 1]} : vector<8x96xf32> to vector<8x32xf32>
    %501 = vector.extract_strided_slice %499 {offsets = [0, 32], sizes = [8, 32], strides = [1, 1]} : vector<8x96xf32> to vector<8x32xf32>
    %502 = vector.extract_strided_slice %499 {offsets = [0, 64], sizes = [8, 32], strides = [1, 1]} : vector<8x96xf32> to vector<8x32xf32>
    %503 = vector.extract_strided_slice %493 {offsets = [0, 96], sizes = [8, 32], strides = [1, 1]} : vector<8x128xf32> to vector<8x32xf32>
    %504 = math.tanh %503 : vector<8x32xf32>
    %505 = arith.mulf %501, %408 : vector<8x32xf32>
    %506 = arith.mulf %500, %504 : vector<8x32xf32>
    %507 = arith.addf %505, %506 : vector<8x32xf32>
    %508 = math.tanh %507 : vector<8x32xf32>
    %509 = arith.mulf %502, %508 : vector<8x32xf32>
    %510 = tpu.concatenate %410, %430 in 1 : vector<8x32xf32>, vector<8x32xf32> -> vector<8x64xf32>
    %cst_88 = arith.constant dense<0.000000e+00> : vector<8x128xf32>
    %511 = tpu.matmul %510, %9, %cst_88 {dimension_numbers = #tpu.dot_dimension_numbers<[1], [0], [0], [1], [0, 0, 1, 1], [], []>} : vector<8x64xf32>, vector<64x128xf32>, vector<8x128xf32> -> vector<8x128xf32>
    %512 = vector.broadcast %19 : vector<1x128xf32> to vector<8x128xf32>
    %513 = arith.addf %511, %512 : vector<8x128xf32>
    %514 = vector.extract_strided_slice %513 {offsets = [0, 0], sizes = [8, 96], strides = [1, 1]} : vector<8x128xf32> to vector<8x96xf32>
    %515 = arith.negf %514 : vector<8x96xf32>
    %516 = math.exp %515 : vector<8x96xf32>
    %cst_89 = arith.constant 1.000000e+00 : f32
    %517 = vector.broadcast %cst_89 : f32 to vector<8x96xf32>
    %518 = arith.addf %517, %516 : vector<8x96xf32>
    %519 = arith.divf %517, %518 : vector<8x96xf32>
    %520 = vector.extract_strided_slice %519 {offsets = [0, 0], sizes = [8, 32], strides = [1, 1]} : vector<8x96xf32> to vector<8x32xf32>
    %521 = vector.extract_strided_slice %519 {offsets = [0, 32], sizes = [8, 32], strides = [1, 1]} : vector<8x96xf32> to vector<8x32xf32>
    %522 = vector.extract_strided_slice %519 {offsets = [0, 64], sizes = [8, 32], strides = [1, 1]} : vector<8x96xf32> to vector<8x32xf32>
    %523 = vector.extract_strided_slice %513 {offsets = [0, 96], sizes = [8, 32], strides = [1, 1]} : vector<8x128xf32> to vector<8x32xf32>
    %524 = math.tanh %523 : vector<8x32xf32>
    %525 = arith.mulf %521, %428 : vector<8x32xf32>
    %526 = arith.mulf %520, %524 : vector<8x32xf32>
    %527 = arith.addf %525, %526 : vector<8x32xf32>
    %528 = math.tanh %527 : vector<8x32xf32>
    %529 = arith.mulf %522, %528 : vector<8x32xf32>
    %cst_90 = arith.constant dense<0.000000e+00> : vector<8x128xf32>
    %530 = tpu.matmul %449, %20, %cst_90 {dimension_numbers = #tpu.dot_dimension_numbers<[1], [0], [0], [1], [0, 0, 1, 1], [], []>} : vector<8x32xf32>, vector<32x128xf32>, vector<8x128xf32> -> vector<8x128xf32>
    %531 = vector.extract_strided_slice %26 {offsets = [56, 0], sizes = [8, 128], strides = [1, 1]} : vector<64x128xf32> to vector<8x128xf32>
    %532 = arith.addf %530, %531 : vector<8x128xf32>
    %533 = vector.extract_strided_slice %532 {offsets = [0, 0], sizes = [8, 96], strides = [1, 1]} : vector<8x128xf32> to vector<8x96xf32>
    %534 = arith.negf %533 : vector<8x96xf32>
    %535 = math.exp %534 : vector<8x96xf32>
    %cst_91 = arith.constant 1.000000e+00 : f32
    %536 = vector.broadcast %cst_91 : f32 to vector<8x96xf32>
    %537 = arith.addf %536, %535 : vector<8x96xf32>
    %538 = arith.divf %536, %537 : vector<8x96xf32>
    %539 = vector.extract_strided_slice %538 {offsets = [0, 0], sizes = [8, 32], strides = [1, 1]} : vector<8x96xf32> to vector<8x32xf32>
    %540 = vector.extract_strided_slice %538 {offsets = [0, 32], sizes = [8, 32], strides = [1, 1]} : vector<8x96xf32> to vector<8x32xf32>
    %541 = vector.extract_strided_slice %538 {offsets = [0, 64], sizes = [8, 32], strides = [1, 1]} : vector<8x96xf32> to vector<8x32xf32>
    %542 = vector.extract_strided_slice %532 {offsets = [0, 96], sizes = [8, 32], strides = [1, 1]} : vector<8x128xf32> to vector<8x32xf32>
    %543 = math.tanh %542 : vector<8x32xf32>
    %544 = arith.mulf %540, %447 : vector<8x32xf32>
    %545 = arith.mulf %539, %543 : vector<8x32xf32>
    %546 = arith.addf %544, %545 : vector<8x32xf32>
    %547 = math.tanh %546 : vector<8x32xf32>
    %548 = arith.mulf %541, %547 : vector<8x32xf32>
    %549 = tpu.concatenate %449, %469 in 1 : vector<8x32xf32>, vector<8x32xf32> -> vector<8x64xf32>
    %cst_92 = arith.constant dense<0.000000e+00> : vector<8x128xf32>
    %550 = tpu.matmul %549, %3, %cst_92 {dimension_numbers = #tpu.dot_dimension_numbers<[1], [0], [0], [1], [0, 0, 1, 1], [], []>} : vector<8x64xf32>, vector<64x128xf32>, vector<8x128xf32> -> vector<8x128xf32>
    %551 = vector.broadcast %13 : vector<1x128xf32> to vector<8x128xf32>
    %552 = arith.addf %550, %551 : vector<8x128xf32>
    %553 = vector.extract_strided_slice %552 {offsets = [0, 0], sizes = [8, 96], strides = [1, 1]} : vector<8x128xf32> to vector<8x96xf32>
    %554 = arith.negf %553 : vector<8x96xf32>
    %555 = math.exp %554 : vector<8x96xf32>
    %cst_93 = arith.constant 1.000000e+00 : f32
    %556 = vector.broadcast %cst_93 : f32 to vector<8x96xf32>
    %557 = arith.addf %556, %555 : vector<8x96xf32>
    %558 = arith.divf %556, %557 : vector<8x96xf32>
    %559 = vector.extract_strided_slice %558 {offsets = [0, 0], sizes = [8, 32], strides = [1, 1]} : vector<8x96xf32> to vector<8x32xf32>
    %560 = vector.extract_strided_slice %558 {offsets = [0, 32], sizes = [8, 32], strides = [1, 1]} : vector<8x96xf32> to vector<8x32xf32>
    %561 = vector.extract_strided_slice %558 {offsets = [0, 64], sizes = [8, 32], strides = [1, 1]} : vector<8x96xf32> to vector<8x32xf32>
    %562 = vector.extract_strided_slice %552 {offsets = [0, 96], sizes = [8, 32], strides = [1, 1]} : vector<8x128xf32> to vector<8x32xf32>
    %563 = math.tanh %562 : vector<8x32xf32>
    %564 = arith.mulf %560, %467 : vector<8x32xf32>
    %565 = arith.mulf %559, %563 : vector<8x32xf32>
    %566 = arith.addf %564, %565 : vector<8x32xf32>
    %567 = math.tanh %566 : vector<8x32xf32>
    %568 = arith.mulf %561, %567 : vector<8x32xf32>
    %569 = tpu.concatenate %469, %489 in 1 : vector<8x32xf32>, vector<8x32xf32> -> vector<8x64xf32>
    %cst_94 = arith.constant dense<0.000000e+00> : vector<8x128xf32>
    %570 = tpu.matmul %569, %5, %cst_94 {dimension_numbers = #tpu.dot_dimension_numbers<[1], [0], [0], [1], [0, 0, 1, 1], [], []>} : vector<8x64xf32>, vector<64x128xf32>, vector<8x128xf32> -> vector<8x128xf32>
    %571 = vector.broadcast %15 : vector<1x128xf32> to vector<8x128xf32>
    %572 = arith.addf %570, %571 : vector<8x128xf32>
    %573 = vector.extract_strided_slice %572 {offsets = [0, 0], sizes = [8, 96], strides = [1, 1]} : vector<8x128xf32> to vector<8x96xf32>
    %574 = arith.negf %573 : vector<8x96xf32>
    %575 = math.exp %574 : vector<8x96xf32>
    %cst_95 = arith.constant 1.000000e+00 : f32
    %576 = vector.broadcast %cst_95 : f32 to vector<8x96xf32>
    %577 = arith.addf %576, %575 : vector<8x96xf32>
    %578 = arith.divf %576, %577 : vector<8x96xf32>
    %579 = vector.extract_strided_slice %578 {offsets = [0, 0], sizes = [8, 32], strides = [1, 1]} : vector<8x96xf32> to vector<8x32xf32>
    %580 = vector.extract_strided_slice %578 {offsets = [0, 32], sizes = [8, 32], strides = [1, 1]} : vector<8x96xf32> to vector<8x32xf32>
    %581 = vector.extract_strided_slice %578 {offsets = [0, 64], sizes = [8, 32], strides = [1, 1]} : vector<8x96xf32> to vector<8x32xf32>
    %582 = vector.extract_strided_slice %572 {offsets = [0, 96], sizes = [8, 32], strides = [1, 1]} : vector<8x128xf32> to vector<8x32xf32>
    %583 = math.tanh %582 : vector<8x32xf32>
    %584 = arith.mulf %580, %487 : vector<8x32xf32>
    %585 = arith.mulf %579, %583 : vector<8x32xf32>
    %586 = arith.addf %584, %585 : vector<8x32xf32>
    %587 = math.tanh %586 : vector<8x32xf32>
    %588 = arith.mulf %581, %587 : vector<8x32xf32>
    %589 = tpu.concatenate %489, %509 in 1 : vector<8x32xf32>, vector<8x32xf32> -> vector<8x64xf32>
    %cst_96 = arith.constant dense<0.000000e+00> : vector<8x128xf32>
    %590 = tpu.matmul %589, %7, %cst_96 {dimension_numbers = #tpu.dot_dimension_numbers<[1], [0], [0], [1], [0, 0, 1, 1], [], []>} : vector<8x64xf32>, vector<64x128xf32>, vector<8x128xf32> -> vector<8x128xf32>
    %591 = vector.broadcast %17 : vector<1x128xf32> to vector<8x128xf32>
    %592 = arith.addf %590, %591 : vector<8x128xf32>
    %593 = vector.extract_strided_slice %592 {offsets = [0, 0], sizes = [8, 96], strides = [1, 1]} : vector<8x128xf32> to vector<8x96xf32>
    %594 = arith.negf %593 : vector<8x96xf32>
    %595 = math.exp %594 : vector<8x96xf32>
    %cst_97 = arith.constant 1.000000e+00 : f32
    %596 = vector.broadcast %cst_97 : f32 to vector<8x96xf32>
    %597 = arith.addf %596, %595 : vector<8x96xf32>
    %598 = arith.divf %596, %597 : vector<8x96xf32>
    %599 = vector.extract_strided_slice %598 {offsets = [0, 0], sizes = [8, 32], strides = [1, 1]} : vector<8x96xf32> to vector<8x32xf32>
    %600 = vector.extract_strided_slice %598 {offsets = [0, 32], sizes = [8, 32], strides = [1, 1]} : vector<8x96xf32> to vector<8x32xf32>
    %601 = vector.extract_strided_slice %598 {offsets = [0, 64], sizes = [8, 32], strides = [1, 1]} : vector<8x96xf32> to vector<8x32xf32>
    %602 = vector.extract_strided_slice %592 {offsets = [0, 96], sizes = [8, 32], strides = [1, 1]} : vector<8x128xf32> to vector<8x32xf32>
    %603 = math.tanh %602 : vector<8x32xf32>
    %604 = arith.mulf %600, %507 : vector<8x32xf32>
    %605 = arith.mulf %599, %603 : vector<8x32xf32>
    %606 = arith.addf %604, %605 : vector<8x32xf32>
    %607 = math.tanh %606 : vector<8x32xf32>
    %608 = arith.mulf %601, %607 : vector<8x32xf32>
    %609 = tpu.concatenate %509, %529 in 1 : vector<8x32xf32>, vector<8x32xf32> -> vector<8x64xf32>
    %cst_98 = arith.constant dense<0.000000e+00> : vector<8x128xf32>
    %610 = tpu.matmul %609, %9, %cst_98 {dimension_numbers = #tpu.dot_dimension_numbers<[1], [0], [0], [1], [0, 0, 1, 1], [], []>} : vector<8x64xf32>, vector<64x128xf32>, vector<8x128xf32> -> vector<8x128xf32>
    %611 = vector.broadcast %19 : vector<1x128xf32> to vector<8x128xf32>
    %612 = arith.addf %610, %611 : vector<8x128xf32>
    %613 = vector.extract_strided_slice %612 {offsets = [0, 0], sizes = [8, 96], strides = [1, 1]} : vector<8x128xf32> to vector<8x96xf32>
    %614 = arith.negf %613 : vector<8x96xf32>
    %615 = math.exp %614 : vector<8x96xf32>
    %cst_99 = arith.constant 1.000000e+00 : f32
    %616 = vector.broadcast %cst_99 : f32 to vector<8x96xf32>
    %617 = arith.addf %616, %615 : vector<8x96xf32>
    %618 = arith.divf %616, %617 : vector<8x96xf32>
    %619 = vector.extract_strided_slice %618 {offsets = [0, 0], sizes = [8, 32], strides = [1, 1]} : vector<8x96xf32> to vector<8x32xf32>
    %620 = vector.extract_strided_slice %618 {offsets = [0, 32], sizes = [8, 32], strides = [1, 1]} : vector<8x96xf32> to vector<8x32xf32>
    %621 = vector.extract_strided_slice %618 {offsets = [0, 64], sizes = [8, 32], strides = [1, 1]} : vector<8x96xf32> to vector<8x32xf32>
    %622 = vector.extract_strided_slice %612 {offsets = [0, 96], sizes = [8, 32], strides = [1, 1]} : vector<8x128xf32> to vector<8x32xf32>
    %623 = math.tanh %622 : vector<8x32xf32>
    %624 = arith.mulf %620, %527 : vector<8x32xf32>
    %625 = arith.mulf %619, %623 : vector<8x32xf32>
    %626 = arith.addf %624, %625 : vector<8x32xf32>
    %627 = math.tanh %626 : vector<8x32xf32>
    %628 = arith.mulf %621, %627 : vector<8x32xf32>
    %629 = tpu.concatenate %548, %568 in 1 : vector<8x32xf32>, vector<8x32xf32> -> vector<8x64xf32>
    %cst_100 = arith.constant dense<0.000000e+00> : vector<8x128xf32>
    %630 = tpu.matmul %629, %3, %cst_100 {dimension_numbers = #tpu.dot_dimension_numbers<[1], [0], [0], [1], [0, 0, 1, 1], [], []>} : vector<8x64xf32>, vector<64x128xf32>, vector<8x128xf32> -> vector<8x128xf32>
    %631 = vector.broadcast %13 : vector<1x128xf32> to vector<8x128xf32>
    %632 = arith.addf %630, %631 : vector<8x128xf32>
    %633 = vector.extract_strided_slice %632 {offsets = [0, 0], sizes = [8, 96], strides = [1, 1]} : vector<8x128xf32> to vector<8x96xf32>
    %634 = arith.negf %633 : vector<8x96xf32>
    %635 = math.exp %634 : vector<8x96xf32>
    %cst_101 = arith.constant 1.000000e+00 : f32
    %636 = vector.broadcast %cst_101 : f32 to vector<8x96xf32>
    %637 = arith.addf %636, %635 : vector<8x96xf32>
    %638 = arith.divf %636, %637 : vector<8x96xf32>
    %639 = vector.extract_strided_slice %638 {offsets = [0, 0], sizes = [8, 32], strides = [1, 1]} : vector<8x96xf32> to vector<8x32xf32>
    %640 = vector.extract_strided_slice %638 {offsets = [0, 32], sizes = [8, 32], strides = [1, 1]} : vector<8x96xf32> to vector<8x32xf32>
    %641 = vector.extract_strided_slice %638 {offsets = [0, 64], sizes = [8, 32], strides = [1, 1]} : vector<8x96xf32> to vector<8x32xf32>
    %642 = vector.extract_strided_slice %632 {offsets = [0, 96], sizes = [8, 32], strides = [1, 1]} : vector<8x128xf32> to vector<8x32xf32>
    %643 = math.tanh %642 : vector<8x32xf32>
    %644 = arith.mulf %640, %566 : vector<8x32xf32>
    %645 = arith.mulf %639, %643 : vector<8x32xf32>
    %646 = arith.addf %644, %645 : vector<8x32xf32>
    %647 = math.tanh %646 : vector<8x32xf32>
    %648 = arith.mulf %641, %647 : vector<8x32xf32>
    %649 = tpu.concatenate %568, %588 in 1 : vector<8x32xf32>, vector<8x32xf32> -> vector<8x64xf32>
    %cst_102 = arith.constant dense<0.000000e+00> : vector<8x128xf32>
    %650 = tpu.matmul %649, %5, %cst_102 {dimension_numbers = #tpu.dot_dimension_numbers<[1], [0], [0], [1], [0, 0, 1, 1], [], []>} : vector<8x64xf32>, vector<64x128xf32>, vector<8x128xf32> -> vector<8x128xf32>
    %651 = vector.broadcast %15 : vector<1x128xf32> to vector<8x128xf32>
    %652 = arith.addf %650, %651 : vector<8x128xf32>
    %653 = vector.extract_strided_slice %652 {offsets = [0, 0], sizes = [8, 96], strides = [1, 1]} : vector<8x128xf32> to vector<8x96xf32>
    %654 = arith.negf %653 : vector<8x96xf32>
    %655 = math.exp %654 : vector<8x96xf32>
    %cst_103 = arith.constant 1.000000e+00 : f32
    %656 = vector.broadcast %cst_103 : f32 to vector<8x96xf32>
    %657 = arith.addf %656, %655 : vector<8x96xf32>
    %658 = arith.divf %656, %657 : vector<8x96xf32>
    %659 = vector.extract_strided_slice %658 {offsets = [0, 0], sizes = [8, 32], strides = [1, 1]} : vector<8x96xf32> to vector<8x32xf32>
    %660 = vector.extract_strided_slice %658 {offsets = [0, 32], sizes = [8, 32], strides = [1, 1]} : vector<8x96xf32> to vector<8x32xf32>
    %661 = vector.extract_strided_slice %658 {offsets = [0, 64], sizes = [8, 32], strides = [1, 1]} : vector<8x96xf32> to vector<8x32xf32>
    %662 = vector.extract_strided_slice %652 {offsets = [0, 96], sizes = [8, 32], strides = [1, 1]} : vector<8x128xf32> to vector<8x32xf32>
    %663 = math.tanh %662 : vector<8x32xf32>
    %664 = arith.mulf %660, %586 : vector<8x32xf32>
    %665 = arith.mulf %659, %663 : vector<8x32xf32>
    %666 = arith.addf %664, %665 : vector<8x32xf32>
    %667 = math.tanh %666 : vector<8x32xf32>
    %668 = arith.mulf %661, %667 : vector<8x32xf32>
    %669 = tpu.concatenate %588, %608 in 1 : vector<8x32xf32>, vector<8x32xf32> -> vector<8x64xf32>
    %cst_104 = arith.constant dense<0.000000e+00> : vector<8x128xf32>
    %670 = tpu.matmul %669, %7, %cst_104 {dimension_numbers = #tpu.dot_dimension_numbers<[1], [0], [0], [1], [0, 0, 1, 1], [], []>} : vector<8x64xf32>, vector<64x128xf32>, vector<8x128xf32> -> vector<8x128xf32>
    %671 = vector.broadcast %17 : vector<1x128xf32> to vector<8x128xf32>
    %672 = arith.addf %670, %671 : vector<8x128xf32>
    %673 = vector.extract_strided_slice %672 {offsets = [0, 0], sizes = [8, 96], strides = [1, 1]} : vector<8x128xf32> to vector<8x96xf32>
    %674 = arith.negf %673 : vector<8x96xf32>
    %675 = math.exp %674 : vector<8x96xf32>
    %cst_105 = arith.constant 1.000000e+00 : f32
    %676 = vector.broadcast %cst_105 : f32 to vector<8x96xf32>
    %677 = arith.addf %676, %675 : vector<8x96xf32>
    %678 = arith.divf %676, %677 : vector<8x96xf32>
    %679 = vector.extract_strided_slice %678 {offsets = [0, 0], sizes = [8, 32], strides = [1, 1]} : vector<8x96xf32> to vector<8x32xf32>
    %680 = vector.extract_strided_slice %678 {offsets = [0, 32], sizes = [8, 32], strides = [1, 1]} : vector<8x96xf32> to vector<8x32xf32>
    %681 = vector.extract_strided_slice %678 {offsets = [0, 64], sizes = [8, 32], strides = [1, 1]} : vector<8x96xf32> to vector<8x32xf32>
    %682 = vector.extract_strided_slice %672 {offsets = [0, 96], sizes = [8, 32], strides = [1, 1]} : vector<8x128xf32> to vector<8x32xf32>
    %683 = math.tanh %682 : vector<8x32xf32>
    %684 = arith.mulf %680, %606 : vector<8x32xf32>
    %685 = arith.mulf %679, %683 : vector<8x32xf32>
    %686 = arith.addf %684, %685 : vector<8x32xf32>
    %687 = math.tanh %686 : vector<8x32xf32>
    %688 = arith.mulf %681, %687 : vector<8x32xf32>
    %689 = tpu.concatenate %608, %628 in 1 : vector<8x32xf32>, vector<8x32xf32> -> vector<8x64xf32>
    %cst_106 = arith.constant dense<0.000000e+00> : vector<8x128xf32>
    %690 = tpu.matmul %689, %9, %cst_106 {dimension_numbers = #tpu.dot_dimension_numbers<[1], [0], [0], [1], [0, 0, 1, 1], [], []>} : vector<8x64xf32>, vector<64x128xf32>, vector<8x128xf32> -> vector<8x128xf32>
    %691 = vector.broadcast %19 : vector<1x128xf32> to vector<8x128xf32>
    %692 = arith.addf %690, %691 : vector<8x128xf32>
    %693 = vector.extract_strided_slice %692 {offsets = [0, 0], sizes = [8, 96], strides = [1, 1]} : vector<8x128xf32> to vector<8x96xf32>
    %694 = arith.negf %693 : vector<8x96xf32>
    %695 = math.exp %694 : vector<8x96xf32>
    %cst_107 = arith.constant 1.000000e+00 : f32
    %696 = vector.broadcast %cst_107 : f32 to vector<8x96xf32>
    %697 = arith.addf %696, %695 : vector<8x96xf32>
    %698 = arith.divf %696, %697 : vector<8x96xf32>
    %699 = vector.extract_strided_slice %698 {offsets = [0, 0], sizes = [8, 32], strides = [1, 1]} : vector<8x96xf32> to vector<8x32xf32>
    %700 = vector.extract_strided_slice %698 {offsets = [0, 32], sizes = [8, 32], strides = [1, 1]} : vector<8x96xf32> to vector<8x32xf32>
    %701 = vector.extract_strided_slice %698 {offsets = [0, 64], sizes = [8, 32], strides = [1, 1]} : vector<8x96xf32> to vector<8x32xf32>
    %702 = vector.extract_strided_slice %692 {offsets = [0, 96], sizes = [8, 32], strides = [1, 1]} : vector<8x128xf32> to vector<8x32xf32>
    %703 = math.tanh %702 : vector<8x32xf32>
    %704 = arith.mulf %700, %626 : vector<8x32xf32>
    %705 = arith.mulf %699, %703 : vector<8x32xf32>
    %706 = arith.addf %704, %705 : vector<8x32xf32>
    %707 = math.tanh %706 : vector<8x32xf32>
    %708 = arith.mulf %701, %707 : vector<8x32xf32>
    %709 = tpu.concatenate %648, %668 in 1 : vector<8x32xf32>, vector<8x32xf32> -> vector<8x64xf32>
    %cst_108 = arith.constant dense<0.000000e+00> : vector<8x128xf32>
    %710 = tpu.matmul %709, %5, %cst_108 {dimension_numbers = #tpu.dot_dimension_numbers<[1], [0], [0], [1], [0, 0, 1, 1], [], []>} : vector<8x64xf32>, vector<64x128xf32>, vector<8x128xf32> -> vector<8x128xf32>
    %711 = vector.broadcast %15 : vector<1x128xf32> to vector<8x128xf32>
    %712 = arith.addf %710, %711 : vector<8x128xf32>
    %713 = vector.extract_strided_slice %712 {offsets = [0, 0], sizes = [8, 96], strides = [1, 1]} : vector<8x128xf32> to vector<8x96xf32>
    %714 = arith.negf %713 : vector<8x96xf32>
    %715 = math.exp %714 : vector<8x96xf32>
    %cst_109 = arith.constant 1.000000e+00 : f32
    %716 = vector.broadcast %cst_109 : f32 to vector<8x96xf32>
    %717 = arith.addf %716, %715 : vector<8x96xf32>
    %718 = arith.divf %716, %717 : vector<8x96xf32>
    %719 = vector.extract_strided_slice %718 {offsets = [0, 0], sizes = [8, 32], strides = [1, 1]} : vector<8x96xf32> to vector<8x32xf32>
    %720 = vector.extract_strided_slice %718 {offsets = [0, 32], sizes = [8, 32], strides = [1, 1]} : vector<8x96xf32> to vector<8x32xf32>
    %721 = vector.extract_strided_slice %718 {offsets = [0, 64], sizes = [8, 32], strides = [1, 1]} : vector<8x96xf32> to vector<8x32xf32>
    %722 = vector.extract_strided_slice %712 {offsets = [0, 96], sizes = [8, 32], strides = [1, 1]} : vector<8x128xf32> to vector<8x32xf32>
    %723 = math.tanh %722 : vector<8x32xf32>
    %724 = arith.mulf %720, %666 : vector<8x32xf32>
    %725 = arith.mulf %719, %723 : vector<8x32xf32>
    %726 = arith.addf %724, %725 : vector<8x32xf32>
    %727 = math.tanh %726 : vector<8x32xf32>
    %728 = arith.mulf %721, %727 : vector<8x32xf32>
    %729 = tpu.concatenate %668, %688 in 1 : vector<8x32xf32>, vector<8x32xf32> -> vector<8x64xf32>
    %cst_110 = arith.constant dense<0.000000e+00> : vector<8x128xf32>
    %730 = tpu.matmul %729, %7, %cst_110 {dimension_numbers = #tpu.dot_dimension_numbers<[1], [0], [0], [1], [0, 0, 1, 1], [], []>} : vector<8x64xf32>, vector<64x128xf32>, vector<8x128xf32> -> vector<8x128xf32>
    %731 = vector.broadcast %17 : vector<1x128xf32> to vector<8x128xf32>
    %732 = arith.addf %730, %731 : vector<8x128xf32>
    %733 = vector.extract_strided_slice %732 {offsets = [0, 0], sizes = [8, 96], strides = [1, 1]} : vector<8x128xf32> to vector<8x96xf32>
    %734 = arith.negf %733 : vector<8x96xf32>
    %735 = math.exp %734 : vector<8x96xf32>
    %cst_111 = arith.constant 1.000000e+00 : f32
    %736 = vector.broadcast %cst_111 : f32 to vector<8x96xf32>
    %737 = arith.addf %736, %735 : vector<8x96xf32>
    %738 = arith.divf %736, %737 : vector<8x96xf32>
    %739 = vector.extract_strided_slice %738 {offsets = [0, 0], sizes = [8, 32], strides = [1, 1]} : vector<8x96xf32> to vector<8x32xf32>
    %740 = vector.extract_strided_slice %738 {offsets = [0, 32], sizes = [8, 32], strides = [1, 1]} : vector<8x96xf32> to vector<8x32xf32>
    %741 = vector.extract_strided_slice %738 {offsets = [0, 64], sizes = [8, 32], strides = [1, 1]} : vector<8x96xf32> to vector<8x32xf32>
    %742 = vector.extract_strided_slice %732 {offsets = [0, 96], sizes = [8, 32], strides = [1, 1]} : vector<8x128xf32> to vector<8x32xf32>
    %743 = math.tanh %742 : vector<8x32xf32>
    %744 = arith.mulf %740, %686 : vector<8x32xf32>
    %745 = arith.mulf %739, %743 : vector<8x32xf32>
    %746 = arith.addf %744, %745 : vector<8x32xf32>
    %747 = math.tanh %746 : vector<8x32xf32>
    %748 = arith.mulf %741, %747 : vector<8x32xf32>
    %749 = tpu.concatenate %688, %708 in 1 : vector<8x32xf32>, vector<8x32xf32> -> vector<8x64xf32>
    %cst_112 = arith.constant dense<0.000000e+00> : vector<8x128xf32>
    %750 = tpu.matmul %749, %9, %cst_112 {dimension_numbers = #tpu.dot_dimension_numbers<[1], [0], [0], [1], [0, 0, 1, 1], [], []>} : vector<8x64xf32>, vector<64x128xf32>, vector<8x128xf32> -> vector<8x128xf32>
    %751 = vector.broadcast %19 : vector<1x128xf32> to vector<8x128xf32>
    %752 = arith.addf %750, %751 : vector<8x128xf32>
    %753 = vector.extract_strided_slice %752 {offsets = [0, 0], sizes = [8, 96], strides = [1, 1]} : vector<8x128xf32> to vector<8x96xf32>
    %754 = arith.negf %753 : vector<8x96xf32>
    %755 = math.exp %754 : vector<8x96xf32>
    %cst_113 = arith.constant 1.000000e+00 : f32
    %756 = vector.broadcast %cst_113 : f32 to vector<8x96xf32>
    %757 = arith.addf %756, %755 : vector<8x96xf32>
    %758 = arith.divf %756, %757 : vector<8x96xf32>
    %759 = vector.extract_strided_slice %758 {offsets = [0, 0], sizes = [8, 32], strides = [1, 1]} : vector<8x96xf32> to vector<8x32xf32>
    %760 = vector.extract_strided_slice %758 {offsets = [0, 32], sizes = [8, 32], strides = [1, 1]} : vector<8x96xf32> to vector<8x32xf32>
    %761 = vector.extract_strided_slice %758 {offsets = [0, 64], sizes = [8, 32], strides = [1, 1]} : vector<8x96xf32> to vector<8x32xf32>
    %762 = vector.extract_strided_slice %752 {offsets = [0, 96], sizes = [8, 32], strides = [1, 1]} : vector<8x128xf32> to vector<8x32xf32>
    %763 = math.tanh %762 : vector<8x32xf32>
    %764 = arith.mulf %760, %706 : vector<8x32xf32>
    %765 = arith.mulf %759, %763 : vector<8x32xf32>
    %766 = arith.addf %764, %765 : vector<8x32xf32>
    %767 = math.tanh %766 : vector<8x32xf32>
    %768 = arith.mulf %761, %767 : vector<8x32xf32>
    %769 = tpu.concatenate %728, %748 in 1 : vector<8x32xf32>, vector<8x32xf32> -> vector<8x64xf32>
    %cst_114 = arith.constant dense<0.000000e+00> : vector<8x128xf32>
    %770 = tpu.matmul %769, %7, %cst_114 {dimension_numbers = #tpu.dot_dimension_numbers<[1], [0], [0], [1], [0, 0, 1, 1], [], []>} : vector<8x64xf32>, vector<64x128xf32>, vector<8x128xf32> -> vector<8x128xf32>
    %771 = vector.broadcast %17 : vector<1x128xf32> to vector<8x128xf32>
    %772 = arith.addf %770, %771 : vector<8x128xf32>
    %773 = vector.extract_strided_slice %772 {offsets = [0, 0], sizes = [8, 96], strides = [1, 1]} : vector<8x128xf32> to vector<8x96xf32>
    %774 = arith.negf %773 : vector<8x96xf32>
    %775 = math.exp %774 : vector<8x96xf32>
    %cst_115 = arith.constant 1.000000e+00 : f32
    %776 = vector.broadcast %cst_115 : f32 to vector<8x96xf32>
    %777 = arith.addf %776, %775 : vector<8x96xf32>
    %778 = arith.divf %776, %777 : vector<8x96xf32>
    %779 = vector.extract_strided_slice %778 {offsets = [0, 0], sizes = [8, 32], strides = [1, 1]} : vector<8x96xf32> to vector<8x32xf32>
    %780 = vector.extract_strided_slice %778 {offsets = [0, 32], sizes = [8, 32], strides = [1, 1]} : vector<8x96xf32> to vector<8x32xf32>
    %781 = vector.extract_strided_slice %778 {offsets = [0, 64], sizes = [8, 32], strides = [1, 1]} : vector<8x96xf32> to vector<8x32xf32>
    %782 = vector.extract_strided_slice %772 {offsets = [0, 96], sizes = [8, 32], strides = [1, 1]} : vector<8x128xf32> to vector<8x32xf32>
    %783 = math.tanh %782 : vector<8x32xf32>
    %784 = arith.mulf %780, %746 : vector<8x32xf32>
    %785 = arith.mulf %779, %783 : vector<8x32xf32>
    %786 = arith.addf %784, %785 : vector<8x32xf32>
    %787 = math.tanh %786 : vector<8x32xf32>
    %788 = arith.mulf %781, %787 : vector<8x32xf32>
    %789 = tpu.concatenate %748, %768 in 1 : vector<8x32xf32>, vector<8x32xf32> -> vector<8x64xf32>
    %cst_116 = arith.constant dense<0.000000e+00> : vector<8x128xf32>
    %790 = tpu.matmul %789, %9, %cst_116 {dimension_numbers = #tpu.dot_dimension_numbers<[1], [0], [0], [1], [0, 0, 1, 1], [], []>} : vector<8x64xf32>, vector<64x128xf32>, vector<8x128xf32> -> vector<8x128xf32>
    %791 = vector.broadcast %19 : vector<1x128xf32> to vector<8x128xf32>
    %792 = arith.addf %790, %791 : vector<8x128xf32>
    %793 = vector.extract_strided_slice %792 {offsets = [0, 0], sizes = [8, 96], strides = [1, 1]} : vector<8x128xf32> to vector<8x96xf32>
    %794 = arith.negf %793 : vector<8x96xf32>
    %795 = math.exp %794 : vector<8x96xf32>
    %cst_117 = arith.constant 1.000000e+00 : f32
    %796 = vector.broadcast %cst_117 : f32 to vector<8x96xf32>
    %797 = arith.addf %796, %795 : vector<8x96xf32>
    %798 = arith.divf %796, %797 : vector<8x96xf32>
    %799 = vector.extract_strided_slice %798 {offsets = [0, 0], sizes = [8, 32], strides = [1, 1]} : vector<8x96xf32> to vector<8x32xf32>
    %800 = vector.extract_strided_slice %798 {offsets = [0, 32], sizes = [8, 32], strides = [1, 1]} : vector<8x96xf32> to vector<8x32xf32>
    %801 = vector.extract_strided_slice %798 {offsets = [0, 64], sizes = [8, 32], strides = [1, 1]} : vector<8x96xf32> to vector<8x32xf32>
    %802 = vector.extract_strided_slice %792 {offsets = [0, 96], sizes = [8, 32], strides = [1, 1]} : vector<8x128xf32> to vector<8x32xf32>
    %803 = math.tanh %802 : vector<8x32xf32>
    %804 = arith.mulf %800, %766 : vector<8x32xf32>
    %805 = arith.mulf %799, %803 : vector<8x32xf32>
    %806 = arith.addf %804, %805 : vector<8x32xf32>
    %807 = math.tanh %806 : vector<8x32xf32>
    %808 = arith.mulf %801, %807 : vector<8x32xf32>
    %809 = tpu.concatenate %788, %808 in 1 : vector<8x32xf32>, vector<8x32xf32> -> vector<8x64xf32>
    %cst_118 = arith.constant dense<0.000000e+00> : vector<8x128xf32>
    %810 = tpu.matmul %809, %9, %cst_118 {dimension_numbers = #tpu.dot_dimension_numbers<[1], [0], [0], [1], [0, 0, 1, 1], [], []>} : vector<8x64xf32>, vector<64x128xf32>, vector<8x128xf32> -> vector<8x128xf32>
    %811 = vector.broadcast %19 : vector<1x128xf32> to vector<8x128xf32>
    %812 = arith.addf %810, %811 : vector<8x128xf32>
    %813 = vector.extract_strided_slice %812 {offsets = [0, 0], sizes = [8, 96], strides = [1, 1]} : vector<8x128xf32> to vector<8x96xf32>
    %814 = arith.negf %813 : vector<8x96xf32>
    %815 = math.exp %814 : vector<8x96xf32>
    %cst_119 = arith.constant 1.000000e+00 : f32
    %816 = vector.broadcast %cst_119 : f32 to vector<8x96xf32>
    %817 = arith.addf %816, %815 : vector<8x96xf32>
    %818 = arith.divf %816, %817 : vector<8x96xf32>
    %819 = vector.extract_strided_slice %818 {offsets = [0, 0], sizes = [8, 32], strides = [1, 1]} : vector<8x96xf32> to vector<8x32xf32>
    %820 = vector.extract_strided_slice %818 {offsets = [0, 32], sizes = [8, 32], strides = [1, 1]} : vector<8x96xf32> to vector<8x32xf32>
    %821 = vector.extract_strided_slice %818 {offsets = [0, 64], sizes = [8, 32], strides = [1, 1]} : vector<8x96xf32> to vector<8x32xf32>
    %822 = vector.extract_strided_slice %812 {offsets = [0, 96], sizes = [8, 32], strides = [1, 1]} : vector<8x128xf32> to vector<8x32xf32>
    %823 = math.tanh %822 : vector<8x32xf32>
    %824 = arith.mulf %820, %806 : vector<8x32xf32>
    %825 = arith.mulf %819, %823 : vector<8x32xf32>
    %826 = arith.addf %824, %825 : vector<8x32xf32>
    %827 = math.tanh %826 : vector<8x32xf32>
    %828 = arith.mulf %821, %827 : vector<8x32xf32>
    %c0_120 = arith.constant 0 : index
    %c0_121 = arith.constant 0 : index
    %829 = vector.load %arg2[%c0_120, %c0_121] : memref<8x32xf32, #tpu.memory_space<vmem>>, vector<8x32xf32>
    %830 = tpu.iota {dimensions = array<i32: 1>} : vector<8x32xi32>
    %c0_i32 = arith.constant 0 : i32
    %831 = vector.broadcast %c0_i32 : i32 to vector<8x32xi32>
    %832 = arith.cmpi eq, %830, %831 : vector<8x32xi32>
    %833 = tpu.iota {dimensions = array<i32: 1>} : vector<8x3xi32>
    %cst_122 = arith.constant 0.000000e+00 : f32
    %834 = vector.broadcast %cst_122 : f32 to vector<8x3xf32>
    %c0_123 = arith.constant 0 : index
    %c0_124 = arith.constant 0 : index
    %835 = vector.load %arg6[%c0_123, %c0_124] : memref<32x32xf32, #tpu.memory_space<vmem>>, vector<32x32xf32>
    %c0_125 = arith.constant 0 : index
    %c0_126 = arith.constant 0 : index
    %836 = vector.load %arg7[%c0_125, %c0_126] : memref<1x32xf32, #tpu.memory_space<vmem>>, vector<1x32xf32>
    %c0_127 = arith.constant 0 : index
    %c0_128 = arith.constant 0 : index
    %837 = vector.load %arg8[%c0_127, %c0_128] : memref<32x32xf32, #tpu.memory_space<vmem>>, vector<32x32xf32>
    %c0_129 = arith.constant 0 : index
    %c0_130 = arith.constant 0 : index
    %838 = vector.load %arg9[%c0_129, %c0_130] : memref<1x32xf32, #tpu.memory_space<vmem>>, vector<1x32xf32>
    %c0_131 = arith.constant 0 : index
    %c0_132 = arith.constant 0 : index
    %839 = vector.load %arg10[%c0_131, %c0_132] : memref<1x32xf32, #tpu.memory_space<vmem>>, vector<1x32xf32>
    %c0_133 = arith.constant 0 : index
    %c0_134 = arith.constant 0 : index
    %840 = vector.load %arg11[%c0_133, %c0_134] : memref<1x1xf32, #tpu.memory_space<vmem>>, vector<1x1xf32>
    %841 = tpu.concatenate %829, %548 in 1 : vector<8x32xf32>, vector<8x32xf32> -> vector<8x64xf32>
    %cst_135 = arith.constant dense<0.000000e+00> : vector<8x128xf32>
    %842 = tpu.matmul %841, %1, %cst_135 {dimension_numbers = #tpu.dot_dimension_numbers<[1], [0], [0], [1], [0, 0, 1, 1], [], []>} : vector<8x64xf32>, vector<64x128xf32>, vector<8x128xf32> -> vector<8x128xf32>
    %843 = vector.broadcast %11 : vector<1x128xf32> to vector<8x128xf32>
    %844 = arith.addf %842, %843 : vector<8x128xf32>
    %845 = vector.extract_strided_slice %844 {offsets = [0, 0], sizes = [8, 96], strides = [1, 1]} : vector<8x128xf32> to vector<8x96xf32>
    %846 = arith.negf %845 : vector<8x96xf32>
    %847 = math.exp %846 : vector<8x96xf32>
    %cst_136 = arith.constant 1.000000e+00 : f32
    %848 = vector.broadcast %cst_136 : f32 to vector<8x96xf32>
    %849 = arith.addf %848, %847 : vector<8x96xf32>
    %850 = arith.divf %848, %849 : vector<8x96xf32>
    %851 = vector.extract_strided_slice %850 {offsets = [0, 0], sizes = [8, 32], strides = [1, 1]} : vector<8x96xf32> to vector<8x32xf32>
    %852 = vector.extract_strided_slice %850 {offsets = [0, 32], sizes = [8, 32], strides = [1, 1]} : vector<8x96xf32> to vector<8x32xf32>
    %853 = vector.extract_strided_slice %850 {offsets = [0, 64], sizes = [8, 32], strides = [1, 1]} : vector<8x96xf32> to vector<8x32xf32>
    %854 = vector.extract_strided_slice %844 {offsets = [0, 96], sizes = [8, 32], strides = [1, 1]} : vector<8x128xf32> to vector<8x32xf32>
    %855 = math.tanh %854 : vector<8x32xf32>
    %856 = arith.mulf %852, %546 : vector<8x32xf32>
    %857 = arith.mulf %851, %855 : vector<8x32xf32>
    %858 = arith.addf %856, %857 : vector<8x32xf32>
    %859 = math.tanh %858 : vector<8x32xf32>
    %860 = arith.mulf %853, %859 : vector<8x32xf32>
    %861 = tpu.concatenate %860, %648 in 1 : vector<8x32xf32>, vector<8x32xf32> -> vector<8x64xf32>
    %cst_137 = arith.constant dense<0.000000e+00> : vector<8x128xf32>
    %862 = tpu.matmul %861, %3, %cst_137 {dimension_numbers = #tpu.dot_dimension_numbers<[1], [0], [0], [1], [0, 0, 1, 1], [], []>} : vector<8x64xf32>, vector<64x128xf32>, vector<8x128xf32> -> vector<8x128xf32>
    %863 = vector.broadcast %13 : vector<1x128xf32> to vector<8x128xf32>
    %864 = arith.addf %862, %863 : vector<8x128xf32>
    %865 = vector.extract_strided_slice %864 {offsets = [0, 0], sizes = [8, 96], strides = [1, 1]} : vector<8x128xf32> to vector<8x96xf32>
    %866 = arith.negf %865 : vector<8x96xf32>
    %867 = math.exp %866 : vector<8x96xf32>
    %cst_138 = arith.constant 1.000000e+00 : f32
    %868 = vector.broadcast %cst_138 : f32 to vector<8x96xf32>
    %869 = arith.addf %868, %867 : vector<8x96xf32>
    %870 = arith.divf %868, %869 : vector<8x96xf32>
    %871 = vector.extract_strided_slice %870 {offsets = [0, 0], sizes = [8, 32], strides = [1, 1]} : vector<8x96xf32> to vector<8x32xf32>
    %872 = vector.extract_strided_slice %870 {offsets = [0, 32], sizes = [8, 32], strides = [1, 1]} : vector<8x96xf32> to vector<8x32xf32>
    %873 = vector.extract_strided_slice %870 {offsets = [0, 64], sizes = [8, 32], strides = [1, 1]} : vector<8x96xf32> to vector<8x32xf32>
    %874 = vector.extract_strided_slice %864 {offsets = [0, 96], sizes = [8, 32], strides = [1, 1]} : vector<8x128xf32> to vector<8x32xf32>
    %875 = math.tanh %874 : vector<8x32xf32>
    %876 = arith.mulf %872, %646 : vector<8x32xf32>
    %877 = arith.mulf %871, %875 : vector<8x32xf32>
    %878 = arith.addf %876, %877 : vector<8x32xf32>
    %879 = math.tanh %878 : vector<8x32xf32>
    %880 = arith.mulf %873, %879 : vector<8x32xf32>
    %881 = tpu.concatenate %880, %728 in 1 : vector<8x32xf32>, vector<8x32xf32> -> vector<8x64xf32>
    %cst_139 = arith.constant dense<0.000000e+00> : vector<8x128xf32>
    %882 = tpu.matmul %881, %5, %cst_139 {dimension_numbers = #tpu.dot_dimension_numbers<[1], [0], [0], [1], [0, 0, 1, 1], [], []>} : vector<8x64xf32>, vector<64x128xf32>, vector<8x128xf32> -> vector<8x128xf32>
    %883 = vector.broadcast %15 : vector<1x128xf32> to vector<8x128xf32>
    %884 = arith.addf %882, %883 : vector<8x128xf32>
    %885 = vector.extract_strided_slice %884 {offsets = [0, 0], sizes = [8, 96], strides = [1, 1]} : vector<8x128xf32> to vector<8x96xf32>
    %886 = arith.negf %885 : vector<8x96xf32>
    %887 = math.exp %886 : vector<8x96xf32>
    %cst_140 = arith.constant 1.000000e+00 : f32
    %888 = vector.broadcast %cst_140 : f32 to vector<8x96xf32>
    %889 = arith.addf %888, %887 : vector<8x96xf32>
    %890 = arith.divf %888, %889 : vector<8x96xf32>
    %891 = vector.extract_strided_slice %890 {offsets = [0, 0], sizes = [8, 32], strides = [1, 1]} : vector<8x96xf32> to vector<8x32xf32>
    %892 = vector.extract_strided_slice %890 {offsets = [0, 32], sizes = [8, 32], strides = [1, 1]} : vector<8x96xf32> to vector<8x32xf32>
    %893 = vector.extract_strided_slice %890 {offsets = [0, 64], sizes = [8, 32], strides = [1, 1]} : vector<8x96xf32> to vector<8x32xf32>
    %894 = vector.extract_strided_slice %884 {offsets = [0, 96], sizes = [8, 32], strides = [1, 1]} : vector<8x128xf32> to vector<8x32xf32>
    %895 = math.tanh %894 : vector<8x32xf32>
    %896 = arith.mulf %892, %726 : vector<8x32xf32>
    %897 = arith.mulf %891, %895 : vector<8x32xf32>
    %898 = arith.addf %896, %897 : vector<8x32xf32>
    %899 = math.tanh %898 : vector<8x32xf32>
    %900 = arith.mulf %893, %899 : vector<8x32xf32>
    %901 = tpu.concatenate %900, %788 in 1 : vector<8x32xf32>, vector<8x32xf32> -> vector<8x64xf32>
    %cst_141 = arith.constant dense<0.000000e+00> : vector<8x128xf32>
    %902 = tpu.matmul %901, %7, %cst_141 {dimension_numbers = #tpu.dot_dimension_numbers<[1], [0], [0], [1], [0, 0, 1, 1], [], []>} : vector<8x64xf32>, vector<64x128xf32>, vector<8x128xf32> -> vector<8x128xf32>
    %903 = vector.broadcast %17 : vector<1x128xf32> to vector<8x128xf32>
    %904 = arith.addf %902, %903 : vector<8x128xf32>
    %905 = vector.extract_strided_slice %904 {offsets = [0, 0], sizes = [8, 96], strides = [1, 1]} : vector<8x128xf32> to vector<8x96xf32>
    %906 = arith.negf %905 : vector<8x96xf32>
    %907 = math.exp %906 : vector<8x96xf32>
    %cst_142 = arith.constant 1.000000e+00 : f32
    %908 = vector.broadcast %cst_142 : f32 to vector<8x96xf32>
    %909 = arith.addf %908, %907 : vector<8x96xf32>
    %910 = arith.divf %908, %909 : vector<8x96xf32>
    %911 = vector.extract_strided_slice %910 {offsets = [0, 0], sizes = [8, 32], strides = [1, 1]} : vector<8x96xf32> to vector<8x32xf32>
    %912 = vector.extract_strided_slice %910 {offsets = [0, 32], sizes = [8, 32], strides = [1, 1]} : vector<8x96xf32> to vector<8x32xf32>
    %913 = vector.extract_strided_slice %910 {offsets = [0, 64], sizes = [8, 32], strides = [1, 1]} : vector<8x96xf32> to vector<8x32xf32>
    %914 = vector.extract_strided_slice %904 {offsets = [0, 96], sizes = [8, 32], strides = [1, 1]} : vector<8x128xf32> to vector<8x32xf32>
    %915 = math.tanh %914 : vector<8x32xf32>
    %916 = arith.mulf %912, %786 : vector<8x32xf32>
    %917 = arith.mulf %911, %915 : vector<8x32xf32>
    %918 = arith.addf %916, %917 : vector<8x32xf32>
    %919 = math.tanh %918 : vector<8x32xf32>
    %920 = arith.mulf %913, %919 : vector<8x32xf32>
    %921 = tpu.concatenate %920, %828 in 1 : vector<8x32xf32>, vector<8x32xf32> -> vector<8x64xf32>
    %cst_143 = arith.constant dense<0.000000e+00> : vector<8x128xf32>
    %922 = tpu.matmul %921, %9, %cst_143 {dimension_numbers = #tpu.dot_dimension_numbers<[1], [0], [0], [1], [0, 0, 1, 1], [], []>} : vector<8x64xf32>, vector<64x128xf32>, vector<8x128xf32> -> vector<8x128xf32>
    %923 = vector.broadcast %19 : vector<1x128xf32> to vector<8x128xf32>
    %924 = arith.addf %922, %923 : vector<8x128xf32>
    %925 = vector.extract_strided_slice %924 {offsets = [0, 0], sizes = [8, 96], strides = [1, 1]} : vector<8x128xf32> to vector<8x96xf32>
    %926 = arith.negf %925 : vector<8x96xf32>
    %927 = math.exp %926 : vector<8x96xf32>
    %cst_144 = arith.constant 1.000000e+00 : f32
    %928 = vector.broadcast %cst_144 : f32 to vector<8x96xf32>
    %929 = arith.addf %928, %927 : vector<8x96xf32>
    %930 = arith.divf %928, %929 : vector<8x96xf32>
    %931 = vector.extract_strided_slice %930 {offsets = [0, 0], sizes = [8, 32], strides = [1, 1]} : vector<8x96xf32> to vector<8x32xf32>
    %932 = vector.extract_strided_slice %930 {offsets = [0, 32], sizes = [8, 32], strides = [1, 1]} : vector<8x96xf32> to vector<8x32xf32>
    %933 = vector.extract_strided_slice %930 {offsets = [0, 64], sizes = [8, 32], strides = [1, 1]} : vector<8x96xf32> to vector<8x32xf32>
    %934 = vector.extract_strided_slice %924 {offsets = [0, 96], sizes = [8, 32], strides = [1, 1]} : vector<8x128xf32> to vector<8x32xf32>
    %935 = math.tanh %934 : vector<8x32xf32>
    %936 = arith.mulf %932, %826 : vector<8x32xf32>
    %937 = arith.mulf %931, %935 : vector<8x32xf32>
    %938 = arith.addf %936, %937 : vector<8x32xf32>
    %939 = math.tanh %938 : vector<8x32xf32>
    %940 = arith.mulf %933, %939 : vector<8x32xf32>
    %cst_145 = arith.constant dense<0.000000e+00> : vector<8x32xf32>
    %941 = tpu.matmul %940, %835, %cst_145 {dimension_numbers = #tpu.dot_dimension_numbers<[1], [0], [0], [1], [0, 0, 1, 1], [], []>} : vector<8x32xf32>, vector<32x32xf32>, vector<8x32xf32> -> vector<8x32xf32>
    %942 = vector.broadcast %836 : vector<1x32xf32> to vector<8x32xf32>
    %943 = arith.addf %941, %942 : vector<8x32xf32>
    %cst_146 = arith.constant 0.000000e+00 : f32
    %944 = vector.broadcast %cst_146 : f32 to vector<8x32xf32>
    %945 = arith.maximumf %943, %944 : vector<8x32xf32>
    %cst_147 = arith.constant dense<0.000000e+00> : vector<8x32xf32>
    %946 = tpu.matmul %945, %837, %cst_147 {dimension_numbers = #tpu.dot_dimension_numbers<[1], [0], [0], [1], [0, 0, 1, 1], [], []>} : vector<8x32xf32>, vector<32x32xf32>, vector<8x32xf32> -> vector<8x32xf32>
    %947 = vector.broadcast %838 : vector<1x32xf32> to vector<8x32xf32>
    %948 = arith.addf %946, %947 : vector<8x32xf32>
    %cst_148 = arith.constant 0.000000e+00 : f32
    %949 = vector.broadcast %cst_148 : f32 to vector<8x32xf32>
    %950 = arith.maximumf %948, %949 : vector<8x32xf32>
    %951 = vector.broadcast %839 : vector<1x32xf32> to vector<8x32xf32>
    %952 = arith.mulf %950, %951 : vector<8x32xf32>
    %cst_149 = arith.constant dense<0.000000e+00> : vector<8xf32>
    %953 = vector.multi_reduction <add>, %952, %cst_149 [1] : vector<8x32xf32> to vector<8xf32>
    %954 = vector.shape_cast %953 : vector<8xf32> to vector<8x1xf32>
    %955 = vector.broadcast %840 : vector<1x1xf32> to vector<8x1xf32>
    %956 = arith.addf %954, %955 : vector<8x1xf32>
    %c0_i32_150 = arith.constant 0 : i32
    %957 = vector.broadcast %c0_i32_150 : i32 to vector<8x3xi32>
    %958 = arith.cmpi eq, %833, %957 : vector<8x3xi32>
    %959 = vector.shape_cast %956 : vector<8x1xf32> to vector<8x1xf32>
    %960 = vector.broadcast %959 : vector<8x1xf32> to vector<8x3xf32>
    %961 = arith.select %958, %960, %834 : vector<8x3xi1>, vector<8x3xf32>
    %962 = vector.shape_cast %956 : vector<8x1xf32> to vector<8x1xf32>
    %963 = vector.broadcast %962 : vector<8x1xf32> to vector<8x32xf32>
    %964 = arith.select %832, %963, %829 : vector<8x32xi1>, vector<8x32xf32>
    %965 = tpu.concatenate %964, %860 in 1 : vector<8x32xf32>, vector<8x32xf32> -> vector<8x64xf32>
    %cst_151 = arith.constant dense<0.000000e+00> : vector<8x128xf32>
    %966 = tpu.matmul %965, %1, %cst_151 {dimension_numbers = #tpu.dot_dimension_numbers<[1], [0], [0], [1], [0, 0, 1, 1], [], []>} : vector<8x64xf32>, vector<64x128xf32>, vector<8x128xf32> -> vector<8x128xf32>
    %967 = vector.broadcast %11 : vector<1x128xf32> to vector<8x128xf32>
    %968 = arith.addf %966, %967 : vector<8x128xf32>
    %969 = vector.extract_strided_slice %968 {offsets = [0, 0], sizes = [8, 96], strides = [1, 1]} : vector<8x128xf32> to vector<8x96xf32>
    %970 = arith.negf %969 : vector<8x96xf32>
    %971 = math.exp %970 : vector<8x96xf32>
    %cst_152 = arith.constant 1.000000e+00 : f32
    %972 = vector.broadcast %cst_152 : f32 to vector<8x96xf32>
    %973 = arith.addf %972, %971 : vector<8x96xf32>
    %974 = arith.divf %972, %973 : vector<8x96xf32>
    %975 = vector.extract_strided_slice %974 {offsets = [0, 0], sizes = [8, 32], strides = [1, 1]} : vector<8x96xf32> to vector<8x32xf32>
    %976 = vector.extract_strided_slice %974 {offsets = [0, 32], sizes = [8, 32], strides = [1, 1]} : vector<8x96xf32> to vector<8x32xf32>
    %977 = vector.extract_strided_slice %974 {offsets = [0, 64], sizes = [8, 32], strides = [1, 1]} : vector<8x96xf32> to vector<8x32xf32>
    %978 = vector.extract_strided_slice %968 {offsets = [0, 96], sizes = [8, 32], strides = [1, 1]} : vector<8x128xf32> to vector<8x32xf32>
    %979 = math.tanh %978 : vector<8x32xf32>
    %980 = arith.mulf %976, %858 : vector<8x32xf32>
    %981 = arith.mulf %975, %979 : vector<8x32xf32>
    %982 = arith.addf %980, %981 : vector<8x32xf32>
    %983 = math.tanh %982 : vector<8x32xf32>
    %984 = arith.mulf %977, %983 : vector<8x32xf32>
    %985 = tpu.concatenate %984, %880 in 1 : vector<8x32xf32>, vector<8x32xf32> -> vector<8x64xf32>
    %cst_153 = arith.constant dense<0.000000e+00> : vector<8x128xf32>
    %986 = tpu.matmul %985, %3, %cst_153 {dimension_numbers = #tpu.dot_dimension_numbers<[1], [0], [0], [1], [0, 0, 1, 1], [], []>} : vector<8x64xf32>, vector<64x128xf32>, vector<8x128xf32> -> vector<8x128xf32>
    %987 = vector.broadcast %13 : vector<1x128xf32> to vector<8x128xf32>
    %988 = arith.addf %986, %987 : vector<8x128xf32>
    %989 = vector.extract_strided_slice %988 {offsets = [0, 0], sizes = [8, 96], strides = [1, 1]} : vector<8x128xf32> to vector<8x96xf32>
    %990 = arith.negf %989 : vector<8x96xf32>
    %991 = math.exp %990 : vector<8x96xf32>
    %cst_154 = arith.constant 1.000000e+00 : f32
    %992 = vector.broadcast %cst_154 : f32 to vector<8x96xf32>
    %993 = arith.addf %992, %991 : vector<8x96xf32>
    %994 = arith.divf %992, %993 : vector<8x96xf32>
    %995 = vector.extract_strided_slice %994 {offsets = [0, 0], sizes = [8, 32], strides = [1, 1]} : vector<8x96xf32> to vector<8x32xf32>
    %996 = vector.extract_strided_slice %994 {offsets = [0, 32], sizes = [8, 32], strides = [1, 1]} : vector<8x96xf32> to vector<8x32xf32>
    %997 = vector.extract_strided_slice %994 {offsets = [0, 64], sizes = [8, 32], strides = [1, 1]} : vector<8x96xf32> to vector<8x32xf32>
    %998 = vector.extract_strided_slice %988 {offsets = [0, 96], sizes = [8, 32], strides = [1, 1]} : vector<8x128xf32> to vector<8x32xf32>
    %999 = math.tanh %998 : vector<8x32xf32>
    %1000 = arith.mulf %996, %878 : vector<8x32xf32>
    %1001 = arith.mulf %995, %999 : vector<8x32xf32>
    %1002 = arith.addf %1000, %1001 : vector<8x32xf32>
    %1003 = math.tanh %1002 : vector<8x32xf32>
    %1004 = arith.mulf %997, %1003 : vector<8x32xf32>
    %1005 = tpu.concatenate %1004, %900 in 1 : vector<8x32xf32>, vector<8x32xf32> -> vector<8x64xf32>
    %cst_155 = arith.constant dense<0.000000e+00> : vector<8x128xf32>
    %1006 = tpu.matmul %1005, %5, %cst_155 {dimension_numbers = #tpu.dot_dimension_numbers<[1], [0], [0], [1], [0, 0, 1, 1], [], []>} : vector<8x64xf32>, vector<64x128xf32>, vector<8x128xf32> -> vector<8x128xf32>
    %1007 = vector.broadcast %15 : vector<1x128xf32> to vector<8x128xf32>
    %1008 = arith.addf %1006, %1007 : vector<8x128xf32>
    %1009 = vector.extract_strided_slice %1008 {offsets = [0, 0], sizes = [8, 96], strides = [1, 1]} : vector<8x128xf32> to vector<8x96xf32>
    %1010 = arith.negf %1009 : vector<8x96xf32>
    %1011 = math.exp %1010 : vector<8x96xf32>
    %cst_156 = arith.constant 1.000000e+00 : f32
    %1012 = vector.broadcast %cst_156 : f32 to vector<8x96xf32>
    %1013 = arith.addf %1012, %1011 : vector<8x96xf32>
    %1014 = arith.divf %1012, %1013 : vector<8x96xf32>
    %1015 = vector.extract_strided_slice %1014 {offsets = [0, 0], sizes = [8, 32], strides = [1, 1]} : vector<8x96xf32> to vector<8x32xf32>
    %1016 = vector.extract_strided_slice %1014 {offsets = [0, 32], sizes = [8, 32], strides = [1, 1]} : vector<8x96xf32> to vector<8x32xf32>
    %1017 = vector.extract_strided_slice %1014 {offsets = [0, 64], sizes = [8, 32], strides = [1, 1]} : vector<8x96xf32> to vector<8x32xf32>
    %1018 = vector.extract_strided_slice %1008 {offsets = [0, 96], sizes = [8, 32], strides = [1, 1]} : vector<8x128xf32> to vector<8x32xf32>
    %1019 = math.tanh %1018 : vector<8x32xf32>
    %1020 = arith.mulf %1016, %898 : vector<8x32xf32>
    %1021 = arith.mulf %1015, %1019 : vector<8x32xf32>
    %1022 = arith.addf %1020, %1021 : vector<8x32xf32>
    %1023 = math.tanh %1022 : vector<8x32xf32>
    %1024 = arith.mulf %1017, %1023 : vector<8x32xf32>
    %1025 = tpu.concatenate %1024, %920 in 1 : vector<8x32xf32>, vector<8x32xf32> -> vector<8x64xf32>
    %cst_157 = arith.constant dense<0.000000e+00> : vector<8x128xf32>
    %1026 = tpu.matmul %1025, %7, %cst_157 {dimension_numbers = #tpu.dot_dimension_numbers<[1], [0], [0], [1], [0, 0, 1, 1], [], []>} : vector<8x64xf32>, vector<64x128xf32>, vector<8x128xf32> -> vector<8x128xf32>
    %1027 = vector.broadcast %17 : vector<1x128xf32> to vector<8x128xf32>
    %1028 = arith.addf %1026, %1027 : vector<8x128xf32>
    %1029 = vector.extract_strided_slice %1028 {offsets = [0, 0], sizes = [8, 96], strides = [1, 1]} : vector<8x128xf32> to vector<8x96xf32>
    %1030 = arith.negf %1029 : vector<8x96xf32>
    %1031 = math.exp %1030 : vector<8x96xf32>
    %cst_158 = arith.constant 1.000000e+00 : f32
    %1032 = vector.broadcast %cst_158 : f32 to vector<8x96xf32>
    %1033 = arith.addf %1032, %1031 : vector<8x96xf32>
    %1034 = arith.divf %1032, %1033 : vector<8x96xf32>
    %1035 = vector.extract_strided_slice %1034 {offsets = [0, 0], sizes = [8, 32], strides = [1, 1]} : vector<8x96xf32> to vector<8x32xf32>
    %1036 = vector.extract_strided_slice %1034 {offsets = [0, 32], sizes = [8, 32], strides = [1, 1]} : vector<8x96xf32> to vector<8x32xf32>
    %1037 = vector.extract_strided_slice %1034 {offsets = [0, 64], sizes = [8, 32], strides = [1, 1]} : vector<8x96xf32> to vector<8x32xf32>
    %1038 = vector.extract_strided_slice %1028 {offsets = [0, 96], sizes = [8, 32], strides = [1, 1]} : vector<8x128xf32> to vector<8x32xf32>
    %1039 = math.tanh %1038 : vector<8x32xf32>
    %1040 = arith.mulf %1036, %918 : vector<8x32xf32>
    %1041 = arith.mulf %1035, %1039 : vector<8x32xf32>
    %1042 = arith.addf %1040, %1041 : vector<8x32xf32>
    %1043 = math.tanh %1042 : vector<8x32xf32>
    %1044 = arith.mulf %1037, %1043 : vector<8x32xf32>
    %1045 = tpu.concatenate %1044, %940 in 1 : vector<8x32xf32>, vector<8x32xf32> -> vector<8x64xf32>
    %cst_159 = arith.constant dense<0.000000e+00> : vector<8x128xf32>
    %1046 = tpu.matmul %1045, %9, %cst_159 {dimension_numbers = #tpu.dot_dimension_numbers<[1], [0], [0], [1], [0, 0, 1, 1], [], []>} : vector<8x64xf32>, vector<64x128xf32>, vector<8x128xf32> -> vector<8x128xf32>
    %1047 = vector.broadcast %19 : vector<1x128xf32> to vector<8x128xf32>
    %1048 = arith.addf %1046, %1047 : vector<8x128xf32>
    %1049 = vector.extract_strided_slice %1048 {offsets = [0, 0], sizes = [8, 96], strides = [1, 1]} : vector<8x128xf32> to vector<8x96xf32>
    %1050 = arith.negf %1049 : vector<8x96xf32>
    %1051 = math.exp %1050 : vector<8x96xf32>
    %cst_160 = arith.constant 1.000000e+00 : f32
    %1052 = vector.broadcast %cst_160 : f32 to vector<8x96xf32>
    %1053 = arith.addf %1052, %1051 : vector<8x96xf32>
    %1054 = arith.divf %1052, %1053 : vector<8x96xf32>
    %1055 = vector.extract_strided_slice %1054 {offsets = [0, 0], sizes = [8, 32], strides = [1, 1]} : vector<8x96xf32> to vector<8x32xf32>
    %1056 = vector.extract_strided_slice %1054 {offsets = [0, 32], sizes = [8, 32], strides = [1, 1]} : vector<8x96xf32> to vector<8x32xf32>
    %1057 = vector.extract_strided_slice %1054 {offsets = [0, 64], sizes = [8, 32], strides = [1, 1]} : vector<8x96xf32> to vector<8x32xf32>
    %1058 = vector.extract_strided_slice %1048 {offsets = [0, 96], sizes = [8, 32], strides = [1, 1]} : vector<8x128xf32> to vector<8x32xf32>
    %1059 = math.tanh %1058 : vector<8x32xf32>
    %1060 = arith.mulf %1056, %938 : vector<8x32xf32>
    %1061 = arith.mulf %1055, %1059 : vector<8x32xf32>
    %1062 = arith.addf %1060, %1061 : vector<8x32xf32>
    %1063 = math.tanh %1062 : vector<8x32xf32>
    %1064 = arith.mulf %1057, %1063 : vector<8x32xf32>
    %cst_161 = arith.constant dense<0.000000e+00> : vector<8x32xf32>
    %1065 = tpu.matmul %1064, %835, %cst_161 {dimension_numbers = #tpu.dot_dimension_numbers<[1], [0], [0], [1], [0, 0, 1, 1], [], []>} : vector<8x32xf32>, vector<32x32xf32>, vector<8x32xf32> -> vector<8x32xf32>
    %1066 = vector.broadcast %836 : vector<1x32xf32> to vector<8x32xf32>
    %1067 = arith.addf %1065, %1066 : vector<8x32xf32>
    %cst_162 = arith.constant 0.000000e+00 : f32
    %1068 = vector.broadcast %cst_162 : f32 to vector<8x32xf32>
    %1069 = arith.maximumf %1067, %1068 : vector<8x32xf32>
    %cst_163 = arith.constant dense<0.000000e+00> : vector<8x32xf32>
    %1070 = tpu.matmul %1069, %837, %cst_163 {dimension_numbers = #tpu.dot_dimension_numbers<[1], [0], [0], [1], [0, 0, 1, 1], [], []>} : vector<8x32xf32>, vector<32x32xf32>, vector<8x32xf32> -> vector<8x32xf32>
    %1071 = vector.broadcast %838 : vector<1x32xf32> to vector<8x32xf32>
    %1072 = arith.addf %1070, %1071 : vector<8x32xf32>
    %cst_164 = arith.constant 0.000000e+00 : f32
    %1073 = vector.broadcast %cst_164 : f32 to vector<8x32xf32>
    %1074 = arith.maximumf %1072, %1073 : vector<8x32xf32>
    %1075 = vector.broadcast %839 : vector<1x32xf32> to vector<8x32xf32>
    %1076 = arith.mulf %1074, %1075 : vector<8x32xf32>
    %cst_165 = arith.constant dense<0.000000e+00> : vector<8xf32>
    %1077 = vector.multi_reduction <add>, %1076, %cst_165 [1] : vector<8x32xf32> to vector<8xf32>
    %1078 = vector.shape_cast %1077 : vector<8xf32> to vector<8x1xf32>
    %1079 = vector.broadcast %840 : vector<1x1xf32> to vector<8x1xf32>
    %1080 = arith.addf %1078, %1079 : vector<8x1xf32>
    %c1_i32 = arith.constant 1 : i32
    %1081 = vector.broadcast %c1_i32 : i32 to vector<8x3xi32>
    %1082 = arith.cmpi eq, %833, %1081 : vector<8x3xi32>
    %1083 = vector.shape_cast %1080 : vector<8x1xf32> to vector<8x1xf32>
    %1084 = vector.broadcast %1083 : vector<8x1xf32> to vector<8x3xf32>
    %1085 = arith.select %1082, %1084, %961 : vector<8x3xi1>, vector<8x3xf32>
    %1086 = vector.shape_cast %1080 : vector<8x1xf32> to vector<8x1xf32>
    %1087 = vector.broadcast %1086 : vector<8x1xf32> to vector<8x32xf32>
    %1088 = arith.select %832, %1087, %964 : vector<8x32xi1>, vector<8x32xf32>
    %1089 = tpu.concatenate %1088, %984 in 1 : vector<8x32xf32>, vector<8x32xf32> -> vector<8x64xf32>
    %cst_166 = arith.constant dense<0.000000e+00> : vector<8x128xf32>
    %1090 = tpu.matmul %1089, %1, %cst_166 {dimension_numbers = #tpu.dot_dimension_numbers<[1], [0], [0], [1], [0, 0, 1, 1], [], []>} : vector<8x64xf32>, vector<64x128xf32>, vector<8x128xf32> -> vector<8x128xf32>
    %1091 = vector.broadcast %11 : vector<1x128xf32> to vector<8x128xf32>
    %1092 = arith.addf %1090, %1091 : vector<8x128xf32>
    %1093 = vector.extract_strided_slice %1092 {offsets = [0, 0], sizes = [8, 96], strides = [1, 1]} : vector<8x128xf32> to vector<8x96xf32>
    %1094 = arith.negf %1093 : vector<8x96xf32>
    %1095 = math.exp %1094 : vector<8x96xf32>
    %cst_167 = arith.constant 1.000000e+00 : f32
    %1096 = vector.broadcast %cst_167 : f32 to vector<8x96xf32>
    %1097 = arith.addf %1096, %1095 : vector<8x96xf32>
    %1098 = arith.divf %1096, %1097 : vector<8x96xf32>
    %1099 = vector.extract_strided_slice %1098 {offsets = [0, 0], sizes = [8, 32], strides = [1, 1]} : vector<8x96xf32> to vector<8x32xf32>
    %1100 = vector.extract_strided_slice %1098 {offsets = [0, 32], sizes = [8, 32], strides = [1, 1]} : vector<8x96xf32> to vector<8x32xf32>
    %1101 = vector.extract_strided_slice %1098 {offsets = [0, 64], sizes = [8, 32], strides = [1, 1]} : vector<8x96xf32> to vector<8x32xf32>
    %1102 = vector.extract_strided_slice %1092 {offsets = [0, 96], sizes = [8, 32], strides = [1, 1]} : vector<8x128xf32> to vector<8x32xf32>
    %1103 = math.tanh %1102 : vector<8x32xf32>
    %1104 = arith.mulf %1100, %982 : vector<8x32xf32>
    %1105 = arith.mulf %1099, %1103 : vector<8x32xf32>
    %1106 = arith.addf %1104, %1105 : vector<8x32xf32>
    %1107 = math.tanh %1106 : vector<8x32xf32>
    %1108 = arith.mulf %1101, %1107 : vector<8x32xf32>
    %1109 = tpu.concatenate %1108, %1004 in 1 : vector<8x32xf32>, vector<8x32xf32> -> vector<8x64xf32>
    %cst_168 = arith.constant dense<0.000000e+00> : vector<8x128xf32>
    %1110 = tpu.matmul %1109, %3, %cst_168 {dimension_numbers = #tpu.dot_dimension_numbers<[1], [0], [0], [1], [0, 0, 1, 1], [], []>} : vector<8x64xf32>, vector<64x128xf32>, vector<8x128xf32> -> vector<8x128xf32>
    %1111 = vector.broadcast %13 : vector<1x128xf32> to vector<8x128xf32>
    %1112 = arith.addf %1110, %1111 : vector<8x128xf32>
    %1113 = vector.extract_strided_slice %1112 {offsets = [0, 0], sizes = [8, 96], strides = [1, 1]} : vector<8x128xf32> to vector<8x96xf32>
    %1114 = arith.negf %1113 : vector<8x96xf32>
    %1115 = math.exp %1114 : vector<8x96xf32>
    %cst_169 = arith.constant 1.000000e+00 : f32
    %1116 = vector.broadcast %cst_169 : f32 to vector<8x96xf32>
    %1117 = arith.addf %1116, %1115 : vector<8x96xf32>
    %1118 = arith.divf %1116, %1117 : vector<8x96xf32>
    %1119 = vector.extract_strided_slice %1118 {offsets = [0, 0], sizes = [8, 32], strides = [1, 1]} : vector<8x96xf32> to vector<8x32xf32>
    %1120 = vector.extract_strided_slice %1118 {offsets = [0, 32], sizes = [8, 32], strides = [1, 1]} : vector<8x96xf32> to vector<8x32xf32>
    %1121 = vector.extract_strided_slice %1118 {offsets = [0, 64], sizes = [8, 32], strides = [1, 1]} : vector<8x96xf32> to vector<8x32xf32>
    %1122 = vector.extract_strided_slice %1112 {offsets = [0, 96], sizes = [8, 32], strides = [1, 1]} : vector<8x128xf32> to vector<8x32xf32>
    %1123 = math.tanh %1122 : vector<8x32xf32>
    %1124 = arith.mulf %1120, %1002 : vector<8x32xf32>
    %1125 = arith.mulf %1119, %1123 : vector<8x32xf32>
    %1126 = arith.addf %1124, %1125 : vector<8x32xf32>
    %1127 = math.tanh %1126 : vector<8x32xf32>
    %1128 = arith.mulf %1121, %1127 : vector<8x32xf32>
    %1129 = tpu.concatenate %1128, %1024 in 1 : vector<8x32xf32>, vector<8x32xf32> -> vector<8x64xf32>
    %cst_170 = arith.constant dense<0.000000e+00> : vector<8x128xf32>
    %1130 = tpu.matmul %1129, %5, %cst_170 {dimension_numbers = #tpu.dot_dimension_numbers<[1], [0], [0], [1], [0, 0, 1, 1], [], []>} : vector<8x64xf32>, vector<64x128xf32>, vector<8x128xf32> -> vector<8x128xf32>
    %1131 = vector.broadcast %15 : vector<1x128xf32> to vector<8x128xf32>
    %1132 = arith.addf %1130, %1131 : vector<8x128xf32>
    %1133 = vector.extract_strided_slice %1132 {offsets = [0, 0], sizes = [8, 96], strides = [1, 1]} : vector<8x128xf32> to vector<8x96xf32>
    %1134 = arith.negf %1133 : vector<8x96xf32>
    %1135 = math.exp %1134 : vector<8x96xf32>
    %cst_171 = arith.constant 1.000000e+00 : f32
    %1136 = vector.broadcast %cst_171 : f32 to vector<8x96xf32>
    %1137 = arith.addf %1136, %1135 : vector<8x96xf32>
    %1138 = arith.divf %1136, %1137 : vector<8x96xf32>
    %1139 = vector.extract_strided_slice %1138 {offsets = [0, 0], sizes = [8, 32], strides = [1, 1]} : vector<8x96xf32> to vector<8x32xf32>
    %1140 = vector.extract_strided_slice %1138 {offsets = [0, 32], sizes = [8, 32], strides = [1, 1]} : vector<8x96xf32> to vector<8x32xf32>
    %1141 = vector.extract_strided_slice %1138 {offsets = [0, 64], sizes = [8, 32], strides = [1, 1]} : vector<8x96xf32> to vector<8x32xf32>
    %1142 = vector.extract_strided_slice %1132 {offsets = [0, 96], sizes = [8, 32], strides = [1, 1]} : vector<8x128xf32> to vector<8x32xf32>
    %1143 = math.tanh %1142 : vector<8x32xf32>
    %1144 = arith.mulf %1140, %1022 : vector<8x32xf32>
    %1145 = arith.mulf %1139, %1143 : vector<8x32xf32>
    %1146 = arith.addf %1144, %1145 : vector<8x32xf32>
    %1147 = math.tanh %1146 : vector<8x32xf32>
    %1148 = arith.mulf %1141, %1147 : vector<8x32xf32>
    %1149 = tpu.concatenate %1148, %1044 in 1 : vector<8x32xf32>, vector<8x32xf32> -> vector<8x64xf32>
    %cst_172 = arith.constant dense<0.000000e+00> : vector<8x128xf32>
    %1150 = tpu.matmul %1149, %7, %cst_172 {dimension_numbers = #tpu.dot_dimension_numbers<[1], [0], [0], [1], [0, 0, 1, 1], [], []>} : vector<8x64xf32>, vector<64x128xf32>, vector<8x128xf32> -> vector<8x128xf32>
    %1151 = vector.broadcast %17 : vector<1x128xf32> to vector<8x128xf32>
    %1152 = arith.addf %1150, %1151 : vector<8x128xf32>
    %1153 = vector.extract_strided_slice %1152 {offsets = [0, 0], sizes = [8, 96], strides = [1, 1]} : vector<8x128xf32> to vector<8x96xf32>
    %1154 = arith.negf %1153 : vector<8x96xf32>
    %1155 = math.exp %1154 : vector<8x96xf32>
    %cst_173 = arith.constant 1.000000e+00 : f32
    %1156 = vector.broadcast %cst_173 : f32 to vector<8x96xf32>
    %1157 = arith.addf %1156, %1155 : vector<8x96xf32>
    %1158 = arith.divf %1156, %1157 : vector<8x96xf32>
    %1159 = vector.extract_strided_slice %1158 {offsets = [0, 0], sizes = [8, 32], strides = [1, 1]} : vector<8x96xf32> to vector<8x32xf32>
    %1160 = vector.extract_strided_slice %1158 {offsets = [0, 32], sizes = [8, 32], strides = [1, 1]} : vector<8x96xf32> to vector<8x32xf32>
    %1161 = vector.extract_strided_slice %1158 {offsets = [0, 64], sizes = [8, 32], strides = [1, 1]} : vector<8x96xf32> to vector<8x32xf32>
    %1162 = vector.extract_strided_slice %1152 {offsets = [0, 96], sizes = [8, 32], strides = [1, 1]} : vector<8x128xf32> to vector<8x32xf32>
    %1163 = math.tanh %1162 : vector<8x32xf32>
    %1164 = arith.mulf %1160, %1042 : vector<8x32xf32>
    %1165 = arith.mulf %1159, %1163 : vector<8x32xf32>
    %1166 = arith.addf %1164, %1165 : vector<8x32xf32>
    %1167 = math.tanh %1166 : vector<8x32xf32>
    %1168 = arith.mulf %1161, %1167 : vector<8x32xf32>
    %1169 = tpu.concatenate %1168, %1064 in 1 : vector<8x32xf32>, vector<8x32xf32> -> vector<8x64xf32>
    %cst_174 = arith.constant dense<0.000000e+00> : vector<8x128xf32>
    %1170 = tpu.matmul %1169, %9, %cst_174 {dimension_numbers = #tpu.dot_dimension_numbers<[1], [0], [0], [1], [0, 0, 1, 1], [], []>} : vector<8x64xf32>, vector<64x128xf32>, vector<8x128xf32> -> vector<8x128xf32>
    %1171 = vector.broadcast %19 : vector<1x128xf32> to vector<8x128xf32>
    %1172 = arith.addf %1170, %1171 : vector<8x128xf32>
    %1173 = vector.extract_strided_slice %1172 {offsets = [0, 0], sizes = [8, 96], strides = [1, 1]} : vector<8x128xf32> to vector<8x96xf32>
    %1174 = arith.negf %1173 : vector<8x96xf32>
    %1175 = math.exp %1174 : vector<8x96xf32>
    %cst_175 = arith.constant 1.000000e+00 : f32
    %1176 = vector.broadcast %cst_175 : f32 to vector<8x96xf32>
    %1177 = arith.addf %1176, %1175 : vector<8x96xf32>
    %1178 = arith.divf %1176, %1177 : vector<8x96xf32>
    %1179 = vector.extract_strided_slice %1178 {offsets = [0, 0], sizes = [8, 32], strides = [1, 1]} : vector<8x96xf32> to vector<8x32xf32>
    %1180 = vector.extract_strided_slice %1178 {offsets = [0, 32], sizes = [8, 32], strides = [1, 1]} : vector<8x96xf32> to vector<8x32xf32>
    %1181 = vector.extract_strided_slice %1178 {offsets = [0, 64], sizes = [8, 32], strides = [1, 1]} : vector<8x96xf32> to vector<8x32xf32>
    %1182 = vector.extract_strided_slice %1172 {offsets = [0, 96], sizes = [8, 32], strides = [1, 1]} : vector<8x128xf32> to vector<8x32xf32>
    %1183 = math.tanh %1182 : vector<8x32xf32>
    %1184 = arith.mulf %1180, %1062 : vector<8x32xf32>
    %1185 = arith.mulf %1179, %1183 : vector<8x32xf32>
    %1186 = arith.addf %1184, %1185 : vector<8x32xf32>
    %1187 = math.tanh %1186 : vector<8x32xf32>
    %1188 = arith.mulf %1181, %1187 : vector<8x32xf32>
    %cst_176 = arith.constant dense<0.000000e+00> : vector<8x32xf32>
    %1189 = tpu.matmul %1188, %835, %cst_176 {dimension_numbers = #tpu.dot_dimension_numbers<[1], [0], [0], [1], [0, 0, 1, 1], [], []>} : vector<8x32xf32>, vector<32x32xf32>, vector<8x32xf32> -> vector<8x32xf32>
    %1190 = vector.broadcast %836 : vector<1x32xf32> to vector<8x32xf32>
    %1191 = arith.addf %1189, %1190 : vector<8x32xf32>
    %cst_177 = arith.constant 0.000000e+00 : f32
    %1192 = vector.broadcast %cst_177 : f32 to vector<8x32xf32>
    %1193 = arith.maximumf %1191, %1192 : vector<8x32xf32>
    %cst_178 = arith.constant dense<0.000000e+00> : vector<8x32xf32>
    %1194 = tpu.matmul %1193, %837, %cst_178 {dimension_numbers = #tpu.dot_dimension_numbers<[1], [0], [0], [1], [0, 0, 1, 1], [], []>} : vector<8x32xf32>, vector<32x32xf32>, vector<8x32xf32> -> vector<8x32xf32>
    %1195 = vector.broadcast %838 : vector<1x32xf32> to vector<8x32xf32>
    %1196 = arith.addf %1194, %1195 : vector<8x32xf32>
    %cst_179 = arith.constant 0.000000e+00 : f32
    %1197 = vector.broadcast %cst_179 : f32 to vector<8x32xf32>
    %1198 = arith.maximumf %1196, %1197 : vector<8x32xf32>
    %1199 = vector.broadcast %839 : vector<1x32xf32> to vector<8x32xf32>
    %1200 = arith.mulf %1198, %1199 : vector<8x32xf32>
    %cst_180 = arith.constant dense<0.000000e+00> : vector<8xf32>
    %1201 = vector.multi_reduction <add>, %1200, %cst_180 [1] : vector<8x32xf32> to vector<8xf32>
    %1202 = vector.shape_cast %1201 : vector<8xf32> to vector<8x1xf32>
    %1203 = vector.broadcast %840 : vector<1x1xf32> to vector<8x1xf32>
    %1204 = arith.addf %1202, %1203 : vector<8x1xf32>
    %c2_i32 = arith.constant 2 : i32
    %1205 = vector.broadcast %c2_i32 : i32 to vector<8x3xi32>
    %1206 = arith.cmpi eq, %833, %1205 : vector<8x3xi32>
    %1207 = vector.shape_cast %1204 : vector<8x1xf32> to vector<8x1xf32>
    %1208 = vector.broadcast %1207 : vector<8x1xf32> to vector<8x3xf32>
    %1209 = arith.select %1206, %1208, %1085 : vector<8x3xi1>, vector<8x3xf32>
    %c0_181 = arith.constant 0 : index
    %c0_182 = arith.constant 0 : index
    %1210 = vector.load %arg12[%c0_181, %c0_182] : memref<8x3xf32, #tpu.memory_space<vmem>>, vector<8x3xf32>
    tpu.vector_store %arg12[%c0_181, %c0_182], %1209 {strides = array<i32>} : memref<8x3xf32, #tpu.memory_space<vmem>>, vector<8x3xf32>,
    return
  }
  func.func @transform_0(%arg0: i32) -> (i32, i32, i32) {
    %c0_i32 = arith.constant 0 : i32
    %c0_i32_0 = arith.constant 0 : i32
    %c0_i32_1 = arith.constant 0 : i32
    return %c0_i32, %arg0, %c0_i32_0 : i32, i32, i32
  }
  func.func @transform_1(%arg0: i32) -> (i32, i32) {
    %c0_i32 = arith.constant 0 : i32
    %c0_i32_0 = arith.constant 0 : i32
    return %arg0, %c0_i32 : i32, i32
  }
  func.func @transform_2(%arg0: i32) -> (i32, i32) {
    %c0_i32 = arith.constant 0 : i32
    %c0_i32_0 = arith.constant 0 : i32
    %c0_i32_1 = arith.constant 0 : i32
    return %c0_i32, %c0_i32_0 : i32, i32
  }
  func.func @transform_3(%arg0: i32) -> (i32, i32, i32) {
    %c0_i32 = arith.constant 0 : i32
    %c0_i32_0 = arith.constant 0 : i32
    %c0_i32_1 = arith.constant 0 : i32
    %c0_i32_2 = arith.constant 0 : i32
    return %c0_i32, %c0_i32_0, %c0_i32_1 : i32, i32, i32
  }
  func.func @transform_4(%arg0: i32) -> (i32, i32, i32) {
    %c0_i32 = arith.constant 0 : i32
    %c0_i32_0 = arith.constant 0 : i32
    %c0_i32_1 = arith.constant 0 : i32
    %c0_i32_2 = arith.constant 0 : i32
    return %c0_i32, %c0_i32_0, %c0_i32_1 : i32, i32, i32
  }
  func.func @transform_5(%arg0: i32) -> (i32, i32) {
    %c0_i32 = arith.constant 0 : i32
    %c0_i32_0 = arith.constant 0 : i32
    %c0_i32_1 = arith.constant 0 : i32
    return %c0_i32, %c0_i32_0 : i32, i32
  }
  func.func @transform_6(%arg0: i32) -> (i32, i32) {
    %c0_i32 = arith.constant 0 : i32
    %c0_i32_0 = arith.constant 0 : i32
    %c0_i32_1 = arith.constant 0 : i32
    return %c0_i32, %c0_i32_0 : i32, i32
  }
  func.func @transform_7(%arg0: i32) -> (i32, i32) {
    %c0_i32 = arith.constant 0 : i32
    %c0_i32_0 = arith.constant 0 : i32
    %c0_i32_1 = arith.constant 0 : i32
    return %c0_i32, %c0_i32_0 : i32, i32
  }
  func.func @transform_8(%arg0: i32) -> (i32, i32) {
    %c0_i32 = arith.constant 0 : i32
    %c0_i32_0 = arith.constant 0 : i32
    %c0_i32_1 = arith.constant 0 : i32
    return %c0_i32, %c0_i32_0 : i32, i32
  }
  func.func @transform_9(%arg0: i32) -> (i32, i32) {
    %c0_i32 = arith.constant 0 : i32
    %c0_i32_0 = arith.constant 0 : i32
    %c0_i32_1 = arith.constant 0 : i32
    return %c0_i32, %c0_i32_0 : i32, i32
  }
  func.func @transform_10(%arg0: i32) -> (i32, i32) {
    %c0_i32 = arith.constant 0 : i32
    %c0_i32_0 = arith.constant 0 : i32
    %c0_i32_1 = arith.constant 0 : i32
    return %c0_i32, %c0_i32_0 : i32, i32
  }
  func.func @transform_11(%arg0: i32) -> (i32, i32) {
    %c0_i32 = arith.constant 0 : i32
    %c0_i32_0 = arith.constant 0 : i32
    return %arg0, %c0_i32 : i32, i32
  }
}

</mosaic_0001>

<llo_original>
// kernel: junction_traffic_lstm.1
$region0: #{junction_traffic_lstm.1}
  #allocation0 [shape = 'u32[]', space=smem, size = 0x4, offset = 0x4, fixed_abs, tag = 'smem constant byte address 0x4 - core index']
  #allocation1 [shape = 'u32[144,128]{1,0:T(1,128)}', space=vmem, size = 0x12000, scoped, tag = 'internal scratch']
  #allocation2 [shape = 'f32[1,1]{1,0:T(1,128)S(1)}', space=vmem, size = 0x200, scoped, tag = 'scoped memory for junction_traffic_lstm.1']
  %s0 = inlined_call_operand.vmem [shape: f32[8,8,5], index: 0, kind: input, shape index: {}]
  %s1 = inlined_call_operand.vmem [shape: f32[8,32], index: 1, kind: input, shape index: {}]
  %s2 = inlined_call_operand.vmem [shape: f32[5,128], index: 2, kind: input, shape index: {}]
  %s3 = inlined_call_operand.hbm [shape: f32[5,64,128], index: 3, kind: input, shape index: {}]
  %s4 = inlined_call_operand.vmem [shape: f32[5,1,128], index: 4, kind: input, shape index: {}]
  %s5 = inlined_call_operand.vmem [shape: f32[32,32], index: 5, kind: input, shape index: {}]
  %s6 = inlined_call_operand.vmem [shape: f32[1,32], index: 6, kind: input, shape index: {}]
  %s7 = inlined_call_operand.vmem [shape: f32[32,32], index: 7, kind: input, shape index: {}]
  %s8 = inlined_call_operand.vmem [shape: f32[1,32], index: 8, kind: input, shape index: {}]
  %s9 = inlined_call_operand.vmem [shape: f32[1,32], index: 9, kind: input, shape index: {}]
  %s10 = inlined_call_operand.<no memory space> [shape: f32[1,1], index: 10, kind: input, shape index: {}]
  %s11 = inlined_call_operand.vmem [shape: f32[8,3], index: 11, kind: output, shape index: {}]
  %s12 = sld [smem:[#allocation0]]
  $region58: #{junction_traffic_lstm.1} parent=0
    _
  %s14 = ssub.s32 1, %s12
  %s15 = scalar_select 0, %s14, %s12
  %v16 = vstv %s10
  %17 = vst [vmem:[#allocation2] sm:$0x1] %v16
  $region1: #{junction_traffic_lstm.1} parent=0
    #allocation3 [shape = 'u8[163840]{0}', space=vmem, size = 0x28000, scoped, tag = 'input window, operand 3, single buffered']
    #allocation4 [shape = 's32[1]{0}', space=sflag, size = 0x4, scoped, tag = 'scoped memory for junction_traffic_lstm.1']
    %18 = vsyncpa [#allocation4], 0
    // Predicated region
    $region2: #{junction_traffic_lstm.1} parent=1 // pred_check
      _
    $region3: #{junction_traffic_lstm.1} parent=1 // pred_check_branch
      %20 = sbr.rel (0) target = $region5
    $region4: #{junction_traffic_lstm.1} parent=1 // pred_region
      _
    $region5: #{junction_traffic_lstm.1} parent=1 // pred_fallthru
      _
    // Predicated region
    $region6: #{junction_traffic_lstm.1} parent=1 // pred_check
      _
    $region7: #{junction_traffic_lstm.1} parent=1 // pred_check_branch
      %22 = sbr.rel (0) target = $region9
    $region8: #{junction_traffic_lstm.1} parent=1 // pred_region
      _
    $region9: #{junction_traffic_lstm.1} parent=1 // pred_fallthru
      _
    // Predicated region
    $region10: #{junction_traffic_lstm.1} parent=1 // pred_check
      _
    $region11: #{junction_traffic_lstm.1} parent=1 // pred_check_branch
      %24 = sbr.rel (0) target = $region13
    $region12: #{junction_traffic_lstm.1} parent=1 // pred_region
      _
    $region13: #{junction_traffic_lstm.1} parent=1 // pred_fallthru
      _
    // Predicated region
    $region14: #{junction_traffic_lstm.1} parent=1 // pred_check
      _
    $region15: #{junction_traffic_lstm.1} parent=1 // pred_check_branch
      %26 = sbr.rel (0) target = $region17
    $region16: #{junction_traffic_lstm.1} parent=1 // pred_region
      %s28 = ssub.s32 5120, 5120
      %29 = vsyncadd [#allocation4], %s28
      %s30 = sshll.u32 [#allocation3], 4
      %s31 = int_to_ptr.vmem [resolvable:$true] %s30
      %36 = dma.hbm_to_vmem [thread:$0]  %s3, 5120, %s31, [#allocation4], 128, 128, 8
    $region17: #{junction_traffic_lstm.1} parent=1 // pred_fallthru
      _
    // Predicated region
    $region18: #{junction_traffic_lstm.1} parent=1 // pred_check
      _
    $region19: #{junction_traffic_lstm.1} parent=1 // pred_check_branch
      %38 = sbr.rel (0) target = $region21
    $region20: #{junction_traffic_lstm.1} parent=1 // pred_region
      _
    $region21: #{junction_traffic_lstm.1} parent=1 // pred_fallthru
      _
    // Predicated region
    $region22: #{junction_traffic_lstm.1} parent=1 // pred_check
      _
    $region23: #{junction_traffic_lstm.1} parent=1 // pred_check_branch
      %40 = sbr.rel (0) target = $region25
    $region24: #{junction_traffic_lstm.1} parent=1 // pred_region
      _
    $region25: #{junction_traffic_lstm.1} parent=1 // pred_fallthru
      _
    // Predicated region
    $region26: #{junction_traffic_lstm.1} parent=1 // pred_check
      _
    $region27: #{junction_traffic_lstm.1} parent=1 // pred_check_branch
      %42 = sbr.rel (0) target = $region29
    $region28: #{junction_traffic_lstm.1} parent=1 // pred_region
      _
    $region29: #{junction_traffic_lstm.1} parent=1 // pred_fallthru
      _
    // Predicated region
    $region30: #{junction_traffic_lstm.1} parent=1 // pred_check
      _
    $region31: #{junction_traffic_lstm.1} parent=1 // pred_check_branch
      %44 = sbr.rel (0) target = $region33
    $region32: #{junction_traffic_lstm.1} parent=1 // pred_region
      _
    $region33: #{junction_traffic_lstm.1} parent=1 // pred_fallthru
      _
    // Predicated region
    $region34: #{junction_traffic_lstm.1} parent=1 // pred_check
      _
    $region35: #{junction_traffic_lstm.1} parent=1 // pred_check_branch
      %46 = sbr.rel (0) target = $region37
    $region36: #{junction_traffic_lstm.1} parent=1 // pred_region
      _
    $region37: #{junction_traffic_lstm.1} parent=1 // pred_fallthru
      _
    // Predicated region
    $region38: #{junction_traffic_lstm.1} parent=1 // pred_check
      _
    $region39: #{junction_traffic_lstm.1} parent=1 // pred_check_branch
      %48 = sbr.rel (0) target = $region41
    $region40: #{junction_traffic_lstm.1} parent=1 // pred_region
      _
    $region41: #{junction_traffic_lstm.1} parent=1 // pred_fallthru
      _
    // Predicated region
    $region42: #{junction_traffic_lstm.1} parent=1 // pred_check
      _
    $region43: #{junction_traffic_lstm.1} parent=1 // pred_check_branch
      %50 = sbr.rel (0) target = $region45
    $region44: #{junction_traffic_lstm.1} parent=1 // pred_region
      _
    $region45: #{junction_traffic_lstm.1} parent=1 // pred_fallthru
      _
    // Predicated region
    $region46: #{junction_traffic_lstm.1} parent=1 // pred_check
      _
    $region47: #{junction_traffic_lstm.1} parent=1 // pred_check_branch
      %52 = sbr.rel (0) target = $region49
    $region48: #{junction_traffic_lstm.1} parent=1 // pred_region
      %53 = dma.done [#allocation4], 5120
    $region49: #{junction_traffic_lstm.1} parent=1 // pred_fallthru
      _
    %v54 = vld [vmem:[#allocation3] sm:$0xff]
    %v55 = vld [vmem:[#allocation3 + $0x8] sm:$0xff]
    %v56 = vld [vmem:[#allocation3 + $0x10] sm:$0xff]
    %v57 = vld [vmem:[#allocation3 + $0x18] sm:$0xff]
    %v58 = vld [vmem:[#allocation3 + $0x20] sm:$0xff]
    %v59 = vld [vmem:[#allocation3 + $0x28] sm:$0xff]
    %v60 = vld [vmem:[#allocation3 + $0x30] sm:$0xff]
    %v61 = vld [vmem:[#allocation3 + $0x38] sm:$0xff]
    %s62 = scalar_lea.vmem [#allocation3], 64
    %v63 = vld [vmem:[%s62] sm:$0xff]
    %v64 = vld [vmem:[%s62 + $0x8] sm:$0xff]
    %v65 = vld [vmem:[%s62 + $0x10] sm:$0xff]
    %v66 = vld [vmem:[%s62 + $0x18] sm:$0xff]
    %v67 = vld [vmem:[%s62 + $0x20] sm:$0xff]
    %v68 = vld [vmem:[%s62 + $0x28] sm:$0xff]
    %v69 = vld [vmem:[%s62 + $0x30] sm:$0xff]
    %v70 = vld [vmem:[%s62 + $0x38] sm:$0xff]
    %s71 = scalar_lea.vmem [#allocation3], 128
    %v72 = vld [vmem:[%s71] sm:$0xff]
    %v73 = vld [vmem:[%s71 + $0x8] sm:$0xff]
    %v74 = vld [vmem:[%s71 + $0x10] sm:$0xff]
    %v75 = vld [vmem:[%s71 + $0x18] sm:$0xff]
    %v76 = vld [vmem:[%s71 + $0x20] sm:$0xff]
    %v77 = vld [vmem:[%s71 + $0x28] sm:$0xff]
    %v78 = vld [vmem:[%s71 + $0x30] sm:$0xff]
    %v79 = vld [vmem:[%s71 + $0x38] sm:$0xff]
    %s80 = scalar_lea.vmem [#allocation3], 192
    %v81 = vld [vmem:[%s80] sm:$0xff]
    %v82 = vld [vmem:[%s80 + $0x8] sm:$0xff]
    %v83 = vld [vmem:[%s80 + $0x10] sm:$0xff]
    %v84 = vld [vmem:[%s80 + $0x18] sm:$0xff]
    %v85 = vld [vmem:[%s80 + $0x20] sm:$0xff]
    %v86 = vld [vmem:[%s80 + $0x28] sm:$0xff]
    %v87 = vld [vmem:[%s80 + $0x30] sm:$0xff]
    %v88 = vld [vmem:[%s80 + $0x38] sm:$0xff]
    %s89 = scalar_lea.vmem [#allocation3], 256
    %v90 = vld [vmem:[%s89] sm:$0xff]
    %v91 = vld [vmem:[%s89 + $0x8] sm:$0xff]
    %v92 = vld [vmem:[%s89 + $0x10] sm:$0xff]
    %v93 = vld [vmem:[%s89 + $0x18] sm:$0xff]
    %v94 = vld [vmem:[%s89 + $0x20] sm:$0xff]
    %v95 = vld [vmem:[%s89 + $0x28] sm:$0xff]
    %v96 = vld [vmem:[%s89 + $0x30] sm:$0xff]
    %v97 = vld [vmem:[%s89 + $0x38] sm:$0xff]
    %v98 = vld [vmem:[%s4] sm:$0x1]
    %s99 = scalar_lea.vmem %s4, 1
    %v100 = vld [vmem:[%s99] sm:$0x1]
    %s101 = scalar_lea.vmem %s4, 2
    %v102 = vld [vmem:[%s101] sm:$0x1]
    %s103 = scalar_lea.vmem %s4, 3
    %v104 = vld [vmem:[%s103] sm:$0x1]
    %s105 = scalar_lea.vmem %s4, 4
    %v106 = vld [vmem:[%s105] sm:$0x1]
    %v107 = vld [vmem:[%s0] sm:$0xff]
    %v108 = vld [vmem:[%s0 + $0x8] sm:$0xff]
    %v109 = vld [vmem:[%s0 + $0x10] sm:$0xff]
    %v110 = vld [vmem:[%s0 + $0x18] sm:$0xff]
    %v111 = vld [vmem:[%s0 + $0x20] sm:$0xff]
    %v112 = vld [vmem:[%s0 + $0x28] sm:$0xff]
    %v113 = vld [vmem:[%s0 + $0x30] sm:$0xff]
    %v114 = vld [vmem:[%s0 + $0x38] sm:$0xff]
    %v115 = vld [vmem:[%s2] sm:$0x1f]
    %v117 = vlaneseq
    %v118 = vshrl.u32 %v117, 7
    %v119 = vsub.s32 0, %v118
    %v120 = vrot.slane %v98, %v119
    %vm122 = vcmask 39936
    %v124 = vsel %vm122, %v107, 0
    %v127 = vsel %vm122, %v108, 0
    %v130 = vsel %vm122, %v109, 0
    %v133 = vsel %vm122, %v110, 0
    %v136 = vsel %vm122, %v111, 0
    %v139 = vsel %vm122, %v112, 0
    %v142 = vsel %vm122, %v113, 0
    %v145 = vsel %vm122, %v114, 0
    %vm147 = vcmask 1044480
    %v149 = vsel %vm147, %v115, 0
    %151 = vmatprep.subr.mxu0 0.0
    %152 = vmatpush1.msra.mxu0 %v149
    %153 = vmatprep.subr.mxu0 0.0
    %154 = vmatpush1.msra.mxu0 0.0
    %155 = vmatprep.subr.mxu0 0.0
    %156 = vmatpush1.msra.mxu0 0.0
    %157 = vmatprep.subr.mxu0 0.0
    %158 = vmatpush1.msra.mxu0 0.0
    %159 = vmatprep.subr.mxu0 0.0
    %160 = vmatpush1.msra.mxu0 0.0
    %161 = vmatprep.subr.mxu0 0.0
    %162 = vmatpush1.msra.mxu0 0.0
    %163 = vmatprep.subr.mxu0 0.0
    %164 = vmatpush1.msra.mxu0 0.0
    %165 = vmatprep.subr.mxu0 0.0
    %166 = vmatpush1.msra.mxu0 0.0
    %167 = vmatprep.subr.mxu0 0.0
    %168 = vmatpush1.msra.mxu0 0.0
    %169 = vmatprep.subr.mxu0 0.0
    %170 = vmatpush1.msra.mxu0 0.0
    %171 = vmatprep.subr.mxu0 0.0
    %172 = vmatpush1.msra.mxu0 0.0
    %173 = vmatprep.subr.mxu0 0.0
    %174 = vmatpush1.msra.mxu0 0.0
    %175 = vmatprep.subr.mxu0 0.0
    %176 = vmatpush1.msra.mxu0 0.0
    %177 = vmatprep.subr.mxu0 0.0
    %178 = vmatpush1.msra.mxu0 0.0
    %179 = vmatprep.subr.mxu0 0.0
    %180 = vmatpush1.msra.mxu0 0.0
    %181 = vmatprep.subr.mxu0 0.0
    %182 = vmatpush1.msra.mxu0 0.0
    %183 = vmatprep.subr.mxu0 0.0
    %184 = vmatpush1.msra.mxu0 0.0
    %185 = vmatprep.subr.mxu0 0.0
    %186 = vmatpush1.msra.mxu0 0.0
    %187 = vmatprep.subr.mxu0 0.0
    %188 = vmatpush1.msra.mxu0 0.0
    %189 = vmatprep.subr.mxu0 0.0
    %190 = vmatpush1.msra.mxu0 0.0
    %191 = vmatprep.subr.mxu0 0.0
    %192 = vmatpush1.msra.mxu0 0.0
    %193 = vmatprep.subr.mxu0 0.0
    %194 = vmatpush1.msra.mxu0 0.0
    %195 = vmatprep.subr.mxu0 0.0
    %196 = vmatpush1.msra.mxu0 0.0
    %197 = vmatprep.subr.mxu0 0.0
    %198 = vmatpush1.msra.mxu0 0.0
    %199 = vmatprep.subr.mxu0 0.0
    %200 = vmatpush1.msra.mxu0 0.0
    %201 = vmatprep.subr.mxu0 0.0
    %202 = vmatpush1.msra.mxu0 0.0
    %203 = vmatprep.subr.mxu0 0.0
    %204 = vmatpush1.msra.mxu0 0.0
    %205 = vmatprep.subr.mxu0 0.0
    %206 = vmatpush1.msra.mxu0 0.0
    %207 = vmatprep.subr.mxu0 0.0
    %208 = vmatpush1.msra.mxu0 0.0
    %209 = vmatprep.subr.mxu0 0.0
    %210 = vmatpush1.msra.mxu0 0.0
    %211 = vmatprep.subr.mxu0 0.0
    %212 = vmatpush1.msra.mxu0 0.0
    %213 = vmatprep.subr.mxu0 0.0
    %214 = vmatpush1.msra.mxu0 0.0
    %215 = vmatprep.mubr.f32.mxu0 0.0
    %216 = vmatmul.mubr.f32.gmra.mrb[0].mxu0 %v124
    %v217 = vpop.f32.mrb[0].mxu0
    %v218 = vadd.f32 %v120, %v217
    %v219 = vpop.f32.mrb[0].mxu0
    %220 = vmatprep.mubr.f32.mxu0 0.0
    %221 = vmatmul.mubr.f32.gmra.mrb[0].mxu0 %v127
    %v222 = vpop.f32.mrb[0].mxu0
    %v223 = vadd.f32 %v120, %v222
    %v224 = vpop.f32.mrb[0].mxu0
    %225 = vmatprep.mubr.f32.mxu0 0.0
    %226 = vmatmul.mubr.f32.gmra.mrb[0].mxu0 %v130
    %v227 = vpop.f32.mrb[0].mxu0
    %v228 = vadd.f32 %v120, %v227
    %v229 = vpop.f32.mrb[0].mxu0
    %230 = vmatprep.mubr.f32.mxu0 0.0
    %231 = vmatmul.mubr.f32.gmra.mrb[0].mxu0 %v133
    %v232 = vpop.f32.mrb[0].mxu0
    %v233 = vadd.f32 %v120, %v232
    %v234 = vpop.f32.mrb[0].mxu0
    %235 = vmatprep.mubr.f32.mxu0 0.0
    %236 = vmatmul.mubr.f32.gmra.mrb[0].mxu0 %v136
    %v237 = vpop.f32.mrb[0].mxu0
    %v238 = vadd.f32 %v120, %v237
    %v239 = vpop.f32.mrb[0].mxu0
    %240 = vmatprep.mubr.f32.mxu0 0.0
    %241 = vmatmul.mubr.f32.gmra.mrb[0].mxu0 %v139
    %v242 = vpop.f32.mrb[0].mxu0
    %v243 = vadd.f32 %v120, %v242
    %v244 = vpop.f32.mrb[0].mxu0
    %245 = vmatprep.mubr.f32.mxu0 0.0
    %246 = vmatmul.mubr.f32.gmra.mrb[0].mxu0 %v142
    %v247 = vpop.f32.mrb[0].mxu0
    %v248 = vadd.f32 %v120, %v247
    %v249 = vpop.f32.mrb[0].mxu0
    %250 = vmatprep.mubr.f32.mxu0 0.0
    %251 = vmatmul.mubr.f32.gmra.mrb[0].mxu0 %v145
    %v252 = vpop.f32.mrb[0].mxu0
    %v253 = vadd.f32 %v120, %v252
    %v254 = vpop.f32.mrb[0].mxu0
    %255 = vdwg.mxu0
    %vm256 = vcmask 261120
    %v258 = vsel %vm256, 0.0, 0
    %260 = vmatprep.subr.mxu0 0.0
    %261 = vmatpush1.msra.mxu0 %v58
    %262 = vmatprep.subr.mxu0 0.0
    %263 = vmatpush1.msra.mxu0 %v59
    %264 = vmatprep.subr.mxu0 0.0
    %265 = vmatpush1.msra.mxu0 %v60
    %266 = vmatprep.subr.mxu0 0.0
    %267 = vmatpush1.msra.mxu0 %v61
    %268 = vmatprep.subr.mxu0 0.0
    %269 = vmatpush1.msra.mxu0 0.0
    %270 = vmatprep.subr.mxu0 0.0
    %271 = vmatpush1.msra.mxu0 0.0
    %272 = vmatprep.subr.mxu0 0.0
    %273 = vmatpush1.msra.mxu0 0.0
    %274 = vmatprep.subr.mxu0 0.0
    %275 = vmatpush1.msra.mxu0 0.0
    %276 = vmatprep.subr.mxu0 0.0
    %277 = vmatpush1.msra.mxu0 0.0
    %278 = vmatprep.subr.mxu0 0.0
    %279 = vmatpush1.msra.mxu0 0.0
    %280 = vmatprep.subr.mxu0 0.0
    %281 = vmatpush1.msra.mxu0 0.0
    %282 = vmatprep.subr.mxu0 0.0
    %283 = vmatpush1.msra.mxu0 0.0
    %284 = vmatprep.subr.mxu0 0.0
    %285 = vmatpush1.msra.mxu0 0.0
    %286 = vmatprep.subr.mxu0 0.0
    %287 = vmatpush1.msra.mxu0 0.0
    %288 = vmatprep.subr.mxu0 0.0
    %289 = vmatpush1.msra.mxu0 0.0
    %290 = vmatprep.subr.mxu0 0.0
    %291 = vmatpush1.msra.mxu0 0.0
    %292 = vmatprep.subr.mxu0 0.0
    %293 = vmatpush1.msra.mxu0 0.0
    %294 = vmatprep.subr.mxu0 0.0
    %295 = vmatpush1.msra.mxu0 0.0
    %296 = vmatprep.subr.mxu0 0.0
    %297 = vmatpush1.msra.mxu0 0.0
    %298 = vmatprep.subr.mxu0 0.0
    %299 = vmatpush1.msra.mxu0 0.0
    %300 = vmatprep.subr.mxu0 0.0
    %301 = vmatpush1.msra.mxu0 0.0
    %302 = vmatprep.subr.mxu0 0.0
    %303 = vmatpush1.msra.mxu0 0.0
    %304 = vmatprep.subr.mxu0 0.0
    %305 = vmatpush1.msra.mxu0 0.0
    %306 = vmatprep.subr.mxu0 0.0
    %307 = vmatpush1.msra.mxu0 0.0
    %308 = vmatprep.subr.mxu0 0.0
    %309 = vmatpush1.msra.mxu0 0.0
    %310 = vmatprep.subr.mxu0 0.0
    %311 = vmatpush1.msra.mxu0 0.0
    %312 = vmatprep.subr.mxu0 0.0
    %313 = vmatpush1.msra.mxu0 0.0
    %314 = vmatprep.subr.mxu0 0.0
    %315 = vmatpush1.msra.mxu0 0.0
    %316 = vmatprep.subr.mxu0 0.0
    %317 = vmatpush1.msra.mxu0 0.0
    %318 = vmatprep.subr.mxu0 0.0
    %319 = vmatpush1.msra.mxu0 0.0
    %320 = vmatprep.subr.mxu0 0.0
    %321 = vmatpush1.msra.mxu0 0.0
    %322 = vmatprep.subr.mxu0 0.0
    %323 = vmatpush1.msra.mxu0 0.0
    %324 = vmatprep.mubr.f32.mxu0 0.0
    %325 = vmatmul.mubr.f32.gmra.mrb[0].mxu0 %v258
    %v326 = vpop.f32.mrb[0].mxu0
    %v327 = vadd.f32 %v218, %v326
    %v328 = vpop.f32.mrb[0].mxu0
    %329 = vdwg.mxu0
    %v330 = vxor.u32 %v327, 2147483648
    %v331 = vmul.f32 %v330, 1.442695
    %v332 = vpow.pop %v331
    %v333 = vadd.f32 %v332, 1.0
    %v334 = vrcp.pop %v333
    %v335 = vmul.f32 1.0, %v334
    %v336 = vtanh.pop %v327
    %v337 = vmul.f32 %v335, 0.0
    %339 = vrot.lane.b32.xlu0 %v336, 32
    %v340 = vpop.permute.xlu0 %339
    %v342 = vmul.f32 %v335, %v340
    %344 = vrot.lane.b32.xlu0 %v342, 32
    %v345 = vpop.permute.xlu0 %344
    %v347 = vadd.f32 %v337, %v345
    %v348 = vtanh.pop %v347
    %350 = vrot.lane.b32.xlu0 %v348, 32
    %v351 = vpop.permute.xlu0 %350
    %v353 = vmul.f32 %v335, %v351
    %355 = vrot.lane.b32.xlu0 %v353, 64
    %v356 = vpop.permute.xlu0 %355
    %v357 = vsel %vm256, %v356, 0
    %359 = vmatprep.subr.mxu0 0.0
    %360 = vmatpush1.msra.mxu0 %v58
    %361 = vmatprep.subr.mxu0 0.0
    %362 = vmatpush1.msra.mxu0 %v59
    %363 = vmatprep.subr.mxu0 0.0
    %364 = vmatpush1.msra.mxu0 %v60
    %365 = vmatprep.subr.mxu0 0.0
    %366 = vmatpush1.msra.mxu0 %v61
    %367 = vmatprep.subr.mxu0 0.0
    %368 = vmatpush1.msra.mxu0 0.0
    %369 = vmatprep.subr.mxu0 0.0
    %370 = vmatpush1.msra.mxu0 0.0
    %371 = vmatprep.subr.mxu0 0.0
    %372 = vmatpush1.msra.mxu0 0.0
    %373 = vmatprep.subr.mxu0 0.0
    %374 = vmatpush1.msra.mxu0 0.0
    %375 = vmatprep.subr.mxu0 0.0
    %376 = vmatpush1.msra.mxu0 0.0
    %377 = vmatprep.subr.mxu0 0.0
    %378 = vmatpush1.msra.mxu0 0.0
    %379 = vmatprep.subr.mxu0 0.0
    %380 = vmatpush1.msra.mxu0 0.0
    %381 = vmatprep.subr.mxu0 0.0
    %382 = vmatpush1.msra.mxu0 0.0
    %383 = vmatprep.subr.mxu0 0.0
    %384 = vmatpush1.msra.mxu0 0.0
    %385 = vmatprep.subr.mxu0 0.0
    %386 = vmatpush1.msra.mxu0 0.0
    %387 = vmatprep.subr.mxu0 0.0
    %388 = vmatpush1.msra.mxu0 0.0
    %389 = vmatprep.subr.mxu0 0.0
    %390 = vmatpush1.msra.mxu0 0.0
    %391 = vmatprep.subr.mxu0 0.0
    %392 = vmatpush1.msra.mxu0 0.0
    %393 = vmatprep.subr.mxu0 0.0
    %394 = vmatpush1.msra.mxu0 0.0
    %395 = vmatprep.subr.mxu0 0.0
    %396 = vmatpush1.msra.mxu0 0.0
    %397 = vmatprep.subr.mxu0 0.0
    %398 = vmatpush1.msra.mxu0 0.0
    %399 = vmatprep.subr.mxu0 0.0
    %400 = vmatpush1.msra.mxu0 0.0
    %401 = vmatprep.subr.mxu0 0.0
    %402 = vmatpush1.msra.mxu0 0.0
    %403 = vmatprep.subr.mxu0 0.0
    %404 = vmatpush1.msra.mxu0 0.0
    %405 = vmatprep.subr.mxu0 0.0
    %406 = vmatpush1.msra.mxu0 0.0
    %407 = vmatprep.subr.mxu0 0.0
    %408 = vmatpush1.msra.mxu0 0.0
    %409 = vmatprep.subr.mxu0 0.0
    %410 = vmatpush1.msra.mxu0 0.0
    %411 = vmatprep.subr.mxu0 0.0
    %412 = vmatpush1.msra.mxu0 0.0
    %413 = vmatprep.subr.mxu0 0.0
    %414 = vmatpush1.msra.mxu0 0.0
    %415 = vmatprep.subr.mxu0 0.0
    %416 = vmatpush1.msra.mxu0 0.0
    %417 = vmatprep.subr.mxu0 0.0
    %418 = vmatpush1.msra.mxu0 0.0
    %419 = vmatprep.subr.mxu0 0.0
    %420 = vmatpush1.msra.mxu0 0.0
    %421 = vmatprep.subr.mxu0 0.0
    %422 = vmatpush1.msra.mxu0 0.0
    %423 = vmatprep.mubr.f32.mxu0 0.0
    %424 = vmatmul.mubr.f32.gmra.mrb[0].mxu0 %v357
    %v425 = vpop.f32.mrb[0].mxu0
    %v426 = vadd.f32 %v223, %v425
    %v427 = vpop.f32.mrb[0].mxu0
    %428 = vdwg.mxu0
    %v429 = vxor.u32 %v426, 2147483648
    %v430 = vmul.f32 %v429, 1.442695
    %v431 = vpow.pop %v430
    %v432 = vadd.f32 %v431, 1.0
    %v433 = vrcp.pop %v432
    %v434 = vmul.f32 1.0, %v433
    %v435 = vtanh.pop %v426
    %v436 = vmul.f32 %v434, %v347
    %438 = vrot.lane.b32.xlu0 %v435, 32
    %v439 = vpop.permute.xlu0 %438
    %v441 = vmul.f32 %v434, %v439
    %443 = vrot.lane.b32.xlu0 %v441, 32
    %v444 = vpop.permute.xlu0 %443
    %v446 = vadd.f32 %v436, %v444
    %v447 = vtanh.pop %v446
    %449 = vrot.lane.b32.xlu0 %v447, 32
    %v450 = vpop.permute.xlu0 %449
    %v452 = vmul.f32 %v434, %v450
    %v454 = vsel %vm256, %v356, 0.0
    %v456 = vlaneseq
    %v457 = vshrl.u32 %v456, 7
    %v458 = vsub.s32 0, %v457
    %v459 = vrot.slane %v100, %v458
    %vm461 = vcmask 523264
    %v463 = vsel %vm461, %v454, 0
    %465 = vmatprep.subr.mxu0 0.0
    %466 = vmatpush1.msra.mxu0 %v63
    %467 = vmatprep.subr.mxu0 0.0
    %468 = vmatpush1.msra.mxu0 %v64
    %469 = vmatprep.subr.mxu0 0.0
    %470 = vmatpush1.msra.mxu0 %v65
    %471 = vmatprep.subr.mxu0 0.0
    %472 = vmatpush1.msra.mxu0 %v66
    %473 = vmatprep.subr.mxu0 0.0
    %474 = vmatpush1.msra.mxu0 %v67
    %475 = vmatprep.subr.mxu0 0.0
    %476 = vmatpush1.msra.mxu0 %v68
    %477 = vmatprep.subr.mxu0 0.0
    %478 = vmatpush1.msra.mxu0 %v69
    %479 = vmatprep.subr.mxu0 0.0
    %480 = vmatpush1.msra.mxu0 %v70
    %481 = vmatprep.subr.mxu0 0.0
    %482 = vmatpush1.msra.mxu0 0.0
    %483 = vmatprep.subr.mxu0 0.0
    %484 = vmatpush1.msra.mxu0 0.0
    %485 = vmatprep.subr.mxu0 0.0
    %486 = vmatpush1.msra.mxu0 0.0
    %487 = vmatprep.subr.mxu0 0.0
    %488 = vmatpush1.msra.mxu0 0.0
    %489 = vmatprep.subr.mxu0 0.0
    %490 = vmatpush1.msra.mxu0 0.0
    %491 = vmatprep.subr.mxu0 0.0
    %492 = vmatpush1.msra.mxu0 0.0
    %493 = vmatprep.subr.mxu0 0.0
    %494 = vmatpush1.msra.mxu0 0.0
    %495 = vmatprep.subr.mxu0 0.0
    %496 = vmatpush1.msra.mxu0 0.0
    %497 = vmatprep.subr.mxu0 0.0
    %498 = vmatpush1.msra.mxu0 0.0
    %499 = vmatprep.subr.mxu0 0.0
    %500 = vmatpush1.msra.mxu0 0.0
    %501 = vmatprep.subr.mxu0 0.0
    %502 = vmatpush1.msra.mxu0 0.0
    %503 = vmatprep.subr.mxu0 0.0
    %504 = vmatpush1.msra.mxu0 0.0
    %505 = vmatprep.subr.mxu0 0.0
    %506 = vmatpush1.msra.mxu0 0.0
    %507 = vmatprep.subr.mxu0 0.0
    %508 = vmatpush1.msra.mxu0 0.0
    %509 = vmatprep.subr.mxu0 0.0
    %510 = vmatpush1.msra.mxu0 0.0
    %511 = vmatprep.subr.mxu0 0.0
    %512 = vmatpush1.msra.mxu0 0.0
    %513 = vmatprep.subr.mxu0 0.0
    %514 = vmatpush1.msra.mxu0 0.0
    %515 = vmatprep.subr.mxu0 0.0
    %516 = vmatpush1.msra.mxu0 0.0
    %517 = vmatprep.subr.mxu0 0.0
    %518 = vmatpush1.msra.mxu0 0.0
    %519 = vmatprep.subr.mxu0 0.0
    %520 = vmatpush1.msra.mxu0 0.0
    %521 = vmatprep.subr.mxu0 0.0
    %522 = vmatpush1.msra.mxu0 0.0
    %523 = vmatprep.subr.mxu0 0.0
    %524 = vmatpush1.msra.mxu0 0.0
    %525 = vmatprep.subr.mxu0 0.0
    %526 = vmatpush1.msra.mxu0 0.0
    %527 = vmatprep.subr.mxu0 0.0
    %528 = vmatpush1.msra.mxu0 0.0
    %529 = vmatprep.mubr.f32.mxu0 0.0
    %530 = vmatmul.mubr.f32.gmra.mrb[0].mxu0 %v463
    %v531 = vpop.f32.mrb[0].mxu0
    %v532 = vadd.f32 %v459, %v531
    %v533 = vpop.f32.mrb[0].mxu0
    %534 = vdwg.mxu0
    %v535 = vxor.u32 %v532, 2147483648
    %v536 = vmul.f32 %v535, 1.442695
    %v537 = vpow.pop %v536
    %v538 = vadd.f32 %v537, 1.0
    %v539 = vrcp.pop %v538
    %v540 = vmul.f32 1.0, %v539
    %v541 = vtanh.pop %v532
    %v542 = vmul.f32 %v540, 0.0
    %544 = vrot.lane.b32.xlu0 %v541, 32
    %v545 = vpop.permute.xlu0 %544
    %v547 = vmul.f32 %v540, %v545
    %549 = vrot.lane.b32.xlu0 %v547, 32
    %v550 = vpop.permute.xlu0 %549
    %v552 = vadd.f32 %v542, %v550
    %v553 = vtanh.pop %v552
    %555 = vrot.lane.b32.xlu0 %v553, 32
    %v556 = vpop.permute.xlu0 %555
    %v558 = vmul.f32 %v540, %v556
    %560 = vrot.lane.b32.xlu0 %v452, 64
    %v561 = vpop.permute.xlu0 %560
    %v562 = vsel %vm256, %v561, 0
    %564 = vmatprep.subr.mxu0 0.0
    %565 = vmatpush1.msra.mxu0 %v58
    %566 = vmatprep.subr.mxu0 0.0
    %567 = vmatpush1.msra.mxu0 %v59
    %568 = vmatprep.subr.mxu0 0.0
    %569 = vmatpush1.msra.mxu0 %v60
    %570 = vmatprep.subr.mxu0 0.0
    %571 = vmatpush1.msra.mxu0 %v61
    %572 = vmatprep.subr.mxu0 0.0
    %573 = vmatpush1.msra.mxu0 0.0
    %574 = vmatprep.subr.mxu0 0.0
    %575 = vmatpush1.msra.mxu0 0.0
    %576 = vmatprep.subr.mxu0 0.0
    %577 = vmatpush1.msra.mxu0 0.0
    %578 = vmatprep.subr.mxu0 0.0
    %579 = vmatpush1.msra.mxu0 0.0
    %580 = vmatprep.subr.mxu0 0.0
    %581 = vmatpush1.msra.mxu0 0.0
    %582 = vmatprep.subr.mxu0 0.0
    %583 = vmatpush1.msra.mxu0 0.0
    %584 = vmatprep.subr.mxu0 0.0
    %585 = vmatpush1.msra.mxu0 0.0
    %586 = vmatprep.subr.mxu0 0.0
    %587 = vmatpush1.msra.mxu0 0.0
    %588 = vmatprep.subr.mxu0 0.0
    %589 = vmatpush1.msra.mxu0 0.0
    %590 = vmatprep.subr.mxu0 0.0
    %591 = vmatpush1.msra.mxu0 0.0
    %592 = vmatprep.subr.mxu0 0.0
    %593 = vmatpush1.msra.mxu0 0.0
    %594 = vmatprep.subr.mxu0 0.0
    %595 = vmatpush1.msra.mxu0 0.0
    %596 = vmatprep.subr.mxu0 0.0
    %597 = vmatpush1.msra.mxu0 0.0
    %598 = vmatprep.subr.mxu0 0.0
    %599 = vmatpush1.msra.mxu0 0.0
    %600 = vmatprep.subr.mxu0 0.0
    %601 = vmatpush1.msra.mxu0 0.0
    %602 = vmatprep.subr.mxu0 0.0
    %603 = vmatpush1.msra.mxu0 0.0
    %604 = vmatprep.subr.mxu0 0.0
    %605 = vmatpush1.msra.mxu0 0.0
    %606 = vmatprep.subr.mxu0 0.0
    %607 = vmatpush1.msra.mxu0 0.0
    %608 = vmatprep.subr.mxu0 0.0
    %609 = vmatpush1.msra.mxu0 0.0
    %610 = vmatprep.subr.mxu0 0.0
    %611 = vmatpush1.msra.mxu0 0.0
    %612 = vmatprep.subr.mxu0 0.0
    %613 = vmatpush1.msra.mxu0 0.0
    %614 = vmatprep.subr.mxu0 0.0
    %615 = vmatpush1.msra.mxu0 0.0
    %616 = vmatprep.subr.mxu0 0.0
    %617 = vmatpush1.msra.mxu0 0.0
    %618 = vmatprep.subr.mxu0 0.0
    %619 = vmatpush1.msra.mxu0 0.0
    %620 = vmatprep.subr.mxu0 0.0
    %621 = vmatpush1.msra.mxu0 0.0
    %622 = vmatprep.subr.mxu0 0.0
    %623 = vmatpush1.msra.mxu0 0.0
    %624 = vmatprep.subr.mxu0 0.0
    %625 = vmatpush1.msra.mxu0 0.0
    %626 = vmatprep.subr.mxu0 0.0
    %627 = vmatpush1.msra.mxu0 0.0
    %628 = vmatprep.mubr.f32.mxu0 0.0
    %629 = vmatmul.mubr.f32.gmra.mrb[0].mxu0 %v562
    %v630 = vpop.f32.mrb[0].mxu0
    %v631 = vadd.f32 %v228, %v630
    %v632 = vpop.f32.mrb[0].mxu0
    %633 = vdwg.mxu0
    %v634 = vxor.u32 %v631, 2147483648
    %v635 = vmul.f32 %v634, 1.442695
    %v636 = vpow.pop %v635
    %v637 = vadd.f32 %v636, 1.0
    %v638 = vrcp.pop %v637
    %v639 = vmul.f32 1.0, %v638
    %v640 = vtanh.pop %v631
    %v641 = vmul.f32 %v639, %v446
    %643 = vrot.lane.b32.xlu0 %v640, 32
    %v644 = vpop.permute.xlu0 %643
    %v646 = vmul.f32 %v639, %v644
    %648 = vrot.lane.b32.xlu0 %v646, 32
    %v649 = vpop.permute.xlu0 %648
    %v651 = vadd.f32 %v641, %v649
    %v652 = vtanh.pop %v651
    %654 = vrot.lane.b32.xlu0 %v652, 32
    %v655 = vpop.permute.xlu0 %654
    %v657 = vmul.f32 %v639, %v655
    %660 = vrot.lane.b32.xlu0 %v558, 96
    %v661 = vpop.permute.xlu0 %660
    %v663 = vsel %vm256, %v561, %v661
    %v665 = vsel %vm461, %v663, 0
    %667 = vmatprep.subr.mxu0 0.0
    %668 = vmatpush1.msra.mxu0 %v63
    %669 = vmatprep.subr.mxu0 0.0
    %670 = vmatpush1.msra.mxu0 %v64
    %671 = vmatprep.subr.mxu0 0.0
    %672 = vmatpush1.msra.mxu0 %v65
    %673 = vmatprep.subr.mxu0 0.0
    %674 = vmatpush1.msra.mxu0 %v66
    %675 = vmatprep.subr.mxu0 0.0
    %676 = vmatpush1.msra.mxu0 %v67
    %677 = vmatprep.subr.mxu0 0.0
    %678 = vmatpush1.msra.mxu0 %v68
    %679 = vmatprep.subr.mxu0 0.0
    %680 = vmatpush1.msra.mxu0 %v69
    %681 = vmatprep.subr.mxu0 0.0
    %682 = vmatpush1.msra.mxu0 %v70
    %683 = vmatprep.subr.mxu0 0.0
    %684 = vmatpush1.msra.mxu0 0.0
    %685 = vmatprep.subr.mxu0 0.0
    %686 = vmatpush1.msra.mxu0 0.0
    %687 = vmatprep.subr.mxu0 0.0
    %688 = vmatpush1.msra.mxu0 0.0
    %689 = vmatprep.subr.mxu0 0.0
    %690 = vmatpush1.msra.mxu0 0.0
    %691 = vmatprep.subr.mxu0 0.0
    %692 = vmatpush1.msra.mxu0 0.0
    %693 = vmatprep.subr.mxu0 0.0
    %694 = vmatpush1.msra.mxu0 0.0
    %695 = vmatprep.subr.mxu0 0.0
    %696 = vmatpush1.msra.mxu0 0.0
    %697 = vmatprep.subr.mxu0 0.0
    %698 = vmatpush1.msra.mxu0 0.0
    %699 = vmatprep.subr.mxu0 0.0
    %700 = vmatpush1.msra.mxu0 0.0
    %701 = vmatprep.subr.mxu0 0.0
    %702 = vmatpush1.msra.mxu0 0.0
    %703 = vmatprep.subr.mxu0 0.0
    %704 = vmatpush1.msra.mxu0 0.0
    %705 = vmatprep.subr.mxu0 0.0
    %706 = vmatpush1.msra.mxu0 0.0
    %707 = vmatprep.subr.mxu0 0.0
    %708 = vmatpush1.msra.mxu0 0.0
    %709 = vmatprep.subr.mxu0 0.0
    %710 = vmatpush1.msra.mxu0 0.0
    %711 = vmatprep.subr.mxu0 0.0
    %712 = vmatpush1.msra.mxu0 0.0
    %713 = vmatprep.subr.mxu0 0.0
    %714 = vmatpush1.msra.mxu0 0.0
    %715 = vmatprep.subr.mxu0 0.0
    %716 = vmatpush1.msra.mxu0 0.0
    %717 = vmatprep.subr.mxu0 0.0
    %718 = vmatpush1.msra.mxu0 0.0
    %719 = vmatprep.subr.mxu0 0.0
    %720 = vmatpush1.msra.mxu0 0.0
    %721 = vmatprep.subr.mxu0 0.0
    %722 = vmatpush1.msra.mxu0 0.0
    %723 = vmatprep.subr.mxu0 0.0
    %724 = vmatpush1.msra.mxu0 0.0
    %725 = vmatprep.subr.mxu0 0.0
    %726 = vmatpush1.msra.mxu0 0.0
    %727 = vmatprep.subr.mxu0 0.0
    %728 = vmatpush1.msra.mxu0 0.0
    %729 = vmatprep.subr.mxu0 0.0
    %730 = vmatpush1.msra.mxu0 0.0
    %731 = vmatprep.mubr.f32.mxu0 0.0
    %732 = vmatmul.mubr.f32.gmra.mrb[0].mxu0 %v665
    %v733 = vpop.f32.mrb[0].mxu0
    %v734 = vadd.f32 %v459, %v733
    %v735 = vpop.f32.mrb[0].mxu0
    %736 = vdwg.mxu0
    %v737 = vxor.u32 %v734, 2147483648
    %v738 = vmul.f32 %v737, 1.442695
    %v739 = vpow.pop %v738
    %v740 = vadd.f32 %v739, 1.0
    %v741 = vrcp.pop %v740
    %v742 = vmul.f32 1.0, %v741
    %v743 = vtanh.pop %v734
    %v744 = vmul.f32 %v742, %v552
    %746 = vrot.lane.b32.xlu0 %v743, 32
    %v747 = vpop.permute.xlu0 %746
    %v749 = vmul.f32 %v742, %v747
    %751 = vrot.lane.b32.xlu0 %v749, 32
    %v752 = vpop.permute.xlu0 %751
    %v754 = vadd.f32 %v744, %v752
    %v755 = vtanh.pop %v754
    %757 = vrot.lane.b32.xlu0 %v755, 32
    %v758 = vpop.permute.xlu0 %757
    %v760 = vmul.f32 %v742, %v758
    %761 = vrot.lane.b32.xlu0 %v558, 64
    %v762 = vpop.permute.xlu0 %761
    %v764 = vsel %vm256, %v762, 0.0
    %v766 = vlaneseq
    %v767 = vshrl.u32 %v766, 7
    %v768 = vsub.s32 0, %v767
    %v769 = vrot.slane %v102, %v768
    %v772 = vsel %vm461, %v764, 0
    %774 = vmatprep.subr.mxu0 0.0
    %775 = vmatpush1.msra.mxu0 %v72
    %776 = vmatprep.subr.mxu0 0.0
    %777 = vmatpush1.msra.mxu0 %v73
    %778 = vmatprep.subr.mxu0 0.0
    %779 = vmatpush1.msra.mxu0 %v74
    %780 = vmatprep.subr.mxu0 0.0
    %781 = vmatpush1.msra.mxu0 %v75
    %782 = vmatprep.subr.mxu0 0.0
    %783 = vmatpush1.msra.mxu0 %v76
    %784 = vmatprep.subr.mxu0 0.0
    %785 = vmatpush1.msra.mxu0 %v77
    %786 = vmatprep.subr.mxu0 0.0
    %787 = vmatpush1.msra.mxu0 %v78
    %788 = vmatprep.subr.mxu0 0.0
    %789 = vmatpush1.msra.mxu0 %v79
    %790 = vmatprep.subr.mxu0 0.0
    %791 = vmatpush1.msra.mxu0 0.0
    %792 = vmatprep.subr.mxu0 0.0
    %793 = vmatpush1.msra.mxu0 0.0
    %794 = vmatprep.subr.mxu0 0.0
    %795 = vmatpush1.msra.mxu0 0.0
    %796 = vmatprep.subr.mxu0 0.0
    %797 = vmatpush1.msra.mxu0 0.0
    %798 = vmatprep.subr.mxu0 0.0
    %799 = vmatpush1.msra.mxu0 0.0
    %800 = vmatprep.subr.mxu0 0.0
    %801 = vmatpush1.msra.mxu0 0.0
    %802 = vmatprep.subr.mxu0 0.0
    %803 = vmatpush1.msra.mxu0 0.0
    %804 = vmatprep.subr.mxu0 0.0
    %805 = vmatpush1.msra.mxu0 0.0
    %806 = vmatprep.subr.mxu0 0.0
    %807 = vmatpush1.msra.mxu0 0.0
    %808 = vmatprep.subr.mxu0 0.0
    %809 = vmatpush1.msra.mxu0 0.0
    %810 = vmatprep.subr.mxu0 0.0
    %811 = vmatpush1.msra.mxu0 0.0
    %812 = vmatprep.subr.mxu0 0.0
    %813 = vmatpush1.msra.mxu0 0.0
    %814 = vmatprep.subr.mxu0 0.0
    %815 = vmatpush1.msra.mxu0 0.0
    %816 = vmatprep.subr.mxu0 0.0
    %817 = vmatpush1.msra.mxu0 0.0
    %818 = vmatprep.subr.mxu0 0.0
    %819 = vmatpush1.msra.mxu0 0.0
    %820 = vmatprep.subr.mxu0 0.0
    %821 = vmatpush1.msra.mxu0 0.0
    %822 = vmatprep.subr.mxu0 0.0
    %823 = vmatpush1.msra.mxu0 0.0
    %824 = vmatprep.subr.mxu0 0.0
    %825 = vmatpush1.msra.mxu0 0.0
    %826 = vmatprep.subr.mxu0 0.0
    %827 = vmatpush1.msra.mxu0 0.0
    %828 = vmatprep.subr.mxu0 0.0
    %829 = vmatpush1.msra.mxu0 0.0
    %830 = vmatprep.subr.mxu0 0.0
    %831 = vmatpush1.msra.mxu0 0.0
    %832 = vmatprep.subr.mxu0 0.0
    %833 = vmatpush1.msra.mxu0 0.0
    %834 = vmatprep.subr.mxu0 0.0
    %835 = vmatpush1.msra.mxu0 0.0
    %836 = vmatprep.subr.mxu0 0.0
    %837 = vmatpush1.msra.mxu0 0.0
    %838 = vmatprep.mubr.f32.mxu0 0.0
    %839 = vmatmul.mubr.f32.gmra.mrb[0].mxu0 %v772
    %v840 = vpop.f32.mrb[0].mxu0
    %v841 = vadd.f32 %v769, %v840
    %v842 = vpop.f32.mrb[0].mxu0
    %843 = vdwg.mxu0
    %v844 = vxor.u32 %v841, 2147483648
    %v845 = vmul.f32 %v844, 1.442695
    %v846 = vpow.pop %v845
    %v847 = vadd.f32 %v846, 1.0
    %v848 = vrcp.pop %v847
    %v849 = vmul.f32 1.0, %v848
    %v850 = vtanh.pop %v841
    %v851 = vmul.f32 %v849, 0.0
    %853 = vrot.lane.b32.xlu0 %v850, 32
    %v854 = vpop.permute.xlu0 %853
    %v856 = vmul.f32 %v849, %v854
    %858 = vrot.lane.b32.xlu0 %v856, 32
    %v859 = vpop.permute.xlu0 %858
    %v861 = vadd.f32 %v851, %v859
    %v862 = vtanh.pop %v861
    %864 = vrot.lane.b32.xlu0 %v862, 32
    %v865 = vpop.permute.xlu0 %864
    %v867 = vmul.f32 %v849, %v865
    %869 = vrot.lane.b32.xlu0 %v657, 64
    %v870 = vpop.permute.xlu0 %869
    %v871 = vsel %vm256, %v870, 0
    %873 = vmatprep.subr.mxu0 0.0
    %874 = vmatpush1.msra.mxu0 %v58
    %875 = vmatprep.subr.mxu0 0.0
    %876 = vmatpush1.msra.mxu0 %v59
    %877 = vmatprep.subr.mxu0 0.0
    %878 = vmatpush1.msra.mxu0 %v60
    %879 = vmatprep.subr.mxu0 0.0
    %880 = vmatpush1.msra.mxu0 %v61
    %881 = vmatprep.subr.mxu0 0.0
    %882 = vmatpush1.msra.mxu0 0.0
    %883 = vmatprep.subr.mxu0 0.0
    %884 = vmatpush1.msra.mxu0 0.0
    %885 = vmatprep.subr.mxu0 0.0
    %886 = vmatpush1.msra.mxu0 0.0
    %887 = vmatprep.subr.mxu0 0.0
    %888 = vmatpush1.msra.mxu0 0.0
    %889 = vmatprep.subr.mxu0 0.0
    %890 = vmatpush1.msra.mxu0 0.0
    %891 = vmatprep.subr.mxu0 0.0
    %892 = vmatpush1.msra.mxu0 0.0
    %893 = vmatprep.subr.mxu0 0.0
    %894 = vmatpush1.msra.mxu0 0.0
    %895 = vmatprep.subr.mxu0 0.0
    %896 = vmatpush1.msra.mxu0 0.0
    %897 = vmatprep.subr.mxu0 0.0
    %898 = vmatpush1.msra.mxu0 0.0
    %899 = vmatprep.subr.mxu0 0.0
    %900 = vmatpush1.msra.mxu0 0.0
    %901 = vmatprep.subr.mxu0 0.0
    %902 = vmatpush1.msra.mxu0 0.0
    %903 = vmatprep.subr.mxu0 0.0
    %904 = vmatpush1.msra.mxu0 0.0
    %905 = vmatprep.subr.mxu0 0.0
    %906 = vmatpush1.msra.mxu0 0.0
    %907 = vmatprep.subr.mxu0 0.0
    %908 = vmatpush1.msra.mxu0 0.0
    %909 = vmatprep.subr.mxu0 0.0
    %910 = vmatpush1.msra.mxu0 0.0
    %911 = vmatprep.subr.mxu0 0.0
    %912 = vmatpush1.msra.mxu0 0.0
    %913 = vmatprep.subr.mxu0 0.0
    %914 = vmatpush1.msra.mxu0 0.0
    %915 = vmatprep.subr.mxu0 0.0
    %916 = vmatpush1.msra.mxu0 0.0
    %917 = vmatprep.subr.mxu0 0.0
    %918 = vmatpush1.msra.mxu0 0.0
    %919 = vmatprep.subr.mxu0 0.0
    %920 = vmatpush1.msra.mxu0 0.0
    %921 = vmatprep.subr.mxu0 0.0
    %922 = vmatpush1.msra.mxu0 0.0
    %923 = vmatprep.subr.mxu0 0.0
    %924 = vmatpush1.msra.mxu0 0.0
    %925 = vmatprep.subr.mxu0 0.0
    %926 = vmatpush1.msra.mxu0 0.0
    %927 = vmatprep.subr.mxu0 0.0
    %928 = vmatpush1.msra.mxu0 0.0
    %929 = vmatprep.subr.mxu0 0.0
    %930 = vmatpush1.msra.mxu0 0.0
    %931 = vmatprep.subr.mxu0 0.0
    %932 = vmatpush1.msra.mxu0 0.0
    %933 = vmatprep.subr.mxu0 0.0
    %934 = vmatpush1.msra.mxu0 0.0
    %935 = vmatprep.subr.mxu0 0.0
    %936 = vmatpush1.msra.mxu0 0.0
    %937 = vmatprep.mubr.f32.mxu0 0.0
    %938 = vmatmul.mubr.f32.gmra.mrb[0].mxu0 %v871
    %v939 = vpop.f32.mrb[0].mxu0
    %v940 = vadd.f32 %v233, %v939
    %v941 = vpop.f32.mrb[0].mxu0
    %942 = vdwg.mxu0
    %v943 = vxor.u32 %v940, 2147483648
    %v944 = vmul.f32 %v943, 1.442695
    %v945 = vpow.pop %v944
    %v946 = vadd.f32 %v945, 1.0
    %v947 = vrcp.pop %v946
    %v948 = vmul.f32 1.0, %v947
    %v949 = vtanh.pop %v940
    %v950 = vmul.f32 %v948, %v651
    %952 = vrot.lane.b32.xlu0 %v949, 32
    %v953 = vpop.permute.xlu0 %952
    %v955 = vmul.f32 %v948, %v953
    %957 = vrot.lane.b32.xlu0 %v955, 32
    %v958 = vpop.permute.xlu0 %957
    %v960 = vadd.f32 %v950, %v958
    %v961 = vtanh.pop %v960
    %963 = vrot.lane.b32.xlu0 %v961, 32
    %v964 = vpop.permute.xlu0 %963
    %v966 = vmul.f32 %v948, %v964
    %969 = vrot.lane.b32.xlu0 %v760, 96
    %v970 = vpop.permute.xlu0 %969
    %v972 = vsel %vm256, %v870, %v970
    %v974 = vsel %vm461, %v972, 0
    %976 = vmatprep.subr.mxu0 0.0
    %977 = vmatpush1.msra.mxu0 %v63
    %978 = vmatprep.subr.mxu0 0.0
    %979 = vmatpush1.msra.mxu0 %v64
    %980 = vmatprep.subr.mxu0 0.0
    %981 = vmatpush1.msra.mxu0 %v65
    %982 = vmatprep.subr.mxu0 0.0
    %983 = vmatpush1.msra.mxu0 %v66
    %984 = vmatprep.subr.mxu0 0.0
    %985 = vmatpush1.msra.mxu0 %v67
    %986 = vmatprep.subr.mxu0 0.0
    %987 = vmatpush1.msra.mxu0 %v68
    %988 = vmatprep.subr.mxu0 0.0
    %989 = vmatpush1.msra.mxu0 %v69
    %990 = vmatprep.subr.mxu0 0.0
    %991 = vmatpush1.msra.mxu0 %v70
    %992 = vmatprep.subr.mxu0 0.0
    %993 = vmatpush1.msra.mxu0 0.0
    %994 = vmatprep.subr.mxu0 0.0
    %995 = vmatpush1.msra.mxu0 0.0
    %996 = vmatprep.subr.mxu0 0.0
    %997 = vmatpush1.msra.mxu0 0.0
    %998 = vmatprep.subr.mxu0 0.0
    %999 = vmatpush1.msra.mxu0 0.0
    %1000 = vmatprep.subr.mxu0 0.0
    %1001 = vmatpush1.msra.mxu0 0.0
    %1002 = vmatprep.subr.mxu0 0.0
    %1003 = vmatpush1.msra.mxu0 0.0
    %1004 = vmatprep.subr.mxu0 0.0
    %1005 = vmatpush1.msra.mxu0 0.0
    %1006 = vmatprep.subr.mxu0 0.0
    %1007 = vmatpush1.msra.mxu0 0.0
    %1008 = vmatprep.subr.mxu0 0.0
    %1009 = vmatpush1.msra.mxu0 0.0
    %1010 = vmatprep.subr.mxu0 0.0
    %1011 = vmatpush1.msra.mxu0 0.0
    %1012 = vmatprep.subr.mxu0 0.0
    %1013 = vmatpush1.msra.mxu0 0.0
    %1014 = vmatprep.subr.mxu0 0.0
    %1015 = vmatpush1.msra.mxu0 0.0
    %1016 = vmatprep.subr.mxu0 0.0
    %1017 = vmatpush1.msra.mxu0 0.0
    %1018 = vmatprep.subr.mxu0 0.0
    %1019 = vmatpush1.msra.mxu0 0.0
    %1020 = vmatprep.subr.mxu0 0.0
    %1021 = vmatpush1.msra.mxu0 0.0
    %1022 = vmatprep.subr.mxu0 0.0
    %1023 = vmatpush1.msra.mxu0 0.0
    %1024 = vmatprep.subr.mxu0 0.0
    %1025 = vmatpush1.msra.mxu0 0.0
    %1026 = vmatprep.subr.mxu0 0.0
    %1027 = vmatpush1.msra.mxu0 0.0
    %1028 = vmatprep.subr.mxu0 0.0
    %1029 = vmatpush1.msra.mxu0 0.0
    %1030 = vmatprep.subr.mxu0 0.0
    %1031 = vmatpush1.msra.mxu0 0.0
    %1032 = vmatprep.subr.mxu0 0.0
    %1033 = vmatpush1.msra.mxu0 0.0
    %1034 = vmatprep.subr.mxu0 0.0
    %1035 = vmatpush1.msra.mxu0 0.0
    %1036 = vmatprep.subr.mxu0 0.0
    %1037 = vmatpush1.msra.mxu0 0.0
    %1038 = vmatprep.subr.mxu0 0.0
    %1039 = vmatpush1.msra.mxu0 0.0
    %1040 = vmatprep.mubr.f32.mxu0 0.0
    %1041 = vmatmul.mubr.f32.gmra.mrb[0].mxu0 %v974
    %v1042 = vpop.f32.mrb[0].mxu0
    %v1043 = vadd.f32 %v459, %v1042
    %v1044 = vpop.f32.mrb[0].mxu0
    %1045 = vdwg.mxu0
    %v1046 = vxor.u32 %v1043, 2147483648
    %v1047 = vmul.f32 %v1046, 1.442695
    %v1048 = vpow.pop %v1047
    %v1049 = vadd.f32 %v1048, 1.0
    %v1050 = vrcp.pop %v1049
    %v1051 = vmul.f32 1.0, %v1050
    %v1052 = vtanh.pop %v1043
    %v1053 = vmul.f32 %v1051, %v754
    %1055 = vrot.lane.b32.xlu0 %v1052, 32
    %v1056 = vpop.permute.xlu0 %1055
    %v1058 = vmul.f32 %v1051, %v1056
    %1060 = vrot.lane.b32.xlu0 %v1058, 32
    %v1061 = vpop.permute.xlu0 %1060
    %v1063 = vadd.f32 %v1053, %v1061
    %v1064 = vtanh.pop %v1063
    %1066 = vrot.lane.b32.xlu0 %v1064, 32
    %v1067 = vpop.permute.xlu0 %1066
    %v1069 = vmul.f32 %v1051, %v1067
    %1070 = vrot.lane.b32.xlu0 %v760, 64
    %v1071 = vpop.permute.xlu0 %1070
    %1074 = vrot.lane.b32.xlu0 %v867, 96
    %v1075 = vpop.permute.xlu0 %1074
    %v1077 = vsel %vm256, %v1071, %v1075
    %v1079 = vsel %vm461, %v1077, 0
    %1081 = vmatprep.subr.mxu0 0.0
    %1082 = vmatpush1.msra.mxu0 %v72
    %1083 = vmatprep.subr.mxu0 0.0
    %1084 = vmatpush1.msra.mxu0 %v73
    %1085 = vmatprep.subr.mxu0 0.0
    %1086 = vmatpush1.msra.mxu0 %v74
    %1087 = vmatprep.subr.mxu0 0.0
    %1088 = vmatpush1.msra.mxu0 %v75
    %1089 = vmatprep.subr.mxu0 0.0
    %1090 = vmatpush1.msra.mxu0 %v76
    %1091 = vmatprep.subr.mxu0 0.0
    %1092 = vmatpush1.msra.mxu0 %v77
    %1093 = vmatprep.subr.mxu0 0.0
    %1094 = vmatpush1.msra.mxu0 %v78
    %1095 = vmatprep.subr.mxu0 0.0
    %1096 = vmatpush1.msra.mxu0 %v79
    %1097 = vmatprep.subr.mxu0 0.0
    %1098 = vmatpush1.msra.mxu0 0.0
    %1099 = vmatprep.subr.mxu0 0.0
    %1100 = vmatpush1.msra.mxu0 0.0
    %1101 = vmatprep.subr.mxu0 0.0
    %1102 = vmatpush1.msra.mxu0 0.0
    %1103 = vmatprep.subr.mxu0 0.0
    %1104 = vmatpush1.msra.mxu0 0.0
    %1105 = vmatprep.subr.mxu0 0.0
    %1106 = vmatpush1.msra.mxu0 0.0
    %1107 = vmatprep.subr.mxu0 0.0
    %1108 = vmatpush1.msra.mxu0 0.0
    %1109 = vmatprep.subr.mxu0 0.0
    %1110 = vmatpush1.msra.mxu0 0.0
    %1111 = vmatprep.subr.mxu0 0.0
    %1112 = vmatpush1.msra.mxu0 0.0
    %1113 = vmatprep.subr.mxu0 0.0
    %1114 = vmatpush1.msra.mxu0 0.0
    %1115 = vmatprep.subr.mxu0 0.0
    %1116 = vmatpush1.msra.mxu0 0.0
    %1117 = vmatprep.subr.mxu0 0.0
    %1118 = vmatpush1.msra.mxu0 0.0
    %1119 = vmatprep.subr.mxu0 0.0
    %1120 = vmatpush1.msra.mxu0 0.0
    %1121 = vmatprep.subr.mxu0 0.0
    %1122 = vmatpush1.msra.mxu0 0.0
    %1123 = vmatprep.subr.mxu0 0.0
    %1124 = vmatpush1.msra.mxu0 0.0
    %1125 = vmatprep.subr.mxu0 0.0
    %1126 = vmatpush1.msra.mxu0 0.0
    %1127 = vmatprep.subr.mxu0 0.0
    %1128 = vmatpush1.msra.mxu0 0.0
    %1129 = vmatprep.subr.mxu0 0.0
    %1130 = vmatpush1.msra.mxu0 0.0
    %1131 = vmatprep.subr.mxu0 0.0
    %1132 = vmatpush1.msra.mxu0 0.0
    %1133 = vmatprep.subr.mxu0 0.0
    %1134 = vmatpush1.msra.mxu0 0.0
    %1135 = vmatprep.subr.mxu0 0.0
    %1136 = vmatpush1.msra.mxu0 0.0
    %1137 = vmatprep.subr.mxu0 0.0
    %1138 = vmatpush1.msra.mxu0 0.0
    %1139 = vmatprep.subr.mxu0 0.0
    %1140 = vmatpush1.msra.mxu0 0.0
    %1141 = vmatprep.subr.mxu0 0.0
    %1142 = vmatpush1.msra.mxu0 0.0
    %1143 = vmatprep.subr.mxu0 0.0
    %1144 = vmatpush1.msra.mxu0 0.0
    %1145 = vmatprep.mubr.f32.mxu0 0.0
    %1146 = vmatmul.mubr.f32.gmra.mrb[0].mxu0 %v1079
    %v1147 = vpop.f32.mrb[0].mxu0
    %v1148 = vadd.f32 %v769, %v1147
    %v1149 = vpop.f32.mrb[0].mxu0
    %1150 = vdwg.mxu0
    %v1151 = vxor.u32 %v1148, 2147483648
    %v1152 = vmul.f32 %v1151, 1.442695
    %v1153 = vpow.pop %v1152
    %v1154 = vadd.f32 %v1153, 1.0
    %v1155 = vrcp.pop %v1154
    %v1156 = vmul.f32 1.0, %v1155
    %v1157 = vtanh.pop %v1148
    %v1158 = vmul.f32 %v1156, %v861
    %1160 = vrot.lane.b32.xlu0 %v1157, 32
    %v1161 = vpop.permute.xlu0 %1160
    %v1163 = vmul.f32 %v1156, %v1161
    %1165 = vrot.lane.b32.xlu0 %v1163, 32
    %v1166 = vpop.permute.xlu0 %1165
    %v1168 = vadd.f32 %v1158, %v1166
    %v1169 = vtanh.pop %v1168
    %1171 = vrot.lane.b32.xlu0 %v1169, 32
    %v1172 = vpop.permute.xlu0 %1171
    %v1174 = vmul.f32 %v1156, %v1172
    %1175 = vrot.lane.b32.xlu0 %v867, 64
    %v1176 = vpop.permute.xlu0 %1175
    %v1178 = vsel %vm256, %v1176, 0.0
    %v1180 = vlaneseq
    %v1181 = vshrl.u32 %v1180, 7
    %v1182 = vsub.s32 0, %v1181
    %v1183 = vrot.slane %v104, %v1182
    %v1186 = vsel %vm461, %v1178, 0
    %1188 = vmatprep.subr.mxu0 0.0
    %1189 = vmatpush1.msra.mxu0 %v81
    %1190 = vmatprep.subr.mxu0 0.0
    %1191 = vmatpush1.msra.mxu0 %v82
    %1192 = vmatprep.subr.mxu0 0.0
    %1193 = vmatpush1.msra.mxu0 %v83
    %1194 = vmatprep.subr.mxu0 0.0
    %1195 = vmatpush1.msra.mxu0 %v84
    %1196 = vmatprep.subr.mxu0 0.0
    %1197 = vmatpush1.msra.mxu0 %v85
    %1198 = vmatprep.subr.mxu0 0.0
    %1199 = vmatpush1.msra.mxu0 %v86
    %1200 = vmatprep.subr.mxu0 0.0
    %1201 = vmatpush1.msra.mxu0 %v87
    %1202 = vmatprep.subr.mxu0 0.0
    %1203 = vmatpush1.msra.mxu0 %v88
    %1204 = vmatprep.subr.mxu0 0.0
    %1205 = vmatpush1.msra.mxu0 0.0
    %1206 = vmatprep.subr.mxu0 0.0
    %1207 = vmatpush1.msra.mxu0 0.0
    %1208 = vmatprep.subr.mxu0 0.0
    %1209 = vmatpush1.msra.mxu0 0.0
    %1210 = vmatprep.subr.mxu0 0.0
    %1211 = vmatpush1.msra.mxu0 0.0
    %1212 = vmatprep.subr.mxu0 0.0
    %1213 = vmatpush1.msra.mxu0 0.0
    %1214 = vmatprep.subr.mxu0 0.0
    %1215 = vmatpush1.msra.mxu0 0.0
    %1216 = vmatprep.subr.mxu0 0.0
    %1217 = vmatpush1.msra.mxu0 0.0
    %1218 = vmatprep.subr.mxu0 0.0
    %1219 = vmatpush1.msra.mxu0 0.0
    %1220 = vmatprep.subr.mxu0 0.0
    %1221 = vmatpush1.msra.mxu0 0.0
    %1222 = vmatprep.subr.mxu0 0.0
    %1223 = vmatpush1.msra.mxu0 0.0
    %1224 = vmatprep.subr.mxu0 0.0
    %1225 = vmatpush1.msra.mxu0 0.0
    %1226 = vmatprep.subr.mxu0 0.0
    %1227 = vmatpush1.msra.mxu0 0.0
    %1228 = vmatprep.subr.mxu0 0.0
    %1229 = vmatpush1.msra.mxu0 0.0
    %1230 = vmatprep.subr.mxu0 0.0
    %1231 = vmatpush1.msra.mxu0 0.0
    %1232 = vmatprep.subr.mxu0 0.0
    %1233 = vmatpush1.msra.mxu0 0.0
    %1234 = vmatprep.subr.mxu0 0.0
    %1235 = vmatpush1.msra.mxu0 0.0
    %1236 = vmatprep.subr.mxu0 0.0
    %1237 = vmatpush1.msra.mxu0 0.0
    %1238 = vmatprep.subr.mxu0 0.0
    %1239 = vmatpush1.msra.mxu0 0.0
    %1240 = vmatprep.subr.mxu0 0.0
    %1241 = vmatpush1.msra.mxu0 0.0
    %1242 = vmatprep.subr.mxu0 0.0
    %1243 = vmatpush1.msra.mxu0 0.0
    %1244 = vmatprep.subr.mxu0 0.0
    %1245 = vmatpush1.msra.mxu0 0.0
    %1246 = vmatprep.subr.mxu0 0.0
    %1247 = vmatpush1.msra.mxu0 0.0
    %1248 = vmatprep.subr.mxu0 0.0
    %1249 = vmatpush1.msra.mxu0 0.0
    %1250 = vmatprep.subr.mxu0 0.0
    %1251 = vmatpush1.msra.mxu0 0.0
    %1252 = vmatprep.mubr.f32.mxu0 0.0
    %1253 = vmatmul.mubr.f32.gmra.mrb[0].mxu0 %v1186
    %v1254 = vpop.f32.mrb[0].mxu0
    %v1255 = vadd.f32 %v1183, %v1254
    %v1256 = vpop.f32.mrb[0].mxu0
    %1257 = vdwg.mxu0
    %v1258 = vxor.u32 %v1255, 2147483648
    %v1259 = vmul.f32 %v1258, 1.442695
    %v1260 = vpow.pop %v1259
    %v1261 = vadd.f32 %v1260, 1.0
    %v1262 = vrcp.pop %v1261
    %v1263 = vmul.f32 1.0, %v1262
    %v1264 = vtanh.pop %v1255
    %v1265 = vmul.f32 %v1263, 0.0
    %1267 = vrot.lane.b32.xlu0 %v1264, 32
    %v1268 = vpop.permute.xlu0 %1267
    %v1270 = vmul.f32 %v1263, %v1268
    %1272 = vrot.lane.b32.xlu0 %v1270, 32
    %v1273 = vpop.permute.xlu0 %1272
    %v1275 = vadd.f32 %v1265, %v1273
    %v1276 = vtanh.pop %v1275
    %1278 = vrot.lane.b32.xlu0 %v1276, 32
    %v1279 = vpop.permute.xlu0 %1278
    %v1281 = vmul.f32 %v1263, %v1279
    %1283 = vrot.lane.b32.xlu0 %v966, 64
    %v1284 = vpop.permute.xlu0 %1283
    %v1285 = vsel %vm256, %v1284, 0
    %1287 = vmatprep.subr.mxu0 0.0
    %1288 = vmatpush1.msra.mxu0 %v58
    %1289 = vmatprep.subr.mxu0 0.0
    %1290 = vmatpush1.msra.mxu0 %v59
    %1291 = vmatprep.subr.mxu0 0.0
    %1292 = vmatpush1.msra.mxu0 %v60
    %1293 = vmatprep.subr.mxu0 0.0
    %1294 = vmatpush1.msra.mxu0 %v61
    %1295 = vmatprep.subr.mxu0 0.0
    %1296 = vmatpush1.msra.mxu0 0.0
    %1297 = vmatprep.subr.mxu0 0.0
    %1298 = vmatpush1.msra.mxu0 0.0
    %1299 = vmatprep.subr.mxu0 0.0
    %1300 = vmatpush1.msra.mxu0 0.0
    %1301 = vmatprep.subr.mxu0 0.0
    %1302 = vmatpush1.msra.mxu0 0.0
    %1303 = vmatprep.subr.mxu0 0.0
    %1304 = vmatpush1.msra.mxu0 0.0
    %1305 = vmatprep.subr.mxu0 0.0
    %1306 = vmatpush1.msra.mxu0 0.0
    %1307 = vmatprep.subr.mxu0 0.0
    %1308 = vmatpush1.msra.mxu0 0.0
    %1309 = vmatprep.subr.mxu0 0.0
    %1310 = vmatpush1.msra.mxu0 0.0
    %1311 = vmatprep.subr.mxu0 0.0
    %1312 = vmatpush1.msra.mxu0 0.0
    %1313 = vmatprep.subr.mxu0 0.0
    %1314 = vmatpush1.msra.mxu0 0.0
    %1315 = vmatprep.subr.mxu0 0.0
    %1316 = vmatpush1.msra.mxu0 0.0
    %1317 = vmatprep.subr.mxu0 0.0
    %1318 = vmatpush1.msra.mxu0 0.0
    %1319 = vmatprep.subr.mxu0 0.0
    %1320 = vmatpush1.msra.mxu0 0.0
    %1321 = vmatprep.subr.mxu0 0.0
    %1322 = vmatpush1.msra.mxu0 0.0
    %1323 = vmatprep.subr.mxu0 0.0
    %1324 = vmatpush1.msra.mxu0 0.0
    %1325 = vmatprep.subr.mxu0 0.0
    %1326 = vmatpush1.msra.mxu0 0.0
    %1327 = vmatprep.subr.mxu0 0.0
    %1328 = vmatpush1.msra.mxu0 0.0
    %1329 = vmatprep.subr.mxu0 0.0
    %1330 = vmatpush1.msra.mxu0 0.0
    %1331 = vmatprep.subr.mxu0 0.0
    %1332 = vmatpush1.msra.mxu0 0.0
    %1333 = vmatprep.subr.mxu0 0.0
    %1334 = vmatpush1.msra.mxu0 0.0
    %1335 = vmatprep.subr.mxu0 0.0
    %1336 = vmatpush1.msra.mxu0 0.0
    %1337 = vmatprep.subr.mxu0 0.0
    %1338 = vmatpush1.msra.mxu0 0.0
    %1339 = vmatprep.subr.mxu0 0.0
    %1340 = vmatpush1.msra.mxu0 0.0
    %1341 = vmatprep.subr.mxu0 0.0
    %1342 = vmatpush1.msra.mxu0 0.0
    %1343 = vmatprep.subr.mxu0 0.0
    %1344 = vmatpush1.msra.mxu0 0.0
    %1345 = vmatprep.subr.mxu0 0.0
    %1346 = vmatpush1.msra.mxu0 0.0
    %1347 = vmatprep.subr.mxu0 0.0
    %1348 = vmatpush1.msra.mxu0 0.0
    %1349 = vmatprep.subr.mxu0 0.0
    %1350 = vmatpush1.msra.mxu0 0.0
    %1351 = vmatprep.mubr.f32.mxu0 0.0
    %1352 = vmatmul.mubr.f32.gmra.mrb[0].mxu0 %v1285
    %v1353 = vpop.f32.mrb[0].mxu0
    %v1354 = vadd.f32 %v238, %v1353
    %v1355 = vpop.f32.mrb[0].mxu0
    %1356 = vdwg.mxu0
    %v1357 = vxor.u32 %v1354, 2147483648
    %v1358 = vmul.f32 %v1357, 1.442695
    %v1359 = vpow.pop %v1358
    %v1360 = vadd.f32 %v1359, 1.0
    %v1361 = vrcp.pop %v1360
    %v1362 = vmul.f32 1.0, %v1361
    %v1363 = vtanh.pop %v1354
    %v1364 = vmul.f32 %v1362, %v960
    %1366 = vrot.lane.b32.xlu0 %v1363, 32
    %v1367 = vpop.permute.xlu0 %1366
    %v1369 = vmul.f32 %v1362, %v1367
    %1371 = vrot.lane.b32.xlu0 %v1369, 32
    %v1372 = vpop.permute.xlu0 %1371
    %v1374 = vadd.f32 %v1364, %v1372
    %v1375 = vtanh.pop %v1374
    %1377 = vrot.lane.b32.xlu0 %v1375, 32
    %v1378 = vpop.permute.xlu0 %1377
    %v1380 = vmul.f32 %v1362, %v1378
    %1383 = vrot.lane.b32.xlu0 %v1069, 96
    %v1384 = vpop.permute.xlu0 %1383
    %v1386 = vsel %vm256, %v1284, %v1384
    %v1388 = vsel %vm461, %v1386, 0
    %1390 = vmatprep.subr.mxu0 0.0
    %1391 = vmatpush1.msra.mxu0 %v63
    %1392 = vmatprep.subr.mxu0 0.0
    %1393 = vmatpush1.msra.mxu0 %v64
    %1394 = vmatprep.subr.mxu0 0.0
    %1395 = vmatpush1.msra.mxu0 %v65
    %1396 = vmatprep.subr.mxu0 0.0
    %1397 = vmatpush1.msra.mxu0 %v66
    %1398 = vmatprep.subr.mxu0 0.0
    %1399 = vmatpush1.msra.mxu0 %v67
    %1400 = vmatprep.subr.mxu0 0.0
    %1401 = vmatpush1.msra.mxu0 %v68
    %1402 = vmatprep.subr.mxu0 0.0
    %1403 = vmatpush1.msra.mxu0 %v69
    %1404 = vmatprep.subr.mxu0 0.0
    %1405 = vmatpush1.msra.mxu0 %v70
    %1406 = vmatprep.subr.mxu0 0.0
    %1407 = vmatpush1.msra.mxu0 0.0
    %1408 = vmatprep.subr.mxu0 0.0
    %1409 = vmatpush1.msra.mxu0 0.0
    %1410 = vmatprep.subr.mxu0 0.0
    %1411 = vmatpush1.msra.mxu0 0.0
    %1412 = vmatprep.subr.mxu0 0.0
    %1413 = vmatpush1.msra.mxu0 0.0
    %1414 = vmatprep.subr.mxu0 0.0
    %1415 = vmatpush1.msra.mxu0 0.0
    %1416 = vmatprep.subr.mxu0 0.0
    %1417 = vmatpush1.msra.mxu0 0.0
    %1418 = vmatprep.subr.mxu0 0.0
    %1419 = vmatpush1.msra.mxu0 0.0
    %1420 = vmatprep.subr.mxu0 0.0
    %1421 = vmatpush1.msra.mxu0 0.0
    %1422 = vmatprep.subr.mxu0 0.0
    %1423 = vmatpush1.msra.mxu0 0.0
    %1424 = vmatprep.subr.mxu0 0.0
    %1425 = vmatpush1.msra.mxu0 0.0
    %1426 = vmatprep.subr.mxu0 0.0
    %1427 = vmatpush1.msra.mxu0 0.0
    %1428 = vmatprep.subr.mxu0 0.0
    %1429 = vmatpush1.msra.mxu0 0.0
    %1430 = vmatprep.subr.mxu0 0.0
    %1431 = vmatpush1.msra.mxu0 0.0
    %1432 = vmatprep.subr.mxu0 0.0
    %1433 = vmatpush1.msra.mxu0 0.0
    %1434 = vmatprep.subr.mxu0 0.0
    %1435 = vmatpush1.msra.mxu0 0.0
    %1436 = vmatprep.subr.mxu0 0.0
    %1437 = vmatpush1.msra.mxu0 0.0
    %1438 = vmatprep.subr.mxu0 0.0
    %1439 = vmatpush1.msra.mxu0 0.0
    %1440 = vmatprep.subr.mxu0 0.0
    %1441 = vmatpush1.msra.mxu0 0.0
    %1442 = vmatprep.subr.mxu0 0.0
    %1443 = vmatpush1.msra.mxu0 0.0
    %1444 = vmatprep.subr.mxu0 0.0
    %1445 = vmatpush1.msra.mxu0 0.0
    %1446 = vmatprep.subr.mxu0 0.0
    %1447 = vmatpush1.msra.mxu0 0.0
    %1448 = vmatprep.subr.mxu0 0.0
    %1449 = vmatpush1.msra.mxu0 0.0
    %1450 = vmatprep.subr.mxu0 0.0
    %1451 = vmatpush1.msra.mxu0 0.0
    %1452 = vmatprep.subr.mxu0 0.0
    %1453 = vmatpush1.msra.mxu0 0.0
    %1454 = vmatprep.mubr.f32.mxu0 0.0
    %1455 = vmatmul.mubr.f32.gmra.mrb[0].mxu0 %v1388
    %v1456 = vpop.f32.mrb[0].mxu0
    %v1457 = vadd.f32 %v459, %v1456
    %v1458 = vpop.f32.mrb[0].mxu0
    %1459 = vdwg.mxu0
    %v1460 = vxor.u32 %v1457, 2147483648
    %v1461 = vmul.f32 %v1460, 1.442695
    %v1462 = vpow.pop %v1461
    %v1463 = vadd.f32 %v1462, 1.0
    %v1464 = vrcp.pop %v1463
    %v1465 = vmul.f32 1.0, %v1464
    %v1466 = vtanh.pop %v1457
    %v1467 = vmul.f32 %v1465, %v1063
    %1469 = vrot.lane.b32.xlu0 %v1466, 32
    %v1470 = vpop.permute.xlu0 %1469
    %v1472 = vmul.f32 %v1465, %v1470
    %1474 = vrot.lane.b32.xlu0 %v1472, 32
    %v1475 = vpop.permute.xlu0 %1474
    %v1477 = vadd.f32 %v1467, %v1475
    %v1478 = vtanh.pop %v1477
    %1480 = vrot.lane.b32.xlu0 %v1478, 32
    %v1481 = vpop.permute.xlu0 %1480
    %v1483 = vmul.f32 %v1465, %v1481
    %1484 = vrot.lane.b32.xlu0 %v1069, 64
    %v1485 = vpop.permute.xlu0 %1484
    %1488 = vrot.lane.b32.xlu0 %v1174, 96
    %v1489 = vpop.permute.xlu0 %1488
    %v1491 = vsel %vm256, %v1485, %v1489
    %v1493 = vsel %vm461, %v1491, 0
    %1495 = vmatprep.subr.mxu0 0.0
    %1496 = vmatpush1.msra.mxu0 %v72
    %1497 = vmatprep.subr.mxu0 0.0
    %1498 = vmatpush1.msra.mxu0 %v73
    %1499 = vmatprep.subr.mxu0 0.0
    %1500 = vmatpush1.msra.mxu0 %v74
    %1501 = vmatprep.subr.mxu0 0.0
    %1502 = vmatpush1.msra.mxu0 %v75
    %1503 = vmatprep.subr.mxu0 0.0
    %1504 = vmatpush1.msra.mxu0 %v76
    %1505 = vmatprep.subr.mxu0 0.0
    %1506 = vmatpush1.msra.mxu0 %v77
    %1507 = vmatprep.subr.mxu0 0.0
    %1508 = vmatpush1.msra.mxu0 %v78
    %1509 = vmatprep.subr.mxu0 0.0
    %1510 = vmatpush1.msra.mxu0 %v79
    %1511 = vmatprep.subr.mxu0 0.0
    %1512 = vmatpush1.msra.mxu0 0.0
    %1513 = vmatprep.subr.mxu0 0.0
    %1514 = vmatpush1.msra.mxu0 0.0
    %1515 = vmatprep.subr.mxu0 0.0
    %1516 = vmatpush1.msra.mxu0 0.0
    %1517 = vmatprep.subr.mxu0 0.0
    %1518 = vmatpush1.msra.mxu0 0.0
    %1519 = vmatprep.subr.mxu0 0.0
    %1520 = vmatpush1.msra.mxu0 0.0
    %1521 = vmatprep.subr.mxu0 0.0
    %1522 = vmatpush1.msra.mxu0 0.0
    %1523 = vmatprep.subr.mxu0 0.0
    %1524 = vmatpush1.msra.mxu0 0.0
    %1525 = vmatprep.subr.mxu0 0.0
    %1526 = vmatpush1.msra.mxu0 0.0
    %1527 = vmatprep.subr.mxu0 0.0
    %1528 = vmatpush1.msra.mxu0 0.0
    %1529 = vmatprep.subr.mxu0 0.0
    %1530 = vmatpush1.msra.mxu0 0.0
    %1531 = vmatprep.subr.mxu0 0.0
    %1532 = vmatpush1.msra.mxu0 0.0
    %1533 = vmatprep.subr.mxu0 0.0
    %1534 = vmatpush1.msra.mxu0 0.0
    %1535 = vmatprep.subr.mxu0 0.0
    %1536 = vmatpush1.msra.mxu0 0.0
    %1537 = vmatprep.subr.mxu0 0.0
    %1538 = vmatpush1.msra.mxu0 0.0
    %1539 = vmatprep.subr.mxu0 0.0
    %1540 = vmatpush1.msra.mxu0 0.0
    %1541 = vmatprep.subr.mxu0 0.0
    %1542 = vmatpush1.msra.mxu0 0.0
    %1543 = vmatprep.subr.mxu0 0.0
    %1544 = vmatpush1.msra.mxu0 0.0
    %1545 = vmatprep.subr.mxu0 0.0
    %1546 = vmatpush1.msra.mxu0 0.0
    %1547 = vmatprep.subr.mxu0 0.0
    %1548 = vmatpush1.msra.mxu0 0.0
    %1549 = vmatprep.subr.mxu0 0.0
    %1550 = vmatpush1.msra.mxu0 0.0
    %1551 = vmatprep.subr.mxu0 0.0
    %1552 = vmatpush1.msra.mxu0 0.0
    %1553 = vmatprep.subr.mxu0 0.0
    %1554 = vmatpush1.msra.mxu0 0.0
    %1555 = vmatprep.subr.mxu0 0.0
    %1556 = vmatpush1.msra.mxu0 0.0
    %1557 = vmatprep.subr.mxu0 0.0
    %1558 = vmatpush1.msra.mxu0 0.0
    %1559 = vmatprep.mubr.f32.mxu0 0.0
    %1560 = vmatmul.mubr.f32.gmra.mrb[0].mxu0 %v1493
    %v1561 = vpop.f32.mrb[0].mxu0
    %v1562 = vadd.f32 %v769, %v1561
    %v1563 = vpop.f32.mrb[0].mxu0
    %1564 = vdwg.mxu0
    %v1565 = vxor.u32 %v1562, 2147483648
    %v1566 = vmul.f32 %v1565, 1.442695
    %v1567 = vpow.pop %v1566
    %v1568 = vadd.f32 %v1567, 1.0
    %v1569 = vrcp.pop %v1568
    %v1570 = vmul.f32 1.0, %v1569
    %v1571 = vtanh.pop %v1562
    %v1572 = vmul.f32 %v1570, %v1168
    %1574 = vrot.lane.b32.xlu0 %v1571, 32
    %v1575 = vpop.permute.xlu0 %1574
    %v1577 = vmul.f32 %v1570, %v1575
    %1579 = vrot.lane.b32.xlu0 %v1577, 32
    %v1580 = vpop.permute.xlu0 %1579
    %v1582 = vadd.f32 %v1572, %v1580
    %v1583 = vtanh.pop %v1582
    %1585 = vrot.lane.b32.xlu0 %v1583, 32
    %v1586 = vpop.permute.xlu0 %1585
    %v1588 = vmul.f32 %v1570, %v1586
    %1589 = vrot.lane.b32.xlu0 %v1174, 64
    %v1590 = vpop.permute.xlu0 %1589
    %1593 = vrot.lane.b32.xlu0 %v1281, 96
    %v1594 = vpop.permute.xlu0 %1593
    %v1596 = vsel %vm256, %v1590, %v1594
    %v1598 = vsel %vm461, %v1596, 0
    %1600 = vmatprep.subr.mxu0 0.0
    %1601 = vmatpush1.msra.mxu0 %v81
    %1602 = vmatprep.subr.mxu0 0.0
    %1603 = vmatpush1.msra.mxu0 %v82
    %1604 = vmatprep.subr.mxu0 0.0
    %1605 = vmatpush1.msra.mxu0 %v83
    %1606 = vmatprep.subr.mxu0 0.0
    %1607 = vmatpush1.msra.mxu0 %v84
    %1608 = vmatprep.subr.mxu0 0.0
    %1609 = vmatpush1.msra.mxu0 %v85
    %1610 = vmatprep.subr.mxu0 0.0
    %1611 = vmatpush1.msra.mxu0 %v86
    %1612 = vmatprep.subr.mxu0 0.0
    %1613 = vmatpush1.msra.mxu0 %v87
    %1614 = vmatprep.subr.mxu0 0.0
    %1615 = vmatpush1.msra.mxu0 %v88
    %1616 = vmatprep.subr.mxu0 0.0
    %1617 = vmatpush1.msra.mxu0 0.0
    %1618 = vmatprep.subr.mxu0 0.0
    %1619 = vmatpush1.msra.mxu0 0.0
    %1620 = vmatprep.subr.mxu0 0.0
    %1621 = vmatpush1.msra.mxu0 0.0
    %1622 = vmatprep.subr.mxu0 0.0
    %1623 = vmatpush1.msra.mxu0 0.0
    %1624 = vmatprep.subr.mxu0 0.0
    %1625 = vmatpush1.msra.mxu0 0.0
    %1626 = vmatprep.subr.mxu0 0.0
    %1627 = vmatpush1.msra.mxu0 0.0
    %1628 = vmatprep.subr.mxu0 0.0
    %1629 = vmatpush1.msra.mxu0 0.0
    %1630 = vmatprep.subr.mxu0 0.0
    %1631 = vmatpush1.msra.mxu0 0.0
    %1632 = vmatprep.subr.mxu0 0.0
    %1633 = vmatpush1.msra.mxu0 0.0
    %1634 = vmatprep.subr.mxu0 0.0
    %1635 = vmatpush1.msra.mxu0 0.0
    %1636 = vmatprep.subr.mxu0 0.0
    %1637 = vmatpush1.msra.mxu0 0.0
    %1638 = vmatprep.subr.mxu0 0.0
    %1639 = vmatpush1.msra.mxu0 0.0
    %1640 = vmatprep.subr.mxu0 0.0
    %1641 = vmatpush1.msra.mxu0 0.0
    %1642 = vmatprep.subr.mxu0 0.0
    %1643 = vmatpush1.msra.mxu0 0.0
    %1644 = vmatprep.subr.mxu0 0.0
    %1645 = vmatpush1.msra.mxu0 0.0
    %1646 = vmatprep.subr.mxu0 0.0
    %1647 = vmatpush1.msra.mxu0 0.0
    %1648 = vmatprep.subr.mxu0 0.0
    %1649 = vmatpush1.msra.mxu0 0.0
    %1650 = vmatprep.subr.mxu0 0.0
    %1651 = vmatpush1.msra.mxu0 0.0
    %1652 = vmatprep.subr.mxu0 0.0
    %1653 = vmatpush1.msra.mxu0 0.0
    %1654 = vmatprep.subr.mxu0 0.0
    %1655 = vmatpush1.msra.mxu0 0.0
    %1656 = vmatprep.subr.mxu0 0.0
    %1657 = vmatpush1.msra.mxu0 0.0
    %1658 = vmatprep.subr.mxu0 0.0
    %1659 = vmatpush1.msra.mxu0 0.0
    %1660 = vmatprep.subr.mxu0 0.0
    %1661 = vmatpush1.msra.mxu0 0.0
    %1662 = vmatprep.subr.mxu0 0.0
    %1663 = vmatpush1.msra.mxu0 0.0
    %1664 = vmatprep.mubr.f32.mxu0 0.0
    %1665 = vmatmul.mubr.f32.gmra.mrb[0].mxu0 %v1598
    %v1666 = vpop.f32.mrb[0].mxu0
    %v1667 = vadd.f32 %v1183, %v1666
    %v1668 = vpop.f32.mrb[0].mxu0
    %1669 = vdwg.mxu0
    %v1670 = vxor.u32 %v1667, 2147483648
    %v1671 = vmul.f32 %v1670, 1.442695
    %v1672 = vpow.pop %v1671
    %v1673 = vadd.f32 %v1672, 1.0
    %v1674 = vrcp.pop %v1673
    %v1675 = vmul.f32 1.0, %v1674
    %v1676 = vtanh.pop %v1667
    %v1677 = vmul.f32 %v1675, %v1275
    %1679 = vrot.lane.b32.xlu0 %v1676, 32
    %v1680 = vpop.permute.xlu0 %1679
    %v1682 = vmul.f32 %v1675, %v1680
    %1684 = vrot.lane.b32.xlu0 %v1682, 32
    %v1685 = vpop.permute.xlu0 %1684
    %v1687 = vadd.f32 %v1677, %v1685
    %v1688 = vtanh.pop %v1687
    %1690 = vrot.lane.b32.xlu0 %v1688, 32
    %v1691 = vpop.permute.xlu0 %1690
    %v1693 = vmul.f32 %v1675, %v1691
    %1694 = vrot.lane.b32.xlu0 %v1281, 64
    %v1695 = vpop.permute.xlu0 %1694
    %v1697 = vsel %vm256, %v1695, 0.0
    %v1699 = vlaneseq
    %v1700 = vshrl.u32 %v1699, 7
    %v1701 = vsub.s32 0, %v1700
    %v1702 = vrot.slane %v106, %v1701
    %v1705 = vsel %vm461, %v1697, 0
    %1707 = vmatprep.subr.mxu0 0.0
    %1708 = vmatpush1.msra.mxu0 %v90
    %1709 = vmatprep.subr.mxu0 0.0
    %1710 = vmatpush1.msra.mxu0 %v91
    %1711 = vmatprep.subr.mxu0 0.0
    %1712 = vmatpush1.msra.mxu0 %v92
    %1713 = vmatprep.subr.mxu0 0.0
    %1714 = vmatpush1.msra.mxu0 %v93
    %1715 = vmatprep.subr.mxu0 0.0
    %1716 = vmatpush1.msra.mxu0 %v94
    %1717 = vmatprep.subr.mxu0 0.0
    %1718 = vmatpush1.msra.mxu0 %v95
    %1719 = vmatprep.subr.mxu0 0.0
    %1720 = vmatpush1.msra.mxu0 %v96
    %1721 = vmatprep.subr.mxu0 0.0
    %1722 = vmatpush1.msra.mxu0 %v97
    %1723 = vmatprep.subr.mxu0 0.0
    %1724 = vmatpush1.msra.mxu0 0.0
    %1725 = vmatprep.subr.mxu0 0.0
    %1726 = vmatpush1.msra.mxu0 0.0
    %1727 = vmatprep.subr.mxu0 0.0
    %1728 = vmatpush1.msra.mxu0 0.0
    %1729 = vmatprep.subr.mxu0 0.0
    %1730 = vmatpush1.msra.mxu0 0.0
    %1731 = vmatprep.subr.mxu0 0.0
    %1732 = vmatpush1.msra.mxu0 0.0
    %1733 = vmatprep.subr.mxu0 0.0
    %1734 = vmatpush1.msra.mxu0 0.0
    %1735 = vmatprep.subr.mxu0 0.0
    %1736 = vmatpush1.msra.mxu0 0.0
    %1737 = vmatprep.subr.mxu0 0.0
    %1738 = vmatpush1.msra.mxu0 0.0
    %1739 = vmatprep.subr.mxu0 0.0
    %1740 = vmatpush1.msra.mxu0 0.0
    %1741 = vmatprep.subr.mxu0 0.0
    %1742 = vmatpush1.msra.mxu0 0.0
    %1743 = vmatprep.subr.mxu0 0.0
    %1744 = vmatpush1.msra.mxu0 0.0
    %1745 = vmatprep.subr.mxu0 0.0
    %1746 = vmatpush1.msra.mxu0 0.0
    %1747 = vmatprep.subr.mxu0 0.0
    %1748 = vmatpush1.msra.mxu0 0.0
    %1749 = vmatprep.subr.mxu0 0.0
    %1750 = vmatpush1.msra.mxu0 0.0
    %1751 = vmatprep.subr.mxu0 0.0
    %1752 = vmatpush1.msra.mxu0 0.0
    %1753 = vmatprep.subr.mxu0 0.0
    %1754 = vmatpush1.msra.mxu0 0.0
    %1755 = vmatprep.subr.mxu0 0.0
    %1756 = vmatpush1.msra.mxu0 0.0
    %1757 = vmatprep.subr.mxu0 0.0
    %1758 = vmatpush1.msra.mxu0 0.0
    %1759 = vmatprep.subr.mxu0 0.0
    %1760 = vmatpush1.msra.mxu0 0.0
    %1761 = vmatprep.subr.mxu0 0.0
    %1762 = vmatpush1.msra.mxu0 0.0
    %1763 = vmatprep.subr.mxu0 0.0
    %1764 = vmatpush1.msra.mxu0 0.0
    %1765 = vmatprep.subr.mxu0 0.0
    %1766 = vmatpush1.msra.mxu0 0.0
    %1767 = vmatprep.subr.mxu0 0.0
    %1768 = vmatpush1.msra.mxu0 0.0
    %1769 = vmatprep.subr.mxu0 0.0
    %1770 = vmatpush1.msra.mxu0 0.0
    %1771 = vmatprep.mubr.f32.mxu0 0.0
    %1772 = vmatmul.mubr.f32.gmra.mrb[0].mxu0 %v1705
    %v1773 = vpop.f32.mrb[0].mxu0
    %v1774 = vadd.f32 %v1702, %v1773
    %v1775 = vpop.f32.mrb[0].mxu0
    %1776 = vdwg.mxu0
    %v1777 = vxor.u32 %v1774, 2147483648
    %v1778 = vmul.f32 %v1777, 1.442695
    %v1779 = vpow.pop %v1778
    %v1780 = vadd.f32 %v1779, 1.0
    %v1781 = vrcp.pop %v1780
    %v1782 = vmul.f32 1.0, %v1781
    %v1783 = vtanh.pop %v1774
    %v1784 = vmul.f32 %v1782, 0.0
    %1786 = vrot.lane.b32.xlu0 %v1783, 32
    %v1787 = vpop.permute.xlu0 %1786
    %v1789 = vmul.f32 %v1782, %v1787
    %1791 = vrot.lane.b32.xlu0 %v1789, 32
    %v1792 = vpop.permute.xlu0 %1791
    %v1794 = vadd.f32 %v1784, %v1792
    %v1795 = vtanh.pop %v1794
    %1797 = vrot.lane.b32.xlu0 %v1795, 32
    %v1798 = vpop.permute.xlu0 %1797
    %v1800 = vmul.f32 %v1782, %v1798
    %1802 = vrot.lane.b32.xlu0 %v1380, 64
    %v1803 = vpop.permute.xlu0 %1802
    %v1804 = vsel %vm256, %v1803, 0
    %1806 = vmatprep.subr.mxu0 0.0
    %1807 = vmatpush1.msra.mxu0 %v58
    %1808 = vmatprep.subr.mxu0 0.0
    %1809 = vmatpush1.msra.mxu0 %v59
    %1810 = vmatprep.subr.mxu0 0.0
    %1811 = vmatpush1.msra.mxu0 %v60
    %1812 = vmatprep.subr.mxu0 0.0
    %1813 = vmatpush1.msra.mxu0 %v61
    %1814 = vmatprep.subr.mxu0 0.0
    %1815 = vmatpush1.msra.mxu0 0.0
    %1816 = vmatprep.subr.mxu0 0.0
    %1817 = vmatpush1.msra.mxu0 0.0
    %1818 = vmatprep.subr.mxu0 0.0
    %1819 = vmatpush1.msra.mxu0 0.0
    %1820 = vmatprep.subr.mxu0 0.0
    %1821 = vmatpush1.msra.mxu0 0.0
    %1822 = vmatprep.subr.mxu0 0.0
    %1823 = vmatpush1.msra.mxu0 0.0
    %1824 = vmatprep.subr.mxu0 0.0
    %1825 = vmatpush1.msra.mxu0 0.0
    %1826 = vmatprep.subr.mxu0 0.0
    %1827 = vmatpush1.msra.mxu0 0.0
    %1828 = vmatprep.subr.mxu0 0.0
    %1829 = vmatpush1.msra.mxu0 0.0
    %1830 = vmatprep.subr.mxu0 0.0
    %1831 = vmatpush1.msra.mxu0 0.0
    %1832 = vmatprep.subr.mxu0 0.0
    %1833 = vmatpush1.msra.mxu0 0.0
    %1834 = vmatprep.subr.mxu0 0.0
    %1835 = vmatpush1.msra.mxu0 0.0
    %1836 = vmatprep.subr.mxu0 0.0
    %1837 = vmatpush1.msra.mxu0 0.0
    %1838 = vmatprep.subr.mxu0 0.0
    %1839 = vmatpush1.msra.mxu0 0.0
    %1840 = vmatprep.subr.mxu0 0.0
    %1841 = vmatpush1.msra.mxu0 0.0
    %1842 = vmatprep.subr.mxu0 0.0
    %1843 = vmatpush1.msra.mxu0 0.0
    %1844 = vmatprep.subr.mxu0 0.0
    %1845 = vmatpush1.msra.mxu0 0.0
    %1846 = vmatprep.subr.mxu0 0.0
    %1847 = vmatpush1.msra.mxu0 0.0
    %1848 = vmatprep.subr.mxu0 0.0
    %1849 = vmatpush1.msra.mxu0 0.0
    %1850 = vmatprep.subr.mxu0 0.0
    %1851 = vmatpush1.msra.mxu0 0.0
    %1852 = vmatprep.subr.mxu0 0.0
    %1853 = vmatpush1.msra.mxu0 0.0
    %1854 = vmatprep.subr.mxu0 0.0
    %1855 = vmatpush1.msra.mxu0 0.0
    %1856 = vmatprep.subr.mxu0 0.0
    %1857 = vmatpush1.msra.mxu0 0.0
    %1858 = vmatprep.subr.mxu0 0.0
    %1859 = vmatpush1.msra.mxu0 0.0
    %1860 = vmatprep.subr.mxu0 0.0
    %1861 = vmatpush1.msra.mxu0 0.0
    %1862 = vmatprep.subr.mxu0 0.0
    %1863 = vmatpush1.msra.mxu0 0.0
    %1864 = vmatprep.subr.mxu0 0.0
    %1865 = vmatpush1.msra.mxu0 0.0
    %1866 = vmatprep.subr.mxu0 0.0
    %1867 = vmatpush1.msra.mxu0 0.0
    %1868 = vmatprep.subr.mxu0 0.0
    %1869 = vmatpush1.msra.mxu0 0.0
    %1870 = vmatprep.mubr.f32.mxu0 0.0
    %1871 = vmatmul.mubr.f32.gmra.mrb[0].mxu0 %v1804
    %v1872 = vpop.f32.mrb[0].mxu0
    %v1873 = vadd.f32 %v243, %v1872
    %v1874 = vpop.f32.mrb[0].mxu0
    %1875 = vdwg.mxu0
    %v1876 = vxor.u32 %v1873, 2147483648
    %v1877 = vmul.f32 %v1876, 1.442695
    %v1878 = vpow.pop %v1877
    %v1879 = vadd.f32 %v1878, 1.0
    %v1880 = vrcp.pop %v1879
    %v1881 = vmul.f32 1.0, %v1880
    %v1882 = vtanh.pop %v1873
    %v1883 = vmul.f32 %v1881, %v1374
    %1885 = vrot.lane.b32.xlu0 %v1882, 32
    %v1886 = vpop.permute.xlu0 %1885
    %v1888 = vmul.f32 %v1881, %v1886
    %1890 = vrot.lane.b32.xlu0 %v1888, 32
    %v1891 = vpop.permute.xlu0 %1890
    %v1893 = vadd.f32 %v1883, %v1891
    %v1894 = vtanh.pop %v1893
    %1896 = vrot.lane.b32.xlu0 %v1894, 32
    %v1897 = vpop.permute.xlu0 %1896
    %v1899 = vmul.f32 %v1881, %v1897
    %1902 = vrot.lane.b32.xlu0 %v1483, 96
    %v1903 = vpop.permute.xlu0 %1902
    %v1905 = vsel %vm256, %v1803, %v1903
    %v1907 = vsel %vm461, %v1905, 0
    %1909 = vmatprep.subr.mxu0 0.0
    %1910 = vmatpush1.msra.mxu0 %v63
    %1911 = vmatprep.subr.mxu0 0.0
    %1912 = vmatpush1.msra.mxu0 %v64
    %1913 = vmatprep.subr.mxu0 0.0
    %1914 = vmatpush1.msra.mxu0 %v65
    %1915 = vmatprep.subr.mxu0 0.0
    %1916 = vmatpush1.msra.mxu0 %v66
    %1917 = vmatprep.subr.mxu0 0.0
    %1918 = vmatpush1.msra.mxu0 %v67
    %1919 = vmatprep.subr.mxu0 0.0
    %1920 = vmatpush1.msra.mxu0 %v68
    %1921 = vmatprep.subr.mxu0 0.0
    %1922 = vmatpush1.msra.mxu0 %v69
    %1923 = vmatprep.subr.mxu0 0.0
    %1924 = vmatpush1.msra.mxu0 %v70
    %1925 = vmatprep.subr.mxu0 0.0
    %1926 = vmatpush1.msra.mxu0 0.0
    %1927 = vmatprep.subr.mxu0 0.0
    %1928 = vmatpush1.msra.mxu0 0.0
    %1929 = vmatprep.subr.mxu0 0.0
    %1930 = vmatpush1.msra.mxu0 0.0
    %1931 = vmatprep.subr.mxu0 0.0
    %1932 = vmatpush1.msra.mxu0 0.0
    %1933 = vmatprep.subr.mxu0 0.0
    %1934 = vmatpush1.msra.mxu0 0.0
    %1935 = vmatprep.subr.mxu0 0.0
    %1936 = vmatpush1.msra.mxu0 0.0
    %1937 = vmatprep.subr.mxu0 0.0
    %1938 = vmatpush1.msra.mxu0 0.0
    %1939 = vmatprep.subr.mxu0 0.0
    %1940 = vmatpush1.msra.mxu0 0.0
    %1941 = vmatprep.subr.mxu0 0.0
    %1942 = vmatpush1.msra.mxu0 0.0
    %1943 = vmatprep.subr.mxu0 0.0
    %1944 = vmatpush1.msra.mxu0 0.0
    %1945 = vmatprep.subr.mxu0 0.0
    %1946 = vmatpush1.msra.mxu0 0.0
    %1947 = vmatprep.subr.mxu0 0.0
    %1948 = vmatpush1.msra.mxu0 0.0
    %1949 = vmatprep.subr.mxu0 0.0
    %1950 = vmatpush1.msra.mxu0 0.0
    %1951 = vmatprep.subr.mxu0 0.0
    %1952 = vmatpush1.msra.mxu0 0.0
    %1953 = vmatprep.subr.mxu0 0.0
    %1954 = vmatpush1.msra.mxu0 0.0
    %1955 = vmatprep.subr.mxu0 0.0
    %1956 = vmatpush1.msra.mxu0 0.0
    %1957 = vmatprep.subr.mxu0 0.0
    %1958 = vmatpush1.msra.mxu0 0.0
    %1959 = vmatprep.subr.mxu0 0.0
    %1960 = vmatpush1.msra.mxu0 0.0
    %1961 = vmatprep.subr.mxu0 0.0
    %1962 = vmatpush1.msra.mxu0 0.0
    %1963 = vmatprep.subr.mxu0 0.0
    %1964 = vmatpush1.msra.mxu0 0.0
    %1965 = vmatprep.subr.mxu0 0.0
    %1966 = vmatpush1.msra.mxu0 0.0
    %1967 = vmatprep.subr.mxu0 0.0
    %1968 = vmatpush1.msra.mxu0 0.0
    %1969 = vmatprep.subr.mxu0 0.0
    %1970 = vmatpush1.msra.mxu0 0.0
    %1971 = vmatprep.subr.mxu0 0.0
    %1972 = vmatpush1.msra.mxu0 0.0
    %1973 = vmatprep.mubr.f32.mxu0 0.0
    %1974 = vmatmul.mubr.f32.gmra.mrb[0].mxu0 %v1907
    %v1975 = vpop.f32.mrb[0].mxu0
    %v1976 = vadd.f32 %v459, %v1975
    %v1977 = vpop.f32.mrb[0].mxu0
    %1978 = vdwg.mxu0
    %v1979 = vxor.u32 %v1976, 2147483648
    %v1980 = vmul.f32 %v1979, 1.442695
    %v1981 = vpow.pop %v1980
    %v1982 = vadd.f32 %v1981, 1.0
    %v1983 = vrcp.pop %v1982
    %v1984 = vmul.f32 1.0, %v1983
    %v1985 = vtanh.pop %v1976
    %v1986 = vmul.f32 %v1984, %v1477
    %1988 = vrot.lane.b32.xlu0 %v1985, 32
    %v1989 = vpop.permute.xlu0 %1988
    %v1991 = vmul.f32 %v1984, %v1989
    %1993 = vrot.lane.b32.xlu0 %v1991, 32
    %v1994 = vpop.permute.xlu0 %1993
    %v1996 = vadd.f32 %v1986, %v1994
    %v1997 = vtanh.pop %v1996
    %1999 = vrot.lane.b32.xlu0 %v1997, 32
    %v2000 = vpop.permute.xlu0 %1999
    %v2002 = vmul.f32 %v1984, %v2000
    %2003 = vrot.lane.b32.xlu0 %v1483, 64
    %v2004 = vpop.permute.xlu0 %2003
    %2007 = vrot.lane.b32.xlu0 %v1588, 96
    %v2008 = vpop.permute.xlu0 %2007
    %v2010 = vsel %vm256, %v2004, %v2008
    %v2012 = vsel %vm461, %v2010, 0
    %2014 = vmatprep.subr.mxu0 0.0
    %2015 = vmatpush1.msra.mxu0 %v72
    %2016 = vmatprep.subr.mxu0 0.0
    %2017 = vmatpush1.msra.mxu0 %v73
    %2018 = vmatprep.subr.mxu0 0.0
    %2019 = vmatpush1.msra.mxu0 %v74
    %2020 = vmatprep.subr.mxu0 0.0
    %2021 = vmatpush1.msra.mxu0 %v75
    %2022 = vmatprep.subr.mxu0 0.0
    %2023 = vmatpush1.msra.mxu0 %v76
    %2024 = vmatprep.subr.mxu0 0.0
    %2025 = vmatpush1.msra.mxu0 %v77
    %2026 = vmatprep.subr.mxu0 0.0
    %2027 = vmatpush1.msra.mxu0 %v78
    %2028 = vmatprep.subr.mxu0 0.0
    %2029 = vmatpush1.msra.mxu0 %v79
    %2030 = vmatprep.subr.mxu0 0.0
    %2031 = vmatpush1.msra.mxu0 0.0
    %2032 = vmatprep.subr.mxu0 0.0
    %2033 = vmatpush1.msra.mxu0 0.0
    %2034 = vmatprep.subr.mxu0 0.0
    %2035 = vmatpush1.msra.mxu0 0.0
    %2036 = vmatprep.subr.mxu0 0.0
    %2037 = vmatpush1.msra.mxu0 0.0
    %2038 = vmatprep.subr.mxu0 0.0
    %2039 = vmatpush1.msra.mxu0 0.0
    %2040 = vmatprep.subr.mxu0 0.0
    %2041 = vmatpush1.msra.mxu0 0.0
    %2042 = vmatprep.subr.mxu0 0.0
    %2043 = vmatpush1.msra.mxu0 0.0
    %2044 = vmatprep.subr.mxu0 0.0
    %2045 = vmatpush1.msra.mxu0 0.0
    %2046 = vmatprep.subr.mxu0 0.0
    %2047 = vmatpush1.msra.mxu0 0.0
    %2048 = vmatprep.subr.mxu0 0.0
    %2049 = vmatpush1.msra.mxu0 0.0
    %2050 = vmatprep.subr.mxu0 0.0
    %2051 = vmatpush1.msra.mxu0 0.0
    %2052 = vmatprep.subr.mxu0 0.0
    %2053 = vmatpush1.msra.mxu0 0.0
    %2054 = vmatprep.subr.mxu0 0.0
    %2055 = vmatpush1.msra.mxu0 0.0
    %2056 = vmatprep.subr.mxu0 0.0
    %2057 = vmatpush1.msra.mxu0 0.0
    %2058 = vmatprep.subr.mxu0 0.0
    %2059 = vmatpush1.msra.mxu0 0.0
    %2060 = vmatprep.subr.mxu0 0.0
    %2061 = vmatpush1.msra.mxu0 0.0
    %2062 = vmatprep.subr.mxu0 0.0
    %2063 = vmatpush1.msra.mxu0 0.0
    %2064 = vmatprep.subr.mxu0 0.0
    %2065 = vmatpush1.msra.mxu0 0.0
    %2066 = vmatprep.subr.mxu0 0.0
    %2067 = vmatpush1.msra.mxu0 0.0
    %2068 = vmatprep.subr.mxu0 0.0
    %2069 = vmatpush1.msra.mxu0 0.0
    %2070 = vmatprep.subr.mxu0 0.0
    %2071 = vmatpush1.msra.mxu0 0.0
    %2072 = vmatprep.subr.mxu0 0.0
    %2073 = vmatpush1.msra.mxu0 0.0
    %2074 = vmatprep.subr.mxu0 0.0
    %2075 = vmatpush1.msra.mxu0 0.0
    %2076 = vmatprep.subr.mxu0 0.0
    %2077 = vmatpush1.msra.mxu0 0.0
    %2078 = vmatprep.mubr.f32.mxu0 0.0
    %2079 = vmatmul.mubr.f32.gmra.mrb[0].mxu0 %v2012
    %v2080 = vpop.f32.mrb[0].mxu0
    %v2081 = vadd.f32 %v769, %v2080
    %v2082 = vpop.f32.mrb[0].mxu0
    %2083 = vdwg.mxu0
    %v2084 = vxor.u32 %v2081, 2147483648
    %v2085 = vmul.f32 %v2084, 1.442695
    %v2086 = vpow.pop %v2085
    %v2087 = vadd.f32 %v2086, 1.0
    %v2088 = vrcp.pop %v2087
    %v2089 = vmul.f32 1.0, %v2088
    %v2090 = vtanh.pop %v2081
    %v2091 = vmul.f32 %v2089, %v1582
    %2093 = vrot.lane.b32.xlu0 %v2090, 32
    %v2094 = vpop.permute.xlu0 %2093
    %v2096 = vmul.f32 %v2089, %v2094
    %2098 = vrot.lane.b32.xlu0 %v2096, 32
    %v2099 = vpop.permute.xlu0 %2098
    %v2101 = vadd.f32 %v2091, %v2099
    %v2102 = vtanh.pop %v2101
    %2104 = vrot.lane.b32.xlu0 %v2102, 32
    %v2105 = vpop.permute.xlu0 %2104
    %v2107 = vmul.f32 %v2089, %v2105
    %2108 = vrot.lane.b32.xlu0 %v1588, 64
    %v2109 = vpop.permute.xlu0 %2108
    %2112 = vrot.lane.b32.xlu0 %v1693, 96
    %v2113 = vpop.permute.xlu0 %2112
    %v2115 = vsel %vm256, %v2109, %v2113
    %v2117 = vsel %vm461, %v2115, 0
    %2119 = vmatprep.subr.mxu0 0.0
    %2120 = vmatpush1.msra.mxu0 %v81
    %2121 = vmatprep.subr.mxu0 0.0
    %2122 = vmatpush1.msra.mxu0 %v82
    %2123 = vmatprep.subr.mxu0 0.0
    %2124 = vmatpush1.msra.mxu0 %v83
    %2125 = vmatprep.subr.mxu0 0.0
    %2126 = vmatpush1.msra.mxu0 %v84
    %2127 = vmatprep.subr.mxu0 0.0
    %2128 = vmatpush1.msra.mxu0 %v85
    %2129 = vmatprep.subr.mxu0 0.0
    %2130 = vmatpush1.msra.mxu0 %v86
    %2131 = vmatprep.subr.mxu0 0.0
    %2132 = vmatpush1.msra.mxu0 %v87
    %2133 = vmatprep.subr.mxu0 0.0
    %2134 = vmatpush1.msra.mxu0 %v88
    %2135 = vmatprep.subr.mxu0 0.0
    %2136 = vmatpush1.msra.mxu0 0.0
    %2137 = vmatprep.subr.mxu0 0.0
    %2138 = vmatpush1.msra.mxu0 0.0
    %2139 = vmatprep.subr.mxu0 0.0
    %2140 = vmatpush1.msra.mxu0 0.0
    %2141 = vmatprep.subr.mxu0 0.0
    %2142 = vmatpush1.msra.mxu0 0.0
    %2143 = vmatprep.subr.mxu0 0.0
    %2144 = vmatpush1.msra.mxu0 0.0
    %2145 = vmatprep.subr.mxu0 0.0
    %2146 = vmatpush1.msra.mxu0 0.0
    %2147 = vmatprep.subr.mxu0 0.0
    %2148 = vmatpush1.msra.mxu0 0.0
    %2149 = vmatprep.subr.mxu0 0.0
    %2150 = vmatpush1.msra.mxu0 0.0
    %2151 = vmatprep.subr.mxu0 0.0
    %2152 = vmatpush1.msra.mxu0 0.0
    %2153 = vmatprep.subr.mxu0 0.0
    %2154 = vmatpush1.msra.mxu0 0.0
    %2155 = vmatprep.subr.mxu0 0.0
    %2156 = vmatpush1.msra.mxu0 0.0
    %2157 = vmatprep.subr.mxu0 0.0
    %2158 = vmatpush1.msra.mxu0 0.0
    %2159 = vmatprep.subr.mxu0 0.0
    %2160 = vmatpush1.msra.mxu0 0.0
    %2161 = vmatprep.subr.mxu0 0.0
    %2162 = vmatpush1.msra.mxu0 0.0
    %2163 = vmatprep.subr.mxu0 0.0
    %2164 = vmatpush1.msra.mxu0 0.0
    %2165 = vmatprep.subr.mxu0 0.0
    %2166 = vmatpush1.msra.mxu0 0.0
    %2167 = vmatprep.subr.mxu0 0.0
    %2168 = vmatpush1.msra.mxu0 0.0
    %2169 = vmatprep.subr.mxu0 0.0
    %2170 = vmatpush1.msra.mxu0 0.0
    %2171 = vmatprep.subr.mxu0 0.0
    %2172 = vmatpush1.msra.mxu0 0.0
    %2173 = vmatprep.subr.mxu0 0.0
    %2174 = vmatpush1.msra.mxu0 0.0
    %2175 = vmatprep.subr.mxu0 0.0
    %2176 = vmatpush1.msra.mxu0 0.0
    %2177 = vmatprep.subr.mxu0 0.0
    %2178 = vmatpush1.msra.mxu0 0.0
    %2179 = vmatprep.subr.mxu0 0.0
    %2180 = vmatpush1.msra.mxu0 0.0
    %2181 = vmatprep.subr.mxu0 0.0
    %2182 = vmatpush1.msra.mxu0 0.0
    %2183 = vmatprep.mubr.f32.mxu0 0.0
    %2184 = vmatmul.mubr.f32.gmra.mrb[0].mxu0 %v2117
    %v2185 = vpop.f32.mrb[0].mxu0
    %v2186 = vadd.f32 %v1183, %v2185
    %v2187 = vpop.f32.mrb[0].mxu0
    %2188 = vdwg.mxu0
    %v2189 = vxor.u32 %v2186, 2147483648
    %v2190 = vmul.f32 %v2189, 1.442695
    %v2191 = vpow.pop %v2190
    %v2192 = vadd.f32 %v2191, 1.0
    %v2193 = vrcp.pop %v2192
    %v2194 = vmul.f32 1.0, %v2193
    %v2195 = vtanh.pop %v2186
    %v2196 = vmul.f32 %v2194, %v1687
    %2198 = vrot.lane.b32.xlu0 %v2195, 32
    %v2199 = vpop.permute.xlu0 %2198
    %v2201 = vmul.f32 %v2194, %v2199
    %2203 = vrot.lane.b32.xlu0 %v2201, 32
    %v2204 = vpop.permute.xlu0 %2203
    %v2206 = vadd.f32 %v2196, %v2204
    %v2207 = vtanh.pop %v2206
    %2209 = vrot.lane.b32.xlu0 %v2207, 32
    %v2210 = vpop.permute.xlu0 %2209
    %v2212 = vmul.f32 %v2194, %v2210
    %2213 = vrot.lane.b32.xlu0 %v1693, 64
    %v2214 = vpop.permute.xlu0 %2213
    %2217 = vrot.lane.b32.xlu0 %v1800, 96
    %v2218 = vpop.permute.xlu0 %2217
    %v2220 = vsel %vm256, %v2214, %v2218
    %v2222 = vsel %vm461, %v2220, 0
    %2224 = vmatprep.subr.mxu0 0.0
    %2225 = vmatpush1.msra.mxu0 %v90
    %2226 = vmatprep.subr.mxu0 0.0
    %2227 = vmatpush1.msra.mxu0 %v91
    %2228 = vmatprep.subr.mxu0 0.0
    %2229 = vmatpush1.msra.mxu0 %v92
    %2230 = vmatprep.subr.mxu0 0.0
    %2231 = vmatpush1.msra.mxu0 %v93
    %2232 = vmatprep.subr.mxu0 0.0
    %2233 = vmatpush1.msra.mxu0 %v94
    %2234 = vmatprep.subr.mxu0 0.0
    %2235 = vmatpush1.msra.mxu0 %v95
    %2236 = vmatprep.subr.mxu0 0.0
    %2237 = vmatpush1.msra.mxu0 %v96
    %2238 = vmatprep.subr.mxu0 0.0
    %2239 = vmatpush1.msra.mxu0 %v97
    %2240 = vmatprep.subr.mxu0 0.0
    %2241 = vmatpush1.msra.mxu0 0.0
    %2242 = vmatprep.subr.mxu0 0.0
    %2243 = vmatpush1.msra.mxu0 0.0
    %2244 = vmatprep.subr.mxu0 0.0
    %2245 = vmatpush1.msra.mxu0 0.0
    %2246 = vmatprep.subr.mxu0 0.0
    %2247 = vmatpush1.msra.mxu0 0.0
    %2248 = vmatprep.subr.mxu0 0.0
    %2249 = vmatpush1.msra.mxu0 0.0
    %2250 = vmatprep.subr.mxu0 0.0
    %2251 = vmatpush1.msra.mxu0 0.0
    %2252 = vmatprep.subr.mxu0 0.0
    %2253 = vmatpush1.msra.mxu0 0.0
    %2254 = vmatprep.subr.mxu0 0.0
    %2255 = vmatpush1.msra.mxu0 0.0
    %2256 = vmatprep.subr.mxu0 0.0
    %2257 = vmatpush1.msra.mxu0 0.0
    %2258 = vmatprep.subr.mxu0 0.0
    %2259 = vmatpush1.msra.mxu0 0.0
    %2260 = vmatprep.subr.mxu0 0.0
    %2261 = vmatpush1.msra.mxu0 0.0
    %2262 = vmatprep.subr.mxu0 0.0
    %2263 = vmatpush1.msra.mxu0 0.0
    %2264 = vmatprep.subr.mxu0 0.0
    %2265 = vmatpush1.msra.mxu0 0.0
    %2266 = vmatprep.subr.mxu0 0.0
    %2267 = vmatpush1.msra.mxu0 0.0
    %2268 = vmatprep.subr.mxu0 0.0
    %2269 = vmatpush1.msra.mxu0 0.0
    %2270 = vmatprep.subr.mxu0 0.0
    %2271 = vmatpush1.msra.mxu0 0.0
    %2272 = vmatprep.subr.mxu0 0.0
    %2273 = vmatpush1.msra.mxu0 0.0
    %2274 = vmatprep.subr.mxu0 0.0
    %2275 = vmatpush1.msra.mxu0 0.0
    %2276 = vmatprep.subr.mxu0 0.0
    %2277 = vmatpush1.msra.mxu0 0.0
    %2278 = vmatprep.subr.mxu0 0.0
    %2279 = vmatpush1.msra.mxu0 0.0
    %2280 = vmatprep.subr.mxu0 0.0
    %2281 = vmatpush1.msra.mxu0 0.0
    %2282 = vmatprep.subr.mxu0 0.0
    %2283 = vmatpush1.msra.mxu0 0.0
    %2284 = vmatprep.subr.mxu0 0.0
    %2285 = vmatpush1.msra.mxu0 0.0
    %2286 = vmatprep.subr.mxu0 0.0
    %2287 = vmatpush1.msra.mxu0 0.0
    %2288 = vmatprep.mubr.f32.mxu0 0.0
    %2289 = vmatmul.mubr.f32.gmra.mrb[0].mxu0 %v2222
    %v2290 = vpop.f32.mrb[0].mxu0
    %v2291 = vadd.f32 %v1702, %v2290
    %v2292 = vpop.f32.mrb[0].mxu0
    %2293 = vdwg.mxu0
    %v2294 = vxor.u32 %v2291, 2147483648
    %v2295 = vmul.f32 %v2294, 1.442695
    %v2296 = vpow.pop %v2295
    %v2297 = vadd.f32 %v2296, 1.0
    %v2298 = vrcp.pop %v2297
    %v2299 = vmul.f32 1.0, %v2298
    %v2300 = vtanh.pop %v2291
    %v2301 = vmul.f32 %v2299, %v1794
    %2303 = vrot.lane.b32.xlu0 %v2300, 32
    %v2304 = vpop.permute.xlu0 %2303
    %v2306 = vmul.f32 %v2299, %v2304
    %2308 = vrot.lane.b32.xlu0 %v2306, 32
    %v2309 = vpop.permute.xlu0 %2308
    %v2311 = vadd.f32 %v2301, %v2309
    %v2312 = vtanh.pop %v2311
    %2314 = vrot.lane.b32.xlu0 %v2312, 32
    %v2315 = vpop.permute.xlu0 %2314
    %v2317 = vmul.f32 %v2299, %v2315
    %2319 = vrot.lane.b32.xlu0 %v1899, 64
    %v2320 = vpop.permute.xlu0 %2319
    %v2321 = vsel %vm256, %v2320, 0
    %2323 = vmatprep.subr.mxu0 0.0
    %2324 = vmatpush1.msra.mxu0 %v58
    %2325 = vmatprep.subr.mxu0 0.0
    %2326 = vmatpush1.msra.mxu0 %v59
    %2327 = vmatprep.subr.mxu0 0.0
    %2328 = vmatpush1.msra.mxu0 %v60
    %2329 = vmatprep.subr.mxu0 0.0
    %2330 = vmatpush1.msra.mxu0 %v61
    %2331 = vmatprep.subr.mxu0 0.0
    %2332 = vmatpush1.msra.mxu0 0.0
    %2333 = vmatprep.subr.mxu0 0.0
    %2334 = vmatpush1.msra.mxu0 0.0
    %2335 = vmatprep.subr.mxu0 0.0
    %2336 = vmatpush1.msra.mxu0 0.0
    %2337 = vmatprep.subr.mxu0 0.0
    %2338 = vmatpush1.msra.mxu0 0.0
    %2339 = vmatprep.subr.mxu0 0.0
    %2340 = vmatpush1.msra.mxu0 0.0
    %2341 = vmatprep.subr.mxu0 0.0
    %2342 = vmatpush1.msra.mxu0 0.0
    %2343 = vmatprep.subr.mxu0 0.0
    %2344 = vmatpush1.msra.mxu0 0.0
    %2345 = vmatprep.subr.mxu0 0.0
    %2346 = vmatpush1.msra.mxu0 0.0
    %2347 = vmatprep.subr.mxu0 0.0
    %2348 = vmatpush1.msra.mxu0 0.0
    %2349 = vmatprep.subr.mxu0 0.0
    %2350 = vmatpush1.msra.mxu0 0.0
    %2351 = vmatprep.subr.mxu0 0.0
    %2352 = vmatpush1.msra.mxu0 0.0
    %2353 = vmatprep.subr.mxu0 0.0
    %2354 = vmatpush1.msra.mxu0 0.0
    %2355 = vmatprep.subr.mxu0 0.0
    %2356 = vmatpush1.msra.mxu0 0.0
    %2357 = vmatprep.subr.mxu0 0.0
    %2358 = vmatpush1.msra.mxu0 0.0
    %2359 = vmatprep.subr.mxu0 0.0
    %2360 = vmatpush1.msra.mxu0 0.0
    %2361 = vmatprep.subr.mxu0 0.0
    %2362 = vmatpush1.msra.mxu0 0.0
    %2363 = vmatprep.subr.mxu0 0.0
    %2364 = vmatpush1.msra.mxu0 0.0
    %2365 = vmatprep.subr.mxu0 0.0
    %2366 = vmatpush1.msra.mxu0 0.0
    %2367 = vmatprep.subr.mxu0 0.0
    %2368 = vmatpush1.msra.mxu0 0.0
    %2369 = vmatprep.subr.mxu0 0.0
    %2370 = vmatpush1.msra.mxu0 0.0
    %2371 = vmatprep.subr.mxu0 0.0
    %2372 = vmatpush1.msra.mxu0 0.0
    %2373 = vmatprep.subr.mxu0 0.0
    %2374 = vmatpush1.msra.mxu0 0.0
    %2375 = vmatprep.subr.mxu0 0.0
    %2376 = vmatpush1.msra.mxu0 0.0
    %2377 = vmatprep.subr.mxu0 0.0
    %2378 = vmatpush1.msra.mxu0 0.0
    %2379 = vmatprep.subr.mxu0 0.0
    %2380 = vmatpush1.msra.mxu0 0.0
    %2381 = vmatprep.subr.mxu0 0.0
    %2382 = vmatpush1.msra.mxu0 0.0
    %2383 = vmatprep.subr.mxu0 0.0
    %2384 = vmatpush1.msra.mxu0 0.0
    %2385 = vmatprep.subr.mxu0 0.0
    %2386 = vmatpush1.msra.mxu0 0.0
    %2387 = vmatprep.mubr.f32.mxu0 0.0
    %2388 = vmatmul.mubr.f32.gmra.mrb[0].mxu0 %v2321
    %v2389 = vpop.f32.mrb[0].mxu0
    %v2390 = vadd.f32 %v248, %v2389
    %v2391 = vpop.f32.mrb[0].mxu0
    %2392 = vdwg.mxu0
    %v2393 = vxor.u32 %v2390, 2147483648
    %v2394 = vmul.f32 %v2393, 1.442695
    %v2395 = vpow.pop %v2394
    %v2396 = vadd.f32 %v2395, 1.0
    %v2397 = vrcp.pop %v2396
    %v2398 = vmul.f32 1.0, %v2397
    %v2399 = vtanh.pop %v2390
    %v2400 = vmul.f32 %v2398, %v1893
    %2402 = vrot.lane.b32.xlu0 %v2399, 32
    %v2403 = vpop.permute.xlu0 %2402
    %v2405 = vmul.f32 %v2398, %v2403
    %2407 = vrot.lane.b32.xlu0 %v2405, 32
    %v2408 = vpop.permute.xlu0 %2407
    %v2410 = vadd.f32 %v2400, %v2408
    %v2411 = vtanh.pop %v2410
    %2413 = vrot.lane.b32.xlu0 %v2411, 32
    %v2414 = vpop.permute.xlu0 %2413
    %v2416 = vmul.f32 %v2398, %v2414
    %2419 = vrot.lane.b32.xlu0 %v2002, 96
    %v2420 = vpop.permute.xlu0 %2419
    %v2422 = vsel %vm256, %v2320, %v2420
    %v2424 = vsel %vm461, %v2422, 0
    %2426 = vmatprep.subr.mxu0 0.0
    %2427 = vmatpush1.msra.mxu0 %v63
    %2428 = vmatprep.subr.mxu0 0.0
    %2429 = vmatpush1.msra.mxu0 %v64
    %2430 = vmatprep.subr.mxu0 0.0
    %2431 = vmatpush1.msra.mxu0 %v65
    %2432 = vmatprep.subr.mxu0 0.0
    %2433 = vmatpush1.msra.mxu0 %v66
    %2434 = vmatprep.subr.mxu0 0.0
    %2435 = vmatpush1.msra.mxu0 %v67
    %2436 = vmatprep.subr.mxu0 0.0
    %2437 = vmatpush1.msra.mxu0 %v68
    %2438 = vmatprep.subr.mxu0 0.0
    %2439 = vmatpush1.msra.mxu0 %v69
    %2440 = vmatprep.subr.mxu0 0.0
    %2441 = vmatpush1.msra.mxu0 %v70
    %2442 = vmatprep.subr.mxu0 0.0
    %2443 = vmatpush1.msra.mxu0 0.0
    %2444 = vmatprep.subr.mxu0 0.0
    %2445 = vmatpush1.msra.mxu0 0.0
    %2446 = vmatprep.subr.mxu0 0.0
    %2447 = vmatpush1.msra.mxu0 0.0
    %2448 = vmatprep.subr.mxu0 0.0
    %2449 = vmatpush1.msra.mxu0 0.0
    %2450 = vmatprep.subr.mxu0 0.0
    %2451 = vmatpush1.msra.mxu0 0.0
    %2452 = vmatprep.subr.mxu0 0.0
    %2453 = vmatpush1.msra.mxu0 0.0
    %2454 = vmatprep.subr.mxu0 0.0
    %2455 = vmatpush1.msra.mxu0 0.0
    %2456 = vmatprep.subr.mxu0 0.0
    %2457 = vmatpush1.msra.mxu0 0.0
    %2458 = vmatprep.subr.mxu0 0.0
    %2459 = vmatpush1.msra.mxu0 0.0
    %2460 = vmatprep.subr.mxu0 0.0
    %2461 = vmatpush1.msra.mxu0 0.0
    %2462 = vmatprep.subr.mxu0 0.0
    %2463 = vmatpush1.msra.mxu0 0.0
    %2464 = vmatprep.subr.mxu0 0.0
    %2465 = vmatpush1.msra.mxu0 0.0
    %2466 = vmatprep.subr.mxu0 0.0
    %2467 = vmatpush1.msra.mxu0 0.0
    %2468 = vmatprep.subr.mxu0 0.0
    %2469 = vmatpush1.msra.mxu0 0.0
    %2470 = vmatprep.subr.mxu0 0.0
    %2471 = vmatpush1.msra.mxu0 0.0
    %2472 = vmatprep.subr.mxu0 0.0
    %2473 = vmatpush1.msra.mxu0 0.0
    %2474 = vmatprep.subr.mxu0 0.0
    %2475 = vmatpush1.msra.mxu0 0.0
    %2476 = vmatprep.subr.mxu0 0.0
    %2477 = vmatpush1.msra.mxu0 0.0
    %2478 = vmatprep.subr.mxu0 0.0
    %2479 = vmatpush1.msra.mxu0 0.0
    %2480 = vmatprep.subr.mxu0 0.0
    %2481 = vmatpush1.msra.mxu0 0.0
    %2482 = vmatprep.subr.mxu0 0.0
    %2483 = vmatpush1.msra.mxu0 0.0
    %2484 = vmatprep.subr.mxu0 0.0
    %2485 = vmatpush1.msra.mxu0 0.0
    %2486 = vmatprep.subr.mxu0 0.0
    %2487 = vmatpush1.msra.mxu0 0.0
    %2488 = vmatprep.subr.mxu0 0.0
    %2489 = vmatpush1.msra.mxu0 0.0
    %2490 = vmatprep.mubr.f32.mxu0 0.0
    %2491 = vmatmul.mubr.f32.gmra.mrb[0].mxu0 %v2424
    %v2492 = vpop.f32.mrb[0].mxu0
    %v2493 = vadd.f32 %v459, %v2492
    %v2494 = vpop.f32.mrb[0].mxu0
    %2495 = vdwg.mxu0
    %v2496 = vxor.u32 %v2493, 2147483648
    %v2497 = vmul.f32 %v2496, 1.442695
    %v2498 = vpow.pop %v2497
    %v2499 = vadd.f32 %v2498, 1.0
    %v2500 = vrcp.pop %v2499
    %v2501 = vmul.f32 1.0, %v2500
    %v2502 = vtanh.pop %v2493
    %v2503 = vmul.f32 %v2501, %v1996
    %2505 = vrot.lane.b32.xlu0 %v2502, 32
    %v2506 = vpop.permute.xlu0 %2505
    %v2508 = vmul.f32 %v2501, %v2506
    %2510 = vrot.lane.b32.xlu0 %v2508, 32
    %v2511 = vpop.permute.xlu0 %2510
    %v2513 = vadd.f32 %v2503, %v2511
    %v2514 = vtanh.pop %v2513
    %2516 = vrot.lane.b32.xlu0 %v2514, 32
    %v2517 = vpop.permute.xlu0 %2516
    %v2519 = vmul.f32 %v2501, %v2517
    %2520 = vrot.lane.b32.xlu0 %v2002, 64
    %v2521 = vpop.permute.xlu0 %2520
    %2524 = vrot.lane.b32.xlu0 %v2107, 96
    %v2525 = vpop.permute.xlu0 %2524
    %v2527 = vsel %vm256, %v2521, %v2525
    %v2529 = vsel %vm461, %v2527, 0
    %2531 = vmatprep.subr.mxu0 0.0
    %2532 = vmatpush1.msra.mxu0 %v72
    %2533 = vmatprep.subr.mxu0 0.0
    %2534 = vmatpush1.msra.mxu0 %v73
    %2535 = vmatprep.subr.mxu0 0.0
    %2536 = vmatpush1.msra.mxu0 %v74
    %2537 = vmatprep.subr.mxu0 0.0
    %2538 = vmatpush1.msra.mxu0 %v75
    %2539 = vmatprep.subr.mxu0 0.0
    %2540 = vmatpush1.msra.mxu0 %v76
    %2541 = vmatprep.subr.mxu0 0.0
    %2542 = vmatpush1.msra.mxu0 %v77
    %2543 = vmatprep.subr.mxu0 0.0
    %2544 = vmatpush1.msra.mxu0 %v78
    %2545 = vmatprep.subr.mxu0 0.0
    %2546 = vmatpush1.msra.mxu0 %v79
    %2547 = vmatprep.subr.mxu0 0.0
    %2548 = vmatpush1.msra.mxu0 0.0
    %2549 = vmatprep.subr.mxu0 0.0
    %2550 = vmatpush1.msra.mxu0 0.0
    %2551 = vmatprep.subr.mxu0 0.0
    %2552 = vmatpush1.msra.mxu0 0.0
    %2553 = vmatprep.subr.mxu0 0.0
    %2554 = vmatpush1.msra.mxu0 0.0
    %2555 = vmatprep.subr.mxu0 0.0
    %2556 = vmatpush1.msra.mxu0 0.0
    %2557 = vmatprep.subr.mxu0 0.0
    %2558 = vmatpush1.msra.mxu0 0.0
    %2559 = vmatprep.subr.mxu0 0.0
    %2560 = vmatpush1.msra.mxu0 0.0
    %2561 = vmatprep.subr.mxu0 0.0
    %2562 = vmatpush1.msra.mxu0 0.0
    %2563 = vmatprep.subr.mxu0 0.0
    %2564 = vmatpush1.msra.mxu0 0.0
    %2565 = vmatprep.subr.mxu0 0.0
    %2566 = vmatpush1.msra.mxu0 0.0
    %2567 = vmatprep.subr.mxu0 0.0
    %2568 = vmatpush1.msra.mxu0 0.0
    %2569 = vmatprep.subr.mxu0 0.0
    %2570 = vmatpush1.msra.mxu0 0.0
    %2571 = vmatprep.subr.mxu0 0.0
    %2572 = vmatpush1.msra.mxu0 0.0
    %2573 = vmatprep.subr.mxu0 0.0
    %2574 = vmatpush1.msra.mxu0 0.0
    %2575 = vmatprep.subr.mxu0 0.0
    %2576 = vmatpush1.msra.mxu0 0.0
    %2577 = vmatprep.subr.mxu0 0.0
    %2578 = vmatpush1.msra.mxu0 0.0
    %2579 = vmatprep.subr.mxu0 0.0
    %2580 = vmatpush1.msra.mxu0 0.0
    %2581 = vmatprep.subr.mxu0 0.0
    %2582 = vmatpush1.msra.mxu0 0.0
    %2583 = vmatprep.subr.mxu0 0.0
    %2584 = vmatpush1.msra.mxu0 0.0
    %2585 = vmatprep.subr.mxu0 0.0
    %2586 = vmatpush1.msra.mxu0 0.0
    %2587 = vmatprep.subr.mxu0 0.0
    %2588 = vmatpush1.msra.mxu0 0.0
    %2589 = vmatprep.subr.mxu0 0.0
    %2590 = vmatpush1.msra.mxu0 0.0
    %2591 = vmatprep.subr.mxu0 0.0
    %2592 = vmatpush1.msra.mxu0 0.0
    %2593 = vmatprep.subr.mxu0 0.0
    %2594 = vmatpush1.msra.mxu0 0.0
    %2595 = vmatprep.mubr.f32.mxu0 0.0
    %2596 = vmatmul.mubr.f32.gmra.mrb[0].mxu0 %v2529
    %v2597 = vpop.f32.mrb[0].mxu0
    %v2598 = vadd.f32 %v769, %v2597
    %v2599 = vpop.f32.mrb[0].mxu0
    %2600 = vdwg.mxu0
    %v2601 = vxor.u32 %v2598, 2147483648
    %v2602 = vmul.f32 %v2601, 1.442695
    %v2603 = vpow.pop %v2602
    %v2604 = vadd.f32 %v2603, 1.0
    %v2605 = vrcp.pop %v2604
    %v2606 = vmul.f32 1.0, %v2605
    %v2607 = vtanh.pop %v2598
    %v2608 = vmul.f32 %v2606, %v2101
    %2610 = vrot.lane.b32.xlu0 %v2607, 32
    %v2611 = vpop.permute.xlu0 %2610
    %v2613 = vmul.f32 %v2606, %v2611
    %2615 = vrot.lane.b32.xlu0 %v2613, 32
    %v2616 = vpop.permute.xlu0 %2615
    %v2618 = vadd.f32 %v2608, %v2616
    %v2619 = vtanh.pop %v2618
    %2621 = vrot.lane.b32.xlu0 %v2619, 32
    %v2622 = vpop.permute.xlu0 %2621
    %v2624 = vmul.f32 %v2606, %v2622
    %2625 = vrot.lane.b32.xlu0 %v2107, 64
    %v2626 = vpop.permute.xlu0 %2625
    %2629 = vrot.lane.b32.xlu0 %v2212, 96
    %v2630 = vpop.permute.xlu0 %2629
    %v2632 = vsel %vm256, %v2626, %v2630
    %v2634 = vsel %vm461, %v2632, 0
    %2636 = vmatprep.subr.mxu0 0.0
    %2637 = vmatpush1.msra.mxu0 %v81
    %2638 = vmatprep.subr.mxu0 0.0
    %2639 = vmatpush1.msra.mxu0 %v82
    %2640 = vmatprep.subr.mxu0 0.0
    %2641 = vmatpush1.msra.mxu0 %v83
    %2642 = vmatprep.subr.mxu0 0.0
    %2643 = vmatpush1.msra.mxu0 %v84
    %2644 = vmatprep.subr.mxu0 0.0
    %2645 = vmatpush1.msra.mxu0 %v85
    %2646 = vmatprep.subr.mxu0 0.0
    %2647 = vmatpush1.msra.mxu0 %v86
    %2648 = vmatprep.subr.mxu0 0.0
    %2649 = vmatpush1.msra.mxu0 %v87
    %2650 = vmatprep.subr.mxu0 0.0
    %2651 = vmatpush1.msra.mxu0 %v88
    %2652 = vmatprep.subr.mxu0 0.0
    %2653 = vmatpush1.msra.mxu0 0.0
    %2654 = vmatprep.subr.mxu0 0.0
    %2655 = vmatpush1.msra.mxu0 0.0
    %2656 = vmatprep.subr.mxu0 0.0
    %2657 = vmatpush1.msra.mxu0 0.0
    %2658 = vmatprep.subr.mxu0 0.0
    %2659 = vmatpush1.msra.mxu0 0.0
    %2660 = vmatprep.subr.mxu0 0.0
    %2661 = vmatpush1.msra.mxu0 0.0
    %2662 = vmatprep.subr.mxu0 0.0
    %2663 = vmatpush1.msra.mxu0 0.0
    %2664 = vmatprep.subr.mxu0 0.0
    %2665 = vmatpush1.msra.mxu0 0.0
    %2666 = vmatprep.subr.mxu0 0.0
    %2667 = vmatpush1.msra.mxu0 0.0
    %2668 = vmatprep.subr.mxu0 0.0
    %2669 = vmatpush1.msra.mxu0 0.0
    %2670 = vmatprep.subr.mxu0 0.0
    %2671 = vmatpush1.msra.mxu0 0.0
    %2672 = vmatprep.subr.mxu0 0.0
    %2673 = vmatpush1.msra.mxu0 0.0
    %2674 = vmatprep.subr.mxu0 0.0
    %2675 = vmatpush1.msra.mxu0 0.0
    %2676 = vmatprep.subr.mxu0 0.0
    %2677 = vmatpush1.msra.mxu0 0.0
    %2678 = vmatprep.subr.mxu0 0.0
    %2679 = vmatpush1.msra.mxu0 0.0
    %2680 = vmatprep.subr.mxu0 0.0
    %2681 = vmatpush1.msra.mxu0 0.0
    %2682 = vmatprep.subr.mxu0 0.0
    %2683 = vmatpush1.msra.mxu0 0.0
    %2684 = vmatprep.subr.mxu0 0.0
    %2685 = vmatpush1.msra.mxu0 0.0
    %2686 = vmatprep.subr.mxu0 0.0
    %2687 = vmatpush1.msra.mxu0 0.0
    %2688 = vmatprep.subr.mxu0 0.0
    %2689 = vmatpush1.msra.mxu0 0.0
    %2690 = vmatprep.subr.mxu0 0.0
    %2691 = vmatpush1.msra.mxu0 0.0
    %2692 = vmatprep.subr.mxu0 0.0
    %2693 = vmatpush1.msra.mxu0 0.0
    %2694 = vmatprep.subr.mxu0 0.0
    %2695 = vmatpush1.msra.mxu0 0.0
    %2696 = vmatprep.subr.mxu0 0.0
    %2697 = vmatpush1.msra.mxu0 0.0
    %2698 = vmatprep.subr.mxu0 0.0
    %2699 = vmatpush1.msra.mxu0 0.0
    %2700 = vmatprep.mubr.f32.mxu0 0.0
    %2701 = vmatmul.mubr.f32.gmra.mrb[0].mxu0 %v2634
    %v2702 = vpop.f32.mrb[0].mxu0
    %v2703 = vadd.f32 %v1183, %v2702
    %v2704 = vpop.f32.mrb[0].mxu0
    %2705 = vdwg.mxu0
    %v2706 = vxor.u32 %v2703, 2147483648
    %v2707 = vmul.f32 %v2706, 1.442695
    %v2708 = vpow.pop %v2707
    %v2709 = vadd.f32 %v2708, 1.0
    %v2710 = vrcp.pop %v2709
    %v2711 = vmul.f32 1.0, %v2710
    %v2712 = vtanh.pop %v2703
    %v2713 = vmul.f32 %v2711, %v2206
    %2715 = vrot.lane.b32.xlu0 %v2712, 32
    %v2716 = vpop.permute.xlu0 %2715
    %v2718 = vmul.f32 %v2711, %v2716
    %2720 = vrot.lane.b32.xlu0 %v2718, 32
    %v2721 = vpop.permute.xlu0 %2720
    %v2723 = vadd.f32 %v2713, %v2721
    %v2724 = vtanh.pop %v2723
    %2726 = vrot.lane.b32.xlu0 %v2724, 32
    %v2727 = vpop.permute.xlu0 %2726
    %v2729 = vmul.f32 %v2711, %v2727
    %2730 = vrot.lane.b32.xlu0 %v2212, 64
    %v2731 = vpop.permute.xlu0 %2730
    %2734 = vrot.lane.b32.xlu0 %v2317, 96
    %v2735 = vpop.permute.xlu0 %2734
    %v2737 = vsel %vm256, %v2731, %v2735
    %v2739 = vsel %vm461, %v2737, 0
    %2741 = vmatprep.subr.mxu0 0.0
    %2742 = vmatpush1.msra.mxu0 %v90
    %2743 = vmatprep.subr.mxu0 0.0
    %2744 = vmatpush1.msra.mxu0 %v91
    %2745 = vmatprep.subr.mxu0 0.0
    %2746 = vmatpush1.msra.mxu0 %v92
    %2747 = vmatprep.subr.mxu0 0.0
    %2748 = vmatpush1.msra.mxu0 %v93
    %2749 = vmatprep.subr.mxu0 0.0
    %2750 = vmatpush1.msra.mxu0 %v94
    %2751 = vmatprep.subr.mxu0 0.0
    %2752 = vmatpush1.msra.mxu0 %v95
    %2753 = vmatprep.subr.mxu0 0.0
    %2754 = vmatpush1.msra.mxu0 %v96
    %2755 = vmatprep.subr.mxu0 0.0
    %2756 = vmatpush1.msra.mxu0 %v97
    %2757 = vmatprep.subr.mxu0 0.0
    %2758 = vmatpush1.msra.mxu0 0.0
    %2759 = vmatprep.subr.mxu0 0.0
    %2760 = vmatpush1.msra.mxu0 0.0
    %2761 = vmatprep.subr.mxu0 0.0
    %2762 = vmatpush1.msra.mxu0 0.0
    %2763 = vmatprep.subr.mxu0 0.0
    %2764 = vmatpush1.msra.mxu0 0.0
    %2765 = vmatprep.subr.mxu0 0.0
    %2766 = vmatpush1.msra.mxu0 0.0
    %2767 = vmatprep.subr.mxu0 0.0
    %2768 = vmatpush1.msra.mxu0 0.0
    %2769 = vmatprep.subr.mxu0 0.0
    %2770 = vmatpush1.msra.mxu0 0.0
    %2771 = vmatprep.subr.mxu0 0.0
    %2772 = vmatpush1.msra.mxu0 0.0
    %2773 = vmatprep.subr.mxu0 0.0
    %2774 = vmatpush1.msra.mxu0 0.0
    %2775 = vmatprep.subr.mxu0 0.0
    %2776 = vmatpush1.msra.mxu0 0.0
    %2777 = vmatprep.subr.mxu0 0.0
    %2778 = vmatpush1.msra.mxu0 0.0
    %2779 = vmatprep.subr.mxu0 0.0
    %2780 = vmatpush1.msra.mxu0 0.0
    %2781 = vmatprep.subr.mxu0 0.0
    %2782 = vmatpush1.msra.mxu0 0.0
    %2783 = vmatprep.subr.mxu0 0.0
    %2784 = vmatpush1.msra.mxu0 0.0
    %2785 = vmatprep.subr.mxu0 0.0
    %2786 = vmatpush1.msra.mxu0 0.0
    %2787 = vmatprep.subr.mxu0 0.0
    %2788 = vmatpush1.msra.mxu0 0.0
    %2789 = vmatprep.subr.mxu0 0.0
    %2790 = vmatpush1.msra.mxu0 0.0
    %2791 = vmatprep.subr.mxu0 0.0
    %2792 = vmatpush1.msra.mxu0 0.0
    %2793 = vmatprep.subr.mxu0 0.0
    %2794 = vmatpush1.msra.mxu0 0.0
    %2795 = vmatprep.subr.mxu0 0.0
    %2796 = vmatpush1.msra.mxu0 0.0
    %2797 = vmatprep.subr.mxu0 0.0
    %2798 = vmatpush1.msra.mxu0 0.0
    %2799 = vmatprep.subr.mxu0 0.0
    %2800 = vmatpush1.msra.mxu0 0.0
    %2801 = vmatprep.subr.mxu0 0.0
    %2802 = vmatpush1.msra.mxu0 0.0
    %2803 = vmatprep.subr.mxu0 0.0
    %2804 = vmatpush1.msra.mxu0 0.0
    %2805 = vmatprep.mubr.f32.mxu0 0.0
    %2806 = vmatmul.mubr.f32.gmra.mrb[0].mxu0 %v2739
    %v2807 = vpop.f32.mrb[0].mxu0
    %v2808 = vadd.f32 %v1702, %v2807
    %v2809 = vpop.f32.mrb[0].mxu0
    %2810 = vdwg.mxu0
    %v2811 = vxor.u32 %v2808, 2147483648
    %v2812 = vmul.f32 %v2811, 1.442695
    %v2813 = vpow.pop %v2812
    %v2814 = vadd.f32 %v2813, 1.0
    %v2815 = vrcp.pop %v2814
    %v2816 = vmul.f32 1.0, %v2815
    %v2817 = vtanh.pop %v2808
    %v2818 = vmul.f32 %v2816, %v2311
    %2820 = vrot.lane.b32.xlu0 %v2817, 32
    %v2821 = vpop.permute.xlu0 %2820
    %v2823 = vmul.f32 %v2816, %v2821
    %2825 = vrot.lane.b32.xlu0 %v2823, 32
    %v2826 = vpop.permute.xlu0 %2825
    %v2828 = vadd.f32 %v2818, %v2826
    %v2829 = vtanh.pop %v2828
    %2831 = vrot.lane.b32.xlu0 %v2829, 32
    %v2832 = vpop.permute.xlu0 %2831
    %v2834 = vmul.f32 %v2816, %v2832
    %2836 = vrot.lane.b32.xlu0 %v2416, 64
    %v2837 = vpop.permute.xlu0 %2836
    %v2838 = vsel %vm256, %v2837, 0
    %2840 = vmatprep.subr.mxu0 0.0
    %2841 = vmatpush1.msra.mxu0 %v58
    %2842 = vmatprep.subr.mxu0 0.0
    %2843 = vmatpush1.msra.mxu0 %v59
    %2844 = vmatprep.subr.mxu0 0.0
    %2845 = vmatpush1.msra.mxu0 %v60
    %2846 = vmatprep.subr.mxu0 0.0
    %2847 = vmatpush1.msra.mxu0 %v61
    %2848 = vmatprep.subr.mxu0 0.0
    %2849 = vmatpush1.msra.mxu0 0.0
    %2850 = vmatprep.subr.mxu0 0.0
    %2851 = vmatpush1.msra.mxu0 0.0
    %2852 = vmatprep.subr.mxu0 0.0
    %2853 = vmatpush1.msra.mxu0 0.0
    %2854 = vmatprep.subr.mxu0 0.0
    %2855 = vmatpush1.msra.mxu0 0.0
    %2856 = vmatprep.subr.mxu0 0.0
    %2857 = vmatpush1.msra.mxu0 0.0
    %2858 = vmatprep.subr.mxu0 0.0
    %2859 = vmatpush1.msra.mxu0 0.0
    %2860 = vmatprep.subr.mxu0 0.0
    %2861 = vmatpush1.msra.mxu0 0.0
    %2862 = vmatprep.subr.mxu0 0.0
    %2863 = vmatpush1.msra.mxu0 0.0
    %2864 = vmatprep.subr.mxu0 0.0
    %2865 = vmatpush1.msra.mxu0 0.0
    %2866 = vmatprep.subr.mxu0 0.0
    %2867 = vmatpush1.msra.mxu0 0.0
    %2868 = vmatprep.subr.mxu0 0.0
    %2869 = vmatpush1.msra.mxu0 0.0
    %2870 = vmatprep.subr.mxu0 0.0
    %2871 = vmatpush1.msra.mxu0 0.0
    %2872 = vmatprep.subr.mxu0 0.0
    %2873 = vmatpush1.msra.mxu0 0.0
    %2874 = vmatprep.subr.mxu0 0.0
    %2875 = vmatpush1.msra.mxu0 0.0
    %2876 = vmatprep.subr.mxu0 0.0
    %2877 = vmatpush1.msra.mxu0 0.0
    %2878 = vmatprep.subr.mxu0 0.0
    %2879 = vmatpush1.msra.mxu0 0.0
    %2880 = vmatprep.subr.mxu0 0.0
    %2881 = vmatpush1.msra.mxu0 0.0
    %2882 = vmatprep.subr.mxu0 0.0
    %2883 = vmatpush1.msra.mxu0 0.0
    %2884 = vmatprep.subr.mxu0 0.0
    %2885 = vmatpush1.msra.mxu0 0.0
    %2886 = vmatprep.subr.mxu0 0.0
    %2887 = vmatpush1.msra.mxu0 0.0
    %2888 = vmatprep.subr.mxu0 0.0
    %2889 = vmatpush1.msra.mxu0 0.0
    %2890 = vmatprep.subr.mxu0 0.0
    %2891 = vmatpush1.msra.mxu0 0.0
    %2892 = vmatprep.subr.mxu0 0.0
    %2893 = vmatpush1.msra.mxu0 0.0
    %2894 = vmatprep.subr.mxu0 0.0
    %2895 = vmatpush1.msra.mxu0 0.0
    %2896 = vmatprep.subr.mxu0 0.0
    %2897 = vmatpush1.msra.mxu0 0.0
    %2898 = vmatprep.subr.mxu0 0.0
    %2899 = vmatpush1.msra.mxu0 0.0
    %2900 = vmatprep.subr.mxu0 0.0
    %2901 = vmatpush1.msra.mxu0 0.0
    %2902 = vmatprep.subr.mxu0 0.0
    %2903 = vmatpush1.msra.mxu0 0.0
    %2904 = vmatprep.mubr.f32.mxu0 0.0
    %2905 = vmatmul.mubr.f32.gmra.mrb[0].mxu0 %v2838
    %v2906 = vpop.f32.mrb[0].mxu0
    %v2907 = vadd.f32 %v253, %v2906
    %v2908 = vpop.f32.mrb[0].mxu0
    %2909 = vdwg.mxu0
    %v2910 = vxor.u32 %v2907, 2147483648
    %v2911 = vmul.f32 %v2910, 1.442695
    %v2912 = vpow.pop %v2911
    %v2913 = vadd.f32 %v2912, 1.0
    %v2914 = vrcp.pop %v2913
    %v2915 = vmul.f32 1.0, %v2914
    %v2916 = vtanh.pop %v2907
    %v2917 = vmul.f32 %v2915, %v2410
    %2919 = vrot.lane.b32.xlu0 %v2916, 32
    %v2920 = vpop.permute.xlu0 %2919
    %v2922 = vmul.f32 %v2915, %v2920
    %2924 = vrot.lane.b32.xlu0 %v2922, 32
    %v2925 = vpop.permute.xlu0 %2924
    %v2927 = vadd.f32 %v2917, %v2925
    %v2928 = vtanh.pop %v2927
    %2930 = vrot.lane.b32.xlu0 %v2928, 32
    %v2931 = vpop.permute.xlu0 %2930
    %v2933 = vmul.f32 %v2915, %v2931
    %2936 = vrot.lane.b32.xlu0 %v2519, 96
    %v2937 = vpop.permute.xlu0 %2936
    %v2939 = vsel %vm256, %v2837, %v2937
    %v2941 = vsel %vm461, %v2939, 0
    %2943 = vmatprep.subr.mxu0 0.0
    %2944 = vmatpush1.msra.mxu0 %v63
    %2945 = vmatprep.subr.mxu0 0.0
    %2946 = vmatpush1.msra.mxu0 %v64
    %2947 = vmatprep.subr.mxu0 0.0
    %2948 = vmatpush1.msra.mxu0 %v65
    %2949 = vmatprep.subr.mxu0 0.0
    %2950 = vmatpush1.msra.mxu0 %v66
    %2951 = vmatprep.subr.mxu0 0.0
    %2952 = vmatpush1.msra.mxu0 %v67
    %2953 = vmatprep.subr.mxu0 0.0
    %2954 = vmatpush1.msra.mxu0 %v68
    %2955 = vmatprep.subr.mxu0 0.0
    %2956 = vmatpush1.msra.mxu0 %v69
    %2957 = vmatprep.subr.mxu0 0.0
    %2958 = vmatpush1.msra.mxu0 %v70
    %2959 = vmatprep.subr.mxu0 0.0
    %2960 = vmatpush1.msra.mxu0 0.0
    %2961 = vmatprep.subr.mxu0 0.0
    %2962 = vmatpush1.msra.mxu0 0.0
    %2963 = vmatprep.subr.mxu0 0.0
    %2964 = vmatpush1.msra.mxu0 0.0
    %2965 = vmatprep.subr.mxu0 0.0
    %2966 = vmatpush1.msra.mxu0 0.0
    %2967 = vmatprep.subr.mxu0 0.0
    %2968 = vmatpush1.msra.mxu0 0.0
    %2969 = vmatprep.subr.mxu0 0.0
    %2970 = vmatpush1.msra.mxu0 0.0
    %2971 = vmatprep.subr.mxu0 0.0
    %2972 = vmatpush1.msra.mxu0 0.0
    %2973 = vmatprep.subr.mxu0 0.0
    %2974 = vmatpush1.msra.mxu0 0.0
    %2975 = vmatprep.subr.mxu0 0.0
    %2976 = vmatpush1.msra.mxu0 0.0
    %2977 = vmatprep.subr.mxu0 0.0
    %2978 = vmatpush1.msra.mxu0 0.0
    %2979 = vmatprep.subr.mxu0 0.0
    %2980 = vmatpush1.msra.mxu0 0.0
    %2981 = vmatprep.subr.mxu0 0.0
    %2982 = vmatpush1.msra.mxu0 0.0
    %2983 = vmatprep.subr.mxu0 0.0
    %2984 = vmatpush1.msra.mxu0 0.0
    %2985 = vmatprep.subr.mxu0 0.0
    %2986 = vmatpush1.msra.mxu0 0.0
    %2987 = vmatprep.subr.mxu0 0.0
    %2988 = vmatpush1.msra.mxu0 0.0
    %2989 = vmatprep.subr.mxu0 0.0
    %2990 = vmatpush1.msra.mxu0 0.0
    %2991 = vmatprep.subr.mxu0 0.0
    %2992 = vmatpush1.msra.mxu0 0.0
    %2993 = vmatprep.subr.mxu0 0.0
    %2994 = vmatpush1.msra.mxu0 0.0
    %2995 = vmatprep.subr.mxu0 0.0
    %2996 = vmatpush1.msra.mxu0 0.0
    %2997 = vmatprep.subr.mxu0 0.0
    %2998 = vmatpush1.msra.mxu0 0.0
    %2999 = vmatprep.subr.mxu0 0.0
    %3000 = vmatpush1.msra.mxu0 0.0
    %3001 = vmatprep.subr.mxu0 0.0
    %3002 = vmatpush1.msra.mxu0 0.0
    %3003 = vmatprep.subr.mxu0 0.0
    %3004 = vmatpush1.msra.mxu0 0.0
    %3005 = vmatprep.subr.mxu0 0.0
    %3006 = vmatpush1.msra.mxu0 0.0
    %3007 = vmatprep.mubr.f32.mxu0 0.0
    %3008 = vmatmul.mubr.f32.gmra.mrb[0].mxu0 %v2941
    %v3009 = vpop.f32.mrb[0].mxu0
    %v3010 = vadd.f32 %v459, %v3009
    %v3011 = vpop.f32.mrb[0].mxu0
    %3012 = vdwg.mxu0
    %v3013 = vxor.u32 %v3010, 2147483648
    %v3014 = vmul.f32 %v3013, 1.442695
    %v3015 = vpow.pop %v3014
    %v3016 = vadd.f32 %v3015, 1.0
    %v3017 = vrcp.pop %v3016
    %v3018 = vmul.f32 1.0, %v3017
    %v3019 = vtanh.pop %v3010
    %v3020 = vmul.f32 %v3018, %v2513
    %3022 = vrot.lane.b32.xlu0 %v3019, 32
    %v3023 = vpop.permute.xlu0 %3022
    %v3025 = vmul.f32 %v3018, %v3023
    %3027 = vrot.lane.b32.xlu0 %v3025, 32
    %v3028 = vpop.permute.xlu0 %3027
    %v3030 = vadd.f32 %v3020, %v3028
    %v3031 = vtanh.pop %v3030
    %3033 = vrot.lane.b32.xlu0 %v3031, 32
    %v3034 = vpop.permute.xlu0 %3033
    %v3036 = vmul.f32 %v3018, %v3034
    %3037 = vrot.lane.b32.xlu0 %v2519, 64
    %v3038 = vpop.permute.xlu0 %3037
    %3041 = vrot.lane.b32.xlu0 %v2624, 96
    %v3042 = vpop.permute.xlu0 %3041
    %v3044 = vsel %vm256, %v3038, %v3042
    %v3046 = vsel %vm461, %v3044, 0
    %3048 = vmatprep.subr.mxu0 0.0
    %3049 = vmatpush1.msra.mxu0 %v72
    %3050 = vmatprep.subr.mxu0 0.0
    %3051 = vmatpush1.msra.mxu0 %v73
    %3052 = vmatprep.subr.mxu0 0.0
    %3053 = vmatpush1.msra.mxu0 %v74
    %3054 = vmatprep.subr.mxu0 0.0
    %3055 = vmatpush1.msra.mxu0 %v75
    %3056 = vmatprep.subr.mxu0 0.0
    %3057 = vmatpush1.msra.mxu0 %v76
    %3058 = vmatprep.subr.mxu0 0.0
    %3059 = vmatpush1.msra.mxu0 %v77
    %3060 = vmatprep.subr.mxu0 0.0
    %3061 = vmatpush1.msra.mxu0 %v78
    %3062 = vmatprep.subr.mxu0 0.0
    %3063 = vmatpush1.msra.mxu0 %v79
    %3064 = vmatprep.subr.mxu0 0.0
    %3065 = vmatpush1.msra.mxu0 0.0
    %3066 = vmatprep.subr.mxu0 0.0
    %3067 = vmatpush1.msra.mxu0 0.0
    %3068 = vmatprep.subr.mxu0 0.0
    %3069 = vmatpush1.msra.mxu0 0.0
    %3070 = vmatprep.subr.mxu0 0.0
    %3071 = vmatpush1.msra.mxu0 0.0
    %3072 = vmatprep.subr.mxu0 0.0
    %3073 = vmatpush1.msra.mxu0 0.0
    %3074 = vmatprep.subr.mxu0 0.0
    %3075 = vmatpush1.msra.mxu0 0.0
    %3076 = vmatprep.subr.mxu0 0.0
    %3077 = vmatpush1.msra.mxu0 0.0
    %3078 = vmatprep.subr.mxu0 0.0
    %3079 = vmatpush1.msra.mxu0 0.0
    %3080 = vmatprep.subr.mxu0 0.0
    %3081 = vmatpush1.msra.mxu0 0.0
    %3082 = vmatprep.subr.mxu0 0.0
    %3083 = vmatpush1.msra.mxu0 0.0
    %3084 = vmatprep.subr.mxu0 0.0
    %3085 = vmatpush1.msra.mxu0 0.0
    %3086 = vmatprep.subr.mxu0 0.0
    %3087 = vmatpush1.msra.mxu0 0.0
    %3088 = vmatprep.subr.mxu0 0.0
    %3089 = vmatpush1.msra.mxu0 0.0
    %3090 = vmatprep.subr.mxu0 0.0
    %3091 = vmatpush1.msra.mxu0 0.0
    %3092 = vmatprep.subr.mxu0 0.0
    %3093 = vmatpush1.msra.mxu0 0.0
    %3094 = vmatprep.subr.mxu0 0.0
    %3095 = vmatpush1.msra.mxu0 0.0
    %3096 = vmatprep.subr.mxu0 0.0
    %3097 = vmatpush1.msra.mxu0 0.0
    %3098 = vmatprep.subr.mxu0 0.0
    %3099 = vmatpush1.msra.mxu0 0.0
    %3100 = vmatprep.subr.mxu0 0.0
    %3101 = vmatpush1.msra.mxu0 0.0
    %3102 = vmatprep.subr.mxu0 0.0
    %3103 = vmatpush1.msra.mxu0 0.0
    %3104 = vmatprep.subr.mxu0 0.0
    %3105 = vmatpush1.msra.mxu0 0.0
    %3106 = vmatprep.subr.mxu0 0.0
    %3107 = vmatpush1.msra.mxu0 0.0
    %3108 = vmatprep.subr.mxu0 0.0
    %3109 = vmatpush1.msra.mxu0 0.0
    %3110 = vmatprep.subr.mxu0 0.0
    %3111 = vmatpush1.msra.mxu0 0.0
    %3112 = vmatprep.mubr.f32.mxu0 0.0
    %3113 = vmatmul.mubr.f32.gmra.mrb[0].mxu0 %v3046
    %v3114 = vpop.f32.mrb[0].mxu0
    %v3115 = vadd.f32 %v769, %v3114
    %v3116 = vpop.f32.mrb[0].mxu0
    %3117 = vdwg.mxu0
    %v3118 = vxor.u32 %v3115, 2147483648
    %v3119 = vmul.f32 %v3118, 1.442695
    %v3120 = vpow.pop %v3119
    %v3121 = vadd.f32 %v3120, 1.0
    %v3122 = vrcp.pop %v3121
    %v3123 = vmul.f32 1.0, %v3122
    %v3124 = vtanh.pop %v3115
    %v3125 = vmul.f32 %v3123, %v2618
    %3127 = vrot.lane.b32.xlu0 %v3124, 32
    %v3128 = vpop.permute.xlu0 %3127
    %v3130 = vmul.f32 %v3123, %v3128
    %3132 = vrot.lane.b32.xlu0 %v3130, 32
    %v3133 = vpop.permute.xlu0 %3132
    %v3135 = vadd.f32 %v3125, %v3133
    %v3136 = vtanh.pop %v3135
    %3138 = vrot.lane.b32.xlu0 %v3136, 32
    %v3139 = vpop.permute.xlu0 %3138
    %v3141 = vmul.f32 %v3123, %v3139
    %3142 = vrot.lane.b32.xlu0 %v2624, 64
    %v3143 = vpop.permute.xlu0 %3142
    %3146 = vrot.lane.b32.xlu0 %v2729, 96
    %v3147 = vpop.permute.xlu0 %3146
    %v3149 = vsel %vm256, %v3143, %v3147
    %v3151 = vsel %vm461, %v3149, 0
    %3153 = vmatprep.subr.mxu0 0.0
    %3154 = vmatpush1.msra.mxu0 %v81
    %3155 = vmatprep.subr.mxu0 0.0
    %3156 = vmatpush1.msra.mxu0 %v82
    %3157 = vmatprep.subr.mxu0 0.0
    %3158 = vmatpush1.msra.mxu0 %v83
    %3159 = vmatprep.subr.mxu0 0.0
    %3160 = vmatpush1.msra.mxu0 %v84
    %3161 = vmatprep.subr.mxu0 0.0
    %3162 = vmatpush1.msra.mxu0 %v85
    %3163 = vmatprep.subr.mxu0 0.0
    %3164 = vmatpush1.msra.mxu0 %v86
    %3165 = vmatprep.subr.mxu0 0.0
    %3166 = vmatpush1.msra.mxu0 %v87
    %3167 = vmatprep.subr.mxu0 0.0
    %3168 = vmatpush1.msra.mxu0 %v88
    %3169 = vmatprep.subr.mxu0 0.0
    %3170 = vmatpush1.msra.mxu0 0.0
    %3171 = vmatprep.subr.mxu0 0.0
    %3172 = vmatpush1.msra.mxu0 0.0
    %3173 = vmatprep.subr.mxu0 0.0
    %3174 = vmatpush1.msra.mxu0 0.0
    %3175 = vmatprep.subr.mxu0 0.0
    %3176 = vmatpush1.msra.mxu0 0.0
    %3177 = vmatprep.subr.mxu0 0.0
    %3178 = vmatpush1.msra.mxu0 0.0
    %3179 = vmatprep.subr.mxu0 0.0
    %3180 = vmatpush1.msra.mxu0 0.0
    %3181 = vmatprep.subr.mxu0 0.0
    %3182 = vmatpush1.msra.mxu0 0.0
    %3183 = vmatprep.subr.mxu0 0.0
    %3184 = vmatpush1.msra.mxu0 0.0
    %3185 = vmatprep.subr.mxu0 0.0
    %3186 = vmatpush1.msra.mxu0 0.0
    %3187 = vmatprep.subr.mxu0 0.0
    %3188 = vmatpush1.msra.mxu0 0.0
    %3189 = vmatprep.subr.mxu0 0.0
    %3190 = vmatpush1.msra.mxu0 0.0
    %3191 = vmatprep.subr.mxu0 0.0
    %3192 = vmatpush1.msra.mxu0 0.0
    %3193 = vmatprep.subr.mxu0 0.0
    %3194 = vmatpush1.msra.mxu0 0.0
    %3195 = vmatprep.subr.mxu0 0.0
    %3196 = vmatpush1.msra.mxu0 0.0
    %3197 = vmatprep.subr.mxu0 0.0
    %3198 = vmatpush1.msra.mxu0 0.0
    %3199 = vmatprep.subr.mxu0 0.0
    %3200 = vmatpush1.msra.mxu0 0.0
    %3201 = vmatprep.subr.mxu0 0.0
    %3202 = vmatpush1.msra.mxu0 0.0
    %3203 = vmatprep.subr.mxu0 0.0
    %3204 = vmatpush1.msra.mxu0 0.0
    %3205 = vmatprep.subr.mxu0 0.0
    %3206 = vmatpush1.msra.mxu0 0.0
    %3207 = vmatprep.subr.mxu0 0.0
    %3208 = vmatpush1.msra.mxu0 0.0
    %3209 = vmatprep.subr.mxu0 0.0
    %3210 = vmatpush1.msra.mxu0 0.0
    %3211 = vmatprep.subr.mxu0 0.0
    %3212 = vmatpush1.msra.mxu0 0.0
    %3213 = vmatprep.subr.mxu0 0.0
    %3214 = vmatpush1.msra.mxu0 0.0
    %3215 = vmatprep.subr.mxu0 0.0
    %3216 = vmatpush1.msra.mxu0 0.0
    %3217 = vmatprep.mubr.f32.mxu0 0.0
    %3218 = vmatmul.mubr.f32.gmra.mrb[0].mxu0 %v3151
    %v3219 = vpop.f32.mrb[0].mxu0
    %v3220 = vadd.f32 %v1183, %v3219
    %v3221 = vpop.f32.mrb[0].mxu0
    %3222 = vdwg.mxu0
    %v3223 = vxor.u32 %v3220, 2147483648
    %v3224 = vmul.f32 %v3223, 1.442695
    %v3225 = vpow.pop %v3224
    %v3226 = vadd.f32 %v3225, 1.0
    %v3227 = vrcp.pop %v3226
    %v3228 = vmul.f32 1.0, %v3227
    %v3229 = vtanh.pop %v3220
    %v3230 = vmul.f32 %v3228, %v2723
    %3232 = vrot.lane.b32.xlu0 %v3229, 32
    %v3233 = vpop.permute.xlu0 %3232
    %v3235 = vmul.f32 %v3228, %v3233
    %3237 = vrot.lane.b32.xlu0 %v3235, 32
    %v3238 = vpop.permute.xlu0 %3237
    %v3240 = vadd.f32 %v3230, %v3238
    %v3241 = vtanh.pop %v3240
    %3243 = vrot.lane.b32.xlu0 %v3241, 32
    %v3244 = vpop.permute.xlu0 %3243
    %v3246 = vmul.f32 %v3228, %v3244
    %3247 = vrot.lane.b32.xlu0 %v2729, 64
    %v3248 = vpop.permute.xlu0 %3247
    %3251 = vrot.lane.b32.xlu0 %v2834, 96
    %v3252 = vpop.permute.xlu0 %3251
    %v3254 = vsel %vm256, %v3248, %v3252
    %v3256 = vsel %vm461, %v3254, 0
    %3258 = vmatprep.subr.mxu0 0.0
    %3259 = vmatpush1.msra.mxu0 %v90
    %3260 = vmatprep.subr.mxu0 0.0
    %3261 = vmatpush1.msra.mxu0 %v91
    %3262 = vmatprep.subr.mxu0 0.0
    %3263 = vmatpush1.msra.mxu0 %v92
    %3264 = vmatprep.subr.mxu0 0.0
    %3265 = vmatpush1.msra.mxu0 %v93
    %3266 = vmatprep.subr.mxu0 0.0
    %3267 = vmatpush1.msra.mxu0 %v94
    %3268 = vmatprep.subr.mxu0 0.0
    %3269 = vmatpush1.msra.mxu0 %v95
    %3270 = vmatprep.subr.mxu0 0.0
    %3271 = vmatpush1.msra.mxu0 %v96
    %3272 = vmatprep.subr.mxu0 0.0
    %3273 = vmatpush1.msra.mxu0 %v97
    %3274 = vmatprep.subr.mxu0 0.0
    %3275 = vmatpush1.msra.mxu0 0.0
    %3276 = vmatprep.subr.mxu0 0.0
    %3277 = vmatpush1.msra.mxu0 0.0
    %3278 = vmatprep.subr.mxu0 0.0
    %3279 = vmatpush1.msra.mxu0 0.0
    %3280 = vmatprep.subr.mxu0 0.0
    %3281 = vmatpush1.msra.mxu0 0.0
    %3282 = vmatprep.subr.mxu0 0.0
    %3283 = vmatpush1.msra.mxu0 0.0
    %3284 = vmatprep.subr.mxu0 0.0
    %3285 = vmatpush1.msra.mxu0 0.0
    %3286 = vmatprep.subr.mxu0 0.0
    %3287 = vmatpush1.msra.mxu0 0.0
    %3288 = vmatprep.subr.mxu0 0.0
    %3289 = vmatpush1.msra.mxu0 0.0
    %3290 = vmatprep.subr.mxu0 0.0
    %3291 = vmatpush1.msra.mxu0 0.0
    %3292 = vmatprep.subr.mxu0 0.0
    %3293 = vmatpush1.msra.mxu0 0.0
    %3294 = vmatprep.subr.mxu0 0.0
    %3295 = vmatpush1.msra.mxu0 0.0
    %3296 = vmatprep.subr.mxu0 0.0
    %3297 = vmatpush1.msra.mxu0 0.0
    %3298 = vmatprep.subr.mxu0 0.0
    %3299 = vmatpush1.msra.mxu0 0.0
    %3300 = vmatprep.subr.mxu0 0.0
    %3301 = vmatpush1.msra.mxu0 0.0
    %3302 = vmatprep.subr.mxu0 0.0
    %3303 = vmatpush1.msra.mxu0 0.0
    %3304 = vmatprep.subr.mxu0 0.0
    %3305 = vmatpush1.msra.mxu0 0.0
    %3306 = vmatprep.subr.mxu0 0.0
    %3307 = vmatpush1.msra.mxu0 0.0
    %3308 = vmatprep.subr.mxu0 0.0
    %3309 = vmatpush1.msra.mxu0 0.0
    %3310 = vmatprep.subr.mxu0 0.0
    %3311 = vmatpush1.msra.mxu0 0.0
    %3312 = vmatprep.subr.mxu0 0.0
    %3313 = vmatpush1.msra.mxu0 0.0
    %3314 = vmatprep.subr.mxu0 0.0
    %3315 = vmatpush1.msra.mxu0 0.0
    %3316 = vmatprep.subr.mxu0 0.0
    %3317 = vmatpush1.msra.mxu0 0.0
    %3318 = vmatprep.subr.mxu0 0.0
    %3319 = vmatpush1.msra.mxu0 0.0
    %3320 = vmatprep.subr.mxu0 0.0
    %3321 = vmatpush1.msra.mxu0 0.0
    %3322 = vmatprep.mubr.f32.mxu0 0.0
    %3323 = vmatmul.mubr.f32.gmra.mrb[0].mxu0 %v3256
    %v3324 = vpop.f32.mrb[0].mxu0
    %v3325 = vadd.f32 %v1702, %v3324
    %v3326 = vpop.f32.mrb[0].mxu0
    %3327 = vdwg.mxu0
    %v3328 = vxor.u32 %v3325, 2147483648
    %v3329 = vmul.f32 %v3328, 1.442695
    %v3330 = vpow.pop %v3329
    %v3331 = vadd.f32 %v3330, 1.0
    %v3332 = vrcp.pop %v3331
    %v3333 = vmul.f32 1.0, %v3332
    %v3334 = vtanh.pop %v3325
    %v3335 = vmul.f32 %v3333, %v2828
    %3337 = vrot.lane.b32.xlu0 %v3334, 32
    %v3338 = vpop.permute.xlu0 %3337
    %v3340 = vmul.f32 %v3333, %v3338
    %3342 = vrot.lane.b32.xlu0 %v3340, 32
    %v3343 = vpop.permute.xlu0 %3342
    %v3345 = vadd.f32 %v3335, %v3343
    %v3346 = vtanh.pop %v3345
    %3348 = vrot.lane.b32.xlu0 %v3346, 32
    %v3349 = vpop.permute.xlu0 %3348
    %v3351 = vmul.f32 %v3333, %v3349
    %3353 = vrot.lane.b32.xlu0 %v2933, 64
    %v3354 = vpop.permute.xlu0 %3353
    %3357 = vrot.lane.b32.xlu0 %v3036, 96
    %v3358 = vpop.permute.xlu0 %3357
    %v3360 = vsel %vm256, %v3354, %v3358
    %v3362 = vsel %vm461, %v3360, 0
    %3364 = vmatprep.subr.mxu0 0.0
    %3365 = vmatpush1.msra.mxu0 %v63
    %3366 = vmatprep.subr.mxu0 0.0
    %3367 = vmatpush1.msra.mxu0 %v64
    %3368 = vmatprep.subr.mxu0 0.0
    %3369 = vmatpush1.msra.mxu0 %v65
    %3370 = vmatprep.subr.mxu0 0.0
    %3371 = vmatpush1.msra.mxu0 %v66
    %3372 = vmatprep.subr.mxu0 0.0
    %3373 = vmatpush1.msra.mxu0 %v67
    %3374 = vmatprep.subr.mxu0 0.0
    %3375 = vmatpush1.msra.mxu0 %v68
    %3376 = vmatprep.subr.mxu0 0.0
    %3377 = vmatpush1.msra.mxu0 %v69
    %3378 = vmatprep.subr.mxu0 0.0
    %3379 = vmatpush1.msra.mxu0 %v70
    %3380 = vmatprep.subr.mxu0 0.0
    %3381 = vmatpush1.msra.mxu0 0.0
    %3382 = vmatprep.subr.mxu0 0.0
    %3383 = vmatpush1.msra.mxu0 0.0
    %3384 = vmatprep.subr.mxu0 0.0
    %3385 = vmatpush1.msra.mxu0 0.0
    %3386 = vmatprep.subr.mxu0 0.0
    %3387 = vmatpush1.msra.mxu0 0.0
    %3388 = vmatprep.subr.mxu0 0.0
    %3389 = vmatpush1.msra.mxu0 0.0
    %3390 = vmatprep.subr.mxu0 0.0
    %3391 = vmatpush1.msra.mxu0 0.0
    %3392 = vmatprep.subr.mxu0 0.0
    %3393 = vmatpush1.msra.mxu0 0.0
    %3394 = vmatprep.subr.mxu0 0.0
    %3395 = vmatpush1.msra.mxu0 0.0
    %3396 = vmatprep.subr.mxu0 0.0
    %3397 = vmatpush1.msra.mxu0 0.0
    %3398 = vmatprep.subr.mxu0 0.0
    %3399 = vmatpush1.msra.mxu0 0.0
    %3400 = vmatprep.subr.mxu0 0.0
    %3401 = vmatpush1.msra.mxu0 0.0
    %3402 = vmatprep.subr.mxu0 0.0
    %3403 = vmatpush1.msra.mxu0 0.0
    %3404 = vmatprep.subr.mxu0 0.0
    %3405 = vmatpush1.msra.mxu0 0.0
    %3406 = vmatprep.subr.mxu0 0.0
    %3407 = vmatpush1.msra.mxu0 0.0
    %3408 = vmatprep.subr.mxu0 0.0
    %3409 = vmatpush1.msra.mxu0 0.0
    %3410 = vmatprep.subr.mxu0 0.0
    %3411 = vmatpush1.msra.mxu0 0.0
    %3412 = vmatprep.subr.mxu0 0.0
    %3413 = vmatpush1.msra.mxu0 0.0
    %3414 = vmatprep.subr.mxu0 0.0
    %3415 = vmatpush1.msra.mxu0 0.0
    %3416 = vmatprep.subr.mxu0 0.0
    %3417 = vmatpush1.msra.mxu0 0.0
    %3418 = vmatprep.subr.mxu0 0.0
    %3419 = vmatpush1.msra.mxu0 0.0
    %3420 = vmatprep.subr.mxu0 0.0
    %3421 = vmatpush1.msra.mxu0 0.0
    %3422 = vmatprep.subr.mxu0 0.0
    %3423 = vmatpush1.msra.mxu0 0.0
    %3424 = vmatprep.subr.mxu0 0.0
    %3425 = vmatpush1.msra.mxu0 0.0
    %3426 = vmatprep.subr.mxu0 0.0
    %3427 = vmatpush1.msra.mxu0 0.0
    %3428 = vmatprep.mubr.f32.mxu0 0.0
    %3429 = vmatmul.mubr.f32.gmra.mrb[0].mxu0 %v3362
    %v3430 = vpop.f32.mrb[0].mxu0
    %v3431 = vadd.f32 %v459, %v3430
    %v3432 = vpop.f32.mrb[0].mxu0
    %3433 = vdwg.mxu0
    %v3434 = vxor.u32 %v3431, 2147483648
    %v3435 = vmul.f32 %v3434, 1.442695
    %v3436 = vpow.pop %v3435
    %v3437 = vadd.f32 %v3436, 1.0
    %v3438 = vrcp.pop %v3437
    %v3439 = vmul.f32 1.0, %v3438
    %v3440 = vtanh.pop %v3431
    %v3441 = vmul.f32 %v3439, %v3030
    %3443 = vrot.lane.b32.xlu0 %v3440, 32
    %v3444 = vpop.permute.xlu0 %3443
    %v3446 = vmul.f32 %v3439, %v3444
    %3448 = vrot.lane.b32.xlu0 %v3446, 32
    %v3449 = vpop.permute.xlu0 %3448
    %v3451 = vadd.f32 %v3441, %v3449
    %v3452 = vtanh.pop %v3451
    %3454 = vrot.lane.b32.xlu0 %v3452, 32
    %v3455 = vpop.permute.xlu0 %3454
    %v3457 = vmul.f32 %v3439, %v3455
    %3458 = vrot.lane.b32.xlu0 %v3036, 64
    %v3459 = vpop.permute.xlu0 %3458
    %3462 = vrot.lane.b32.xlu0 %v3141, 96
    %v3463 = vpop.permute.xlu0 %3462
    %v3465 = vsel %vm256, %v3459, %v3463
    %v3467 = vsel %vm461, %v3465, 0
    %3469 = vmatprep.subr.mxu0 0.0
    %3470 = vmatpush1.msra.mxu0 %v72
    %3471 = vmatprep.subr.mxu0 0.0
    %3472 = vmatpush1.msra.mxu0 %v73
    %3473 = vmatprep.subr.mxu0 0.0
    %3474 = vmatpush1.msra.mxu0 %v74
    %3475 = vmatprep.subr.mxu0 0.0
    %3476 = vmatpush1.msra.mxu0 %v75
    %3477 = vmatprep.subr.mxu0 0.0
    %3478 = vmatpush1.msra.mxu0 %v76
    %3479 = vmatprep.subr.mxu0 0.0
    %3480 = vmatpush1.msra.mxu0 %v77
    %3481 = vmatprep.subr.mxu0 0.0
    %3482 = vmatpush1.msra.mxu0 %v78
    %3483 = vmatprep.subr.mxu0 0.0
    %3484 = vmatpush1.msra.mxu0 %v79
    %3485 = vmatprep.subr.mxu0 0.0
    %3486 = vmatpush1.msra.mxu0 0.0
    %3487 = vmatprep.subr.mxu0 0.0
    %3488 = vmatpush1.msra.mxu0 0.0
    %3489 = vmatprep.subr.mxu0 0.0
    %3490 = vmatpush1.msra.mxu0 0.0
    %3491 = vmatprep.subr.mxu0 0.0
    %3492 = vmatpush1.msra.mxu0 0.0
    %3493 = vmatprep.subr.mxu0 0.0
    %3494 = vmatpush1.msra.mxu0 0.0
    %3495 = vmatprep.subr.mxu0 0.0
    %3496 = vmatpush1.msra.mxu0 0.0
    %3497 = vmatprep.subr.mxu0 0.0
    %3498 = vmatpush1.msra.mxu0 0.0
    %3499 = vmatprep.subr.mxu0 0.0
    %3500 = vmatpush1.msra.mxu0 0.0
    %3501 = vmatprep.subr.mxu0 0.0
    %3502 = vmatpush1.msra.mxu0 0.0
    %3503 = vmatprep.subr.mxu0 0.0
    %3504 = vmatpush1.msra.mxu0 0.0
    %3505 = vmatprep.subr.mxu0 0.0
    %3506 = vmatpush1.msra.mxu0 0.0
    %3507 = vmatprep.subr.mxu0 0.0
    %3508 = vmatpush1.msra.mxu0 0.0
    %3509 = vmatprep.subr.mxu0 0.0
    %3510 = vmatpush1.msra.mxu0 0.0
    %3511 = vmatprep.subr.mxu0 0.0
    %3512 = vmatpush1.msra.mxu0 0.0
    %3513 = vmatprep.subr.mxu0 0.0
    %3514 = vmatpush1.msra.mxu0 0.0
    %3515 = vmatprep.subr.mxu0 0.0
    %3516 = vmatpush1.msra.mxu0 0.0
    %3517 = vmatprep.subr.mxu0 0.0
    %3518 = vmatpush1.msra.mxu0 0.0
    %3519 = vmatprep.subr.mxu0 0.0
    %3520 = vmatpush1.msra.mxu0 0.0
    %3521 = vmatprep.subr.mxu0 0.0
    %3522 = vmatpush1.msra.mxu0 0.0
    %3523 = vmatprep.subr.mxu0 0.0
    %3524 = vmatpush1.msra.mxu0 0.0
    %3525 = vmatprep.subr.mxu0 0.0
    %3526 = vmatpush1.msra.mxu0 0.0
    %3527 = vmatprep.subr.mxu0 0.0
    %3528 = vmatpush1.msra.mxu0 0.0
    %3529 = vmatprep.subr.mxu0 0.0
    %3530 = vmatpush1.msra.mxu0 0.0
    %3531 = vmatprep.subr.mxu0 0.0
    %3532 = vmatpush1.msra.mxu0 0.0
    %3533 = vmatprep.mubr.f32.mxu0 0.0
    %3534 = vmatmul.mubr.f32.gmra.mrb[0].mxu0 %v3467
    %v3535 = vpop.f32.mrb[0].mxu0
    %v3536 = vadd.f32 %v769, %v3535
    %v3537 = vpop.f32.mrb[0].mxu0
    %3538 = vdwg.mxu0
    %v3539 = vxor.u32 %v3536, 2147483648
    %v3540 = vmul.f32 %v3539, 1.442695
    %v3541 = vpow.pop %v3540
    %v3542 = vadd.f32 %v3541, 1.0
    %v3543 = vrcp.pop %v3542
    %v3544 = vmul.f32 1.0, %v3543
    %v3545 = vtanh.pop %v3536
    %v3546 = vmul.f32 %v3544, %v3135
    %3548 = vrot.lane.b32.xlu0 %v3545, 32
    %v3549 = vpop.permute.xlu0 %3548
    %v3551 = vmul.f32 %v3544, %v3549
    %3553 = vrot.lane.b32.xlu0 %v3551, 32
    %v3554 = vpop.permute.xlu0 %3553
    %v3556 = vadd.f32 %v3546, %v3554
    %v3557 = vtanh.pop %v3556
    %3559 = vrot.lane.b32.xlu0 %v3557, 32
    %v3560 = vpop.permute.xlu0 %3559
    %v3562 = vmul.f32 %v3544, %v3560
    %3563 = vrot.lane.b32.xlu0 %v3141, 64
    %v3564 = vpop.permute.xlu0 %3563
    %3567 = vrot.lane.b32.xlu0 %v3246, 96
    %v3568 = vpop.permute.xlu0 %3567
    %v3570 = vsel %vm256, %v3564, %v3568
    %v3572 = vsel %vm461, %v3570, 0
    %3574 = vmatprep.subr.mxu0 0.0
    %3575 = vmatpush1.msra.mxu0 %v81
    %3576 = vmatprep.subr.mxu0 0.0
    %3577 = vmatpush1.msra.mxu0 %v82
    %3578 = vmatprep.subr.mxu0 0.0
    %3579 = vmatpush1.msra.mxu0 %v83
    %3580 = vmatprep.subr.mxu0 0.0
    %3581 = vmatpush1.msra.mxu0 %v84
    %3582 = vmatprep.subr.mxu0 0.0
    %3583 = vmatpush1.msra.mxu0 %v85
    %3584 = vmatprep.subr.mxu0 0.0
    %3585 = vmatpush1.msra.mxu0 %v86
    %3586 = vmatprep.subr.mxu0 0.0
    %3587 = vmatpush1.msra.mxu0 %v87
    %3588 = vmatprep.subr.mxu0 0.0
    %3589 = vmatpush1.msra.mxu0 %v88
    %3590 = vmatprep.subr.mxu0 0.0
    %3591 = vmatpush1.msra.mxu0 0.0
    %3592 = vmatprep.subr.mxu0 0.0
    %3593 = vmatpush1.msra.mxu0 0.0
    %3594 = vmatprep.subr.mxu0 0.0
    %3595 = vmatpush1.msra.mxu0 0.0
    %3596 = vmatprep.subr.mxu0 0.0
    %3597 = vmatpush1.msra.mxu0 0.0
    %3598 = vmatprep.subr.mxu0 0.0
    %3599 = vmatpush1.msra.mxu0 0.0
    %3600 = vmatprep.subr.mxu0 0.0
    %3601 = vmatpush1.msra.mxu0 0.0
    %3602 = vmatprep.subr.mxu0 0.0
    %3603 = vmatpush1.msra.mxu0 0.0
    %3604 = vmatprep.subr.mxu0 0.0
    %3605 = vmatpush1.msra.mxu0 0.0
    %3606 = vmatprep.subr.mxu0 0.0
    %3607 = vmatpush1.msra.mxu0 0.0
    %3608 = vmatprep.subr.mxu0 0.0
    %3609 = vmatpush1.msra.mxu0 0.0
    %3610 = vmatprep.subr.mxu0 0.0
    %3611 = vmatpush1.msra.mxu0 0.0
    %3612 = vmatprep.subr.mxu0 0.0
    %3613 = vmatpush1.msra.mxu0 0.0
    %3614 = vmatprep.subr.mxu0 0.0
    %3615 = vmatpush1.msra.mxu0 0.0
    %3616 = vmatprep.subr.mxu0 0.0
    %3617 = vmatpush1.msra.mxu0 0.0
    %3618 = vmatprep.subr.mxu0 0.0
    %3619 = vmatpush1.msra.mxu0 0.0
    %3620 = vmatprep.subr.mxu0 0.0
    %3621 = vmatpush1.msra.mxu0 0.0
    %3622 = vmatprep.subr.mxu0 0.0
    %3623 = vmatpush1.msra.mxu0 0.0
    %3624 = vmatprep.subr.mxu0 0.0
    %3625 = vmatpush1.msra.mxu0 0.0
    %3626 = vmatprep.subr.mxu0 0.0
    %3627 = vmatpush1.msra.mxu0 0.0
    %3628 = vmatprep.subr.mxu0 0.0
    %3629 = vmatpush1.msra.mxu0 0.0
    %3630 = vmatprep.subr.mxu0 0.0
    %3631 = vmatpush1.msra.mxu0 0.0
    %3632 = vmatprep.subr.mxu0 0.0
    %3633 = vmatpush1.msra.mxu0 0.0
    %3634 = vmatprep.subr.mxu0 0.0
    %3635 = vmatpush1.msra.mxu0 0.0
    %3636 = vmatprep.subr.mxu0 0.0
    %3637 = vmatpush1.msra.mxu0 0.0
    %3638 = vmatprep.mubr.f32.mxu0 0.0
    %3639 = vmatmul.mubr.f32.gmra.mrb[0].mxu0 %v3572
    %v3640 = vpop.f32.mrb[0].mxu0
    %v3641 = vadd.f32 %v1183, %v3640
    %v3642 = vpop.f32.mrb[0].mxu0
    %3643 = vdwg.mxu0
    %v3644 = vxor.u32 %v3641, 2147483648
    %v3645 = vmul.f32 %v3644, 1.442695
    %v3646 = vpow.pop %v3645
    %v3647 = vadd.f32 %v3646, 1.0
    %v3648 = vrcp.pop %v3647
    %v3649 = vmul.f32 1.0, %v3648
    %v3650 = vtanh.pop %v3641
    %v3651 = vmul.f32 %v3649, %v3240
    %3653 = vrot.lane.b32.xlu0 %v3650, 32
    %v3654 = vpop.permute.xlu0 %3653
    %v3656 = vmul.f32 %v3649, %v3654
    %3658 = vrot.lane.b32.xlu0 %v3656, 32
    %v3659 = vpop.permute.xlu0 %3658
    %v3661 = vadd.f32 %v3651, %v3659
    %v3662 = vtanh.pop %v3661
    %3664 = vrot.lane.b32.xlu0 %v3662, 32
    %v3665 = vpop.permute.xlu0 %3664
    %v3667 = vmul.f32 %v3649, %v3665
    %3668 = vrot.lane.b32.xlu0 %v3246, 64
    %v3669 = vpop.permute.xlu0 %3668
    %3672 = vrot.lane.b32.xlu0 %v3351, 96
    %v3673 = vpop.permute.xlu0 %3672
    %v3675 = vsel %vm256, %v3669, %v3673
    %v3677 = vsel %vm461, %v3675, 0
    %3679 = vmatprep.subr.mxu0 0.0
    %3680 = vmatpush1.msra.mxu0 %v90
    %3681 = vmatprep.subr.mxu0 0.0
    %3682 = vmatpush1.msra.mxu0 %v91
    %3683 = vmatprep.subr.mxu0 0.0
    %3684 = vmatpush1.msra.mxu0 %v92
    %3685 = vmatprep.subr.mxu0 0.0
    %3686 = vmatpush1.msra.mxu0 %v93
    %3687 = vmatprep.subr.mxu0 0.0
    %3688 = vmatpush1.msra.mxu0 %v94
    %3689 = vmatprep.subr.mxu0 0.0
    %3690 = vmatpush1.msra.mxu0 %v95
    %3691 = vmatprep.subr.mxu0 0.0
    %3692 = vmatpush1.msra.mxu0 %v96
    %3693 = vmatprep.subr.mxu0 0.0
    %3694 = vmatpush1.msra.mxu0 %v97
    %3695 = vmatprep.subr.mxu0 0.0
    %3696 = vmatpush1.msra.mxu0 0.0
    %3697 = vmatprep.subr.mxu0 0.0
    %3698 = vmatpush1.msra.mxu0 0.0
    %3699 = vmatprep.subr.mxu0 0.0
    %3700 = vmatpush1.msra.mxu0 0.0
    %3701 = vmatprep.subr.mxu0 0.0
    %3702 = vmatpush1.msra.mxu0 0.0
    %3703 = vmatprep.subr.mxu0 0.0
    %3704 = vmatpush1.msra.mxu0 0.0
    %3705 = vmatprep.subr.mxu0 0.0
    %3706 = vmatpush1.msra.mxu0 0.0
    %3707 = vmatprep.subr.mxu0 0.0
    %3708 = vmatpush1.msra.mxu0 0.0
    %3709 = vmatprep.subr.mxu0 0.0
    %3710 = vmatpush1.msra.mxu0 0.0
    %3711 = vmatprep.subr.mxu0 0.0
    %3712 = vmatpush1.msra.mxu0 0.0
    %3713 = vmatprep.subr.mxu0 0.0
    %3714 = vmatpush1.msra.mxu0 0.0
    %3715 = vmatprep.subr.mxu0 0.0
    %3716 = vmatpush1.msra.mxu0 0.0
    %3717 = vmatprep.subr.mxu0 0.0
    %3718 = vmatpush1.msra.mxu0 0.0
    %3719 = vmatprep.subr.mxu0 0.0
    %3720 = vmatpush1.msra.mxu0 0.0
    %3721 = vmatprep.subr.mxu0 0.0
    %3722 = vmatpush1.msra.mxu0 0.0
    %3723 = vmatprep.subr.mxu0 0.0
    %3724 = vmatpush1.msra.mxu0 0.0
    %3725 = vmatprep.subr.mxu0 0.0
    %3726 = vmatpush1.msra.mxu0 0.0
    %3727 = vmatprep.subr.mxu0 0.0
    %3728 = vmatpush1.msra.mxu0 0.0
    %3729 = vmatprep.subr.mxu0 0.0
    %3730 = vmatpush1.msra.mxu0 0.0
    %3731 = vmatprep.subr.mxu0 0.0
    %3732 = vmatpush1.msra.mxu0 0.0
    %3733 = vmatprep.subr.mxu0 0.0
    %3734 = vmatpush1.msra.mxu0 0.0
    %3735 = vmatprep.subr.mxu0 0.0
    %3736 = vmatpush1.msra.mxu0 0.0
    %3737 = vmatprep.subr.mxu0 0.0
    %3738 = vmatpush1.msra.mxu0 0.0
    %3739 = vmatprep.subr.mxu0 0.0
    %3740 = vmatpush1.msra.mxu0 0.0
    %3741 = vmatprep.subr.mxu0 0.0
    %3742 = vmatpush1.msra.mxu0 0.0
    %3743 = vmatprep.mubr.f32.mxu0 0.0
    %3744 = vmatmul.mubr.f32.gmra.mrb[0].mxu0 %v3677
    %v3745 = vpop.f32.mrb[0].mxu0
    %v3746 = vadd.f32 %v1702, %v3745
    %v3747 = vpop.f32.mrb[0].mxu0
    %3748 = vdwg.mxu0
    %v3749 = vxor.u32 %v3746, 2147483648
    %v3750 = vmul.f32 %v3749, 1.442695
    %v3751 = vpow.pop %v3750
    %v3752 = vadd.f32 %v3751, 1.0
    %v3753 = vrcp.pop %v3752
    %v3754 = vmul.f32 1.0, %v3753
    %v3755 = vtanh.pop %v3746
    %v3756 = vmul.f32 %v3754, %v3345
    %3758 = vrot.lane.b32.xlu0 %v3755, 32
    %v3759 = vpop.permute.xlu0 %3758
    %v3761 = vmul.f32 %v3754, %v3759
    %3763 = vrot.lane.b32.xlu0 %v3761, 32
    %v3764 = vpop.permute.xlu0 %3763
    %v3766 = vadd.f32 %v3756, %v3764
    %v3767 = vtanh.pop %v3766
    %3769 = vrot.lane.b32.xlu0 %v3767, 32
    %v3770 = vpop.permute.xlu0 %3769
    %v3772 = vmul.f32 %v3754, %v3770
    %3774 = vrot.lane.b32.xlu0 %v3457, 64
    %v3775 = vpop.permute.xlu0 %3774
    %3778 = vrot.lane.b32.xlu0 %v3562, 96
    %v3779 = vpop.permute.xlu0 %3778
    %v3781 = vsel %vm256, %v3775, %v3779
    %v3783 = vsel %vm461, %v3781, 0
    %3785 = vmatprep.subr.mxu0 0.0
    %3786 = vmatpush1.msra.mxu0 %v72
    %3787 = vmatprep.subr.mxu0 0.0
    %3788 = vmatpush1.msra.mxu0 %v73
    %3789 = vmatprep.subr.mxu0 0.0
    %3790 = vmatpush1.msra.mxu0 %v74
    %3791 = vmatprep.subr.mxu0 0.0
    %3792 = vmatpush1.msra.mxu0 %v75
    %3793 = vmatprep.subr.mxu0 0.0
    %3794 = vmatpush1.msra.mxu0 %v76
    %3795 = vmatprep.subr.mxu0 0.0
    %3796 = vmatpush1.msra.mxu0 %v77
    %3797 = vmatprep.subr.mxu0 0.0
    %3798 = vmatpush1.msra.mxu0 %v78
    %3799 = vmatprep.subr.mxu0 0.0
    %3800 = vmatpush1.msra.mxu0 %v79
    %3801 = vmatprep.subr.mxu0 0.0
    %3802 = vmatpush1.msra.mxu0 0.0
    %3803 = vmatprep.subr.mxu0 0.0
    %3804 = vmatpush1.msra.mxu0 0.0
    %3805 = vmatprep.subr.mxu0 0.0
    %3806 = vmatpush1.msra.mxu0 0.0
    %3807 = vmatprep.subr.mxu0 0.0
    %3808 = vmatpush1.msra.mxu0 0.0
    %3809 = vmatprep.subr.mxu0 0.0
    %3810 = vmatpush1.msra.mxu0 0.0
    %3811 = vmatprep.subr.mxu0 0.0
    %3812 = vmatpush1.msra.mxu0 0.0
    %3813 = vmatprep.subr.mxu0 0.0
    %3814 = vmatpush1.msra.mxu0 0.0
    %3815 = vmatprep.subr.mxu0 0.0
    %3816 = vmatpush1.msra.mxu0 0.0
    %3817 = vmatprep.subr.mxu0 0.0
    %3818 = vmatpush1.msra.mxu0 0.0
    %3819 = vmatprep.subr.mxu0 0.0
    %3820 = vmatpush1.msra.mxu0 0.0
    %3821 = vmatprep.subr.mxu0 0.0
    %3822 = vmatpush1.msra.mxu0 0.0
    %3823 = vmatprep.subr.mxu0 0.0
    %3824 = vmatpush1.msra.mxu0 0.0
    %3825 = vmatprep.subr.mxu0 0.0
    %3826 = vmatpush1.msra.mxu0 0.0
    %3827 = vmatprep.subr.mxu0 0.0
    %3828 = vmatpush1.msra.mxu0 0.0
    %3829 = vmatprep.subr.mxu0 0.0
    %3830 = vmatpush1.msra.mxu0 0.0
    %3831 = vmatprep.subr.mxu0 0.0
    %3832 = vmatpush1.msra.mxu0 0.0
    %3833 = vmatprep.subr.mxu0 0.0
    %3834 = vmatpush1.msra.mxu0 0.0
    %3835 = vmatprep.subr.mxu0 0.0
    %3836 = vmatpush1.msra.mxu0 0.0
    %3837 = vmatprep.subr.mxu0 0.0
    %3838 = vmatpush1.msra.mxu0 0.0
    %3839 = vmatprep.subr.mxu0 0.0
    %3840 = vmatpush1.msra.mxu0 0.0
    %3841 = vmatprep.subr.mxu0 0.0
    %3842 = vmatpush1.msra.mxu0 0.0
    %3843 = vmatprep.subr.mxu0 0.0
    %3844 = vmatpush1.msra.mxu0 0.0
    %3845 = vmatprep.subr.mxu0 0.0
    %3846 = vmatpush1.msra.mxu0 0.0
    %3847 = vmatprep.subr.mxu0 0.0
    %3848 = vmatpush1.msra.mxu0 0.0
    %3849 = vmatprep.mubr.f32.mxu0 0.0
    %3850 = vmatmul.mubr.f32.gmra.mrb[0].mxu0 %v3783
    %v3851 = vpop.f32.mrb[0].mxu0
    %v3852 = vadd.f32 %v769, %v3851
    %v3853 = vpop.f32.mrb[0].mxu0
    %3854 = vdwg.mxu0
    %v3855 = vxor.u32 %v3852, 2147483648
    %v3856 = vmul.f32 %v3855, 1.442695
    %v3857 = vpow.pop %v3856
    %v3858 = vadd.f32 %v3857, 1.0
    %v3859 = vrcp.pop %v3858
    %v3860 = vmul.f32 1.0, %v3859
    %v3861 = vtanh.pop %v3852
    %v3862 = vmul.f32 %v3860, %v3556
    %3864 = vrot.lane.b32.xlu0 %v3861, 32
    %v3865 = vpop.permute.xlu0 %3864
    %v3867 = vmul.f32 %v3860, %v3865
    %3869 = vrot.lane.b32.xlu0 %v3867, 32
    %v3870 = vpop.permute.xlu0 %3869
    %v3872 = vadd.f32 %v3862, %v3870
    %v3873 = vtanh.pop %v3872
    %3875 = vrot.lane.b32.xlu0 %v3873, 32
    %v3876 = vpop.permute.xlu0 %3875
    %v3878 = vmul.f32 %v3860, %v3876
    %3879 = vrot.lane.b32.xlu0 %v3562, 64
    %v3880 = vpop.permute.xlu0 %3879
    %3883 = vrot.lane.b32.xlu0 %v3667, 96
    %v3884 = vpop.permute.xlu0 %3883
    %v3886 = vsel %vm256, %v3880, %v3884
    %v3888 = vsel %vm461, %v3886, 0
    %3890 = vmatprep.subr.mxu0 0.0
    %3891 = vmatpush1.msra.mxu0 %v81
    %3892 = vmatprep.subr.mxu0 0.0
    %3893 = vmatpush1.msra.mxu0 %v82
    %3894 = vmatprep.subr.mxu0 0.0
    %3895 = vmatpush1.msra.mxu0 %v83
    %3896 = vmatprep.subr.mxu0 0.0
    %3897 = vmatpush1.msra.mxu0 %v84
    %3898 = vmatprep.subr.mxu0 0.0
    %3899 = vmatpush1.msra.mxu0 %v85
    %3900 = vmatprep.subr.mxu0 0.0
    %3901 = vmatpush1.msra.mxu0 %v86
    %3902 = vmatprep.subr.mxu0 0.0
    %3903 = vmatpush1.msra.mxu0 %v87
    %3904 = vmatprep.subr.mxu0 0.0
    %3905 = vmatpush1.msra.mxu0 %v88
    %3906 = vmatprep.subr.mxu0 0.0
    %3907 = vmatpush1.msra.mxu0 0.0
    %3908 = vmatprep.subr.mxu0 0.0
    %3909 = vmatpush1.msra.mxu0 0.0
    %3910 = vmatprep.subr.mxu0 0.0
    %3911 = vmatpush1.msra.mxu0 0.0
    %3912 = vmatprep.subr.mxu0 0.0
    %3913 = vmatpush1.msra.mxu0 0.0
    %3914 = vmatprep.subr.mxu0 0.0
    %3915 = vmatpush1.msra.mxu0 0.0
    %3916 = vmatprep.subr.mxu0 0.0
    %3917 = vmatpush1.msra.mxu0 0.0
    %3918 = vmatprep.subr.mxu0 0.0
    %3919 = vmatpush1.msra.mxu0 0.0
    %3920 = vmatprep.subr.mxu0 0.0
    %3921 = vmatpush1.msra.mxu0 0.0
    %3922 = vmatprep.subr.mxu0 0.0
    %3923 = vmatpush1.msra.mxu0 0.0
    %3924 = vmatprep.subr.mxu0 0.0
    %3925 = vmatpush1.msra.mxu0 0.0
    %3926 = vmatprep.subr.mxu0 0.0
    %3927 = vmatpush1.msra.mxu0 0.0
    %3928 = vmatprep.subr.mxu0 0.0
    %3929 = vmatpush1.msra.mxu0 0.0
    %3930 = vmatprep.subr.mxu0 0.0
    %3931 = vmatpush1.msra.mxu0 0.0
    %3932 = vmatprep.subr.mxu0 0.0
    %3933 = vmatpush1.msra.mxu0 0.0
    %3934 = vmatprep.subr.mxu0 0.0
    %3935 = vmatpush1.msra.mxu0 0.0
    %3936 = vmatprep.subr.mxu0 0.0
    %3937 = vmatpush1.msra.mxu0 0.0
    %3938 = vmatprep.subr.mxu0 0.0
    %3939 = vmatpush1.msra.mxu0 0.0
    %3940 = vmatprep.subr.mxu0 0.0
    %3941 = vmatpush1.msra.mxu0 0.0
    %3942 = vmatprep.subr.mxu0 0.0
    %3943 = vmatpush1.msra.mxu0 0.0
    %3944 = vmatprep.subr.mxu0 0.0
    %3945 = vmatpush1.msra.mxu0 0.0
    %3946 = vmatprep.subr.mxu0 0.0
    %3947 = vmatpush1.msra.mxu0 0.0
    %3948 = vmatprep.subr.mxu0 0.0
    %3949 = vmatpush1.msra.mxu0 0.0
    %3950 = vmatprep.subr.mxu0 0.0
    %3951 = vmatpush1.msra.mxu0 0.0
    %3952 = vmatprep.subr.mxu0 0.0
    %3953 = vmatpush1.msra.mxu0 0.0
    %3954 = vmatprep.mubr.f32.mxu0 0.0
    %3955 = vmatmul.mubr.f32.gmra.mrb[0].mxu0 %v3888
    %v3956 = vpop.f32.mrb[0].mxu0
    %v3957 = vadd.f32 %v1183, %v3956
    %v3958 = vpop.f32.mrb[0].mxu0
    %3959 = vdwg.mxu0
    %v3960 = vxor.u32 %v3957, 2147483648
    %v3961 = vmul.f32 %v3960, 1.442695
    %v3962 = vpow.pop %v3961
    %v3963 = vadd.f32 %v3962, 1.0
    %v3964 = vrcp.pop %v3963
    %v3965 = vmul.f32 1.0, %v3964
    %v3966 = vtanh.pop %v3957
    %v3967 = vmul.f32 %v3965, %v3661
    %3969 = vrot.lane.b32.xlu0 %v3966, 32
    %v3970 = vpop.permute.xlu0 %3969
    %v3972 = vmul.f32 %v3965, %v3970
    %3974 = vrot.lane.b32.xlu0 %v3972, 32
    %v3975 = vpop.permute.xlu0 %3974
    %v3977 = vadd.f32 %v3967, %v3975
    %v3978 = vtanh.pop %v3977
    %3980 = vrot.lane.b32.xlu0 %v3978, 32
    %v3981 = vpop.permute.xlu0 %3980
    %v3983 = vmul.f32 %v3965, %v3981
    %3984 = vrot.lane.b32.xlu0 %v3667, 64
    %v3985 = vpop.permute.xlu0 %3984
    %3988 = vrot.lane.b32.xlu0 %v3772, 96
    %v3989 = vpop.permute.xlu0 %3988
    %v3991 = vsel %vm256, %v3985, %v3989
    %v3993 = vsel %vm461, %v3991, 0
    %3995 = vmatprep.subr.mxu0 0.0
    %3996 = vmatpush1.msra.mxu0 %v90
    %3997 = vmatprep.subr.mxu0 0.0
    %3998 = vmatpush1.msra.mxu0 %v91
    %3999 = vmatprep.subr.mxu0 0.0
    %4000 = vmatpush1.msra.mxu0 %v92
    %4001 = vmatprep.subr.mxu0 0.0
    %4002 = vmatpush1.msra.mxu0 %v93
    %4003 = vmatprep.subr.mxu0 0.0
    %4004 = vmatpush1.msra.mxu0 %v94
    %4005 = vmatprep.subr.mxu0 0.0
    %4006 = vmatpush1.msra.mxu0 %v95
    %4007 = vmatprep.subr.mxu0 0.0
    %4008 = vmatpush1.msra.mxu0 %v96
    %4009 = vmatprep.subr.mxu0 0.0
    %4010 = vmatpush1.msra.mxu0 %v97
    %4011 = vmatprep.subr.mxu0 0.0
    %4012 = vmatpush1.msra.mxu0 0.0
    %4013 = vmatprep.subr.mxu0 0.0
    %4014 = vmatpush1.msra.mxu0 0.0
    %4015 = vmatprep.subr.mxu0 0.0
    %4016 = vmatpush1.msra.mxu0 0.0
    %4017 = vmatprep.subr.mxu0 0.0
    %4018 = vmatpush1.msra.mxu0 0.0
    %4019 = vmatprep.subr.mxu0 0.0
    %4020 = vmatpush1.msra.mxu0 0.0
    %4021 = vmatprep.subr.mxu0 0.0
    %4022 = vmatpush1.msra.mxu0 0.0
    %4023 = vmatprep.subr.mxu0 0.0
    %4024 = vmatpush1.msra.mxu0 0.0
    %4025 = vmatprep.subr.mxu0 0.0
    %4026 = vmatpush1.msra.mxu0 0.0
    %4027 = vmatprep.subr.mxu0 0.0
    %4028 = vmatpush1.msra.mxu0 0.0
    %4029 = vmatprep.subr.mxu0 0.0
    %4030 = vmatpush1.msra.mxu0 0.0
    %4031 = vmatprep.subr.mxu0 0.0
    %4032 = vmatpush1.msra.mxu0 0.0
    %4033 = vmatprep.subr.mxu0 0.0
    %4034 = vmatpush1.msra.mxu0 0.0
    %4035 = vmatprep.subr.mxu0 0.0
    %4036 = vmatpush1.msra.mxu0 0.0
    %4037 = vmatprep.subr.mxu0 0.0
    %4038 = vmatpush1.msra.mxu0 0.0
    %4039 = vmatprep.subr.mxu0 0.0
    %4040 = vmatpush1.msra.mxu0 0.0
    %4041 = vmatprep.subr.mxu0 0.0
    %4042 = vmatpush1.msra.mxu0 0.0
    %4043 = vmatprep.subr.mxu0 0.0
    %4044 = vmatpush1.msra.mxu0 0.0
    %4045 = vmatprep.subr.mxu0 0.0
    %4046 = vmatpush1.msra.mxu0 0.0
    %4047 = vmatprep.subr.mxu0 0.0
    %4048 = vmatpush1.msra.mxu0 0.0
    %4049 = vmatprep.subr.mxu0 0.0
    %4050 = vmatpush1.msra.mxu0 0.0
    %4051 = vmatprep.subr.mxu0 0.0
    %4052 = vmatpush1.msra.mxu0 0.0
    %4053 = vmatprep.subr.mxu0 0.0
    %4054 = vmatpush1.msra.mxu0 0.0
    %4055 = vmatprep.subr.mxu0 0.0
    %4056 = vmatpush1.msra.mxu0 0.0
    %4057 = vmatprep.subr.mxu0 0.0
    %4058 = vmatpush1.msra.mxu0 0.0
    %4059 = vmatprep.mubr.f32.mxu0 0.0
    %4060 = vmatmul.mubr.f32.gmra.mrb[0].mxu0 %v3993
    %v4061 = vpop.f32.mrb[0].mxu0
    %v4062 = vadd.f32 %v1702, %v4061
    %v4063 = vpop.f32.mrb[0].mxu0
    %4064 = vdwg.mxu0
    %v4065 = vxor.u32 %v4062, 2147483648
    %v4066 = vmul.f32 %v4065, 1.442695
    %v4067 = vpow.pop %v4066
    %v4068 = vadd.f32 %v4067, 1.0
    %v4069 = vrcp.pop %v4068
    %v4070 = vmul.f32 1.0, %v4069
    %v4071 = vtanh.pop %v4062
    %v4072 = vmul.f32 %v4070, %v3766
    %4074 = vrot.lane.b32.xlu0 %v4071, 32
    %v4075 = vpop.permute.xlu0 %4074
    %v4077 = vmul.f32 %v4070, %v4075
    %4079 = vrot.lane.b32.xlu0 %v4077, 32
    %v4080 = vpop.permute.xlu0 %4079
    %v4082 = vadd.f32 %v4072, %v4080
    %v4083 = vtanh.pop %v4082
    %4085 = vrot.lane.b32.xlu0 %v4083, 32
    %v4086 = vpop.permute.xlu0 %4085
    %v4088 = vmul.f32 %v4070, %v4086
    %4090 = vrot.lane.b32.xlu0 %v3878, 64
    %v4091 = vpop.permute.xlu0 %4090
    %4094 = vrot.lane.b32.xlu0 %v3983, 96
    %v4095 = vpop.permute.xlu0 %4094
    %v4097 = vsel %vm256, %v4091, %v4095
    %v4099 = vsel %vm461, %v4097, 0
    %4101 = vmatprep.subr.mxu0 0.0
    %4102 = vmatpush1.msra.mxu0 %v81
    %4103 = vmatprep.subr.mxu0 0.0
    %4104 = vmatpush1.msra.mxu0 %v82
    %4105 = vmatprep.subr.mxu0 0.0
    %4106 = vmatpush1.msra.mxu0 %v83
    %4107 = vmatprep.subr.mxu0 0.0
    %4108 = vmatpush1.msra.mxu0 %v84
    %4109 = vmatprep.subr.mxu0 0.0
    %4110 = vmatpush1.msra.mxu0 %v85
    %4111 = vmatprep.subr.mxu0 0.0
    %4112 = vmatpush1.msra.mxu0 %v86
    %4113 = vmatprep.subr.mxu0 0.0
    %4114 = vmatpush1.msra.mxu0 %v87
    %4115 = vmatprep.subr.mxu0 0.0
    %4116 = vmatpush1.msra.mxu0 %v88
    %4117 = vmatprep.subr.mxu0 0.0
    %4118 = vmatpush1.msra.mxu0 0.0
    %4119 = vmatprep.subr.mxu0 0.0
    %4120 = vmatpush1.msra.mxu0 0.0
    %4121 = vmatprep.subr.mxu0 0.0
    %4122 = vmatpush1.msra.mxu0 0.0
    %4123 = vmatprep.subr.mxu0 0.0
    %4124 = vmatpush1.msra.mxu0 0.0
    %4125 = vmatprep.subr.mxu0 0.0
    %4126 = vmatpush1.msra.mxu0 0.0
    %4127 = vmatprep.subr.mxu0 0.0
    %4128 = vmatpush1.msra.mxu0 0.0
    %4129 = vmatprep.subr.mxu0 0.0
    %4130 = vmatpush1.msra.mxu0 0.0
    %4131 = vmatprep.subr.mxu0 0.0
    %4132 = vmatpush1.msra.mxu0 0.0
    %4133 = vmatprep.subr.mxu0 0.0
    %4134 = vmatpush1.msra.mxu0 0.0
    %4135 = vmatprep.subr.mxu0 0.0
    %4136 = vmatpush1.msra.mxu0 0.0
    %4137 = vmatprep.subr.mxu0 0.0
    %4138 = vmatpush1.msra.mxu0 0.0
    %4139 = vmatprep.subr.mxu0 0.0
    %4140 = vmatpush1.msra.mxu0 0.0
    %4141 = vmatprep.subr.mxu0 0.0
    %4142 = vmatpush1.msra.mxu0 0.0
    %4143 = vmatprep.subr.mxu0 0.0
    %4144 = vmatpush1.msra.mxu0 0.0
    %4145 = vmatprep.subr.mxu0 0.0
    %4146 = vmatpush1.msra.mxu0 0.0
    %4147 = vmatprep.subr.mxu0 0.0
    %4148 = vmatpush1.msra.mxu0 0.0
    %4149 = vmatprep.subr.mxu0 0.0
    %4150 = vmatpush1.msra.mxu0 0.0
    %4151 = vmatprep.subr.mxu0 0.0
    %4152 = vmatpush1.msra.mxu0 0.0
    %4153 = vmatprep.subr.mxu0 0.0
    %4154 = vmatpush1.msra.mxu0 0.0
    %4155 = vmatprep.subr.mxu0 0.0
    %4156 = vmatpush1.msra.mxu0 0.0
    %4157 = vmatprep.subr.mxu0 0.0
    %4158 = vmatpush1.msra.mxu0 0.0
    %4159 = vmatprep.subr.mxu0 0.0
    %4160 = vmatpush1.msra.mxu0 0.0
    %4161 = vmatprep.subr.mxu0 0.0
    %4162 = vmatpush1.msra.mxu0 0.0
    %4163 = vmatprep.subr.mxu0 0.0
    %4164 = vmatpush1.msra.mxu0 0.0
    %4165 = vmatprep.mubr.f32.mxu0 0.0
    %4166 = vmatmul.mubr.f32.gmra.mrb[0].mxu0 %v4099
    %v4167 = vpop.f32.mrb[0].mxu0
    %v4168 = vadd.f32 %v1183, %v4167
    %v4169 = vpop.f32.mrb[0].mxu0
    %4170 = vdwg.mxu0
    %v4171 = vxor.u32 %v4168, 2147483648
    %v4172 = vmul.f32 %v4171, 1.442695
    %v4173 = vpow.pop %v4172
    %v4174 = vadd.f32 %v4173, 1.0
    %v4175 = vrcp.pop %v4174
    %v4176 = vmul.f32 1.0, %v4175
    %v4177 = vtanh.pop %v4168
    %v4178 = vmul.f32 %v4176, %v3977
    %4180 = vrot.lane.b32.xlu0 %v4177, 32
    %v4181 = vpop.permute.xlu0 %4180
    %v4183 = vmul.f32 %v4176, %v4181
    %4185 = vrot.lane.b32.xlu0 %v4183, 32
    %v4186 = vpop.permute.xlu0 %4185
    %v4188 = vadd.f32 %v4178, %v4186
    %v4189 = vtanh.pop %v4188
    %4191 = vrot.lane.b32.xlu0 %v4189, 32
    %v4192 = vpop.permute.xlu0 %4191
    %v4194 = vmul.f32 %v4176, %v4192
    %4195 = vrot.lane.b32.xlu0 %v3983, 64
    %v4196 = vpop.permute.xlu0 %4195
    %4199 = vrot.lane.b32.xlu0 %v4088, 96
    %v4200 = vpop.permute.xlu0 %4199
    %v4202 = vsel %vm256, %v4196, %v4200
    %v4204 = vsel %vm461, %v4202, 0
    %4206 = vmatprep.subr.mxu0 0.0
    %4207 = vmatpush1.msra.mxu0 %v90
    %4208 = vmatprep.subr.mxu0 0.0
    %4209 = vmatpush1.msra.mxu0 %v91
    %4210 = vmatprep.subr.mxu0 0.0
    %4211 = vmatpush1.msra.mxu0 %v92
    %4212 = vmatprep.subr.mxu0 0.0
    %4213 = vmatpush1.msra.mxu0 %v93
    %4214 = vmatprep.subr.mxu0 0.0
    %4215 = vmatpush1.msra.mxu0 %v94
    %4216 = vmatprep.subr.mxu0 0.0
    %4217 = vmatpush1.msra.mxu0 %v95
    %4218 = vmatprep.subr.mxu0 0.0
    %4219 = vmatpush1.msra.mxu0 %v96
    %4220 = vmatprep.subr.mxu0 0.0
    %4221 = vmatpush1.msra.mxu0 %v97
    %4222 = vmatprep.subr.mxu0 0.0
    %4223 = vmatpush1.msra.mxu0 0.0
    %4224 = vmatprep.subr.mxu0 0.0
    %4225 = vmatpush1.msra.mxu0 0.0
    %4226 = vmatprep.subr.mxu0 0.0
    %4227 = vmatpush1.msra.mxu0 0.0
    %4228 = vmatprep.subr.mxu0 0.0
    %4229 = vmatpush1.msra.mxu0 0.0
    %4230 = vmatprep.subr.mxu0 0.0
    %4231 = vmatpush1.msra.mxu0 0.0
    %4232 = vmatprep.subr.mxu0 0.0
    %4233 = vmatpush1.msra.mxu0 0.0
    %4234 = vmatprep.subr.mxu0 0.0
    %4235 = vmatpush1.msra.mxu0 0.0
    %4236 = vmatprep.subr.mxu0 0.0
    %4237 = vmatpush1.msra.mxu0 0.0
    %4238 = vmatprep.subr.mxu0 0.0
    %4239 = vmatpush1.msra.mxu0 0.0
    %4240 = vmatprep.subr.mxu0 0.0
    %4241 = vmatpush1.msra.mxu0 0.0
    %4242 = vmatprep.subr.mxu0 0.0
    %4243 = vmatpush1.msra.mxu0 0.0
    %4244 = vmatprep.subr.mxu0 0.0
    %4245 = vmatpush1.msra.mxu0 0.0
    %4246 = vmatprep.subr.mxu0 0.0
    %4247 = vmatpush1.msra.mxu0 0.0
    %4248 = vmatprep.subr.mxu0 0.0
    %4249 = vmatpush1.msra.mxu0 0.0
    %4250 = vmatprep.subr.mxu0 0.0
    %4251 = vmatpush1.msra.mxu0 0.0
    %4252 = vmatprep.subr.mxu0 0.0
    %4253 = vmatpush1.msra.mxu0 0.0
    %4254 = vmatprep.subr.mxu0 0.0
    %4255 = vmatpush1.msra.mxu0 0.0
    %4256 = vmatprep.subr.mxu0 0.0
    %4257 = vmatpush1.msra.mxu0 0.0
    %4258 = vmatprep.subr.mxu0 0.0
    %4259 = vmatpush1.msra.mxu0 0.0
    %4260 = vmatprep.subr.mxu0 0.0
    %4261 = vmatpush1.msra.mxu0 0.0
    %4262 = vmatprep.subr.mxu0 0.0
    %4263 = vmatpush1.msra.mxu0 0.0
    %4264 = vmatprep.subr.mxu0 0.0
    %4265 = vmatpush1.msra.mxu0 0.0
    %4266 = vmatprep.subr.mxu0 0.0
    %4267 = vmatpush1.msra.mxu0 0.0
    %4268 = vmatprep.subr.mxu0 0.0
    %4269 = vmatpush1.msra.mxu0 0.0
    %4270 = vmatprep.mubr.f32.mxu0 0.0
    %4271 = vmatmul.mubr.f32.gmra.mrb[0].mxu0 %v4204
    %v4272 = vpop.f32.mrb[0].mxu0
    %v4273 = vadd.f32 %v1702, %v4272
    %v4274 = vpop.f32.mrb[0].mxu0
    %4275 = vdwg.mxu0
    %v4276 = vxor.u32 %v4273, 2147483648
    %v4277 = vmul.f32 %v4276, 1.442695
    %v4278 = vpow.pop %v4277
    %v4279 = vadd.f32 %v4278, 1.0
    %v4280 = vrcp.pop %v4279
    %v4281 = vmul.f32 1.0, %v4280
    %v4282 = vtanh.pop %v4273
    %v4283 = vmul.f32 %v4281, %v4082
    %4285 = vrot.lane.b32.xlu0 %v4282, 32
    %v4286 = vpop.permute.xlu0 %4285
    %v4288 = vmul.f32 %v4281, %v4286
    %4290 = vrot.lane.b32.xlu0 %v4288, 32
    %v4291 = vpop.permute.xlu0 %4290
    %v4293 = vadd.f32 %v4283, %v4291
    %v4294 = vtanh.pop %v4293
    %4296 = vrot.lane.b32.xlu0 %v4294, 32
    %v4297 = vpop.permute.xlu0 %4296
    %v4299 = vmul.f32 %v4281, %v4297
    %4301 = vrot.lane.b32.xlu0 %v4194, 64
    %v4302 = vpop.permute.xlu0 %4301
    %4305 = vrot.lane.b32.xlu0 %v4299, 96
    %v4306 = vpop.permute.xlu0 %4305
    %v4308 = vsel %vm256, %v4302, %v4306
    %v4310 = vsel %vm461, %v4308, 0
    %4312 = vmatprep.subr.mxu0 0.0
    %4313 = vmatpush1.msra.mxu0 %v90
    %4314 = vmatprep.subr.mxu0 0.0
    %4315 = vmatpush1.msra.mxu0 %v91
    %4316 = vmatprep.subr.mxu0 0.0
    %4317 = vmatpush1.msra.mxu0 %v92
    %4318 = vmatprep.subr.mxu0 0.0
    %4319 = vmatpush1.msra.mxu0 %v93
    %4320 = vmatprep.subr.mxu0 0.0
    %4321 = vmatpush1.msra.mxu0 %v94
    %4322 = vmatprep.subr.mxu0 0.0
    %4323 = vmatpush1.msra.mxu0 %v95
    %4324 = vmatprep.subr.mxu0 0.0
    %4325 = vmatpush1.msra.mxu0 %v96
    %4326 = vmatprep.subr.mxu0 0.0
    %4327 = vmatpush1.msra.mxu0 %v97
    %4328 = vmatprep.subr.mxu0 0.0
    %4329 = vmatpush1.msra.mxu0 0.0
    %4330 = vmatprep.subr.mxu0 0.0
    %4331 = vmatpush1.msra.mxu0 0.0
    %4332 = vmatprep.subr.mxu0 0.0
    %4333 = vmatpush1.msra.mxu0 0.0
    %4334 = vmatprep.subr.mxu0 0.0
    %4335 = vmatpush1.msra.mxu0 0.0
    %4336 = vmatprep.subr.mxu0 0.0
    %4337 = vmatpush1.msra.mxu0 0.0
    %4338 = vmatprep.subr.mxu0 0.0
    %4339 = vmatpush1.msra.mxu0 0.0
    %4340 = vmatprep.subr.mxu0 0.0
    %4341 = vmatpush1.msra.mxu0 0.0
    %4342 = vmatprep.subr.mxu0 0.0
    %4343 = vmatpush1.msra.mxu0 0.0
    %4344 = vmatprep.subr.mxu0 0.0
    %4345 = vmatpush1.msra.mxu0 0.0
    %4346 = vmatprep.subr.mxu0 0.0
    %4347 = vmatpush1.msra.mxu0 0.0
    %4348 = vmatprep.subr.mxu0 0.0
    %4349 = vmatpush1.msra.mxu0 0.0
    %4350 = vmatprep.subr.mxu0 0.0
    %4351 = vmatpush1.msra.mxu0 0.0
    %4352 = vmatprep.subr.mxu0 0.0
    %4353 = vmatpush1.msra.mxu0 0.0
    %4354 = vmatprep.subr.mxu0 0.0
    %4355 = vmatpush1.msra.mxu0 0.0
    %4356 = vmatprep.subr.mxu0 0.0
    %4357 = vmatpush1.msra.mxu0 0.0
    %4358 = vmatprep.subr.mxu0 0.0
    %4359 = vmatpush1.msra.mxu0 0.0
    %4360 = vmatprep.subr.mxu0 0.0
    %4361 = vmatpush1.msra.mxu0 0.0
    %4362 = vmatprep.subr.mxu0 0.0
    %4363 = vmatpush1.msra.mxu0 0.0
    %4364 = vmatprep.subr.mxu0 0.0
    %4365 = vmatpush1.msra.mxu0 0.0
    %4366 = vmatprep.subr.mxu0 0.0
    %4367 = vmatpush1.msra.mxu0 0.0
    %4368 = vmatprep.subr.mxu0 0.0
    %4369 = vmatpush1.msra.mxu0 0.0
    %4370 = vmatprep.subr.mxu0 0.0
    %4371 = vmatpush1.msra.mxu0 0.0
    %4372 = vmatprep.subr.mxu0 0.0
    %4373 = vmatpush1.msra.mxu0 0.0
    %4374 = vmatprep.subr.mxu0 0.0
    %4375 = vmatpush1.msra.mxu0 0.0
    %4376 = vmatprep.mubr.f32.mxu0 0.0
    %4377 = vmatmul.mubr.f32.gmra.mrb[0].mxu0 %v4310
    %v4378 = vpop.f32.mrb[0].mxu0
    %v4379 = vadd.f32 %v1702, %v4378
    %v4380 = vpop.f32.mrb[0].mxu0
    %4381 = vdwg.mxu0
    %v4382 = vxor.u32 %v4379, 2147483648
    %v4383 = vmul.f32 %v4382, 1.442695
    %v4384 = vpow.pop %v4383
    %v4385 = vadd.f32 %v4384, 1.0
    %v4386 = vrcp.pop %v4385
    %v4387 = vmul.f32 1.0, %v4386
    %v4388 = vtanh.pop %v4379
    %v4389 = vmul.f32 %v4387, %v4293
    %4391 = vrot.lane.b32.xlu0 %v4388, 32
    %v4392 = vpop.permute.xlu0 %4391
    %v4394 = vmul.f32 %v4387, %v4392
    %4396 = vrot.lane.b32.xlu0 %v4394, 32
    %v4397 = vpop.permute.xlu0 %4396
    %v4399 = vadd.f32 %v4389, %v4397
    %v4400 = vtanh.pop %v4399
    %4402 = vrot.lane.b32.xlu0 %v4400, 32
    %v4403 = vpop.permute.xlu0 %4402
    %v4405 = vmul.f32 %v4387, %v4403
    %v4406 = vld [vmem:[%s1] sm:$0xff]
    %v4407 = vlaneseq
    %v4408 = vand.u32 %v4407, 127
    %vm4409 = vcmp.eq.s32.totalorder %v4408, 0
    %v4410 = vld [vmem:[%s5] sm:$0xff]
    %v4411 = vld [vmem:[%s5 + $0x8] sm:$0xff]
    %v4412 = vld [vmem:[%s5 + $0x10] sm:$0xff]
    %v4413 = vld [vmem:[%s5 + $0x18] sm:$0xff]
    %v4414 = vld [vmem:[%s6] sm:$0x1]
    %v4415 = vld [vmem:[%s7] sm:$0xff]
    %v4416 = vld [vmem:[%s7 + $0x8] sm:$0xff]
    %v4417 = vld [vmem:[%s7 + $0x10] sm:$0xff]
    %v4418 = vld [vmem:[%s7 + $0x18] sm:$0xff]
    %v4419 = vld [vmem:[%s8] sm:$0x1]
    %v4420 = vld [vmem:[%s9] sm:$0x1]
    %v4421 = vld [vmem:[#allocation2] sm:$0x1]
    %4422 = vrot.lane.b32.xlu0 %v2933, 96
    %v4423 = vpop.permute.xlu0 %4422
    %v4425 = vsel %vm256, %v4406, %v4423
    %v4427 = vsel %vm461, %v4425, 0
    %4429 = vmatprep.subr.mxu0 0.0
    %4430 = vmatpush1.msra.mxu0 %v54
    %4431 = vmatprep.subr.mxu0 0.0
    %4432 = vmatpush1.msra.mxu0 %v55
    %4433 = vmatprep.subr.mxu0 0.0
    %4434 = vmatpush1.msra.mxu0 %v56
    %4435 = vmatprep.subr.mxu0 0.0
    %4436 = vmatpush1.msra.mxu0 %v57
    %4437 = vmatprep.subr.mxu0 0.0
    %4438 = vmatpush1.msra.mxu0 %v58
    %4439 = vmatprep.subr.mxu0 0.0
    %4440 = vmatpush1.msra.mxu0 %v59
    %4441 = vmatprep.subr.mxu0 0.0
    %4442 = vmatpush1.msra.mxu0 %v60
    %4443 = vmatprep.subr.mxu0 0.0
    %4444 = vmatpush1.msra.mxu0 %v61
    %4445 = vmatprep.subr.mxu0 0.0
    %4446 = vmatpush1.msra.mxu0 0.0
    %4447 = vmatprep.subr.mxu0 0.0
    %4448 = vmatpush1.msra.mxu0 0.0
    %4449 = vmatprep.subr.mxu0 0.0
    %4450 = vmatpush1.msra.mxu0 0.0
    %4451 = vmatprep.subr.mxu0 0.0
    %4452 = vmatpush1.msra.mxu0 0.0
    %4453 = vmatprep.subr.mxu0 0.0
    %4454 = vmatpush1.msra.mxu0 0.0
    %4455 = vmatprep.subr.mxu0 0.0
    %4456 = vmatpush1.msra.mxu0 0.0
    %4457 = vmatprep.subr.mxu0 0.0
    %4458 = vmatpush1.msra.mxu0 0.0
    %4459 = vmatprep.subr.mxu0 0.0
    %4460 = vmatpush1.msra.mxu0 0.0
    %4461 = vmatprep.subr.mxu0 0.0
    %4462 = vmatpush1.msra.mxu0 0.0
    %4463 = vmatprep.subr.mxu0 0.0
    %4464 = vmatpush1.msra.mxu0 0.0
    %4465 = vmatprep.subr.mxu0 0.0
    %4466 = vmatpush1.msra.mxu0 0.0
    %4467 = vmatprep.subr.mxu0 0.0
    %4468 = vmatpush1.msra.mxu0 0.0
    %4469 = vmatprep.subr.mxu0 0.0
    %4470 = vmatpush1.msra.mxu0 0.0
    %4471 = vmatprep.subr.mxu0 0.0
    %4472 = vmatpush1.msra.mxu0 0.0
    %4473 = vmatprep.subr.mxu0 0.0
    %4474 = vmatpush1.msra.mxu0 0.0
    %4475 = vmatprep.subr.mxu0 0.0
    %4476 = vmatpush1.msra.mxu0 0.0
    %4477 = vmatprep.subr.mxu0 0.0
    %4478 = vmatpush1.msra.mxu0 0.0
    %4479 = vmatprep.subr.mxu0 0.0
    %4480 = vmatpush1.msra.mxu0 0.0
    %4481 = vmatprep.subr.mxu0 0.0
    %4482 = vmatpush1.msra.mxu0 0.0
    %4483 = vmatprep.subr.mxu0 0.0
    %4484 = vmatpush1.msra.mxu0 0.0
    %4485 = vmatprep.subr.mxu0 0.0
    %4486 = vmatpush1.msra.mxu0 0.0
    %4487 = vmatprep.subr.mxu0 0.0
    %4488 = vmatpush1.msra.mxu0 0.0
    %4489 = vmatprep.subr.mxu0 0.0
    %4490 = vmatpush1.msra.mxu0 0.0
    %4491 = vmatprep.subr.mxu0 0.0
    %4492 = vmatpush1.msra.mxu0 0.0
    %4493 = vmatprep.mubr.f32.mxu0 0.0
    %4494 = vmatmul.mubr.f32.gmra.mrb[0].mxu0 %v4427
    %v4495 = vpop.f32.mrb[0].mxu0
    %v4496 = vadd.f32 %v120, %v4495
    %v4497 = vpop.f32.mrb[0].mxu0
    %4498 = vdwg.mxu0
    %v4499 = vxor.u32 %v4496, 2147483648
    %v4500 = vmul.f32 %v4499, 1.442695
    %v4501 = vpow.pop %v4500
    %v4502 = vadd.f32 %v4501, 1.0
    %v4503 = vrcp.pop %v4502
    %v4504 = vmul.f32 1.0, %v4503
    %v4505 = vtanh.pop %v4496
    %v4506 = vmul.f32 %v4504, %v2927
    %4508 = vrot.lane.b32.xlu0 %v4505, 32
    %v4509 = vpop.permute.xlu0 %4508
    %v4511 = vmul.f32 %v4504, %v4509
    %4513 = vrot.lane.b32.xlu0 %v4511, 32
    %v4514 = vpop.permute.xlu0 %4513
    %v4516 = vadd.f32 %v4506, %v4514
    %v4517 = vtanh.pop %v4516
    %4519 = vrot.lane.b32.xlu0 %v4517, 32
    %v4520 = vpop.permute.xlu0 %4519
    %v4522 = vmul.f32 %v4504, %v4520
    %4524 = vrot.lane.b32.xlu0 %v4522, 64
    %v4525 = vpop.permute.xlu0 %4524
    %4527 = vrot.lane.b32.xlu0 %v3457, 96
    %v4528 = vpop.permute.xlu0 %4527
    %v4530 = vsel %vm256, %v4525, %v4528
    %v4532 = vsel %vm461, %v4530, 0
    %4534 = vmatprep.subr.mxu0 0.0
    %4535 = vmatpush1.msra.mxu0 %v63
    %4536 = vmatprep.subr.mxu0 0.0
    %4537 = vmatpush1.msra.mxu0 %v64
    %4538 = vmatprep.subr.mxu0 0.0
    %4539 = vmatpush1.msra.mxu0 %v65
    %4540 = vmatprep.subr.mxu0 0.0
    %4541 = vmatpush1.msra.mxu0 %v66
    %4542 = vmatprep.subr.mxu0 0.0
    %4543 = vmatpush1.msra.mxu0 %v67
    %4544 = vmatprep.subr.mxu0 0.0
    %4545 = vmatpush1.msra.mxu0 %v68
    %4546 = vmatprep.subr.mxu0 0.0
    %4547 = vmatpush1.msra.mxu0 %v69
    %4548 = vmatprep.subr.mxu0 0.0
    %4549 = vmatpush1.msra.mxu0 %v70
    %4550 = vmatprep.subr.mxu0 0.0
    %4551 = vmatpush1.msra.mxu0 0.0
    %4552 = vmatprep.subr.mxu0 0.0
    %4553 = vmatpush1.msra.mxu0 0.0
    %4554 = vmatprep.subr.mxu0 0.0
    %4555 = vmatpush1.msra.mxu0 0.0
    %4556 = vmatprep.subr.mxu0 0.0
    %4557 = vmatpush1.msra.mxu0 0.0
    %4558 = vmatprep.subr.mxu0 0.0
    %4559 = vmatpush1.msra.mxu0 0.0
    %4560 = vmatprep.subr.mxu0 0.0
    %4561 = vmatpush1.msra.mxu0 0.0
    %4562 = vmatprep.subr.mxu0 0.0
    %4563 = vmatpush1.msra.mxu0 0.0
    %4564 = vmatprep.subr.mxu0 0.0
    %4565 = vmatpush1.msra.mxu0 0.0
    %4566 = vmatprep.subr.mxu0 0.0
    %4567 = vmatpush1.msra.mxu0 0.0
    %4568 = vmatprep.subr.mxu0 0.0
    %4569 = vmatpush1.msra.mxu0 0.0
    %4570 = vmatprep.subr.mxu0 0.0
    %4571 = vmatpush1.msra.mxu0 0.0
    %4572 = vmatprep.subr.mxu0 0.0
    %4573 = vmatpush1.msra.mxu0 0.0
    %4574 = vmatprep.subr.mxu0 0.0
    %4575 = vmatpush1.msra.mxu0 0.0
    %4576 = vmatprep.subr.mxu0 0.0
    %4577 = vmatpush1.msra.mxu0 0.0
    %4578 = vmatprep.subr.mxu0 0.0
    %4579 = vmatpush1.msra.mxu0 0.0
    %4580 = vmatprep.subr.mxu0 0.0
    %4581 = vmatpush1.msra.mxu0 0.0
    %4582 = vmatprep.subr.mxu0 0.0
    %4583 = vmatpush1.msra.mxu0 0.0
    %4584 = vmatprep.subr.mxu0 0.0
    %4585 = vmatpush1.msra.mxu0 0.0
    %4586 = vmatprep.subr.mxu0 0.0
    %4587 = vmatpush1.msra.mxu0 0.0
    %4588 = vmatprep.subr.mxu0 0.0
    %4589 = vmatpush1.msra.mxu0 0.0
    %4590 = vmatprep.subr.mxu0 0.0
    %4591 = vmatpush1.msra.mxu0 0.0
    %4592 = vmatprep.subr.mxu0 0.0
    %4593 = vmatpush1.msra.mxu0 0.0
    %4594 = vmatprep.subr.mxu0 0.0
    %4595 = vmatpush1.msra.mxu0 0.0
    %4596 = vmatprep.subr.mxu0 0.0
    %4597 = vmatpush1.msra.mxu0 0.0
    %4598 = vmatprep.mubr.f32.mxu0 0.0
    %4599 = vmatmul.mubr.f32.gmra.mrb[0].mxu0 %v4532
    %v4600 = vpop.f32.mrb[0].mxu0
    %v4601 = vadd.f32 %v459, %v4600
    %v4602 = vpop.f32.mrb[0].mxu0
    %4603 = vdwg.mxu0
    %v4604 = vxor.u32 %v4601, 2147483648
    %v4605 = vmul.f32 %v4604, 1.442695
    %v4606 = vpow.pop %v4605
    %v4607 = vadd.f32 %v4606, 1.0
    %v4608 = vrcp.pop %v4607
    %v4609 = vmul.f32 1.0, %v4608
    %v4610 = vtanh.pop %v4601
    %v4611 = vmul.f32 %v4609, %v3451
    %4613 = vrot.lane.b32.xlu0 %v4610, 32
    %v4614 = vpop.permute.xlu0 %4613
    %v4616 = vmul.f32 %v4609, %v4614
    %4618 = vrot.lane.b32.xlu0 %v4616, 32
    %v4619 = vpop.permute.xlu0 %4618
    %v4621 = vadd.f32 %v4611, %v4619
    %v4622 = vtanh.pop %v4621
    %4624 = vrot.lane.b32.xlu0 %v4622, 32
    %v4625 = vpop.permute.xlu0 %4624
    %v4627 = vmul.f32 %v4609, %v4625
    %4629 = vrot.lane.b32.xlu0 %v4627, 64
    %v4630 = vpop.permute.xlu0 %4629
    %4632 = vrot.lane.b32.xlu0 %v3878, 96
    %v4633 = vpop.permute.xlu0 %4632
    %v4635 = vsel %vm256, %v4630, %v4633
    %v4637 = vsel %vm461, %v4635, 0
    %4639 = vmatprep.subr.mxu0 0.0
    %4640 = vmatpush1.msra.mxu0 %v72
    %4641 = vmatprep.subr.mxu0 0.0
    %4642 = vmatpush1.msra.mxu0 %v73
    %4643 = vmatprep.subr.mxu0 0.0
    %4644 = vmatpush1.msra.mxu0 %v74
    %4645 = vmatprep.subr.mxu0 0.0
    %4646 = vmatpush1.msra.mxu0 %v75
    %4647 = vmatprep.subr.mxu0 0.0
    %4648 = vmatpush1.msra.mxu0 %v76
    %4649 = vmatprep.subr.mxu0 0.0
    %4650 = vmatpush1.msra.mxu0 %v77
    %4651 = vmatprep.subr.mxu0 0.0
    %4652 = vmatpush1.msra.mxu0 %v78
    %4653 = vmatprep.subr.mxu0 0.0
    %4654 = vmatpush1.msra.mxu0 %v79
    %4655 = vmatprep.subr.mxu0 0.0
    %4656 = vmatpush1.msra.mxu0 0.0
    %4657 = vmatprep.subr.mxu0 0.0
    %4658 = vmatpush1.msra.mxu0 0.0
    %4659 = vmatprep.subr.mxu0 0.0
    %4660 = vmatpush1.msra.mxu0 0.0
    %4661 = vmatprep.subr.mxu0 0.0
    %4662 = vmatpush1.msra.mxu0 0.0
    %4663 = vmatprep.subr.mxu0 0.0
    %4664 = vmatpush1.msra.mxu0 0.0
    %4665 = vmatprep.subr.mxu0 0.0
    %4666 = vmatpush1.msra.mxu0 0.0
    %4667 = vmatprep.subr.mxu0 0.0
    %4668 = vmatpush1.msra.mxu0 0.0
    %4669 = vmatprep.subr.mxu0 0.0
    %4670 = vmatpush1.msra.mxu0 0.0
    %4671 = vmatprep.subr.mxu0 0.0
    %4672 = vmatpush1.msra.mxu0 0.0
    %4673 = vmatprep.subr.mxu0 0.0
    %4674 = vmatpush1.msra.mxu0 0.0
    %4675 = vmatprep.subr.mxu0 0.0
    %4676 = vmatpush1.msra.mxu0 0.0
    %4677 = vmatprep.subr.mxu0 0.0
    %4678 = vmatpush1.msra.mxu0 0.0
    %4679 = vmatprep.subr.mxu0 0.0
    %4680 = vmatpush1.msra.mxu0 0.0
    %4681 = vmatprep.subr.mxu0 0.0
    %4682 = vmatpush1.msra.mxu0 0.0
    %4683 = vmatprep.subr.mxu0 0.0
    %4684 = vmatpush1.msra.mxu0 0.0
    %4685 = vmatprep.subr.mxu0 0.0
    %4686 = vmatpush1.msra.mxu0 0.0
    %4687 = vmatprep.subr.mxu0 0.0
    %4688 = vmatpush1.msra.mxu0 0.0
    %4689 = vmatprep.subr.mxu0 0.0
    %4690 = vmatpush1.msra.mxu0 0.0
    %4691 = vmatprep.subr.mxu0 0.0
    %4692 = vmatpush1.msra.mxu0 0.0
    %4693 = vmatprep.subr.mxu0 0.0
    %4694 = vmatpush1.msra.mxu0 0.0
    %4695 = vmatprep.subr.mxu0 0.0
    %4696 = vmatpush1.msra.mxu0 0.0
    %4697 = vmatprep.subr.mxu0 0.0
    %4698 = vmatpush1.msra.mxu0 0.0
    %4699 = vmatprep.subr.mxu0 0.0
    %4700 = vmatpush1.msra.mxu0 0.0
    %4701 = vmatprep.subr.mxu0 0.0
    %4702 = vmatpush1.msra.mxu0 0.0
    %4703 = vmatprep.mubr.f32.mxu0 0.0
    %4704 = vmatmul.mubr.f32.gmra.mrb[0].mxu0 %v4637
    %v4705 = vpop.f32.mrb[0].mxu0
    %v4706 = vadd.f32 %v769, %v4705
    %v4707 = vpop.f32.mrb[0].mxu0
    %4708 = vdwg.mxu0
    %v4709 = vxor.u32 %v4706, 2147483648
    %v4710 = vmul.f32 %v4709, 1.442695
    %v4711 = vpow.pop %v4710
    %v4712 = vadd.f32 %v4711, 1.0
    %v4713 = vrcp.pop %v4712
    %v4714 = vmul.f32 1.0, %v4713
    %v4715 = vtanh.pop %v4706
    %v4716 = vmul.f32 %v4714, %v3872
    %4718 = vrot.lane.b32.xlu0 %v4715, 32
    %v4719 = vpop.permute.xlu0 %4718
    %v4721 = vmul.f32 %v4714, %v4719
    %4723 = vrot.lane.b32.xlu0 %v4721, 32
    %v4724 = vpop.permute.xlu0 %4723
    %v4726 = vadd.f32 %v4716, %v4724
    %v4727 = vtanh.pop %v4726
    %4729 = vrot.lane.b32.xlu0 %v4727, 32
    %v4730 = vpop.permute.xlu0 %4729
    %v4732 = vmul.f32 %v4714, %v4730
    %4734 = vrot.lane.b32.xlu0 %v4732, 64
    %v4735 = vpop.permute.xlu0 %4734
    %4737 = vrot.lane.b32.xlu0 %v4194, 96
    %v4738 = vpop.permute.xlu0 %4737
    %v4740 = vsel %vm256, %v4735, %v4738
    %v4742 = vsel %vm461, %v4740, 0
    %4744 = vmatprep.subr.mxu0 0.0
    %4745 = vmatpush1.msra.mxu0 %v81
    %4746 = vmatprep.subr.mxu0 0.0
    %4747 = vmatpush1.msra.mxu0 %v82
    %4748 = vmatprep.subr.mxu0 0.0
    %4749 = vmatpush1.msra.mxu0 %v83
    %4750 = vmatprep.subr.mxu0 0.0
    %4751 = vmatpush1.msra.mxu0 %v84
    %4752 = vmatprep.subr.mxu0 0.0
    %4753 = vmatpush1.msra.mxu0 %v85
    %4754 = vmatprep.subr.mxu0 0.0
    %4755 = vmatpush1.msra.mxu0 %v86
    %4756 = vmatprep.subr.mxu0 0.0
    %4757 = vmatpush1.msra.mxu0 %v87
    %4758 = vmatprep.subr.mxu0 0.0
    %4759 = vmatpush1.msra.mxu0 %v88
    %4760 = vmatprep.subr.mxu0 0.0
    %4761 = vmatpush1.msra.mxu0 0.0
    %4762 = vmatprep.subr.mxu0 0.0
    %4763 = vmatpush1.msra.mxu0 0.0
    %4764 = vmatprep.subr.mxu0 0.0
    %4765 = vmatpush1.msra.mxu0 0.0
    %4766 = vmatprep.subr.mxu0 0.0
    %4767 = vmatpush1.msra.mxu0 0.0
    %4768 = vmatprep.subr.mxu0 0.0
    %4769 = vmatpush1.msra.mxu0 0.0
    %4770 = vmatprep.subr.mxu0 0.0
    %4771 = vmatpush1.msra.mxu0 0.0
    %4772 = vmatprep.subr.mxu0 0.0
    %4773 = vmatpush1.msra.mxu0 0.0
    %4774 = vmatprep.subr.mxu0 0.0
    %4775 = vmatpush1.msra.mxu0 0.0
    %4776 = vmatprep.subr.mxu0 0.0
    %4777 = vmatpush1.msra.mxu0 0.0
    %4778 = vmatprep.subr.mxu0 0.0
    %4779 = vmatpush1.msra.mxu0 0.0
    %4780 = vmatprep.subr.mxu0 0.0
    %4781 = vmatpush1.msra.mxu0 0.0
    %4782 = vmatprep.subr.mxu0 0.0
    %4783 = vmatpush1.msra.mxu0 0.0
    %4784 = vmatprep.subr.mxu0 0.0
    %4785 = vmatpush1.msra.mxu0 0.0
    %4786 = vmatprep.subr.mxu0 0.0
    %4787 = vmatpush1.msra.mxu0 0.0
    %4788 = vmatprep.subr.mxu0 0.0
    %4789 = vmatpush1.msra.mxu0 0.0
    %4790 = vmatprep.subr.mxu0 0.0
    %4791 = vmatpush1.msra.mxu0 0.0
    %4792 = vmatprep.subr.mxu0 0.0
    %4793 = vmatpush1.msra.mxu0 0.0
    %4794 = vmatprep.subr.mxu0 0.0
    %4795 = vmatpush1.msra.mxu0 0.0
    %4796 = vmatprep.subr.mxu0 0.0
    %4797 = vmatpush1.msra.mxu0 0.0
    %4798 = vmatprep.subr.mxu0 0.0
    %4799 = vmatpush1.msra.mxu0 0.0
    %4800 = vmatprep.subr.mxu0 0.0
    %4801 = vmatpush1.msra.mxu0 0.0
    %4802 = vmatprep.subr.mxu0 0.0
    %4803 = vmatpush1.msra.mxu0 0.0
    %4804 = vmatprep.subr.mxu0 0.0
    %4805 = vmatpush1.msra.mxu0 0.0
    %4806 = vmatprep.subr.mxu0 0.0
    %4807 = vmatpush1.msra.mxu0 0.0
    %4808 = vmatprep.mubr.f32.mxu0 0.0
    %4809 = vmatmul.mubr.f32.gmra.mrb[0].mxu0 %v4742
    %v4810 = vpop.f32.mrb[0].mxu0
    %v4811 = vadd.f32 %v1183, %v4810
    %v4812 = vpop.f32.mrb[0].mxu0
    %4813 = vdwg.mxu0
    %v4814 = vxor.u32 %v4811, 2147483648
    %v4815 = vmul.f32 %v4814, 1.442695
    %v4816 = vpow.pop %v4815
    %v4817 = vadd.f32 %v4816, 1.0
    %v4818 = vrcp.pop %v4817
    %v4819 = vmul.f32 1.0, %v4818
    %v4820 = vtanh.pop %v4811
    %v4821 = vmul.f32 %v4819, %v4188
    %4823 = vrot.lane.b32.xlu0 %v4820, 32
    %v4824 = vpop.permute.xlu0 %4823
    %v4826 = vmul.f32 %v4819, %v4824
    %4828 = vrot.lane.b32.xlu0 %v4826, 32
    %v4829 = vpop.permute.xlu0 %4828
    %v4831 = vadd.f32 %v4821, %v4829
    %v4832 = vtanh.pop %v4831
    %4834 = vrot.lane.b32.xlu0 %v4832, 32
    %v4835 = vpop.permute.xlu0 %4834
    %v4837 = vmul.f32 %v4819, %v4835
    %4839 = vrot.lane.b32.xlu0 %v4837, 64
    %v4840 = vpop.permute.xlu0 %4839
    %4843 = vrot.lane.b32.xlu0 %v4405, 96
    %v4844 = vpop.permute.xlu0 %4843
    %v4846 = vsel %vm256, %v4840, %v4844
    %v4848 = vsel %vm461, %v4846, 0
    %4850 = vmatprep.subr.mxu0 0.0
    %4851 = vmatpush1.msra.mxu0 %v90
    %4852 = vmatprep.subr.mxu0 0.0
    %4853 = vmatpush1.msra.mxu0 %v91
    %4854 = vmatprep.subr.mxu0 0.0
    %4855 = vmatpush1.msra.mxu0 %v92
    %4856 = vmatprep.subr.mxu0 0.0
    %4857 = vmatpush1.msra.mxu0 %v93
    %4858 = vmatprep.subr.mxu0 0.0
    %4859 = vmatpush1.msra.mxu0 %v94
    %4860 = vmatprep.subr.mxu0 0.0
    %4861 = vmatpush1.msra.mxu0 %v95
    %4862 = vmatprep.subr.mxu0 0.0
    %4863 = vmatpush1.msra.mxu0 %v96
    %4864 = vmatprep.subr.mxu0 0.0
    %4865 = vmatpush1.msra.mxu0 %v97
    %4866 = vmatprep.subr.mxu0 0.0
    %4867 = vmatpush1.msra.mxu0 0.0
    %4868 = vmatprep.subr.mxu0 0.0
    %4869 = vmatpush1.msra.mxu0 0.0
    %4870 = vmatprep.subr.mxu0 0.0
    %4871 = vmatpush1.msra.mxu0 0.0
    %4872 = vmatprep.subr.mxu0 0.0
    %4873 = vmatpush1.msra.mxu0 0.0
    %4874 = vmatprep.subr.mxu0 0.0
    %4875 = vmatpush1.msra.mxu0 0.0
    %4876 = vmatprep.subr.mxu0 0.0
    %4877 = vmatpush1.msra.mxu0 0.0
    %4878 = vmatprep.subr.mxu0 0.0
    %4879 = vmatpush1.msra.mxu0 0.0
    %4880 = vmatprep.subr.mxu0 0.0
    %4881 = vmatpush1.msra.mxu0 0.0
    %4882 = vmatprep.subr.mxu0 0.0
    %4883 = vmatpush1.msra.mxu0 0.0
    %4884 = vmatprep.subr.mxu0 0.0
    %4885 = vmatpush1.msra.mxu0 0.0
    %4886 = vmatprep.subr.mxu0 0.0
    %4887 = vmatpush1.msra.mxu0 0.0
    %4888 = vmatprep.subr.mxu0 0.0
    %4889 = vmatpush1.msra.mxu0 0.0
    %4890 = vmatprep.subr.mxu0 0.0
    %4891 = vmatpush1.msra.mxu0 0.0
    %4892 = vmatprep.subr.mxu0 0.0
    %4893 = vmatpush1.msra.mxu0 0.0
    %4894 = vmatprep.subr.mxu0 0.0
    %4895 = vmatpush1.msra.mxu0 0.0
    %4896 = vmatprep.subr.mxu0 0.0
    %4897 = vmatpush1.msra.mxu0 0.0
    %4898 = vmatprep.subr.mxu0 0.0
    %4899 = vmatpush1.msra.mxu0 0.0
    %4900 = vmatprep.subr.mxu0 0.0
    %4901 = vmatpush1.msra.mxu0 0.0
    %4902 = vmatprep.subr.mxu0 0.0
    %4903 = vmatpush1.msra.mxu0 0.0
    %4904 = vmatprep.subr.mxu0 0.0
    %4905 = vmatpush1.msra.mxu0 0.0
    %4906 = vmatprep.subr.mxu0 0.0
    %4907 = vmatpush1.msra.mxu0 0.0
    %4908 = vmatprep.subr.mxu0 0.0
    %4909 = vmatpush1.msra.mxu0 0.0
    %4910 = vmatprep.subr.mxu0 0.0
    %4911 = vmatpush1.msra.mxu0 0.0
    %4912 = vmatprep.subr.mxu0 0.0
    %4913 = vmatpush1.msra.mxu0 0.0
    %4914 = vmatprep.mubr.f32.mxu0 0.0
    %4915 = vmatmul.mubr.f32.gmra.mrb[0].mxu0 %v4848
    %v4916 = vpop.f32.mrb[0].mxu0
    %v4917 = vadd.f32 %v1702, %v4916
    %v4918 = vpop.f32.mrb[0].mxu0
    %4919 = vdwg.mxu0
    %v4920 = vxor.u32 %v4917, 2147483648
    %v4921 = vmul.f32 %v4920, 1.442695
    %v4922 = vpow.pop %v4921
    %v4923 = vadd.f32 %v4922, 1.0
    %v4924 = vrcp.pop %v4923
    %v4925 = vmul.f32 1.0, %v4924
    %v4926 = vtanh.pop %v4917
    %v4927 = vmul.f32 %v4925, %v4399
    %4929 = vrot.lane.b32.xlu0 %v4926, 32
    %v4930 = vpop.permute.xlu0 %4929
    %v4932 = vmul.f32 %v4925, %v4930
    %4934 = vrot.lane.b32.xlu0 %v4932, 32
    %v4935 = vpop.permute.xlu0 %4934
    %v4937 = vadd.f32 %v4927, %v4935
    %v4938 = vtanh.pop %v4937
    %4940 = vrot.lane.b32.xlu0 %v4938, 32
    %v4941 = vpop.permute.xlu0 %4940
    %v4943 = vmul.f32 %v4925, %v4941
    %v4945 = vlaneseq
    %v4946 = vshrl.u32 %v4945, 7
    %v4947 = vsub.s32 0, %v4946
    %v4948 = vrot.slane %v4414, %v4947
    %4951 = vrot.lane.b32.xlu0 %v4943, 64
    %v4952 = vpop.permute.xlu0 %4951
    %v4953 = vsel %vm256, %v4952, 0
    %4955 = vmatprep.subr.mxu0 0.0
    %4956 = vmatpush1.msra.mxu0 %v4410
    %4957 = vmatprep.subr.mxu0 0.0
    %4958 = vmatpush1.msra.mxu0 %v4411
    %4959 = vmatprep.subr.mxu0 0.0
    %4960 = vmatpush1.msra.mxu0 %v4412
    %4961 = vmatprep.subr.mxu0 0.0
    %4962 = vmatpush1.msra.mxu0 %v4413
    %4963 = vmatprep.subr.mxu0 0.0
    %4964 = vmatpush1.msra.mxu0 0.0
    %4965 = vmatprep.subr.mxu0 0.0
    %4966 = vmatpush1.msra.mxu0 0.0
    %4967 = vmatprep.subr.mxu0 0.0
    %4968 = vmatpush1.msra.mxu0 0.0
    %4969 = vmatprep.subr.mxu0 0.0
    %4970 = vmatpush1.msra.mxu0 0.0
    %4971 = vmatprep.subr.mxu0 0.0
    %4972 = vmatpush1.msra.mxu0 0.0
    %4973 = vmatprep.subr.mxu0 0.0
    %4974 = vmatpush1.msra.mxu0 0.0
    %4975 = vmatprep.subr.mxu0 0.0
    %4976 = vmatpush1.msra.mxu0 0.0
    %4977 = vmatprep.subr.mxu0 0.0
    %4978 = vmatpush1.msra.mxu0 0.0
    %4979 = vmatprep.subr.mxu0 0.0
    %4980 = vmatpush1.msra.mxu0 0.0
    %4981 = vmatprep.subr.mxu0 0.0
    %4982 = vmatpush1.msra.mxu0 0.0
    %4983 = vmatprep.subr.mxu0 0.0
    %4984 = vmatpush1.msra.mxu0 0.0
    %4985 = vmatprep.subr.mxu0 0.0
    %4986 = vmatpush1.msra.mxu0 0.0
    %4987 = vmatprep.subr.mxu0 0.0
    %4988 = vmatpush1.msra.mxu0 0.0
    %4989 = vmatprep.subr.mxu0 0.0
    %4990 = vmatpush1.msra.mxu0 0.0
    %4991 = vmatprep.subr.mxu0 0.0
    %4992 = vmatpush1.msra.mxu0 0.0
    %4993 = vmatprep.subr.mxu0 0.0
    %4994 = vmatpush1.msra.mxu0 0.0
    %4995 = vmatprep.subr.mxu0 0.0
    %4996 = vmatpush1.msra.mxu0 0.0
    %4997 = vmatprep.subr.mxu0 0.0
    %4998 = vmatpush1.msra.mxu0 0.0
    %4999 = vmatprep.subr.mxu0 0.0
    %5000 = vmatpush1.msra.mxu0 0.0
    %5001 = vmatprep.subr.mxu0 0.0
    %5002 = vmatpush1.msra.mxu0 0.0
    %5003 = vmatprep.subr.mxu0 0.0
    %5004 = vmatpush1.msra.mxu0 0.0
    %5005 = vmatprep.subr.mxu0 0.0
    %5006 = vmatpush1.msra.mxu0 0.0
    %5007 = vmatprep.subr.mxu0 0.0
    %5008 = vmatpush1.msra.mxu0 0.0
    %5009 = vmatprep.subr.mxu0 0.0
    %5010 = vmatpush1.msra.mxu0 0.0
    %5011 = vmatprep.subr.mxu0 0.0
    %5012 = vmatpush1.msra.mxu0 0.0
    %5013 = vmatprep.subr.mxu0 0.0
    %5014 = vmatpush1.msra.mxu0 0.0
    %5015 = vmatprep.subr.mxu0 0.0
    %5016 = vmatpush1.msra.mxu0 0.0
    %5017 = vmatprep.subr.mxu0 0.0
    %5018 = vmatpush1.msra.mxu0 0.0
    %5019 = vmatprep.mubr.f32.mxu0 0.0
    %5020 = vmatmul.mubr.f32.gmra.mrb[0].mxu0 %v4953
    %v5021 = vpop.f32.mrb[0].mxu0
    %v5022 = vadd.f32 %v4948, %v5021
    %v5023 = vpop.f32.mrb[0].mxu0
    %5024 = vdwg.mxu0
    %v5025 = vmax.f32 %v5022, 0.0
    %v5027 = vlaneseq
    %v5028 = vshrl.u32 %v5027, 7
    %v5029 = vsub.s32 0, %v5028
    %v5030 = vrot.slane %v4419, %v5029
    %v5033 = vsel %vm256, %v5025, 0
    %5035 = vmatprep.subr.mxu0 0.0
    %5036 = vmatpush1.msra.mxu0 %v4415
    %5037 = vmatprep.subr.mxu0 0.0
    %5038 = vmatpush1.msra.mxu0 %v4416
    %5039 = vmatprep.subr.mxu0 0.0
    %5040 = vmatpush1.msra.mxu0 %v4417
    %5041 = vmatprep.subr.mxu0 0.0
    %5042 = vmatpush1.msra.mxu0 %v4418
    %5043 = vmatprep.subr.mxu0 0.0
    %5044 = vmatpush1.msra.mxu0 0.0
    %5045 = vmatprep.subr.mxu0 0.0
    %5046 = vmatpush1.msra.mxu0 0.0
    %5047 = vmatprep.subr.mxu0 0.0
    %5048 = vmatpush1.msra.mxu0 0.0
    %5049 = vmatprep.subr.mxu0 0.0
    %5050 = vmatpush1.msra.mxu0 0.0
    %5051 = vmatprep.subr.mxu0 0.0
    %5052 = vmatpush1.msra.mxu0 0.0
    %5053 = vmatprep.subr.mxu0 0.0
    %5054 = vmatpush1.msra.mxu0 0.0
    %5055 = vmatprep.subr.mxu0 0.0
    %5056 = vmatpush1.msra.mxu0 0.0
    %5057 = vmatprep.subr.mxu0 0.0
    %5058 = vmatpush1.msra.mxu0 0.0
    %5059 = vmatprep.subr.mxu0 0.0
    %5060 = vmatpush1.msra.mxu0 0.0
    %5061 = vmatprep.subr.mxu0 0.0
    %5062 = vmatpush1.msra.mxu0 0.0
    %5063 = vmatprep.subr.mxu0 0.0
    %5064 = vmatpush1.msra.mxu0 0.0
    %5065 = vmatprep.subr.mxu0 0.0
    %5066 = vmatpush1.msra.mxu0 0.0
    %5067 = vmatprep.subr.mxu0 0.0
    %5068 = vmatpush1.msra.mxu0 0.0
    %5069 = vmatprep.subr.mxu0 0.0
    %5070 = vmatpush1.msra.mxu0 0.0
    %5071 = vmatprep.subr.mxu0 0.0
    %5072 = vmatpush1.msra.mxu0 0.0
    %5073 = vmatprep.subr.mxu0 0.0
    %5074 = vmatpush1.msra.mxu0 0.0
    %5075 = vmatprep.subr.mxu0 0.0
    %5076 = vmatpush1.msra.mxu0 0.0
    %5077 = vmatprep.subr.mxu0 0.0
    %5078 = vmatpush1.msra.mxu0 0.0
    %5079 = vmatprep.subr.mxu0 0.0
    %5080 = vmatpush1.msra.mxu0 0.0
    %5081 = vmatprep.subr.mxu0 0.0
    %5082 = vmatpush1.msra.mxu0 0.0
    %5083 = vmatprep.subr.mxu0 0.0
    %5084 = vmatpush1.msra.mxu0 0.0
    %5085 = vmatprep.subr.mxu0 0.0
    %5086 = vmatpush1.msra.mxu0 0.0
    %5087 = vmatprep.subr.mxu0 0.0
    %5088 = vmatpush1.msra.mxu0 0.0
    %5089 = vmatprep.subr.mxu0 0.0
    %5090 = vmatpush1.msra.mxu0 0.0
    %5091 = vmatprep.subr.mxu0 0.0
    %5092 = vmatpush1.msra.mxu0 0.0
    %5093 = vmatprep.subr.mxu0 0.0
    %5094 = vmatpush1.msra.mxu0 0.0
    %5095 = vmatprep.subr.mxu0 0.0
    %5096 = vmatpush1.msra.mxu0 0.0
    %5097 = vmatprep.subr.mxu0 0.0
    %5098 = vmatpush1.msra.mxu0 0.0
    %5099 = vmatprep.mubr.f32.mxu0 0.0
    %5100 = vmatmul.mubr.f32.gmra.mrb[0].mxu0 %v5033
    %v5101 = vpop.f32.mrb[0].mxu0
    %v5102 = vadd.f32 %v5030, %v5101
    %v5103 = vpop.f32.mrb[0].mxu0
    %5104 = vdwg.mxu0
    %v5105 = vmax.f32 %v5102, 0.0
    %v5107 = vlaneseq
    %v5108 = vshrl.u32 %v5107, 7
    %v5109 = vsub.s32 0, %v5108
    %v5110 = vrot.slane %v4420, %v5109
    %v5112 = vmul.f32 %v5105, %v5110
    %v5113 = vsel %vm256, %v5112, 0.0
    %5114 = vadd.xlane.f32.xlu0 %v5113
    %v5115 = vpop.xlane.xlu0 %5114
    %v5117 = vlaneseq
    %v5118 = vshrl.u32 %v5117, 7
    %v5119 = vsub.s32 0, %v5118
    %v5120 = vrot.slane %v4421, %v5119
    %v5122 = vadd.f32 %v5115, %v5120
    %5124 = vset.pattern.permute.xlu0 0
    %5125 = vperm.xlu0 %5124, %v5122
    %v5126 = vpop.permute.xlu0 %5125
    %v5128 = vsel %vm4409, %v5126, 0.0
    %v5129 = vsel %vm4409, %v5126, %v4406
    %5130 = vrot.lane.b32.xlu0 %v4522, 96
    %v5131 = vpop.permute.xlu0 %5130
    %v5133 = vsel %vm256, %v5129, %v5131
    %v5135 = vsel %vm461, %v5133, 0
    %5137 = vmatprep.subr.mxu0 0.0
    %5138 = vmatpush1.msra.mxu0 %v54
    %5139 = vmatprep.subr.mxu0 0.0
    %5140 = vmatpush1.msra.mxu0 %v55
    %5141 = vmatprep.subr.mxu0 0.0
    %5142 = vmatpush1.msra.mxu0 %v56
    %5143 = vmatprep.subr.mxu0 0.0
    %5144 = vmatpush1.msra.mxu0 %v57
    %5145 = vmatprep.subr.mxu0 0.0
    %5146 = vmatpush1.msra.mxu0 %v58
    %5147 = vmatprep.subr.mxu0 0.0
    %5148 = vmatpush1.msra.mxu0 %v59
    %5149 = vmatprep.subr.mxu0 0.0
    %5150 = vmatpush1.msra.mxu0 %v60
    %5151 = vmatprep.subr.mxu0 0.0
    %5152 = vmatpush1.msra.mxu0 %v61
    %5153 = vmatprep.subr.mxu0 0.0
    %5154 = vmatpush1.msra.mxu0 0.0
    %5155 = vmatprep.subr.mxu0 0.0
    %5156 = vmatpush1.msra.mxu0 0.0
    %5157 = vmatprep.subr.mxu0 0.0
    %5158 = vmatpush1.msra.mxu0 0.0
    %5159 = vmatprep.subr.mxu0 0.0
    %5160 = vmatpush1.msra.mxu0 0.0
    %5161 = vmatprep.subr.mxu0 0.0
    %5162 = vmatpush1.msra.mxu0 0.0
    %5163 = vmatprep.subr.mxu0 0.0
    %5164 = vmatpush1.msra.mxu0 0.0
    %5165 = vmatprep.subr.mxu0 0.0
    %5166 = vmatpush1.msra.mxu0 0.0
    %5167 = vmatprep.subr.mxu0 0.0
    %5168 = vmatpush1.msra.mxu0 0.0
    %5169 = vmatprep.subr.mxu0 0.0
    %5170 = vmatpush1.msra.mxu0 0.0
    %5171 = vmatprep.subr.mxu0 0.0
    %5172 = vmatpush1.msra.mxu0 0.0
    %5173 = vmatprep.subr.mxu0 0.0
    %5174 = vmatpush1.msra.mxu0 0.0
    %5175 = vmatprep.subr.mxu0 0.0
    %5176 = vmatpush1.msra.mxu0 0.0
    %5177 = vmatprep.subr.mxu0 0.0
    %5178 = vmatpush1.msra.mxu0 0.0
    %5179 = vmatprep.subr.mxu0 0.0
    %5180 = vmatpush1.msra.mxu0 0.0
    %5181 = vmatprep.subr.mxu0 0.0
    %5182 = vmatpush1.msra.mxu0 0.0
    %5183 = vmatprep.subr.mxu0 0.0
    %5184 = vmatpush1.msra.mxu0 0.0
    %5185 = vmatprep.subr.mxu0 0.0
    %5186 = vmatpush1.msra.mxu0 0.0
    %5187 = vmatprep.subr.mxu0 0.0
    %5188 = vmatpush1.msra.mxu0 0.0
    %5189 = vmatprep.subr.mxu0 0.0
    %5190 = vmatpush1.msra.mxu0 0.0
    %5191 = vmatprep.subr.mxu0 0.0
    %5192 = vmatpush1.msra.mxu0 0.0
    %5193 = vmatprep.subr.mxu0 0.0
    %5194 = vmatpush1.msra.mxu0 0.0
    %5195 = vmatprep.subr.mxu0 0.0
    %5196 = vmatpush1.msra.mxu0 0.0
    %5197 = vmatprep.subr.mxu0 0.0
    %5198 = vmatpush1.msra.mxu0 0.0
    %5199 = vmatprep.subr.mxu0 0.0
    %5200 = vmatpush1.msra.mxu0 0.0
    %5201 = vmatprep.mubr.f32.mxu0 0.0
    %5202 = vmatmul.mubr.f32.gmra.mrb[0].mxu0 %v5135
    %v5203 = vpop.f32.mrb[0].mxu0
    %v5204 = vadd.f32 %v120, %v5203
    %v5205 = vpop.f32.mrb[0].mxu0
    %5206 = vdwg.mxu0
    %v5207 = vxor.u32 %v5204, 2147483648
    %v5208 = vmul.f32 %v5207, 1.442695
    %v5209 = vpow.pop %v5208
    %v5210 = vadd.f32 %v5209, 1.0
    %v5211 = vrcp.pop %v5210
    %v5212 = vmul.f32 1.0, %v5211
    %v5213 = vtanh.pop %v5204
    %v5214 = vmul.f32 %v5212, %v4516
    %5216 = vrot.lane.b32.xlu0 %v5213, 32
    %v5217 = vpop.permute.xlu0 %5216
    %v5219 = vmul.f32 %v5212, %v5217
    %5221 = vrot.lane.b32.xlu0 %v5219, 32
    %v5222 = vpop.permute.xlu0 %5221
    %v5224 = vadd.f32 %v5214, %v5222
    %v5225 = vtanh.pop %v5224
    %5227 = vrot.lane.b32.xlu0 %v5225, 32
    %v5228 = vpop.permute.xlu0 %5227
    %v5230 = vmul.f32 %v5212, %v5228
    %5232 = vrot.lane.b32.xlu0 %v5230, 64
    %v5233 = vpop.permute.xlu0 %5232
    %5235 = vrot.lane.b32.xlu0 %v4627, 96
    %v5236 = vpop.permute.xlu0 %5235
    %v5238 = vsel %vm256, %v5233, %v5236
    %v5240 = vsel %vm461, %v5238, 0
    %5242 = vmatprep.subr.mxu0 0.0
    %5243 = vmatpush1.msra.mxu0 %v63
    %5244 = vmatprep.subr.mxu0 0.0
    %5245 = vmatpush1.msra.mxu0 %v64
    %5246 = vmatprep.subr.mxu0 0.0
    %5247 = vmatpush1.msra.mxu0 %v65
    %5248 = vmatprep.subr.mxu0 0.0
    %5249 = vmatpush1.msra.mxu0 %v66
    %5250 = vmatprep.subr.mxu0 0.0
    %5251 = vmatpush1.msra.mxu0 %v67
    %5252 = vmatprep.subr.mxu0 0.0
    %5253 = vmatpush1.msra.mxu0 %v68
    %5254 = vmatprep.subr.mxu0 0.0
    %5255 = vmatpush1.msra.mxu0 %v69
    %5256 = vmatprep.subr.mxu0 0.0
    %5257 = vmatpush1.msra.mxu0 %v70
    %5258 = vmatprep.subr.mxu0 0.0
    %5259 = vmatpush1.msra.mxu0 0.0
    %5260 = vmatprep.subr.mxu0 0.0
    %5261 = vmatpush1.msra.mxu0 0.0
    %5262 = vmatprep.subr.mxu0 0.0
    %5263 = vmatpush1.msra.mxu0 0.0
    %5264 = vmatprep.subr.mxu0 0.0
    %5265 = vmatpush1.msra.mxu0 0.0
    %5266 = vmatprep.subr.mxu0 0.0
    %5267 = vmatpush1.msra.mxu0 0.0
    %5268 = vmatprep.subr.mxu0 0.0
    %5269 = vmatpush1.msra.mxu0 0.0
    %5270 = vmatprep.subr.mxu0 0.0
    %5271 = vmatpush1.msra.mxu0 0.0
    %5272 = vmatprep.subr.mxu0 0.0
    %5273 = vmatpush1.msra.mxu0 0.0
    %5274 = vmatprep.subr.mxu0 0.0
    %5275 = vmatpush1.msra.mxu0 0.0
    %5276 = vmatprep.subr.mxu0 0.0
    %5277 = vmatpush1.msra.mxu0 0.0
    %5278 = vmatprep.subr.mxu0 0.0
    %5279 = vmatpush1.msra.mxu0 0.0
    %5280 = vmatprep.subr.mxu0 0.0
    %5281 = vmatpush1.msra.mxu0 0.0
    %5282 = vmatprep.subr.mxu0 0.0
    %5283 = vmatpush1.msra.mxu0 0.0
    %5284 = vmatprep.subr.mxu0 0.0
    %5285 = vmatpush1.msra.mxu0 0.0
    %5286 = vmatprep.subr.mxu0 0.0
    %5287 = vmatpush1.msra.mxu0 0.0
    %5288 = vmatprep.subr.mxu0 0.0
    %5289 = vmatpush1.msra.mxu0 0.0
    %5290 = vmatprep.subr.mxu0 0.0
    %5291 = vmatpush1.msra.mxu0 0.0
    %5292 = vmatprep.subr.mxu0 0.0
    %5293 = vmatpush1.msra.mxu0 0.0
    %5294 = vmatprep.subr.mxu0 0.0
    %5295 = vmatpush1.msra.mxu0 0.0
    %5296 = vmatprep.subr.mxu0 0.0
    %5297 = vmatpush1.msra.mxu0 0.0
    %5298 = vmatprep.subr.mxu0 0.0
    %5299 = vmatpush1.msra.mxu0 0.0
    %5300 = vmatprep.subr.mxu0 0.0
    %5301 = vmatpush1.msra.mxu0 0.0
    %5302 = vmatprep.subr.mxu0 0.0
    %5303 = vmatpush1.msra.mxu0 0.0
    %5304 = vmatprep.subr.mxu0 0.0
    %5305 = vmatpush1.msra.mxu0 0.0
    %5306 = vmatprep.mubr.f32.mxu0 0.0
    %5307 = vmatmul.mubr.f32.gmra.mrb[0].mxu0 %v5240
    %v5308 = vpop.f32.mrb[0].mxu0
    %v5309 = vadd.f32 %v459, %v5308
    %v5310 = vpop.f32.mrb[0].mxu0
    %5311 = vdwg.mxu0
    %v5312 = vxor.u32 %v5309, 2147483648
    %v5313 = vmul.f32 %v5312, 1.442695
    %v5314 = vpow.pop %v5313
    %v5315 = vadd.f32 %v5314, 1.0
    %v5316 = vrcp.pop %v5315
    %v5317 = vmul.f32 1.0, %v5316
    %v5318 = vtanh.pop %v5309
    %v5319 = vmul.f32 %v5317, %v4621
    %5321 = vrot.lane.b32.xlu0 %v5318, 32
    %v5322 = vpop.permute.xlu0 %5321
    %v5324 = vmul.f32 %v5317, %v5322
    %5326 = vrot.lane.b32.xlu0 %v5324, 32
    %v5327 = vpop.permute.xlu0 %5326
    %v5329 = vadd.f32 %v5319, %v5327
    %v5330 = vtanh.pop %v5329
    %5332 = vrot.lane.b32.xlu0 %v5330, 32
    %v5333 = vpop.permute.xlu0 %5332
    %v5335 = vmul.f32 %v5317, %v5333
    %5337 = vrot.lane.b32.xlu0 %v5335, 64
    %v5338 = vpop.permute.xlu0 %5337
    %5340 = vrot.lane.b32.xlu0 %v4732, 96
    %v5341 = vpop.permute.xlu0 %5340
    %v5343 = vsel %vm256, %v5338, %v5341
    %v5345 = vsel %vm461, %v5343, 0
    %5347 = vmatprep.subr.mxu0 0.0
    %5348 = vmatpush1.msra.mxu0 %v72
    %5349 = vmatprep.subr.mxu0 0.0
    %5350 = vmatpush1.msra.mxu0 %v73
    %5351 = vmatprep.subr.mxu0 0.0
    %5352 = vmatpush1.msra.mxu0 %v74
    %5353 = vmatprep.subr.mxu0 0.0
    %5354 = vmatpush1.msra.mxu0 %v75
    %5355 = vmatprep.subr.mxu0 0.0
    %5356 = vmatpush1.msra.mxu0 %v76
    %5357 = vmatprep.subr.mxu0 0.0
    %5358 = vmatpush1.msra.mxu0 %v77
    %5359 = vmatprep.subr.mxu0 0.0
    %5360 = vmatpush1.msra.mxu0 %v78
    %5361 = vmatprep.subr.mxu0 0.0
    %5362 = vmatpush1.msra.mxu0 %v79
    %5363 = vmatprep.subr.mxu0 0.0
    %5364 = vmatpush1.msra.mxu0 0.0
    %5365 = vmatprep.subr.mxu0 0.0
    %5366 = vmatpush1.msra.mxu0 0.0
    %5367 = vmatprep.subr.mxu0 0.0
    %5368 = vmatpush1.msra.mxu0 0.0
    %5369 = vmatprep.subr.mxu0 0.0
    %5370 = vmatpush1.msra.mxu0 0.0
    %5371 = vmatprep.subr.mxu0 0.0
    %5372 = vmatpush1.msra.mxu0 0.0
    %5373 = vmatprep.subr.mxu0 0.0
    %5374 = vmatpush1.msra.mxu0 0.0
    %5375 = vmatprep.subr.mxu0 0.0
    %5376 = vmatpush1.msra.mxu0 0.0
    %5377 = vmatprep.subr.mxu0 0.0
    %5378 = vmatpush1.msra.mxu0 0.0
    %5379 = vmatprep.subr.mxu0 0.0
    %5380 = vmatpush1.msra.mxu0 0.0
    %5381 = vmatprep.subr.mxu0 0.0
    %5382 = vmatpush1.msra.mxu0 0.0
    %5383 = vmatprep.subr.mxu0 0.0
    %5384 = vmatpush1.msra.mxu0 0.0
    %5385 = vmatprep.subr.mxu0 0.0
    %5386 = vmatpush1.msra.mxu0 0.0
    %5387 = vmatprep.subr.mxu0 0.0
    %5388 = vmatpush1.msra.mxu0 0.0
    %5389 = vmatprep.subr.mxu0 0.0
    %5390 = vmatpush1.msra.mxu0 0.0
    %5391 = vmatprep.subr.mxu0 0.0
    %5392 = vmatpush1.msra.mxu0 0.0
    %5393 = vmatprep.subr.mxu0 0.0
    %5394 = vmatpush1.msra.mxu0 0.0
    %5395 = vmatprep.subr.mxu0 0.0
    %5396 = vmatpush1.msra.mxu0 0.0
    %5397 = vmatprep.subr.mxu0 0.0
    %5398 = vmatpush1.msra.mxu0 0.0
    %5399 = vmatprep.subr.mxu0 0.0
    %5400 = vmatpush1.msra.mxu0 0.0
    %5401 = vmatprep.subr.mxu0 0.0
    %5402 = vmatpush1.msra.mxu0 0.0
    %5403 = vmatprep.subr.mxu0 0.0
    %5404 = vmatpush1.msra.mxu0 0.0
    %5405 = vmatprep.subr.mxu0 0.0
    %5406 = vmatpush1.msra.mxu0 0.0
    %5407 = vmatprep.subr.mxu0 0.0
    %5408 = vmatpush1.msra.mxu0 0.0
    %5409 = vmatprep.subr.mxu0 0.0
    %5410 = vmatpush1.msra.mxu0 0.0
    %5411 = vmatprep.mubr.f32.mxu0 0.0
    %5412 = vmatmul.mubr.f32.gmra.mrb[0].mxu0 %v5345
    %v5413 = vpop.f32.mrb[0].mxu0
    %v5414 = vadd.f32 %v769, %v5413
    %v5415 = vpop.f32.mrb[0].mxu0
    %5416 = vdwg.mxu0
    %v5417 = vxor.u32 %v5414, 2147483648
    %v5418 = vmul.f32 %v5417, 1.442695
    %v5419 = vpow.pop %v5418
    %v5420 = vadd.f32 %v5419, 1.0
    %v5421 = vrcp.pop %v5420
    %v5422 = vmul.f32 1.0, %v5421
    %v5423 = vtanh.pop %v5414
    %v5424 = vmul.f32 %v5422, %v4726
    %5426 = vrot.lane.b32.xlu0 %v5423, 32
    %v5427 = vpop.permute.xlu0 %5426
    %v5429 = vmul.f32 %v5422, %v5427
    %5431 = vrot.lane.b32.xlu0 %v5429, 32
    %v5432 = vpop.permute.xlu0 %5431
    %v5434 = vadd.f32 %v5424, %v5432
    %v5435 = vtanh.pop %v5434
    %5437 = vrot.lane.b32.xlu0 %v5435, 32
    %v5438 = vpop.permute.xlu0 %5437
    %v5440 = vmul.f32 %v5422, %v5438
    %5442 = vrot.lane.b32.xlu0 %v5440, 64
    %v5443 = vpop.permute.xlu0 %5442
    %5445 = vrot.lane.b32.xlu0 %v4837, 96
    %v5446 = vpop.permute.xlu0 %5445
    %v5448 = vsel %vm256, %v5443, %v5446
    %v5450 = vsel %vm461, %v5448, 0
    %5452 = vmatprep.subr.mxu0 0.0
    %5453 = vmatpush1.msra.mxu0 %v81
    %5454 = vmatprep.subr.mxu0 0.0
    %5455 = vmatpush1.msra.mxu0 %v82
    %5456 = vmatprep.subr.mxu0 0.0
    %5457 = vmatpush1.msra.mxu0 %v83
    %5458 = vmatprep.subr.mxu0 0.0
    %5459 = vmatpush1.msra.mxu0 %v84
    %5460 = vmatprep.subr.mxu0 0.0
    %5461 = vmatpush1.msra.mxu0 %v85
    %5462 = vmatprep.subr.mxu0 0.0
    %5463 = vmatpush1.msra.mxu0 %v86
    %5464 = vmatprep.subr.mxu0 0.0
    %5465 = vmatpush1.msra.mxu0 %v87
    %5466 = vmatprep.subr.mxu0 0.0
    %5467 = vmatpush1.msra.mxu0 %v88
    %5468 = vmatprep.subr.mxu0 0.0
    %5469 = vmatpush1.msra.mxu0 0.0
    %5470 = vmatprep.subr.mxu0 0.0
    %5471 = vmatpush1.msra.mxu0 0.0
    %5472 = vmatprep.subr.mxu0 0.0
    %5473 = vmatpush1.msra.mxu0 0.0
    %5474 = vmatprep.subr.mxu0 0.0
    %5475 = vmatpush1.msra.mxu0 0.0
    %5476 = vmatprep.subr.mxu0 0.0
    %5477 = vmatpush1.msra.mxu0 0.0
    %5478 = vmatprep.subr.mxu0 0.0
    %5479 = vmatpush1.msra.mxu0 0.0
    %5480 = vmatprep.subr.mxu0 0.0
    %5481 = vmatpush1.msra.mxu0 0.0
    %5482 = vmatprep.subr.mxu0 0.0
    %5483 = vmatpush1.msra.mxu0 0.0
    %5484 = vmatprep.subr.mxu0 0.0
    %5485 = vmatpush1.msra.mxu0 0.0
    %5486 = vmatprep.subr.mxu0 0.0
    %5487 = vmatpush1.msra.mxu0 0.0
    %5488 = vmatprep.subr.mxu0 0.0
    %5489 = vmatpush1.msra.mxu0 0.0
    %5490 = vmatprep.subr.mxu0 0.0
    %5491 = vmatpush1.msra.mxu0 0.0
    %5492 = vmatprep.subr.mxu0 0.0
    %5493 = vmatpush1.msra.mxu0 0.0
    %5494 = vmatprep.subr.mxu0 0.0
    %5495 = vmatpush1.msra.mxu0 0.0
    %5496 = vmatprep.subr.mxu0 0.0
    %5497 = vmatpush1.msra.mxu0 0.0
    %5498 = vmatprep.subr.mxu0 0.0
    %5499 = vmatpush1.msra.mxu0 0.0
    %5500 = vmatprep.subr.mxu0 0.0
    %5501 = vmatpush1.msra.mxu0 0.0
    %5502 = vmatprep.subr.mxu0 0.0
    %5503 = vmatpush1.msra.mxu0 0.0
    %5504 = vmatprep.subr.mxu0 0.0
    %5505 = vmatpush1.msra.mxu0 0.0
    %5506 = vmatprep.subr.mxu0 0.0
    %5507 = vmatpush1.msra.mxu0 0.0
    %5508 = vmatprep.subr.mxu0 0.0
    %5509 = vmatpush1.msra.mxu0 0.0
    %5510 = vmatprep.subr.mxu0 0.0
    %5511 = vmatpush1.msra.mxu0 0.0
    %5512 = vmatprep.subr.mxu0 0.0
    %5513 = vmatpush1.msra.mxu0 0.0
    %5514 = vmatprep.subr.mxu0 0.0
    %5515 = vmatpush1.msra.mxu0 0.0
    %5516 = vmatprep.mubr.f32.mxu0 0.0
    %5517 = vmatmul.mubr.f32.gmra.mrb[0].mxu0 %v5450
    %v5518 = vpop.f32.mrb[0].mxu0
    %v5519 = vadd.f32 %v1183, %v5518
    %v5520 = vpop.f32.mrb[0].mxu0
    %5521 = vdwg.mxu0
    %v5522 = vxor.u32 %v5519, 2147483648
    %v5523 = vmul.f32 %v5522, 1.442695
    %v5524 = vpow.pop %v5523
    %v5525 = vadd.f32 %v5524, 1.0
    %v5526 = vrcp.pop %v5525
    %v5527 = vmul.f32 1.0, %v5526
    %v5528 = vtanh.pop %v5519
    %v5529 = vmul.f32 %v5527, %v4831
    %5531 = vrot.lane.b32.xlu0 %v5528, 32
    %v5532 = vpop.permute.xlu0 %5531
    %v5534 = vmul.f32 %v5527, %v5532
    %5536 = vrot.lane.b32.xlu0 %v5534, 32
    %v5537 = vpop.permute.xlu0 %5536
    %v5539 = vadd.f32 %v5529, %v5537
    %v5540 = vtanh.pop %v5539
    %5542 = vrot.lane.b32.xlu0 %v5540, 32
    %v5543 = vpop.permute.xlu0 %5542
    %v5545 = vmul.f32 %v5527, %v5543
    %5547 = vrot.lane.b32.xlu0 %v5545, 64
    %v5548 = vpop.permute.xlu0 %5547
    %5550 = vrot.lane.b32.xlu0 %v4943, 96
    %v5551 = vpop.permute.xlu0 %5550
    %v5553 = vsel %vm256, %v5548, %v5551
    %v5555 = vsel %vm461, %v5553, 0
    %5557 = vmatprep.subr.mxu0 0.0
    %5558 = vmatpush1.msra.mxu0 %v90
    %5559 = vmatprep.subr.mxu0 0.0
    %5560 = vmatpush1.msra.mxu0 %v91
    %5561 = vmatprep.subr.mxu0 0.0
    %5562 = vmatpush1.msra.mxu0 %v92
    %5563 = vmatprep.subr.mxu0 0.0
    %5564 = vmatpush1.msra.mxu0 %v93
    %5565 = vmatprep.subr.mxu0 0.0
    %5566 = vmatpush1.msra.mxu0 %v94
    %5567 = vmatprep.subr.mxu0 0.0
    %5568 = vmatpush1.msra.mxu0 %v95
    %5569 = vmatprep.subr.mxu0 0.0
    %5570 = vmatpush1.msra.mxu0 %v96
    %5571 = vmatprep.subr.mxu0 0.0
    %5572 = vmatpush1.msra.mxu0 %v97
    %5573 = vmatprep.subr.mxu0 0.0
    %5574 = vmatpush1.msra.mxu0 0.0
    %5575 = vmatprep.subr.mxu0 0.0
    %5576 = vmatpush1.msra.mxu0 0.0
    %5577 = vmatprep.subr.mxu0 0.0
    %5578 = vmatpush1.msra.mxu0 0.0
    %5579 = vmatprep.subr.mxu0 0.0
    %5580 = vmatpush1.msra.mxu0 0.0
    %5581 = vmatprep.subr.mxu0 0.0
    %5582 = vmatpush1.msra.mxu0 0.0
    %5583 = vmatprep.subr.mxu0 0.0
    %5584 = vmatpush1.msra.mxu0 0.0
    %5585 = vmatprep.subr.mxu0 0.0
    %5586 = vmatpush1.msra.mxu0 0.0
    %5587 = vmatprep.subr.mxu0 0.0
    %5588 = vmatpush1.msra.mxu0 0.0
    %5589 = vmatprep.subr.mxu0 0.0
    %5590 = vmatpush1.msra.mxu0 0.0
    %5591 = vmatprep.subr.mxu0 0.0
    %5592 = vmatpush1.msra.mxu0 0.0
    %5593 = vmatprep.subr.mxu0 0.0
    %5594 = vmatpush1.msra.mxu0 0.0
    %5595 = vmatprep.subr.mxu0 0.0
    %5596 = vmatpush1.msra.mxu0 0.0
    %5597 = vmatprep.subr.mxu0 0.0
    %5598 = vmatpush1.msra.mxu0 0.0
    %5599 = vmatprep.subr.mxu0 0.0
    %5600 = vmatpush1.msra.mxu0 0.0
    %5601 = vmatprep.subr.mxu0 0.0
    %5602 = vmatpush1.msra.mxu0 0.0
    %5603 = vmatprep.subr.mxu0 0.0
    %5604 = vmatpush1.msra.mxu0 0.0
    %5605 = vmatprep.subr.mxu0 0.0
    %5606 = vmatpush1.msra.mxu0 0.0
    %5607 = vmatprep.subr.mxu0 0.0
    %5608 = vmatpush1.msra.mxu0 0.0
    %5609 = vmatprep.subr.mxu0 0.0
    %5610 = vmatpush1.msra.mxu0 0.0
    %5611 = vmatprep.subr.mxu0 0.0
    %5612 = vmatpush1.msra.mxu0 0.0
    %5613 = vmatprep.subr.mxu0 0.0
    %5614 = vmatpush1.msra.mxu0 0.0
    %5615 = vmatprep.subr.mxu0 0.0
    %5616 = vmatpush1.msra.mxu0 0.0
    %5617 = vmatprep.subr.mxu0 0.0
    %5618 = vmatpush1.msra.mxu0 0.0
    %5619 = vmatprep.subr.mxu0 0.0
    %5620 = vmatpush1.msra.mxu0 0.0
    %5621 = vmatprep.mubr.f32.mxu0 0.0
    %5622 = vmatmul.mubr.f32.gmra.mrb[0].mxu0 %v5555
    %v5623 = vpop.f32.mrb[0].mxu0
    %v5624 = vadd.f32 %v1702, %v5623
    %v5625 = vpop.f32.mrb[0].mxu0
    %5626 = vdwg.mxu0
    %v5627 = vxor.u32 %v5624, 2147483648
    %v5628 = vmul.f32 %v5627, 1.442695
    %v5629 = vpow.pop %v5628
    %v5630 = vadd.f32 %v5629, 1.0
    %v5631 = vrcp.pop %v5630
    %v5632 = vmul.f32 1.0, %v5631
    %v5633 = vtanh.pop %v5624
    %v5634 = vmul.f32 %v5632, %v4937
    %5636 = vrot.lane.b32.xlu0 %v5633, 32
    %v5637 = vpop.permute.xlu0 %5636
    %v5639 = vmul.f32 %v5632, %v5637
    %5641 = vrot.lane.b32.xlu0 %v5639, 32
    %v5642 = vpop.permute.xlu0 %5641
    %v5644 = vadd.f32 %v5634, %v5642
    %v5645 = vtanh.pop %v5644
    %5647 = vrot.lane.b32.xlu0 %v5645, 32
    %v5648 = vpop.permute.xlu0 %5647
    %v5650 = vmul.f32 %v5632, %v5648
    %5652 = vrot.lane.b32.xlu0 %v5650, 64
    %v5653 = vpop.permute.xlu0 %5652
    %v5654 = vsel %vm256, %v5653, 0
    %5656 = vmatprep.subr.mxu0 0.0
    %5657 = vmatpush1.msra.mxu0 %v4410
    %5658 = vmatprep.subr.mxu0 0.0
    %5659 = vmatpush1.msra.mxu0 %v4411
    %5660 = vmatprep.subr.mxu0 0.0
    %5661 = vmatpush1.msra.mxu0 %v4412
    %5662 = vmatprep.subr.mxu0 0.0
    %5663 = vmatpush1.msra.mxu0 %v4413
    %5664 = vmatprep.subr.mxu0 0.0
    %5665 = vmatpush1.msra.mxu0 0.0
    %5666 = vmatprep.subr.mxu0 0.0
    %5667 = vmatpush1.msra.mxu0 0.0
    %5668 = vmatprep.subr.mxu0 0.0
    %5669 = vmatpush1.msra.mxu0 0.0
    %5670 = vmatprep.subr.mxu0 0.0
    %5671 = vmatpush1.msra.mxu0 0.0
    %5672 = vmatprep.subr.mxu0 0.0
    %5673 = vmatpush1.msra.mxu0 0.0
    %5674 = vmatprep.subr.mxu0 0.0
    %5675 = vmatpush1.msra.mxu0 0.0
    %5676 = vmatprep.subr.mxu0 0.0
    %5677 = vmatpush1.msra.mxu0 0.0
    %5678 = vmatprep.subr.mxu0 0.0
    %5679 = vmatpush1.msra.mxu0 0.0
    %5680 = vmatprep.subr.mxu0 0.0
    %5681 = vmatpush1.msra.mxu0 0.0
    %5682 = vmatprep.subr.mxu0 0.0
    %5683 = vmatpush1.msra.mxu0 0.0
    %5684 = vmatprep.subr.mxu0 0.0
    %5685 = vmatpush1.msra.mxu0 0.0
    %5686 = vmatprep.subr.mxu0 0.0
    %5687 = vmatpush1.msra.mxu0 0.0
    %5688 = vmatprep.subr.mxu0 0.0
    %5689 = vmatpush1.msra.mxu0 0.0
    %5690 = vmatprep.subr.mxu0 0.0
    %5691 = vmatpush1.msra.mxu0 0.0
    %5692 = vmatprep.subr.mxu0 0.0
    %5693 = vmatpush1.msra.mxu0 0.0
    %5694 = vmatprep.subr.mxu0 0.0
    %5695 = vmatpush1.msra.mxu0 0.0
    %5696 = vmatprep.subr.mxu0 0.0
    %5697 = vmatpush1.msra.mxu0 0.0
    %5698 = vmatprep.subr.mxu0 0.0
    %5699 = vmatpush1.msra.mxu0 0.0
    %5700 = vmatprep.subr.mxu0 0.0
    %5701 = vmatpush1.msra.mxu0 0.0
    %5702 = vmatprep.subr.mxu0 0.0
    %5703 = vmatpush1.msra.mxu0 0.0
    %5704 = vmatprep.subr.mxu0 0.0
    %5705 = vmatpush1.msra.mxu0 0.0
    %5706 = vmatprep.subr.mxu0 0.0
    %5707 = vmatpush1.msra.mxu0 0.0
    %5708 = vmatprep.subr.mxu0 0.0
    %5709 = vmatpush1.msra.mxu0 0.0
    %5710 = vmatprep.subr.mxu0 0.0
    %5711 = vmatpush1.msra.mxu0 0.0
    %5712 = vmatprep.subr.mxu0 0.0
    %5713 = vmatpush1.msra.mxu0 0.0
    %5714 = vmatprep.subr.mxu0 0.0
    %5715 = vmatpush1.msra.mxu0 0.0
    %5716 = vmatprep.subr.mxu0 0.0
    %5717 = vmatpush1.msra.mxu0 0.0
    %5718 = vmatprep.subr.mxu0 0.0
    %5719 = vmatpush1.msra.mxu0 0.0
    %5720 = vmatprep.mubr.f32.mxu0 0.0
    %5721 = vmatmul.mubr.f32.gmra.mrb[0].mxu0 %v5654
    %v5722 = vpop.f32.mrb[0].mxu0
    %v5723 = vadd.f32 %v4948, %v5722
    %v5724 = vpop.f32.mrb[0].mxu0
    %5725 = vdwg.mxu0
    %v5726 = vmax.f32 %v5723, 0.0
    %v5728 = vsel %vm256, %v5726, 0
    %5730 = vmatprep.subr.mxu0 0.0
    %5731 = vmatpush1.msra.mxu0 %v4415
    %5732 = vmatprep.subr.mxu0 0.0
    %5733 = vmatpush1.msra.mxu0 %v4416
    %5734 = vmatprep.subr.mxu0 0.0
    %5735 = vmatpush1.msra.mxu0 %v4417
    %5736 = vmatprep.subr.mxu0 0.0
    %5737 = vmatpush1.msra.mxu0 %v4418
    %5738 = vmatprep.subr.mxu0 0.0
    %5739 = vmatpush1.msra.mxu0 0.0
    %5740 = vmatprep.subr.mxu0 0.0
    %5741 = vmatpush1.msra.mxu0 0.0
    %5742 = vmatprep.subr.mxu0 0.0
    %5743 = vmatpush1.msra.mxu0 0.0
    %5744 = vmatprep.subr.mxu0 0.0
    %5745 = vmatpush1.msra.mxu0 0.0
    %5746 = vmatprep.subr.mxu0 0.0
    %5747 = vmatpush1.msra.mxu0 0.0
    %5748 = vmatprep.subr.mxu0 0.0
    %5749 = vmatpush1.msra.mxu0 0.0
    %5750 = vmatprep.subr.mxu0 0.0
    %5751 = vmatpush1.msra.mxu0 0.0
    %5752 = vmatprep.subr.mxu0 0.0
    %5753 = vmatpush1.msra.mxu0 0.0
    %5754 = vmatprep.subr.mxu0 0.0
    %5755 = vmatpush1.msra.mxu0 0.0
    %5756 = vmatprep.subr.mxu0 0.0
    %5757 = vmatpush1.msra.mxu0 0.0
    %5758 = vmatprep.subr.mxu0 0.0
    %5759 = vmatpush1.msra.mxu0 0.0
    %5760 = vmatprep.subr.mxu0 0.0
    %5761 = vmatpush1.msra.mxu0 0.0
    %5762 = vmatprep.subr.mxu0 0.0
    %5763 = vmatpush1.msra.mxu0 0.0
    %5764 = vmatprep.subr.mxu0 0.0
    %5765 = vmatpush1.msra.mxu0 0.0
    %5766 = vmatprep.subr.mxu0 0.0
    %5767 = vmatpush1.msra.mxu0 0.0
    %5768 = vmatprep.subr.mxu0 0.0
    %5769 = vmatpush1.msra.mxu0 0.0
    %5770 = vmatprep.subr.mxu0 0.0
    %5771 = vmatpush1.msra.mxu0 0.0
    %5772 = vmatprep.subr.mxu0 0.0
    %5773 = vmatpush1.msra.mxu0 0.0
    %5774 = vmatprep.subr.mxu0 0.0
    %5775 = vmatpush1.msra.mxu0 0.0
    %5776 = vmatprep.subr.mxu0 0.0
    %5777 = vmatpush1.msra.mxu0 0.0
    %5778 = vmatprep.subr.mxu0 0.0
    %5779 = vmatpush1.msra.mxu0 0.0
    %5780 = vmatprep.subr.mxu0 0.0
    %5781 = vmatpush1.msra.mxu0 0.0
    %5782 = vmatprep.subr.mxu0 0.0
    %5783 = vmatpush1.msra.mxu0 0.0
    %5784 = vmatprep.subr.mxu0 0.0
    %5785 = vmatpush1.msra.mxu0 0.0
    %5786 = vmatprep.subr.mxu0 0.0
    %5787 = vmatpush1.msra.mxu0 0.0
    %5788 = vmatprep.subr.mxu0 0.0
    %5789 = vmatpush1.msra.mxu0 0.0
    %5790 = vmatprep.subr.mxu0 0.0
    %5791 = vmatpush1.msra.mxu0 0.0
    %5792 = vmatprep.subr.mxu0 0.0
    %5793 = vmatpush1.msra.mxu0 0.0
    %5794 = vmatprep.mubr.f32.mxu0 0.0
    %5795 = vmatmul.mubr.f32.gmra.mrb[0].mxu0 %v5728
    %v5796 = vpop.f32.mrb[0].mxu0
    %v5797 = vadd.f32 %v5030, %v5796
    %v5798 = vpop.f32.mrb[0].mxu0
    %5799 = vdwg.mxu0
    %v5800 = vmax.f32 %v5797, 0.0
    %v5801 = vmul.f32 %v5800, %v5110
    %v5802 = vsel %vm256, %v5801, 0.0
    %5803 = vadd.xlane.f32.xlu0 %v5802
    %v5804 = vpop.xlane.xlu0 %5803
    %v5805 = vadd.f32 %v5804, %v5120
    %vm5806 = vcmp.eq.s32.totalorder %v4408, 1
    %5808 = vset.pattern.permute.xlu0 0
    %5809 = vperm.xlu0 %5808, %v5805
    %v5810 = vpop.permute.xlu0 %5809
    %v5812 = vsel %vm5806, %v5810, %v5128
    %v5813 = vsel %vm4409, %v5810, %v4406
    %5814 = vrot.lane.b32.xlu0 %v5230, 96
    %v5815 = vpop.permute.xlu0 %5814
    %v5817 = vsel %vm256, %v5813, %v5815
    %v5819 = vsel %vm461, %v5817, 0
    %5821 = vmatprep.subr.mxu0 0.0
    %5822 = vmatpush1.msra.mxu0 %v54
    %5823 = vmatprep.subr.mxu0 0.0
    %5824 = vmatpush1.msra.mxu0 %v55
    %5825 = vmatprep.subr.mxu0 0.0
    %5826 = vmatpush1.msra.mxu0 %v56
    %5827 = vmatprep.subr.mxu0 0.0
    %5828 = vmatpush1.msra.mxu0 %v57
    %5829 = vmatprep.subr.mxu0 0.0
    %5830 = vmatpush1.msra.mxu0 %v58
    %5831 = vmatprep.subr.mxu0 0.0
    %5832 = vmatpush1.msra.mxu0 %v59
    %5833 = vmatprep.subr.mxu0 0.0
    %5834 = vmatpush1.msra.mxu0 %v60
    %5835 = vmatprep.subr.mxu0 0.0
    %5836 = vmatpush1.msra.mxu0 %v61
    %5837 = vmatprep.subr.mxu0 0.0
    %5838 = vmatpush1.msra.mxu0 0.0
    %5839 = vmatprep.subr.mxu0 0.0
    %5840 = vmatpush1.msra.mxu0 0.0
    %5841 = vmatprep.subr.mxu0 0.0
    %5842 = vmatpush1.msra.mxu0 0.0
    %5843 = vmatprep.subr.mxu0 0.0
    %5844 = vmatpush1.msra.mxu0 0.0
    %5845 = vmatprep.subr.mxu0 0.0
    %5846 = vmatpush1.msra.mxu0 0.0
    %5847 = vmatprep.subr.mxu0 0.0
    %5848 = vmatpush1.msra.mxu0 0.0
    %5849 = vmatprep.subr.mxu0 0.0
    %5850 = vmatpush1.msra.mxu0 0.0
    %5851 = vmatprep.subr.mxu0 0.0
    %5852 = vmatpush1.msra.mxu0 0.0
    %5853 = vmatprep.subr.mxu0 0.0
    %5854 = vmatpush1.msra.mxu0 0.0
    %5855 = vmatprep.subr.mxu0 0.0
    %5856 = vmatpush1.msra.mxu0 0.0
    %5857 = vmatprep.subr.mxu0 0.0
    %5858 = vmatpush1.msra.mxu0 0.0
    %5859 = vmatprep.subr.mxu0 0.0
    %5860 = vmatpush1.msra.mxu0 0.0
    %5861 = vmatprep.subr.mxu0 0.0
    %5862 = vmatpush1.msra.mxu0 0.0
    %5863 = vmatprep.subr.mxu0 0.0
    %5864 = vmatpush1.msra.mxu0 0.0
    %5865 = vmatprep.subr.mxu0 0.0
    %5866 = vmatpush1.msra.mxu0 0.0
    %5867 = vmatprep.subr.mxu0 0.0
    %5868 = vmatpush1.msra.mxu0 0.0
    %5869 = vmatprep.subr.mxu0 0.0
    %5870 = vmatpush1.msra.mxu0 0.0
    %5871 = vmatprep.subr.mxu0 0.0
    %5872 = vmatpush1.msra.mxu0 0.0
    %5873 = vmatprep.subr.mxu0 0.0
    %5874 = vmatpush1.msra.mxu0 0.0
    %5875 = vmatprep.subr.mxu0 0.0
    %5876 = vmatpush1.msra.mxu0 0.0
    %5877 = vmatprep.subr.mxu0 0.0
    %5878 = vmatpush1.msra.mxu0 0.0
    %5879 = vmatprep.subr.mxu0 0.0
    %5880 = vmatpush1.msra.mxu0 0.0
    %5881 = vmatprep.subr.mxu0 0.0
    %5882 = vmatpush1.msra.mxu0 0.0
    %5883 = vmatprep.subr.mxu0 0.0
    %5884 = vmatpush1.msra.mxu0 0.0
    %5885 = vmatprep.mubr.f32.mxu0 0.0
    %5886 = vmatmul.mubr.f32.gmra.mrb[0].mxu0 %v5819
    %v5887 = vpop.f32.mrb[0].mxu0
    %v5888 = vadd.f32 %v120, %v5887
    %v5889 = vpop.f32.mrb[0].mxu0
    %5890 = vdwg.mxu0
    %v5891 = vxor.u32 %v5888, 2147483648
    %v5892 = vmul.f32 %v5891, 1.442695
    %v5893 = vpow.pop %v5892
    %v5894 = vadd.f32 %v5893, 1.0
    %v5895 = vrcp.pop %v5894
    %v5896 = vmul.f32 1.0, %v5895
    %v5897 = vtanh.pop %v5888
    %v5898 = vmul.f32 %v5896, %v5224
    %5900 = vrot.lane.b32.xlu0 %v5897, 32
    %v5901 = vpop.permute.xlu0 %5900
    %v5903 = vmul.f32 %v5896, %v5901
    %5905 = vrot.lane.b32.xlu0 %v5903, 32
    %v5906 = vpop.permute.xlu0 %5905
    %v5908 = vadd.f32 %v5898, %v5906
    %v5909 = vtanh.pop %v5908
    %5911 = vrot.lane.b32.xlu0 %v5909, 32
    %v5912 = vpop.permute.xlu0 %5911
    %v5914 = vmul.f32 %v5896, %v5912
    %5916 = vrot.lane.b32.xlu0 %v5914, 64
    %v5917 = vpop.permute.xlu0 %5916
    %5919 = vrot.lane.b32.xlu0 %v5335, 96
    %v5920 = vpop.permute.xlu0 %5919
    %v5922 = vsel %vm256, %v5917, %v5920
    %v5924 = vsel %vm461, %v5922, 0
    %5926 = vmatprep.subr.mxu0 0.0
    %5927 = vmatpush1.msra.mxu0 %v63
    %5928 = vmatprep.subr.mxu0 0.0
    %5929 = vmatpush1.msra.mxu0 %v64
    %5930 = vmatprep.subr.mxu0 0.0
    %5931 = vmatpush1.msra.mxu0 %v65
    %5932 = vmatprep.subr.mxu0 0.0
    %5933 = vmatpush1.msra.mxu0 %v66
    %5934 = vmatprep.subr.mxu0 0.0
    %5935 = vmatpush1.msra.mxu0 %v67
    %5936 = vmatprep.subr.mxu0 0.0
    %5937 = vmatpush1.msra.mxu0 %v68
    %5938 = vmatprep.subr.mxu0 0.0
    %5939 = vmatpush1.msra.mxu0 %v69
    %5940 = vmatprep.subr.mxu0 0.0
    %5941 = vmatpush1.msra.mxu0 %v70
    %5942 = vmatprep.subr.mxu0 0.0
    %5943 = vmatpush1.msra.mxu0 0.0
    %5944 = vmatprep.subr.mxu0 0.0
    %5945 = vmatpush1.msra.mxu0 0.0
    %5946 = vmatprep.subr.mxu0 0.0
    %5947 = vmatpush1.msra.mxu0 0.0
    %5948 = vmatprep.subr.mxu0 0.0
    %5949 = vmatpush1.msra.mxu0 0.0
    %5950 = vmatprep.subr.mxu0 0.0
    %5951 = vmatpush1.msra.mxu0 0.0
    %5952 = vmatprep.subr.mxu0 0.0
    %5953 = vmatpush1.msra.mxu0 0.0
    %5954 = vmatprep.subr.mxu0 0.0
    %5955 = vmatpush1.msra.mxu0 0.0
    %5956 = vmatprep.subr.mxu0 0.0
    %5957 = vmatpush1.msra.mxu0 0.0
    %5958 = vmatprep.subr.mxu0 0.0
    %5959 = vmatpush1.msra.mxu0 0.0
    %5960 = vmatprep.subr.mxu0 0.0
    %5961 = vmatpush1.msra.mxu0 0.0
    %5962 = vmatprep.subr.mxu0 0.0
    %5963 = vmatpush1.msra.mxu0 0.0
    %5964 = vmatprep.subr.mxu0 0.0
    %5965 = vmatpush1.msra.mxu0 0.0
    %5966 = vmatprep.subr.mxu0 0.0
    %5967 = vmatpush1.msra.mxu0 0.0
    %5968 = vmatprep.subr.mxu0 0.0
    %5969 = vmatpush1.msra.mxu0 0.0
    %5970 = vmatprep.subr.mxu0 0.0
    %5971 = vmatpush1.msra.mxu0 0.0
    %5972 = vmatprep.subr.mxu0 0.0
    %5973 = vmatpush1.msra.mxu0 0.0
    %5974 = vmatprep.subr.mxu0 0.0
    %5975 = vmatpush1.msra.mxu0 0.0
    %5976 = vmatprep.subr.mxu0 0.0
    %5977 = vmatpush1.msra.mxu0 0.0
    %5978 = vmatprep.subr.mxu0 0.0
    %5979 = vmatpush1.msra.mxu0 0.0
    %5980 = vmatprep.subr.mxu0 0.0
    %5981 = vmatpush1.msra.mxu0 0.0
    %5982 = vmatprep.subr.mxu0 0.0
    %5983 = vmatpush1.msra.mxu0 0.0
    %5984 = vmatprep.subr.mxu0 0.0
    %5985 = vmatpush1.msra.mxu0 0.0
    %5986 = vmatprep.subr.mxu0 0.0
    %5987 = vmatpush1.msra.mxu0 0.0
    %5988 = vmatprep.subr.mxu0 0.0
    %5989 = vmatpush1.msra.mxu0 0.0
    %5990 = vmatprep.mubr.f32.mxu0 0.0
    %5991 = vmatmul.mubr.f32.gmra.mrb[0].mxu0 %v5924
    %v5992 = vpop.f32.mrb[0].mxu0
    %v5993 = vadd.f32 %v459, %v5992
    %v5994 = vpop.f32.mrb[0].mxu0
    %5995 = vdwg.mxu0
    %v5996 = vxor.u32 %v5993, 2147483648
    %v5997 = vmul.f32 %v5996, 1.442695
    %v5998 = vpow.pop %v5997
    %v5999 = vadd.f32 %v5998, 1.0
    %v6000 = vrcp.pop %v5999
    %v6001 = vmul.f32 1.0, %v6000
    %v6002 = vtanh.pop %v5993
    %v6003 = vmul.f32 %v6001, %v5329
    %6005 = vrot.lane.b32.xlu0 %v6002, 32
    %v6006 = vpop.permute.xlu0 %6005
    %v6008 = vmul.f32 %v6001, %v6006
    %6010 = vrot.lane.b32.xlu0 %v6008, 32
    %v6011 = vpop.permute.xlu0 %6010
    %v6013 = vadd.f32 %v6003, %v6011
    %v6014 = vtanh.pop %v6013
    %6016 = vrot.lane.b32.xlu0 %v6014, 32
    %v6017 = vpop.permute.xlu0 %6016
    %v6019 = vmul.f32 %v6001, %v6017
    %6021 = vrot.lane.b32.xlu0 %v6019, 64
    %v6022 = vpop.permute.xlu0 %6021
    %6024 = vrot.lane.b32.xlu0 %v5440, 96
    %v6025 = vpop.permute.xlu0 %6024
    %v6027 = vsel %vm256, %v6022, %v6025
    %v6029 = vsel %vm461, %v6027, 0
    %6031 = vmatprep.subr.mxu0 0.0
    %6032 = vmatpush1.msra.mxu0 %v72
    %6033 = vmatprep.subr.mxu0 0.0
    %6034 = vmatpush1.msra.mxu0 %v73
    %6035 = vmatprep.subr.mxu0 0.0
    %6036 = vmatpush1.msra.mxu0 %v74
    %6037 = vmatprep.subr.mxu0 0.0
    %6038 = vmatpush1.msra.mxu0 %v75
    %6039 = vmatprep.subr.mxu0 0.0
    %6040 = vmatpush1.msra.mxu0 %v76
    %6041 = vmatprep.subr.mxu0 0.0
    %6042 = vmatpush1.msra.mxu0 %v77
    %6043 = vmatprep.subr.mxu0 0.0
    %6044 = vmatpush1.msra.mxu0 %v78
    %6045 = vmatprep.subr.mxu0 0.0
    %6046 = vmatpush1.msra.mxu0 %v79
    %6047 = vmatprep.subr.mxu0 0.0
    %6048 = vmatpush1.msra.mxu0 0.0
    %6049 = vmatprep.subr.mxu0 0.0
    %6050 = vmatpush1.msra.mxu0 0.0
    %6051 = vmatprep.subr.mxu0 0.0
    %6052 = vmatpush1.msra.mxu0 0.0
    %6053 = vmatprep.subr.mxu0 0.0
    %6054 = vmatpush1.msra.mxu0 0.0
    %6055 = vmatprep.subr.mxu0 0.0
    %6056 = vmatpush1.msra.mxu0 0.0
    %6057 = vmatprep.subr.mxu0 0.0
    %6058 = vmatpush1.msra.mxu0 0.0
    %6059 = vmatprep.subr.mxu0 0.0
    %6060 = vmatpush1.msra.mxu0 0.0
    %6061 = vmatprep.subr.mxu0 0.0
    %6062 = vmatpush1.msra.mxu0 0.0
    %6063 = vmatprep.subr.mxu0 0.0
    %6064 = vmatpush1.msra.mxu0 0.0
    %6065 = vmatprep.subr.mxu0 0.0
    %6066 = vmatpush1.msra.mxu0 0.0
    %6067 = vmatprep.subr.mxu0 0.0
    %6068 = vmatpush1.msra.mxu0 0.0
    %6069 = vmatprep.subr.mxu0 0.0
    %6070 = vmatpush1.msra.mxu0 0.0
    %6071 = vmatprep.subr.mxu0 0.0
    %6072 = vmatpush1.msra.mxu0 0.0
    %6073 = vmatprep.subr.mxu0 0.0
    %6074 = vmatpush1.msra.mxu0 0.0
    %6075 = vmatprep.subr.mxu0 0.0
    %6076 = vmatpush1.msra.mxu0 0.0
    %6077 = vmatprep.subr.mxu0 0.0
    %6078 = vmatpush1.msra.mxu0 0.0
    %6079 = vmatprep.subr.mxu0 0.0
    %6080 = vmatpush1.msra.mxu0 0.0
    %6081 = vmatprep.subr.mxu0 0.0
    %6082 = vmatpush1.msra.mxu0 0.0
    %6083 = vmatprep.subr.mxu0 0.0
    %6084 = vmatpush1.msra.mxu0 0.0
    %6085 = vmatprep.subr.mxu0 0.0
    %6086 = vmatpush1.msra.mxu0 0.0
    %6087 = vmatprep.subr.mxu0 0.0
    %6088 = vmatpush1.msra.mxu0 0.0
    %6089 = vmatprep.subr.mxu0 0.0
    %6090 = vmatpush1.msra.mxu0 0.0
    %6091 = vmatprep.subr.mxu0 0.0
    %6092 = vmatpush1.msra.mxu0 0.0
    %6093 = vmatprep.subr.mxu0 0.0
    %6094 = vmatpush1.msra.mxu0 0.0
    %6095 = vmatprep.mubr.f32.mxu0 0.0
    %6096 = vmatmul.mubr.f32.gmra.mrb[0].mxu0 %v6029
    %v6097 = vpop.f32.mrb[0].mxu0
    %v6098 = vadd.f32 %v769, %v6097
    %v6099 = vpop.f32.mrb[0].mxu0
    %6100 = vdwg.mxu0
    %v6101 = vxor.u32 %v6098, 2147483648
    %v6102 = vmul.f32 %v6101, 1.442695
    %v6103 = vpow.pop %v6102
    %v6104 = vadd.f32 %v6103, 1.0
    %v6105 = vrcp.pop %v6104
    %v6106 = vmul.f32 1.0, %v6105
    %v6107 = vtanh.pop %v6098
    %v6108 = vmul.f32 %v6106, %v5434
    %6110 = vrot.lane.b32.xlu0 %v6107, 32
    %v6111 = vpop.permute.xlu0 %6110
    %v6113 = vmul.f32 %v6106, %v6111
    %6115 = vrot.lane.b32.xlu0 %v6113, 32
    %v6116 = vpop.permute.xlu0 %6115
    %v6118 = vadd.f32 %v6108, %v6116
    %v6119 = vtanh.pop %v6118
    %6121 = vrot.lane.b32.xlu0 %v6119, 32
    %v6122 = vpop.permute.xlu0 %6121
    %v6124 = vmul.f32 %v6106, %v6122
    %6126 = vrot.lane.b32.xlu0 %v6124, 64
    %v6127 = vpop.permute.xlu0 %6126
    %6129 = vrot.lane.b32.xlu0 %v5545, 96
    %v6130 = vpop.permute.xlu0 %6129
    %v6132 = vsel %vm256, %v6127, %v6130
    %v6134 = vsel %vm461, %v6132, 0
    %6136 = vmatprep.subr.mxu0 0.0
    %6137 = vmatpush1.msra.mxu0 %v81
    %6138 = vmatprep.subr.mxu0 0.0
    %6139 = vmatpush1.msra.mxu0 %v82
    %6140 = vmatprep.subr.mxu0 0.0
    %6141 = vmatpush1.msra.mxu0 %v83
    %6142 = vmatprep.subr.mxu0 0.0
    %6143 = vmatpush1.msra.mxu0 %v84
    %6144 = vmatprep.subr.mxu0 0.0
    %6145 = vmatpush1.msra.mxu0 %v85
    %6146 = vmatprep.subr.mxu0 0.0
    %6147 = vmatpush1.msra.mxu0 %v86
    %6148 = vmatprep.subr.mxu0 0.0
    %6149 = vmatpush1.msra.mxu0 %v87
    %6150 = vmatprep.subr.mxu0 0.0
    %6151 = vmatpush1.msra.mxu0 %v88
    %6152 = vmatprep.subr.mxu0 0.0
    %6153 = vmatpush1.msra.mxu0 0.0
    %6154 = vmatprep.subr.mxu0 0.0
    %6155 = vmatpush1.msra.mxu0 0.0
    %6156 = vmatprep.subr.mxu0 0.0
    %6157 = vmatpush1.msra.mxu0 0.0
    %6158 = vmatprep.subr.mxu0 0.0
    %6159 = vmatpush1.msra.mxu0 0.0
    %6160 = vmatprep.subr.mxu0 0.0
    %6161 = vmatpush1.msra.mxu0 0.0
    %6162 = vmatprep.subr.mxu0 0.0
    %6163 = vmatpush1.msra.mxu0 0.0
    %6164 = vmatprep.subr.mxu0 0.0
    %6165 = vmatpush1.msra.mxu0 0.0
    %6166 = vmatprep.subr.mxu0 0.0
    %6167 = vmatpush1.msra.mxu0 0.0
    %6168 = vmatprep.subr.mxu0 0.0
    %6169 = vmatpush1.msra.mxu0 0.0
    %6170 = vmatprep.subr.mxu0 0.0
    %6171 = vmatpush1.msra.mxu0 0.0
    %6172 = vmatprep.subr.mxu0 0.0
    %6173 = vmatpush1.msra.mxu0 0.0
    %6174 = vmatprep.subr.mxu0 0.0
    %6175 = vmatpush1.msra.mxu0 0.0
    %6176 = vmatprep.subr.mxu0 0.0
    %6177 = vmatpush1.msra.mxu0 0.0
    %6178 = vmatprep.subr.mxu0 0.0
    %6179 = vmatpush1.msra.mxu0 0.0
    %6180 = vmatprep.subr.mxu0 0.0
    %6181 = vmatpush1.msra.mxu0 0.0
    %6182 = vmatprep.subr.mxu0 0.0
    %6183 = vmatpush1.msra.mxu0 0.0
    %6184 = vmatprep.subr.mxu0 0.0
    %6185 = vmatpush1.msra.mxu0 0.0
    %6186 = vmatprep.subr.mxu0 0.0
    %6187 = vmatpush1.msra.mxu0 0.0
    %6188 = vmatprep.subr.mxu0 0.0
    %6189 = vmatpush1.msra.mxu0 0.0
    %6190 = vmatprep.subr.mxu0 0.0
    %6191 = vmatpush1.msra.mxu0 0.0
    %6192 = vmatprep.subr.mxu0 0.0
    %6193 = vmatpush1.msra.mxu0 0.0
    %6194 = vmatprep.subr.mxu0 0.0
    %6195 = vmatpush1.msra.mxu0 0.0
    %6196 = vmatprep.subr.mxu0 0.0
    %6197 = vmatpush1.msra.mxu0 0.0
    %6198 = vmatprep.subr.mxu0 0.0
    %6199 = vmatpush1.msra.mxu0 0.0
    %6200 = vmatprep.mubr.f32.mxu0 0.0
    %6201 = vmatmul.mubr.f32.gmra.mrb[0].mxu0 %v6134
    %v6202 = vpop.f32.mrb[0].mxu0
    %v6203 = vadd.f32 %v1183, %v6202
    %v6204 = vpop.f32.mrb[0].mxu0
    %6205 = vdwg.mxu0
    %v6206 = vxor.u32 %v6203, 2147483648
    %v6207 = vmul.f32 %v6206, 1.442695
    %v6208 = vpow.pop %v6207
    %v6209 = vadd.f32 %v6208, 1.0
    %v6210 = vrcp.pop %v6209
    %v6211 = vmul.f32 1.0, %v6210
    %v6212 = vtanh.pop %v6203
    %v6213 = vmul.f32 %v6211, %v5539
    %6215 = vrot.lane.b32.xlu0 %v6212, 32
    %v6216 = vpop.permute.xlu0 %6215
    %v6218 = vmul.f32 %v6211, %v6216
    %6220 = vrot.lane.b32.xlu0 %v6218, 32
    %v6221 = vpop.permute.xlu0 %6220
    %v6223 = vadd.f32 %v6213, %v6221
    %v6224 = vtanh.pop %v6223
    %6226 = vrot.lane.b32.xlu0 %v6224, 32
    %v6227 = vpop.permute.xlu0 %6226
    %v6229 = vmul.f32 %v6211, %v6227
    %6231 = vrot.lane.b32.xlu0 %v6229, 64
    %v6232 = vpop.permute.xlu0 %6231
    %6234 = vrot.lane.b32.xlu0 %v5650, 96
    %v6235 = vpop.permute.xlu0 %6234
    %v6237 = vsel %vm256, %v6232, %v6235
    %v6239 = vsel %vm461, %v6237, 0
    %6241 = vmatprep.subr.mxu0 0.0
    %6242 = vmatpush1.msra.mxu0 %v90
    %6243 = vmatprep.subr.mxu0 0.0
    %6244 = vmatpush1.msra.mxu0 %v91
    %6245 = vmatprep.subr.mxu0 0.0
    %6246 = vmatpush1.msra.mxu0 %v92
    %6247 = vmatprep.subr.mxu0 0.0
    %6248 = vmatpush1.msra.mxu0 %v93
    %6249 = vmatprep.subr.mxu0 0.0
    %6250 = vmatpush1.msra.mxu0 %v94
    %6251 = vmatprep.subr.mxu0 0.0
    %6252 = vmatpush1.msra.mxu0 %v95
    %6253 = vmatprep.subr.mxu0 0.0
    %6254 = vmatpush1.msra.mxu0 %v96
    %6255 = vmatprep.subr.mxu0 0.0
    %6256 = vmatpush1.msra.mxu0 %v97
    %6257 = vmatprep.subr.mxu0 0.0
    %6258 = vmatpush1.msra.mxu0 0.0
    %6259 = vmatprep.subr.mxu0 0.0
    %6260 = vmatpush1.msra.mxu0 0.0
    %6261 = vmatprep.subr.mxu0 0.0
    %6262 = vmatpush1.msra.mxu0 0.0
    %6263 = vmatprep.subr.mxu0 0.0
    %6264 = vmatpush1.msra.mxu0 0.0
    %6265 = vmatprep.subr.mxu0 0.0
    %6266 = vmatpush1.msra.mxu0 0.0
    %6267 = vmatprep.subr.mxu0 0.0
    %6268 = vmatpush1.msra.mxu0 0.0
    %6269 = vmatprep.subr.mxu0 0.0
    %6270 = vmatpush1.msra.mxu0 0.0
    %6271 = vmatprep.subr.mxu0 0.0
    %6272 = vmatpush1.msra.mxu0 0.0
    %6273 = vmatprep.subr.mxu0 0.0
    %6274 = vmatpush1.msra.mxu0 0.0
    %6275 = vmatprep.subr.mxu0 0.0
    %6276 = vmatpush1.msra.mxu0 0.0
    %6277 = vmatprep.subr.mxu0 0.0
    %6278 = vmatpush1.msra.mxu0 0.0
    %6279 = vmatprep.subr.mxu0 0.0
    %6280 = vmatpush1.msra.mxu0 0.0
    %6281 = vmatprep.subr.mxu0 0.0
    %6282 = vmatpush1.msra.mxu0 0.0
    %6283 = vmatprep.subr.mxu0 0.0
    %6284 = vmatpush1.msra.mxu0 0.0
    %6285 = vmatprep.subr.mxu0 0.0
    %6286 = vmatpush1.msra.mxu0 0.0
    %6287 = vmatprep.subr.mxu0 0.0
    %6288 = vmatpush1.msra.mxu0 0.0
    %6289 = vmatprep.subr.mxu0 0.0
    %6290 = vmatpush1.msra.mxu0 0.0
    %6291 = vmatprep.subr.mxu0 0.0
    %6292 = vmatpush1.msra.mxu0 0.0
    %6293 = vmatprep.subr.mxu0 0.0
    %6294 = vmatpush1.msra.mxu0 0.0
    %6295 = vmatprep.subr.mxu0 0.0
    %6296 = vmatpush1.msra.mxu0 0.0
    %6297 = vmatprep.subr.mxu0 0.0
    %6298 = vmatpush1.msra.mxu0 0.0
    %6299 = vmatprep.subr.mxu0 0.0
    %6300 = vmatpush1.msra.mxu0 0.0
    %6301 = vmatprep.subr.mxu0 0.0
    %6302 = vmatpush1.msra.mxu0 0.0
    %6303 = vmatprep.subr.mxu0 0.0
    %6304 = vmatpush1.msra.mxu0 0.0
    %6305 = vmatprep.mubr.f32.mxu0 0.0
    %6306 = vmatmul.mubr.f32.gmra.mrb[0].mxu0 %v6239
    %v6307 = vpop.f32.mrb[0].mxu0
    %v6308 = vadd.f32 %v1702, %v6307
    %v6309 = vpop.f32.mrb[0].mxu0
    %6310 = vdwg.mxu0
    %v6311 = vxor.u32 %v6308, 2147483648
    %v6312 = vmul.f32 %v6311, 1.442695
    %v6313 = vpow.pop %v6312
    %v6314 = vadd.f32 %v6313, 1.0
    %v6315 = vrcp.pop %v6314
    %v6316 = vmul.f32 1.0, %v6315
    %v6317 = vtanh.pop %v6308
    %v6318 = vmul.f32 %v6316, %v5644
    %6320 = vrot.lane.b32.xlu0 %v6317, 32
    %v6321 = vpop.permute.xlu0 %6320
    %v6323 = vmul.f32 %v6316, %v6321
    %6325 = vrot.lane.b32.xlu0 %v6323, 32
    %v6326 = vpop.permute.xlu0 %6325
    %v6328 = vadd.f32 %v6318, %v6326
    %v6329 = vtanh.pop %v6328
    %6331 = vrot.lane.b32.xlu0 %v6329, 32
    %v6332 = vpop.permute.xlu0 %6331
    %v6334 = vmul.f32 %v6316, %v6332
    %6336 = vrot.lane.b32.xlu0 %v6334, 64
    %v6337 = vpop.permute.xlu0 %6336
    %v6338 = vsel %vm256, %v6337, 0
    %6340 = vmatprep.subr.mxu0 0.0
    %6341 = vmatpush1.msra.mxu0 %v4410
    %6342 = vmatprep.subr.mxu0 0.0
    %6343 = vmatpush1.msra.mxu0 %v4411
    %6344 = vmatprep.subr.mxu0 0.0
    %6345 = vmatpush1.msra.mxu0 %v4412
    %6346 = vmatprep.subr.mxu0 0.0
    %6347 = vmatpush1.msra.mxu0 %v4413
    %6348 = vmatprep.subr.mxu0 0.0
    %6349 = vmatpush1.msra.mxu0 0.0
    %6350 = vmatprep.subr.mxu0 0.0
    %6351 = vmatpush1.msra.mxu0 0.0
    %6352 = vmatprep.subr.mxu0 0.0
    %6353 = vmatpush1.msra.mxu0 0.0
    %6354 = vmatprep.subr.mxu0 0.0
    %6355 = vmatpush1.msra.mxu0 0.0
    %6356 = vmatprep.subr.mxu0 0.0
    %6357 = vmatpush1.msra.mxu0 0.0
    %6358 = vmatprep.subr.mxu0 0.0
    %6359 = vmatpush1.msra.mxu0 0.0
    %6360 = vmatprep.subr.mxu0 0.0
    %6361 = vmatpush1.msra.mxu0 0.0
    %6362 = vmatprep.subr.mxu0 0.0
    %6363 = vmatpush1.msra.mxu0 0.0
    %6364 = vmatprep.subr.mxu0 0.0
    %6365 = vmatpush1.msra.mxu0 0.0
    %6366 = vmatprep.subr.mxu0 0.0
    %6367 = vmatpush1.msra.mxu0 0.0
    %6368 = vmatprep.subr.mxu0 0.0
    %6369 = vmatpush1.msra.mxu0 0.0
    %6370 = vmatprep.subr.mxu0 0.0
    %6371 = vmatpush1.msra.mxu0 0.0
    %6372 = vmatprep.subr.mxu0 0.0
    %6373 = vmatpush1.msra.mxu0 0.0
    %6374 = vmatprep.subr.mxu0 0.0
    %6375 = vmatpush1.msra.mxu0 0.0
    %6376 = vmatprep.subr.mxu0 0.0
    %6377 = vmatpush1.msra.mxu0 0.0
    %6378 = vmatprep.subr.mxu0 0.0
    %6379 = vmatpush1.msra.mxu0 0.0
    %6380 = vmatprep.subr.mxu0 0.0
    %6381 = vmatpush1.msra.mxu0 0.0
    %6382 = vmatprep.subr.mxu0 0.0
    %6383 = vmatpush1.msra.mxu0 0.0
    %6384 = vmatprep.subr.mxu0 0.0
    %6385 = vmatpush1.msra.mxu0 0.0
    %6386 = vmatprep.subr.mxu0 0.0
    %6387 = vmatpush1.msra.mxu0 0.0
    %6388 = vmatprep.subr.mxu0 0.0
    %6389 = vmatpush1.msra.mxu0 0.0
    %6390 = vmatprep.subr.mxu0 0.0
    %6391 = vmatpush1.msra.mxu0 0.0
    %6392 = vmatprep.subr.mxu0 0.0
    %6393 = vmatpush1.msra.mxu0 0.0
    %6394 = vmatprep.subr.mxu0 0.0
    %6395 = vmatpush1.msra.mxu0 0.0
    %6396 = vmatprep.subr.mxu0 0.0
    %6397 = vmatpush1.msra.mxu0 0.0
    %6398 = vmatprep.subr.mxu0 0.0
    %6399 = vmatpush1.msra.mxu0 0.0
    %6400 = vmatprep.subr.mxu0 0.0
    %6401 = vmatpush1.msra.mxu0 0.0
    %6402 = vmatprep.subr.mxu0 0.0
    %6403 = vmatpush1.msra.mxu0 0.0
    %6404 = vmatprep.mubr.f32.mxu0 0.0
    %6405 = vmatmul.mubr.f32.gmra.mrb[0].mxu0 %v6338
    %v6406 = vpop.f32.mrb[0].mxu0
    %v6407 = vadd.f32 %v4948, %v6406
    %v6408 = vpop.f32.mrb[0].mxu0
    %6409 = vdwg.mxu0
    %v6410 = vmax.f32 %v6407, 0.0
    %v6412 = vsel %vm256, %v6410, 0
    %6414 = vmatprep.subr.mxu0 0.0
    %6415 = vmatpush1.msra.mxu0 %v4415
    %6416 = vmatprep.subr.mxu0 0.0
    %6417 = vmatpush1.msra.mxu0 %v4416
    %6418 = vmatprep.subr.mxu0 0.0
    %6419 = vmatpush1.msra.mxu0 %v4417
    %6420 = vmatprep.subr.mxu0 0.0
    %6421 = vmatpush1.msra.mxu0 %v4418
    %6422 = vmatprep.subr.mxu0 0.0
    %6423 = vmatpush1.msra.mxu0 0.0
    %6424 = vmatprep.subr.mxu0 0.0
    %6425 = vmatpush1.msra.mxu0 0.0
    %6426 = vmatprep.subr.mxu0 0.0
    %6427 = vmatpush1.msra.mxu0 0.0
    %6428 = vmatprep.subr.mxu0 0.0
    %6429 = vmatpush1.msra.mxu0 0.0
    %6430 = vmatprep.subr.mxu0 0.0
    %6431 = vmatpush1.msra.mxu0 0.0
    %6432 = vmatprep.subr.mxu0 0.0
    %6433 = vmatpush1.msra.mxu0 0.0
    %6434 = vmatprep.subr.mxu0 0.0
    %6435 = vmatpush1.msra.mxu0 0.0
    %6436 = vmatprep.subr.mxu0 0.0
    %6437 = vmatpush1.msra.mxu0 0.0
    %6438 = vmatprep.subr.mxu0 0.0
    %6439 = vmatpush1.msra.mxu0 0.0
    %6440 = vmatprep.subr.mxu0 0.0
    %6441 = vmatpush1.msra.mxu0 0.0
    %6442 = vmatprep.subr.mxu0 0.0
    %6443 = vmatpush1.msra.mxu0 0.0
    %6444 = vmatprep.subr.mxu0 0.0
    %6445 = vmatpush1.msra.mxu0 0.0
    %6446 = vmatprep.subr.mxu0 0.0
    %6447 = vmatpush1.msra.mxu0 0.0
    %6448 = vmatprep.subr.mxu0 0.0
    %6449 = vmatpush1.msra.mxu0 0.0
    %6450 = vmatprep.subr.mxu0 0.0
    %6451 = vmatpush1.msra.mxu0 0.0
    %6452 = vmatprep.subr.mxu0 0.0
    %6453 = vmatpush1.msra.mxu0 0.0
    %6454 = vmatprep.subr.mxu0 0.0
    %6455 = vmatpush1.msra.mxu0 0.0
    %6456 = vmatprep.subr.mxu0 0.0
    %6457 = vmatpush1.msra.mxu0 0.0
    %6458 = vmatprep.subr.mxu0 0.0
    %6459 = vmatpush1.msra.mxu0 0.0
    %6460 = vmatprep.subr.mxu0 0.0
    %6461 = vmatpush1.msra.mxu0 0.0
    %6462 = vmatprep.subr.mxu0 0.0
    %6463 = vmatpush1.msra.mxu0 0.0
    %6464 = vmatprep.subr.mxu0 0.0
    %6465 = vmatpush1.msra.mxu0 0.0
    %6466 = vmatprep.subr.mxu0 0.0
    %6467 = vmatpush1.msra.mxu0 0.0
    %6468 = vmatprep.subr.mxu0 0.0
    %6469 = vmatpush1.msra.mxu0 0.0
    %6470 = vmatprep.subr.mxu0 0.0
    %6471 = vmatpush1.msra.mxu0 0.0
    %6472 = vmatprep.subr.mxu0 0.0
    %6473 = vmatpush1.msra.mxu0 0.0
    %6474 = vmatprep.subr.mxu0 0.0
    %6475 = vmatpush1.msra.mxu0 0.0
    %6476 = vmatprep.subr.mxu0 0.0
    %6477 = vmatpush1.msra.mxu0 0.0
    %6478 = vmatprep.mubr.f32.mxu0 0.0
    %6479 = vmatmul.mubr.f32.gmra.mrb[0].mxu0 %v6412
    %v6480 = vpop.f32.mrb[0].mxu0
    %v6481 = vadd.f32 %v5030, %v6480
    %v6482 = vpop.f32.mrb[0].mxu0
    %6483 = vdwg.mxu0
    %v6484 = vmax.f32 %v6481, 0.0
    %v6485 = vmul.f32 %v6484, %v5110
    %v6486 = vsel %vm256, %v6485, 0.0
    %6487 = vadd.xlane.f32.xlu0 %v6486
    %v6488 = vpop.xlane.xlu0 %6487
    %v6489 = vadd.f32 %v6488, %v5120
    %vm6490 = vcmp.eq.s32.totalorder %v4408, 2
    %6492 = vset.pattern.permute.xlu0 0
    %6493 = vperm.xlu0 %6492, %v6489
    %v6494 = vpop.permute.xlu0 %6493
    %v6496 = vsel %vm6490, %v6494, %v5812
    %vm6497 = vcmask 23552
    %6498 = vst.msk [vmem:[%s11] sm:$0xff] %vm6497, %v6496
    // Predicated region
    $region50: #{junction_traffic_lstm.1} parent=1 // pred_check
      _
    $region51: #{junction_traffic_lstm.1} parent=1 // pred_check_branch
      %6500 = sbr.rel (0) target = $region53
    $region52: #{junction_traffic_lstm.1} parent=1 // pred_region
      _
    $region53: #{junction_traffic_lstm.1} parent=1 // pred_fallthru
      _
    // Predicated region
    $region54: #{junction_traffic_lstm.1} parent=1 // pred_check
      _
    $region55: #{junction_traffic_lstm.1} parent=1 // pred_check_branch
      %6502 = sbr.rel (0) target = $region57
    $region56: #{junction_traffic_lstm.1} parent=1 // pred_region
      _
    $region57: #{junction_traffic_lstm.1} parent=1 // pred_fallthru
      _
    %6503 = vsyncpa [#allocation4], 1

</llo_original>
